<compile_context>
chip_gen: v7x
topology: tpu7x:2x2x1
jax: 0.10.0
libtpu: 0.0.40
codegen_flags: <defaults>
</compile_context>

<pallas_src>
import functools

import jax
import jax.numpy as jnp
from jax.experimental import pallas as pl
from jax.experimental.pallas import tpu as pltpu

VMEM = pltpu.MemorySpace.VMEM


def _pick_row_tile(n, target=1024):
    for t in (target, 512, 256, 128, 64, 32, 16, 8):
        if t <= n and n % t == 0:
            return t
    return n


# --------------------------------------------------------------------------
# Kernel 1: apply_mask_to_features (ROI/RONI split) + 1x1 conv + folded BN
#           + PReLU, algebraically rewritten as a single accumulation:
#             y = feat @ W_roni' + (feat*m) @ (W_roi' - W_roni') + shift'
# --------------------------------------------------------------------------
def _mask_proj_kernel(feat_ref, mask_ref, w_roni_ref, w_diff_ref,
                      shift_ref, alpha_ref, out_ref):
    feat = feat_ref[...]                               # (TILE, C)  bf16
    roi = feat * mask_ref[...]                         # mask is 0/1 -> exact
    y = jnp.dot(feat, w_roni_ref[...], preferred_element_type=jnp.float32)
    y = y + jnp.dot(roi, w_diff_ref[...], preferred_element_type=jnp.float32)
    y = y + shift_ref[...]                             # conv bias + BN folded
    y = jnp.where(y > 0, y, y * alpha_ref[...])        # PReLU
    out_ref[...] = y.astype(out_ref.dtype)


def mask_proj(feat2d, mask2d, w_roni, w_diff, shift, alpha):
    n, c = feat2d.shape
    d = w_roni.shape[1]
    tile = _pick_row_tile(n)
    return pl.pallas_call(
        _mask_proj_kernel,
        out_shape=jax.ShapeDtypeStruct((n, d), jnp.bfloat16),
        grid=(n // tile,),
        in_specs=[
            pl.BlockSpec((tile, c), lambda i: (i, 0)),
            pl.BlockSpec((tile, 1), lambda i: (i, 0)),
            pl.BlockSpec((c, d), lambda i: (0, 0)),
            pl.BlockSpec((c, d), lambda i: (0, 0)),
            pl.BlockSpec((1, d), lambda i: (0, 0)),
            pl.BlockSpec((1, d), lambda i: (0, 0)),
        ],
        out_specs=pl.BlockSpec((tile, d), lambda i: (i, 0)),
        compiler_params=pltpu.CompilerParams(
            dimension_semantics=("parallel",)),
    )(feat2d, mask2d, w_roni, w_diff, shift, alpha)


# --------------------------------------------------------------------------
# Kernel 2/3: fused 3x3 conv (9 shifted matmuls on a haloed NHWC tile)
#             + folded BN + PReLU + MaxPool2d(2, 2), gridded over batch.
# --------------------------------------------------------------------------
def _conv_pool_kernel(x_ref, w_ref, shift_ref, alpha_ref, out_ref,
                      *, hh, ww, cin, cout):
    xp = x_ref[0]                                      # (hh+2, ww+2, cin) bf16
    acc = jnp.zeros((hh * ww, cout), jnp.float32)
    for dy in range(3):                                # static unroll: 9 taps
        for dx in range(3):
            win = xp[dy:dy + hh, dx:dx + ww, :].reshape(hh * ww, cin)
            acc = acc + jnp.dot(win, w_ref[dy * 3 + dx],
                                preferred_element_type=jnp.float32)
    y = acc + shift_ref[...]                           # conv bias + BN folded
    y = jnp.where(y > 0, y, y * alpha_ref[...])        # PReLU
    # MaxPool2d(2, 2): pool columns, then rows.
    y = jnp.max(y.reshape(hh, ww // 2, 2, cout), axis=2)
    y = jnp.max(y.reshape(hh // 2, 2, ww // 2, cout), axis=1)
    out_ref[0] = y.astype(out_ref.dtype)


def conv3x3_bn_prelu_pool(x, w_taps, shift, alpha):
    b, hh, ww, cin = x.shape
    cout = w_taps.shape[2]
    assert hh % 2 == 0 and ww % 2 == 0, "spatial dims must be even for 2x2 pool"
    xp = jnp.pad(x, ((0, 0), (1, 1), (1, 1), (0, 0)))  # SAME padding (glue)
    kernel = functools.partial(_conv_pool_kernel, hh=hh, ww=ww,
                               cin=cin, cout=cout)
    return pl.pallas_call(
        kernel,
        out_shape=jax.ShapeDtypeStruct((b, hh // 2, ww // 2, cout),
                                       jnp.bfloat16),
        grid=(b,),
        in_specs=[
            pl.BlockSpec((1, hh + 2, ww + 2, cin), lambda i: (i, 0, 0, 0)),
            pl.BlockSpec((9, cin, cout), lambda i: (0, 0, 0)),
            pl.BlockSpec((1, cout), lambda i: (0, 0)),
            pl.BlockSpec((1, cout), lambda i: (0, 0)),
        ],
        out_specs=pl.BlockSpec((1, hh // 2, ww // 2, cout),
                               lambda i: (i, 0, 0, 0)),
        compiler_params=pltpu.CompilerParams(
            dimension_semantics=("parallel",)),
    )(xp, w_taps, shift, alpha)


# --------------------------------------------------------------------------
# Kernel 4: adaptive_avg_pool2d((1,1)) + classifier head
#           Linear -> LayerNorm -> PReLU -> Linear   (Dropout = identity)
# --------------------------------------------------------------------------
def _head_kernel(x_ref, fw1_ref, fb1_ref, lng_ref, lnb_ref, alpha_ref,
                 fw2_ref, fb2_ref, out_ref):
    x = x_ref[...].astype(jnp.float32)                 # (B, S, D1)
    pooled = jnp.mean(x, axis=1)                       # global avg pool (B, D1)
    h = jnp.dot(pooled, fw1_ref[...],
                preferred_element_type=jnp.float32) + fb1_ref[...]
    mu = jnp.mean(h, axis=-1, keepdims=True)
    var = jnp.mean((h - mu) ** 2, axis=-1, keepdims=True)
    h = (h - mu) * jax.lax.rsqrt(var + 1e-5)           # LayerNorm(64)
    h = h * lng_ref[...] + lnb_ref[...]
    h = jnp.where(h > 0, h, h * alpha_ref[...])        # PReLU
    out_ref[...] = jnp.dot(h, fw2_ref[...],
                           preferred_element_type=jnp.float32) + fb2_ref[...]


def head(x, fw1, fb1, lng, lnb, alpha, fw2, fb2):
    b, nc = x.shape[0], fw2.shape[1]
    return pl.pallas_call(
        _head_kernel,
        out_shape=jax.ShapeDtypeStruct((b, nc), jnp.float32),
        in_specs=[pl.BlockSpec(memory_space=VMEM)] * 8,
        out_specs=pl.BlockSpec(memory_space=VMEM),
    )(x, fw1, fb1, lng, lnb, alpha, fw2, fb2)


# --------------------------------------------------------------------------
# Glue (plain JAX): layout plumbing only (mask resize, halo pad, reshapes)
# --------------------------------------------------------------------------
def nearest_resize_mask(mask, out_h, out_w):
    # mask: (B, 1, Hm, Wm) -> (B, out_h, out_w); matches F.interpolate 'nearest'
    _, _, hm, wm = mask.shape
    idx_h = jnp.floor(jnp.arange(out_h) * (hm / out_h)).astype(jnp.int32)
    idx_w = jnp.floor(jnp.arange(out_w) * (wm / out_w)).astype(jnp.int32)
    m = mask[:, 0, :, :]
    return m[:, idx_h, :][:, :, idx_w]


# --------------------------------------------------------------------------
# Deterministic parameter construction (shapes follow SAM2Classifier.__init__
# with in_c embedding channels, hidden_dims=hidden, fuse_features=False).
# Conv bias + eval-mode BatchNorm are folded into the matmul weights.
# --------------------------------------------------------------------------
def make_params(key, in_c, hidden, num_classes, bn_eps=1e-5):
    d0, d1 = hidden, hidden // 2
    start_c = 2 * in_c
    ks = list(jax.random.split(key, 24))

    def nrm(k, shape, scale=0.1):
        return (scale * jax.random.normal(k, shape)).astype(jnp.float32)

    def bn_fold(kg, kb, km, kv, c):
        gamma = 1.0 + nrm(kg, (c,))
        beta = nrm(kb, (c,))
        rmean = nrm(km, (c,))
        rvar = jnp.abs(nrm(kv, (c,))) + 0.5
        scale = gamma * jax.lax.rsqrt(rvar + bn_eps)
        shift = beta - rmean * scale
        return scale, shift

    p = {}
    # Conv2d(2C, d0, kernel_size=1) -- torch weight layout (Cout, Cin, 1, 1)
    w1 = nrm(ks[0], (d0, start_c, 1, 1))
    b1 = nrm(ks[1], (d0,))
    s1, t1 = bn_fold(ks[2], ks[3], ks[4], ks[5], d0)
    w1m = w1[:, :, 0, 0].T * s1[None, :]                    # (2C, d0), BN folded
    w_roi, w_roni = w1m[:in_c], w1m[in_c:]
    p['w1_roni'] = w_roni.astype(jnp.bfloat16)
    p['w1_diff'] = (w_roi - w_roni).astype(jnp.bfloat16)
    p['shift1'] = (b1 * s1 + t1).reshape(1, d0)
    p['a1'] = jnp.full((1, d0), 0.25, jnp.float32)          # nn.PReLU() alpha

    def conv3x3_pack(kw, kb, kbn, cin, cout):
        wt = nrm(kw, (cout, cin, 3, 3))                     # torch layout
        bias = nrm(kb, (cout,))
        s, t = bn_fold(*kbn, cout)
        # taps: (9, cin, cout), tap index = dy*3 + dx (cross-correlation)
        taps = jnp.transpose(wt, (2, 3, 1, 0)).reshape(9, cin, cout)
        taps = taps * s[None, None, :]                      # BN scale folded
        shift = (bias * s + t).reshape(1, cout)
        return taps.astype(jnp.bfloat16), shift

    p['w2'], p['shift2'] = conv3x3_pack(
        ks[6], ks[7], (ks[8], ks[9], ks[10], ks[11]), d0, d0)
    p['a2'] = jnp.full((1, d0), 0.25, jnp.float32)
    p['w3'], p['shift3'] = conv3x3_pack(
        ks[12], ks[13], (ks[14], ks[15], ks[16], ks[17]), d0, d1)
    p['a3'] = jnp.full((1, d1), 0.25, jnp.float32)

    # classifier: Linear(d1,64) -> LayerNorm(64) -> PReLU -> Dropout -> Linear
    fc1_w, fc1_b = nrm(ks[18], (64, d1)), nrm(ks[19], (64,))
    p['fw1'], p['fb1'] = fc1_w.T, fc1_b.reshape(1, 64)
    p['lng'] = (1.0 + nrm(ks[20], (64,))).reshape(1, 64)
    p['lnb'] = nrm(ks[21], (64,)).reshape(1, 64)
    p['a4'] = jnp.full((1, 64), 0.25, jnp.float32)
    fc2_w, fc2_b = nrm(ks[22], (num_classes, 64)), nrm(ks[23], (num_classes,))
    p['fw2'], p['fb2'] = fc2_w.T, fc2_b.reshape(1, num_classes)
    return p


# --------------------------------------------------------------------------
# Full forward (post SAM2 backbone): apply_mask_to_features -> projection ->
# adaptive_avg_pool2d -> classifier
# --------------------------------------------------------------------------
def sam2_classifier_forward(params, image_embed, mask):
    # image_embed: (B, C, Hf, Wf) NCHW (stand-in for backbone._features['image_embed'])
    # mask:        (B, 1, Hm, Wm) binary
    b, c, hf, wf = image_embed.shape
    assert hf % 4 == 0 and wf % 4 == 0, "two 2x2 max-pools need H, W % 4 == 0"

    feat = jnp.transpose(image_embed, (0, 2, 3, 1)).astype(jnp.bfloat16)  # NHWC
    m = nearest_resize_mask(mask, hf, wf).astype(jnp.bfloat16)            # (B,Hf,Wf)

    feat2d = feat.reshape(b * hf * wf, c)
    m2d = m.reshape(b * hf * wf, 1)

    # block 1: mask split + conv1x1 + BN + PReLU      (Dropout2d = identity)
    d0 = params['w1_roni'].shape[1]
    x = mask_proj(feat2d, m2d, params['w1_roni'], params['w1_diff'],
                  params['shift1'], params['a1'])
    x = x.reshape(b, hf, wf, d0)

    # block 2: conv3x3 + BN + PReLU + MaxPool2d(2,2)  (Dropout2d = identity)
    x = conv3x3_bn_prelu_pool(x, params['w2'], params['shift2'], params['a2'])

    # block 3: conv3x3 + BN + PReLU + MaxPool2d(2,2)  (Dropout2d = identity)
    x = conv3x3_bn_prelu_pool(x, params['w3'], params['shift3'], params['a3'])

    # head: adaptive_avg_pool2d((1,1)) + classifier   (Dropout = identity)
    d1 = params['w3'].shape[2]
    hq, wq = hf // 4, wf // 4
    x = x.reshape(b, hq * wq, d1)
    logits = head(x, params['fw1'], params['fb1'], params['lng'],
                  params['lnb'], params['a4'], params['fw2'], params['fb2'])
    return logits


if __name__ == "__main__":
    key = jax.random.PRNGKey(0)
    k_feat, k_mask, k_par = jax.random.split(key, 3)

    B, C, HF, WF = 2, 4, 16, 16          # synthetic SAM2 image_embed (small)
    HM, WM = 32, 32                      # original mask resolution
    HIDDEN, NUM_CLASSES = 32, 3

    image_embed = jax.random.normal(k_feat, (B, C, HF, WF), jnp.float32)
    mask = (jax.random.uniform(k_mask, (B, 1, HM, WM)) > 0.5).astype(jnp.float32)
    params = make_params(k_par, in_c=C, hidden=HIDDEN, num_classes=NUM_CLASSES)

    fwd = jax.jit(functools.partial(sam2_classifier_forward, params))
    logits = fwd(image_embed, mask)
    jax.block_until_ready(logits)
    assert logits.shape == (B, NUM_CLASSES)
    assert bool(jnp.all(jnp.isfinite(logits)))
    print("KERNEL_OK")
</pallas_src>

<mosaic_0001>
module attributes {stable_mosaic.version = 11 : i64} {
  func.func @_mask_proj_kernel(%arg0: i32, %arg1: memref<512x4xbf16, #tpu.memory_space<vmem>>, %arg2: memref<512x1xbf16, #tpu.memory_space<vmem>>, %arg3: memref<4x32xbf16, #tpu.memory_space<vmem>>, %arg4: memref<4x32xbf16, #tpu.memory_space<vmem>>, %arg5: memref<1x32xf32, #tpu.memory_space<vmem>>, %arg6: memref<1x32xf32, #tpu.memory_space<vmem>>, %arg7: memref<512x32xbf16, #tpu.memory_space<vmem>>) attributes {dimension_semantics = [#tpu.dimension_semantics<parallel>], iteration_bounds = array<i64: 1>, scalar_prefetch = 0 : i64, scratch_operands = 0 : i64, tpu.core_type = #tpu.core_type<tc>, window_params = [{transform_indices = @transform_0, window_bounds = array<i64: 512, 4>}, {transform_indices = @transform_1, window_bounds = array<i64: 512, 1>}, {pipeline_mode = #tpu.pipeline_mode<synchronous>, transform_indices = @transform_2, window_bounds = array<i64: 4, 32>}, {pipeline_mode = #tpu.pipeline_mode<synchronous>, transform_indices = @transform_3, window_bounds = array<i64: 4, 32>}, {pipeline_mode = #tpu.pipeline_mode<synchronous>, transform_indices = @transform_4, window_bounds = array<i64: 1, 32>}, {pipeline_mode = #tpu.pipeline_mode<synchronous>, transform_indices = @transform_5, window_bounds = array<i64: 1, 32>}, {transform_indices = @transform_6, window_bounds = array<i64: 512, 32>}]} {
    %c0 = arith.constant 0 : index
    %c0_0 = arith.constant 0 : index
    %0 = vector.load %arg1[%c0, %c0_0] : memref<512x4xbf16, #tpu.memory_space<vmem>>, vector<512x4xbf16>
    %c0_1 = arith.constant 0 : index
    %c0_2 = arith.constant 0 : index
    %1 = vector.load %arg2[%c0_1, %c0_2] : memref<512x1xbf16, #tpu.memory_space<vmem>>, vector<512x1xbf16>
    %2 = vector.broadcast %1 : vector<512x1xbf16> to vector<512x4xbf16>
    %3 = arith.mulf %0, %2 : vector<512x4xbf16>
    %c0_3 = arith.constant 0 : index
    %c0_4 = arith.constant 0 : index
    %4 = vector.load %arg3[%c0_3, %c0_4] : memref<4x32xbf16, #tpu.memory_space<vmem>>, vector<4x32xbf16>
    %cst = arith.constant dense<0.000000e+00> : vector<512x32xf32>
    %5 = tpu.matmul %0, %4, %cst {dimension_numbers = #tpu.dot_dimension_numbers<[1], [0], [0], [1], [0, 0, 1, 1], [], []>} : vector<512x4xbf16>, vector<4x32xbf16>, vector<512x32xf32> -> vector<512x32xf32>
    %c0_5 = arith.constant 0 : index
    %c0_6 = arith.constant 0 : index
    %6 = vector.load %arg4[%c0_5, %c0_6] : memref<4x32xbf16, #tpu.memory_space<vmem>>, vector<4x32xbf16>
    %cst_7 = arith.constant dense<0.000000e+00> : vector<512x32xf32>
    %7 = tpu.matmul %3, %6, %cst_7 {dimension_numbers = #tpu.dot_dimension_numbers<[1], [0], [0], [1], [0, 0, 1, 1], [], []>} : vector<512x4xbf16>, vector<4x32xbf16>, vector<512x32xf32> -> vector<512x32xf32>
    %8 = arith.addf %5, %7 : vector<512x32xf32>
    %c0_8 = arith.constant 0 : index
    %c0_9 = arith.constant 0 : index
    %9 = vector.load %arg5[%c0_8, %c0_9] : memref<1x32xf32, #tpu.memory_space<vmem>>, vector<1x32xf32>
    %10 = vector.broadcast %9 : vector<1x32xf32> to vector<512x32xf32>
    %11 = arith.addf %8, %10 : vector<512x32xf32>
    %cst_10 = arith.constant 0.000000e+00 : f32
    %12 = vector.broadcast %cst_10 : f32 to vector<512x32xf32>
    %13 = arith.cmpf ogt, %11, %12 : vector<512x32xf32>
    %c0_11 = arith.constant 0 : index
    %c0_12 = arith.constant 0 : index
    %14 = vector.load %arg6[%c0_11, %c0_12] : memref<1x32xf32, #tpu.memory_space<vmem>>, vector<1x32xf32>
    %15 = vector.broadcast %14 : vector<1x32xf32> to vector<512x32xf32>
    %16 = arith.mulf %11, %15 : vector<512x32xf32>
    %17 = arith.select %13, %11, %16 : vector<512x32xi1>, vector<512x32xf32>
    %18 = arith.truncf %17 : vector<512x32xf32> to vector<512x32xbf16>
    %c0_13 = arith.constant 0 : index
    %c0_14 = arith.constant 0 : index
    %19 = vector.load %arg7[%c0_13, %c0_14] : memref<512x32xbf16, #tpu.memory_space<vmem>>, vector<512x32xbf16>
    tpu.vector_store %arg7[%c0_13, %c0_14], %18 {strides = array<i32>} : memref<512x32xbf16, #tpu.memory_space<vmem>>, vector<512x32xbf16>,
    return
  }
  func.func @transform_0(%arg0: i32) -> (i32, i32) {
    %c0_i32 = arith.constant 0 : i32
    %c0_i32_0 = arith.constant 0 : i32
    return %arg0, %c0_i32 : i32, i32
  }
  func.func @transform_1(%arg0: i32) -> (i32, i32) {
    %c0_i32 = arith.constant 0 : i32
    %c0_i32_0 = arith.constant 0 : i32
    return %arg0, %c0_i32 : i32, i32
  }
  func.func @transform_2(%arg0: i32) -> (i32, i32) {
    %c0_i32 = arith.constant 0 : i32
    %c0_i32_0 = arith.constant 0 : i32
    %c0_i32_1 = arith.constant 0 : i32
    return %c0_i32, %c0_i32_0 : i32, i32
  }
  func.func @transform_3(%arg0: i32) -> (i32, i32) {
    %c0_i32 = arith.constant 0 : i32
    %c0_i32_0 = arith.constant 0 : i32
    %c0_i32_1 = arith.constant 0 : i32
    return %c0_i32, %c0_i32_0 : i32, i32
  }
  func.func @transform_4(%arg0: i32) -> (i32, i32) {
    %c0_i32 = arith.constant 0 : i32
    %c0_i32_0 = arith.constant 0 : i32
    %c0_i32_1 = arith.constant 0 : i32
    return %c0_i32, %c0_i32_0 : i32, i32
  }
  func.func @transform_5(%arg0: i32) -> (i32, i32) {
    %c0_i32 = arith.constant 0 : i32
    %c0_i32_0 = arith.constant 0 : i32
    %c0_i32_1 = arith.constant 0 : i32
    return %c0_i32, %c0_i32_0 : i32, i32
  }
  func.func @transform_6(%arg0: i32) -> (i32, i32) {
    %c0_i32 = arith.constant 0 : i32
    %c0_i32_0 = arith.constant 0 : i32
    return %arg0, %c0_i32 : i32, i32
  }
}

module attributes {stable_mosaic.version = 11 : i64} {
  func.func @_conv_pool_kernel(%arg0: i32, %arg1: memref<1x18x18x32xbf16, #tpu.memory_space<vmem>>, %arg2: memref<9x32x32xbf16, #tpu.memory_space<vmem>>, %arg3: memref<1x32xf32, #tpu.memory_space<vmem>>, %arg4: memref<1x32xf32, #tpu.memory_space<vmem>>, %arg5: memref<1x8x8x32xbf16, #tpu.memory_space<vmem>>) attributes {dimension_semantics = [#tpu.dimension_semantics<parallel>], iteration_bounds = array<i64: 2>, scalar_prefetch = 0 : i64, scratch_operands = 0 : i64, tpu.core_type = #tpu.core_type<tc>, window_params = [{transform_indices = @transform_0, window_bounds = array<i64: 1, 18, 18, 32>}, {pipeline_mode = #tpu.pipeline_mode<synchronous>, transform_indices = @transform_1, window_bounds = array<i64: 9, 32, 32>}, {pipeline_mode = #tpu.pipeline_mode<synchronous>, transform_indices = @transform_2, window_bounds = array<i64: 1, 32>}, {pipeline_mode = #tpu.pipeline_mode<synchronous>, transform_indices = @transform_3, window_bounds = array<i64: 1, 32>}, {transform_indices = @transform_4, window_bounds = array<i64: 1, 8, 8, 32>}]} {
    %c0 = arith.constant 0 : index
    %c0_0 = arith.constant 0 : index
    %c0_1 = arith.constant 0 : index
    %c0_2 = arith.constant 0 : index
    %0 = vector.load %arg1[%c0, %c0_0, %c0_1, %c0_2] : memref<1x18x18x32xbf16, #tpu.memory_space<vmem>>, vector<1x18x18x32xbf16>
    %1 = vector.shape_cast %0 : vector<1x18x18x32xbf16> to vector<18x18x32xbf16>
    %cst = arith.constant 0.000000e+00 : f32
    %2 = vector.broadcast %cst : f32 to vector<256x32xf32>
    %3 = vector.extract_strided_slice %1 {offsets = [0, 0, 0], sizes = [16, 16, 32], strides = [1, 1, 1]} : vector<18x18x32xbf16> to vector<16x16x32xbf16>
    %4 = vector.shape_cast %3 : vector<16x16x32xbf16> to vector<256x32xbf16>
    %c0_3 = arith.constant 0 : index
    %c0_4 = arith.constant 0 : index
    %c0_5 = arith.constant 0 : index
    %5 = vector.load %arg2[%c0_3, %c0_4, %c0_5] : memref<9x32x32xbf16, #tpu.memory_space<vmem>>, vector<1x32x32xbf16>
    %6 = vector.shape_cast %5 : vector<1x32x32xbf16> to vector<32x32xbf16>
    %cst_6 = arith.constant dense<0.000000e+00> : vector<256x32xf32>
    %7 = tpu.matmul %4, %6, %cst_6 {dimension_numbers = #tpu.dot_dimension_numbers<[1], [0], [0], [1], [0, 0, 1, 1], [], []>} : vector<256x32xbf16>, vector<32x32xbf16>, vector<256x32xf32> -> vector<256x32xf32>
    %8 = arith.addf %2, %7 : vector<256x32xf32>
    %9 = vector.extract_strided_slice %1 {offsets = [0, 1, 0], sizes = [16, 16, 32], strides = [1, 1, 1]} : vector<18x18x32xbf16> to vector<16x16x32xbf16>
    %10 = vector.shape_cast %9 : vector<16x16x32xbf16> to vector<256x32xbf16>
    %c1 = arith.constant 1 : index
    %c0_7 = arith.constant 0 : index
    %c0_8 = arith.constant 0 : index
    %11 = vector.load %arg2[%c1, %c0_7, %c0_8] : memref<9x32x32xbf16, #tpu.memory_space<vmem>>, vector<1x32x32xbf16>
    %12 = vector.shape_cast %11 : vector<1x32x32xbf16> to vector<32x32xbf16>
    %cst_9 = arith.constant dense<0.000000e+00> : vector<256x32xf32>
    %13 = tpu.matmul %10, %12, %cst_9 {dimension_numbers = #tpu.dot_dimension_numbers<[1], [0], [0], [1], [0, 0, 1, 1], [], []>} : vector<256x32xbf16>, vector<32x32xbf16>, vector<256x32xf32> -> vector<256x32xf32>
    %14 = arith.addf %8, %13 : vector<256x32xf32>
    %15 = vector.extract_strided_slice %1 {offsets = [0, 2, 0], sizes = [16, 16, 32], strides = [1, 1, 1]} : vector<18x18x32xbf16> to vector<16x16x32xbf16>
    %16 = vector.shape_cast %15 : vector<16x16x32xbf16> to vector<256x32xbf16>
    %c2 = arith.constant 2 : index
    %c0_10 = arith.constant 0 : index
    %c0_11 = arith.constant 0 : index
    %17 = vector.load %arg2[%c2, %c0_10, %c0_11] : memref<9x32x32xbf16, #tpu.memory_space<vmem>>, vector<1x32x32xbf16>
    %18 = vector.shape_cast %17 : vector<1x32x32xbf16> to vector<32x32xbf16>
    %cst_12 = arith.constant dense<0.000000e+00> : vector<256x32xf32>
    %19 = tpu.matmul %16, %18, %cst_12 {dimension_numbers = #tpu.dot_dimension_numbers<[1], [0], [0], [1], [0, 0, 1, 1], [], []>} : vector<256x32xbf16>, vector<32x32xbf16>, vector<256x32xf32> -> vector<256x32xf32>
    %20 = arith.addf %14, %19 : vector<256x32xf32>
    %21 = vector.extract_strided_slice %1 {offsets = [1, 0, 0], sizes = [16, 16, 32], strides = [1, 1, 1]} : vector<18x18x32xbf16> to vector<16x16x32xbf16>
    %22 = vector.shape_cast %21 : vector<16x16x32xbf16> to vector<256x32xbf16>
    %c3 = arith.constant 3 : index
    %c0_13 = arith.constant 0 : index
    %c0_14 = arith.constant 0 : index
    %23 = vector.load %arg2[%c3, %c0_13, %c0_14] : memref<9x32x32xbf16, #tpu.memory_space<vmem>>, vector<1x32x32xbf16>
    %24 = vector.shape_cast %23 : vector<1x32x32xbf16> to vector<32x32xbf16>
    %cst_15 = arith.constant dense<0.000000e+00> : vector<256x32xf32>
    %25 = tpu.matmul %22, %24, %cst_15 {dimension_numbers = #tpu.dot_dimension_numbers<[1], [0], [0], [1], [0, 0, 1, 1], [], []>} : vector<256x32xbf16>, vector<32x32xbf16>, vector<256x32xf32> -> vector<256x32xf32>
    %26 = arith.addf %20, %25 : vector<256x32xf32>
    %27 = vector.extract_strided_slice %1 {offsets = [1, 1, 0], sizes = [16, 16, 32], strides = [1, 1, 1]} : vector<18x18x32xbf16> to vector<16x16x32xbf16>
    %28 = vector.shape_cast %27 : vector<16x16x32xbf16> to vector<256x32xbf16>
    %c4 = arith.constant 4 : index
    %c0_16 = arith.constant 0 : index
    %c0_17 = arith.constant 0 : index
    %29 = vector.load %arg2[%c4, %c0_16, %c0_17] : memref<9x32x32xbf16, #tpu.memory_space<vmem>>, vector<1x32x32xbf16>
    %30 = vector.shape_cast %29 : vector<1x32x32xbf16> to vector<32x32xbf16>
    %cst_18 = arith.constant dense<0.000000e+00> : vector<256x32xf32>
    %31 = tpu.matmul %28, %30, %cst_18 {dimension_numbers = #tpu.dot_dimension_numbers<[1], [0], [0], [1], [0, 0, 1, 1], [], []>} : vector<256x32xbf16>, vector<32x32xbf16>, vector<256x32xf32> -> vector<256x32xf32>
    %32 = arith.addf %26, %31 : vector<256x32xf32>
    %33 = vector.extract_strided_slice %1 {offsets = [1, 2, 0], sizes = [16, 16, 32], strides = [1, 1, 1]} : vector<18x18x32xbf16> to vector<16x16x32xbf16>
    %34 = vector.shape_cast %33 : vector<16x16x32xbf16> to vector<256x32xbf16>
    %c5 = arith.constant 5 : index
    %c0_19 = arith.constant 0 : index
    %c0_20 = arith.constant 0 : index
    %35 = vector.load %arg2[%c5, %c0_19, %c0_20] : memref<9x32x32xbf16, #tpu.memory_space<vmem>>, vector<1x32x32xbf16>
    %36 = vector.shape_cast %35 : vector<1x32x32xbf16> to vector<32x32xbf16>
    %cst_21 = arith.constant dense<0.000000e+00> : vector<256x32xf32>
    %37 = tpu.matmul %34, %36, %cst_21 {dimension_numbers = #tpu.dot_dimension_numbers<[1], [0], [0], [1], [0, 0, 1, 1], [], []>} : vector<256x32xbf16>, vector<32x32xbf16>, vector<256x32xf32> -> vector<256x32xf32>
    %38 = arith.addf %32, %37 : vector<256x32xf32>
    %39 = vector.extract_strided_slice %1 {offsets = [2, 0, 0], sizes = [16, 16, 32], strides = [1, 1, 1]} : vector<18x18x32xbf16> to vector<16x16x32xbf16>
    %40 = vector.shape_cast %39 : vector<16x16x32xbf16> to vector<256x32xbf16>
    %c6 = arith.constant 6 : index
    %c0_22 = arith.constant 0 : index
    %c0_23 = arith.constant 0 : index
    %41 = vector.load %arg2[%c6, %c0_22, %c0_23] : memref<9x32x32xbf16, #tpu.memory_space<vmem>>, vector<1x32x32xbf16>
    %42 = vector.shape_cast %41 : vector<1x32x32xbf16> to vector<32x32xbf16>
    %cst_24 = arith.constant dense<0.000000e+00> : vector<256x32xf32>
    %43 = tpu.matmul %40, %42, %cst_24 {dimension_numbers = #tpu.dot_dimension_numbers<[1], [0], [0], [1], [0, 0, 1, 1], [], []>} : vector<256x32xbf16>, vector<32x32xbf16>, vector<256x32xf32> -> vector<256x32xf32>
    %44 = arith.addf %38, %43 : vector<256x32xf32>
    %45 = vector.extract_strided_slice %1 {offsets = [2, 1, 0], sizes = [16, 16, 32], strides = [1, 1, 1]} : vector<18x18x32xbf16> to vector<16x16x32xbf16>
    %46 = vector.shape_cast %45 : vector<16x16x32xbf16> to vector<256x32xbf16>
    %c7 = arith.constant 7 : index
    %c0_25 = arith.constant 0 : index
    %c0_26 = arith.constant 0 : index
    %47 = vector.load %arg2[%c7, %c0_25, %c0_26] : memref<9x32x32xbf16, #tpu.memory_space<vmem>>, vector<1x32x32xbf16>
    %48 = vector.shape_cast %47 : vector<1x32x32xbf16> to vector<32x32xbf16>
    %cst_27 = arith.constant dense<0.000000e+00> : vector<256x32xf32>
    %49 = tpu.matmul %46, %48, %cst_27 {dimension_numbers = #tpu.dot_dimension_numbers<[1], [0], [0], [1], [0, 0, 1, 1], [], []>} : vector<256x32xbf16>, vector<32x32xbf16>, vector<256x32xf32> -> vector<256x32xf32>
    %50 = arith.addf %44, %49 : vector<256x32xf32>
    %51 = vector.extract_strided_slice %1 {offsets = [2, 2, 0], sizes = [16, 16, 32], strides = [1, 1, 1]} : vector<18x18x32xbf16> to vector<16x16x32xbf16>
    %52 = vector.shape_cast %51 : vector<16x16x32xbf16> to vector<256x32xbf16>
    %c8 = arith.constant 8 : index
    %c0_28 = arith.constant 0 : index
    %c0_29 = arith.constant 0 : index
    %53 = vector.load %arg2[%c8, %c0_28, %c0_29] : memref<9x32x32xbf16, #tpu.memory_space<vmem>>, vector<1x32x32xbf16>
    %54 = vector.shape_cast %53 : vector<1x32x32xbf16> to vector<32x32xbf16>
    %cst_30 = arith.constant dense<0.000000e+00> : vector<256x32xf32>
    %55 = tpu.matmul %52, %54, %cst_30 {dimension_numbers = #tpu.dot_dimension_numbers<[1], [0], [0], [1], [0, 0, 1, 1], [], []>} : vector<256x32xbf16>, vector<32x32xbf16>, vector<256x32xf32> -> vector<256x32xf32>
    %56 = arith.addf %50, %55 : vector<256x32xf32>
    %c0_31 = arith.constant 0 : index
    %c0_32 = arith.constant 0 : index
    %57 = vector.load %arg3[%c0_31, %c0_32] : memref<1x32xf32, #tpu.memory_space<vmem>>, vector<1x32xf32>
    %58 = vector.broadcast %57 : vector<1x32xf32> to vector<256x32xf32>
    %59 = arith.addf %56, %58 : vector<256x32xf32>
    %cst_33 = arith.constant 0.000000e+00 : f32
    %60 = vector.broadcast %cst_33 : f32 to vector<256x32xf32>
    %61 = arith.cmpf ogt, %59, %60 : vector<256x32xf32>
    %c0_34 = arith.constant 0 : index
    %c0_35 = arith.constant 0 : index
    %62 = vector.load %arg4[%c0_34, %c0_35] : memref<1x32xf32, #tpu.memory_space<vmem>>, vector<1x32xf32>
    %63 = vector.broadcast %62 : vector<1x32xf32> to vector<256x32xf32>
    %64 = arith.mulf %59, %63 : vector<256x32xf32>
    %65 = arith.select %61, %59, %64 : vector<256x32xi1>, vector<256x32xf32>
    %66 = vector.shape_cast %65 : vector<256x32xf32> to vector<16x8x2x32xf32>
    %cst_36 = arith.constant dense<0xFF800000> : vector<16x8x32xf32>
    %67 = vector.multi_reduction <maximumf>, %66, %cst_36 [2] : vector<16x8x2x32xf32> to vector<16x8x32xf32>
    %68 = vector.shape_cast %67 : vector<16x8x32xf32> to vector<8x2x8x32xf32>
    %cst_37 = arith.constant dense<0xFF800000> : vector<8x8x32xf32>
    %69 = vector.multi_reduction <maximumf>, %68, %cst_37 [1] : vector<8x2x8x32xf32> to vector<8x8x32xf32>
    %70 = arith.truncf %69 : vector<8x8x32xf32> to vector<8x8x32xbf16>
    %c0_38 = arith.constant 0 : index
    %c0_39 = arith.constant 0 : index
    %c0_40 = arith.constant 0 : index
    %c0_41 = arith.constant 0 : index
    %71 = vector.load %arg5[%c0_38, %c0_39, %c0_40, %c0_41] : memref<1x8x8x32xbf16, #tpu.memory_space<vmem>>, vector<1x8x8x32xbf16>
    %72 = vector.shape_cast %71 : vector<1x8x8x32xbf16> to vector<8x8x32xbf16>
    %73 = vector.shape_cast %70 : vector<8x8x32xbf16> to vector<1x8x8x32xbf16>
    tpu.vector_store %arg5[%c0_38, %c0_39, %c0_40, %c0_41], %73 {strides = array<i32>} : memref<1x8x8x32xbf16, #tpu.memory_space<vmem>>, vector<1x8x8x32xbf16>,
    return
  }
  func.func @transform_0(%arg0: i32) -> (i32, i32, i32, i32) {
    %c0_i32 = arith.constant 0 : i32
    %c0_i32_0 = arith.constant 0 : i32
    %c0_i32_1 = arith.constant 0 : i32
    %c0_i32_2 = arith.constant 0 : i32
    return %arg0, %c0_i32, %c0_i32_0, %c0_i32_1 : i32, i32, i32, i32
  }
  func.func @transform_1(%arg0: i32) -> (i32, i32, i32) {
    %c0_i32 = arith.constant 0 : i32
    %c0_i32_0 = arith.constant 0 : i32
    %c0_i32_1 = arith.constant 0 : i32
    %c0_i32_2 = arith.constant 0 : i32
    return %c0_i32, %c0_i32_0, %c0_i32_1 : i32, i32, i32
  }
  func.func @transform_2(%arg0: i32) -> (i32, i32) {
    %c0_i32 = arith.constant 0 : i32
    %c0_i32_0 = arith.constant 0 : i32
    %c0_i32_1 = arith.constant 0 : i32
    return %c0_i32, %c0_i32_0 : i32, i32
  }
  func.func @transform_3(%arg0: i32) -> (i32, i32) {
    %c0_i32 = arith.constant 0 : i32
    %c0_i32_0 = arith.constant 0 : i32
    %c0_i32_1 = arith.constant 0 : i32
    return %c0_i32, %c0_i32_0 : i32, i32
  }
  func.func @transform_4(%arg0: i32) -> (i32, i32, i32, i32) {
    %c0_i32 = arith.constant 0 : i32
    %c0_i32_0 = arith.constant 0 : i32
    %c0_i32_1 = arith.constant 0 : i32
    %c0_i32_2 = arith.constant 0 : i32
    return %arg0, %c0_i32, %c0_i32_0, %c0_i32_1 : i32, i32, i32, i32
  }
}

module attributes {stable_mosaic.version = 11 : i64} {
  func.func @_conv_pool_kernel(%arg0: i32, %arg1: memref<1x10x10x32xbf16, #tpu.memory_space<vmem>>, %arg2: memref<9x32x16xbf16, #tpu.memory_space<vmem>>, %arg3: memref<1x16xf32, #tpu.memory_space<vmem>>, %arg4: memref<1x16xf32, #tpu.memory_space<vmem>>, %arg5: memref<1x4x4x16xbf16, #tpu.memory_space<vmem>>) attributes {dimension_semantics = [#tpu.dimension_semantics<parallel>], iteration_bounds = array<i64: 2>, scalar_prefetch = 0 : i64, scratch_operands = 0 : i64, tpu.core_type = #tpu.core_type<tc>, window_params = [{transform_indices = @transform_0, window_bounds = array<i64: 1, 10, 10, 32>}, {pipeline_mode = #tpu.pipeline_mode<synchronous>, transform_indices = @transform_1, window_bounds = array<i64: 9, 32, 16>}, {pipeline_mode = #tpu.pipeline_mode<synchronous>, transform_indices = @transform_2, window_bounds = array<i64: 1, 16>}, {pipeline_mode = #tpu.pipeline_mode<synchronous>, transform_indices = @transform_3, window_bounds = array<i64: 1, 16>}, {transform_indices = @transform_4, window_bounds = array<i64: 1, 4, 4, 16>}]} {
    %c0 = arith.constant 0 : index
    %c0_0 = arith.constant 0 : index
    %c0_1 = arith.constant 0 : index
    %c0_2 = arith.constant 0 : index
    %0 = vector.load %arg1[%c0, %c0_0, %c0_1, %c0_2] : memref<1x10x10x32xbf16, #tpu.memory_space<vmem>>, vector<1x10x10x32xbf16>
    %1 = vector.shape_cast %0 : vector<1x10x10x32xbf16> to vector<10x10x32xbf16>
    %cst = arith.constant 0.000000e+00 : f32
    %2 = vector.broadcast %cst : f32 to vector<64x16xf32>
    %3 = vector.extract_strided_slice %1 {offsets = [0, 0, 0], sizes = [8, 8, 32], strides = [1, 1, 1]} : vector<10x10x32xbf16> to vector<8x8x32xbf16>
    %4 = vector.shape_cast %3 : vector<8x8x32xbf16> to vector<64x32xbf16>
    %c0_3 = arith.constant 0 : index
    %c0_4 = arith.constant 0 : index
    %c0_5 = arith.constant 0 : index
    %5 = vector.load %arg2[%c0_3, %c0_4, %c0_5] : memref<9x32x16xbf16, #tpu.memory_space<vmem>>, vector<1x32x16xbf16>
    %6 = vector.shape_cast %5 : vector<1x32x16xbf16> to vector<32x16xbf16>
    %cst_6 = arith.constant dense<0.000000e+00> : vector<64x16xf32>
    %7 = tpu.matmul %4, %6, %cst_6 {dimension_numbers = #tpu.dot_dimension_numbers<[1], [0], [0], [1], [0, 0, 1, 1], [], []>} : vector<64x32xbf16>, vector<32x16xbf16>, vector<64x16xf32> -> vector<64x16xf32>
    %8 = arith.addf %2, %7 : vector<64x16xf32>
    %9 = vector.extract_strided_slice %1 {offsets = [0, 1, 0], sizes = [8, 8, 32], strides = [1, 1, 1]} : vector<10x10x32xbf16> to vector<8x8x32xbf16>
    %10 = vector.shape_cast %9 : vector<8x8x32xbf16> to vector<64x32xbf16>
    %c1 = arith.constant 1 : index
    %c0_7 = arith.constant 0 : index
    %c0_8 = arith.constant 0 : index
    %11 = vector.load %arg2[%c1, %c0_7, %c0_8] : memref<9x32x16xbf16, #tpu.memory_space<vmem>>, vector<1x32x16xbf16>
    %12 = vector.shape_cast %11 : vector<1x32x16xbf16> to vector<32x16xbf16>
    %cst_9 = arith.constant dense<0.000000e+00> : vector<64x16xf32>
    %13 = tpu.matmul %10, %12, %cst_9 {dimension_numbers = #tpu.dot_dimension_numbers<[1], [0], [0], [1], [0, 0, 1, 1], [], []>} : vector<64x32xbf16>, vector<32x16xbf16>, vector<64x16xf32> -> vector<64x16xf32>
    %14 = arith.addf %8, %13 : vector<64x16xf32>
    %15 = vector.extract_strided_slice %1 {offsets = [0, 2, 0], sizes = [8, 8, 32], strides = [1, 1, 1]} : vector<10x10x32xbf16> to vector<8x8x32xbf16>
    %16 = vector.shape_cast %15 : vector<8x8x32xbf16> to vector<64x32xbf16>
    %c2 = arith.constant 2 : index
    %c0_10 = arith.constant 0 : index
    %c0_11 = arith.constant 0 : index
    %17 = vector.load %arg2[%c2, %c0_10, %c0_11] : memref<9x32x16xbf16, #tpu.memory_space<vmem>>, vector<1x32x16xbf16>
    %18 = vector.shape_cast %17 : vector<1x32x16xbf16> to vector<32x16xbf16>
    %cst_12 = arith.constant dense<0.000000e+00> : vector<64x16xf32>
    %19 = tpu.matmul %16, %18, %cst_12 {dimension_numbers = #tpu.dot_dimension_numbers<[1], [0], [0], [1], [0, 0, 1, 1], [], []>} : vector<64x32xbf16>, vector<32x16xbf16>, vector<64x16xf32> -> vector<64x16xf32>
    %20 = arith.addf %14, %19 : vector<64x16xf32>
    %21 = vector.extract_strided_slice %1 {offsets = [1, 0, 0], sizes = [8, 8, 32], strides = [1, 1, 1]} : vector<10x10x32xbf16> to vector<8x8x32xbf16>
    %22 = vector.shape_cast %21 : vector<8x8x32xbf16> to vector<64x32xbf16>
    %c3 = arith.constant 3 : index
    %c0_13 = arith.constant 0 : index
    %c0_14 = arith.constant 0 : index
    %23 = vector.load %arg2[%c3, %c0_13, %c0_14] : memref<9x32x16xbf16, #tpu.memory_space<vmem>>, vector<1x32x16xbf16>
    %24 = vector.shape_cast %23 : vector<1x32x16xbf16> to vector<32x16xbf16>
    %cst_15 = arith.constant dense<0.000000e+00> : vector<64x16xf32>
    %25 = tpu.matmul %22, %24, %cst_15 {dimension_numbers = #tpu.dot_dimension_numbers<[1], [0], [0], [1], [0, 0, 1, 1], [], []>} : vector<64x32xbf16>, vector<32x16xbf16>, vector<64x16xf32> -> vector<64x16xf32>
    %26 = arith.addf %20, %25 : vector<64x16xf32>
    %27 = vector.extract_strided_slice %1 {offsets = [1, 1, 0], sizes = [8, 8, 32], strides = [1, 1, 1]} : vector<10x10x32xbf16> to vector<8x8x32xbf16>
    %28 = vector.shape_cast %27 : vector<8x8x32xbf16> to vector<64x32xbf16>
    %c4 = arith.constant 4 : index
    %c0_16 = arith.constant 0 : index
    %c0_17 = arith.constant 0 : index
    %29 = vector.load %arg2[%c4, %c0_16, %c0_17] : memref<9x32x16xbf16, #tpu.memory_space<vmem>>, vector<1x32x16xbf16>
    %30 = vector.shape_cast %29 : vector<1x32x16xbf16> to vector<32x16xbf16>
    %cst_18 = arith.constant dense<0.000000e+00> : vector<64x16xf32>
    %31 = tpu.matmul %28, %30, %cst_18 {dimension_numbers = #tpu.dot_dimension_numbers<[1], [0], [0], [1], [0, 0, 1, 1], [], []>} : vector<64x32xbf16>, vector<32x16xbf16>, vector<64x16xf32> -> vector<64x16xf32>
    %32 = arith.addf %26, %31 : vector<64x16xf32>
    %33 = vector.extract_strided_slice %1 {offsets = [1, 2, 0], sizes = [8, 8, 32], strides = [1, 1, 1]} : vector<10x10x32xbf16> to vector<8x8x32xbf16>
    %34 = vector.shape_cast %33 : vector<8x8x32xbf16> to vector<64x32xbf16>
    %c5 = arith.constant 5 : index
    %c0_19 = arith.constant 0 : index
    %c0_20 = arith.constant 0 : index
    %35 = vector.load %arg2[%c5, %c0_19, %c0_20] : memref<9x32x16xbf16, #tpu.memory_space<vmem>>, vector<1x32x16xbf16>
    %36 = vector.shape_cast %35 : vector<1x32x16xbf16> to vector<32x16xbf16>
    %cst_21 = arith.constant dense<0.000000e+00> : vector<64x16xf32>
    %37 = tpu.matmul %34, %36, %cst_21 {dimension_numbers = #tpu.dot_dimension_numbers<[1], [0], [0], [1], [0, 0, 1, 1], [], []>} : vector<64x32xbf16>, vector<32x16xbf16>, vector<64x16xf32> -> vector<64x16xf32>
    %38 = arith.addf %32, %37 : vector<64x16xf32>
    %39 = vector.extract_strided_slice %1 {offsets = [2, 0, 0], sizes = [8, 8, 32], strides = [1, 1, 1]} : vector<10x10x32xbf16> to vector<8x8x32xbf16>
    %40 = vector.shape_cast %39 : vector<8x8x32xbf16> to vector<64x32xbf16>
    %c6 = arith.constant 6 : index
    %c0_22 = arith.constant 0 : index
    %c0_23 = arith.constant 0 : index
    %41 = vector.load %arg2[%c6, %c0_22, %c0_23] : memref<9x32x16xbf16, #tpu.memory_space<vmem>>, vector<1x32x16xbf16>
    %42 = vector.shape_cast %41 : vector<1x32x16xbf16> to vector<32x16xbf16>
    %cst_24 = arith.constant dense<0.000000e+00> : vector<64x16xf32>
    %43 = tpu.matmul %40, %42, %cst_24 {dimension_numbers = #tpu.dot_dimension_numbers<[1], [0], [0], [1], [0, 0, 1, 1], [], []>} : vector<64x32xbf16>, vector<32x16xbf16>, vector<64x16xf32> -> vector<64x16xf32>
    %44 = arith.addf %38, %43 : vector<64x16xf32>
    %45 = vector.extract_strided_slice %1 {offsets = [2, 1, 0], sizes = [8, 8, 32], strides = [1, 1, 1]} : vector<10x10x32xbf16> to vector<8x8x32xbf16>
    %46 = vector.shape_cast %45 : vector<8x8x32xbf16> to vector<64x32xbf16>
    %c7 = arith.constant 7 : index
    %c0_25 = arith.constant 0 : index
    %c0_26 = arith.constant 0 : index
    %47 = vector.load %arg2[%c7, %c0_25, %c0_26] : memref<9x32x16xbf16, #tpu.memory_space<vmem>>, vector<1x32x16xbf16>
    %48 = vector.shape_cast %47 : vector<1x32x16xbf16> to vector<32x16xbf16>
    %cst_27 = arith.constant dense<0.000000e+00> : vector<64x16xf32>
    %49 = tpu.matmul %46, %48, %cst_27 {dimension_numbers = #tpu.dot_dimension_numbers<[1], [0], [0], [1], [0, 0, 1, 1], [], []>} : vector<64x32xbf16>, vector<32x16xbf16>, vector<64x16xf32> -> vector<64x16xf32>
    %50 = arith.addf %44, %49 : vector<64x16xf32>
    %51 = vector.extract_strided_slice %1 {offsets = [2, 2, 0], sizes = [8, 8, 32], strides = [1, 1, 1]} : vector<10x10x32xbf16> to vector<8x8x32xbf16>
    %52 = vector.shape_cast %51 : vector<8x8x32xbf16> to vector<64x32xbf16>
    %c8 = arith.constant 8 : index
    %c0_28 = arith.constant 0 : index
    %c0_29 = arith.constant 0 : index
    %53 = vector.load %arg2[%c8, %c0_28, %c0_29] : memref<9x32x16xbf16, #tpu.memory_space<vmem>>, vector<1x32x16xbf16>
    %54 = vector.shape_cast %53 : vector<1x32x16xbf16> to vector<32x16xbf16>
    %cst_30 = arith.constant dense<0.000000e+00> : vector<64x16xf32>
    %55 = tpu.matmul %52, %54, %cst_30 {dimension_numbers = #tpu.dot_dimension_numbers<[1], [0], [0], [1], [0, 0, 1, 1], [], []>} : vector<64x32xbf16>, vector<32x16xbf16>, vector<64x16xf32> -> vector<64x16xf32>
    %56 = arith.addf %50, %55 : vector<64x16xf32>
    %c0_31 = arith.constant 0 : index
    %c0_32 = arith.constant 0 : index
    %57 = vector.load %arg3[%c0_31, %c0_32] : memref<1x16xf32, #tpu.memory_space<vmem>>, vector<1x16xf32>
    %58 = vector.broadcast %57 : vector<1x16xf32> to vector<64x16xf32>
    %59 = arith.addf %56, %58 : vector<64x16xf32>
    %cst_33 = arith.constant 0.000000e+00 : f32
    %60 = vector.broadcast %cst_33 : f32 to vector<64x16xf32>
    %61 = arith.cmpf ogt, %59, %60 : vector<64x16xf32>
    %c0_34 = arith.constant 0 : index
    %c0_35 = arith.constant 0 : index
    %62 = vector.load %arg4[%c0_34, %c0_35] : memref<1x16xf32, #tpu.memory_space<vmem>>, vector<1x16xf32>
    %63 = vector.broadcast %62 : vector<1x16xf32> to vector<64x16xf32>
    %64 = arith.mulf %59, %63 : vector<64x16xf32>
    %65 = arith.select %61, %59, %64 : vector<64x16xi1>, vector<64x16xf32>
    %66 = vector.shape_cast %65 : vector<64x16xf32> to vector<8x4x2x16xf32>
    %cst_36 = arith.constant dense<0xFF800000> : vector<8x4x16xf32>
    %67 = vector.multi_reduction <maximumf>, %66, %cst_36 [2] : vector<8x4x2x16xf32> to vector<8x4x16xf32>
    %68 = vector.shape_cast %67 : vector<8x4x16xf32> to vector<4x2x4x16xf32>
    %cst_37 = arith.constant dense<0xFF800000> : vector<4x4x16xf32>
    %69 = vector.multi_reduction <maximumf>, %68, %cst_37 [1] : vector<4x2x4x16xf32> to vector<4x4x16xf32>
    %70 = arith.truncf %69 : vector<4x4x16xf32> to vector<4x4x16xbf16>
    %c0_38 = arith.constant 0 : index
    %c0_39 = arith.constant 0 : index
    %c0_40 = arith.constant 0 : index
    %c0_41 = arith.constant 0 : index
    %71 = vector.load %arg5[%c0_38, %c0_39, %c0_40, %c0_41] : memref<1x4x4x16xbf16, #tpu.memory_space<vmem>>, vector<1x4x4x16xbf16>
    %72 = vector.shape_cast %71 : vector<1x4x4x16xbf16> to vector<4x4x16xbf16>
    %73 = vector.shape_cast %70 : vector<4x4x16xbf16> to vector<1x4x4x16xbf16>
    tpu.vector_store %arg5[%c0_38, %c0_39, %c0_40, %c0_41], %73 {strides = array<i32>} : memref<1x4x4x16xbf16, #tpu.memory_space<vmem>>, vector<1x4x4x16xbf16>,
    return
  }
  func.func @transform_0(%arg0: i32) -> (i32, i32, i32, i32) {
    %c0_i32 = arith.constant 0 : i32
    %c0_i32_0 = arith.constant 0 : i32
    %c0_i32_1 = arith.constant 0 : i32
    %c0_i32_2 = arith.constant 0 : i32
    return %arg0, %c0_i32, %c0_i32_0, %c0_i32_1 : i32, i32, i32, i32
  }
  func.func @transform_1(%arg0: i32) -> (i32, i32, i32) {
    %c0_i32 = arith.constant 0 : i32
    %c0_i32_0 = arith.constant 0 : i32
    %c0_i32_1 = arith.constant 0 : i32
    %c0_i32_2 = arith.constant 0 : i32
    return %c0_i32, %c0_i32_0, %c0_i32_1 : i32, i32, i32
  }
  func.func @transform_2(%arg0: i32) -> (i32, i32) {
    %c0_i32 = arith.constant 0 : i32
    %c0_i32_0 = arith.constant 0 : i32
    %c0_i32_1 = arith.constant 0 : i32
    return %c0_i32, %c0_i32_0 : i32, i32
  }
  func.func @transform_3(%arg0: i32) -> (i32, i32) {
    %c0_i32 = arith.constant 0 : i32
    %c0_i32_0 = arith.constant 0 : i32
    %c0_i32_1 = arith.constant 0 : i32
    return %c0_i32, %c0_i32_0 : i32, i32
  }
  func.func @transform_4(%arg0: i32) -> (i32, i32, i32, i32) {
    %c0_i32 = arith.constant 0 : i32
    %c0_i32_0 = arith.constant 0 : i32
    %c0_i32_1 = arith.constant 0 : i32
    %c0_i32_2 = arith.constant 0 : i32
    return %arg0, %c0_i32, %c0_i32_0, %c0_i32_1 : i32, i32, i32, i32
  }
}

module attributes {stable_mosaic.version = 11 : i64} {
  func.func @_head_kernel(%arg0: memref<2x16x16xbf16, #tpu.memory_space<vmem>>, %arg1: memref<16x64xf32, #tpu.memory_space<vmem>>, %arg2: memref<1x64xf32, #tpu.memory_space<vmem>>, %arg3: memref<1x64xf32, #tpu.memory_space<vmem>>, %arg4: memref<1x64xf32, #tpu.memory_space<vmem>>, %arg5: memref<1x64xf32, #tpu.memory_space<vmem>>, %arg6: memref<64x3xf32, #tpu.memory_space<vmem>>, %arg7: memref<1x3xf32, #tpu.memory_space<vmem>>, %arg8: memref<2x3xf32, #tpu.memory_space<vmem>>) attributes {dimension_semantics = [], scalar_prefetch = 0 : i64, scratch_operands = 0 : i64, tpu.core_type = #tpu.core_type<tc>} {
    %c0 = arith.constant 0 : index
    %c0_0 = arith.constant 0 : index
    %c0_1 = arith.constant 0 : index
    %0 = vector.load %arg0[%c0, %c0_0, %c0_1] : memref<2x16x16xbf16, #tpu.memory_space<vmem>>, vector<2x16x16xbf16>
    %1 = arith.extf %0 : vector<2x16x16xbf16> to vector<2x16x16xf32>
    %cst = arith.constant dense<0.000000e+00> : vector<2x16xf32>
    %2 = vector.multi_reduction <add>, %1, %cst [1] : vector<2x16x16xf32> to vector<2x16xf32>
    %cst_2 = arith.constant 1.600000e+01 : f32
    %3 = vector.broadcast %cst_2 : f32 to vector<2x16xf32>
    %4 = arith.divf %2, %3 : vector<2x16xf32>
    %c0_3 = arith.constant 0 : index
    %c0_4 = arith.constant 0 : index
    %5 = vector.load %arg1[%c0_3, %c0_4] : memref<16x64xf32, #tpu.memory_space<vmem>>, vector<16x64xf32>
    %cst_5 = arith.constant dense<0.000000e+00> : vector<2x64xf32>
    %6 = tpu.matmul %4, %5, %cst_5 {dimension_numbers = #tpu.dot_dimension_numbers<[1], [0], [0], [1], [0, 0, 1, 1], [], []>} : vector<2x16xf32>, vector<16x64xf32>, vector<2x64xf32> -> vector<2x64xf32>
    %c0_6 = arith.constant 0 : index
    %c0_7 = arith.constant 0 : index
    %7 = vector.load %arg2[%c0_6, %c0_7] : memref<1x64xf32, #tpu.memory_space<vmem>>, vector<1x64xf32>
    %8 = vector.broadcast %7 : vector<1x64xf32> to vector<2x64xf32>
    %9 = arith.addf %6, %8 : vector<2x64xf32>
    %cst_8 = arith.constant dense<0.000000e+00> : vector<2xf32>
    %10 = vector.multi_reduction <add>, %9, %cst_8 [1] : vector<2x64xf32> to vector<2xf32>
    %11 = vector.shape_cast %10 : vector<2xf32> to vector<2x1xf32>
    %cst_9 = arith.constant 6.400000e+01 : f32
    %12 = vector.broadcast %cst_9 : f32 to vector<2x1xf32>
    %13 = arith.divf %11, %12 : vector<2x1xf32>
    %14 = vector.broadcast %13 : vector<2x1xf32> to vector<2x64xf32>
    %15 = arith.subf %9, %14 : vector<2x64xf32>
    %16 = arith.mulf %15, %15 : vector<2x64xf32>
    %cst_10 = arith.constant dense<0.000000e+00> : vector<2xf32>
    %17 = vector.multi_reduction <add>, %16, %cst_10 [1] : vector<2x64xf32> to vector<2xf32>
    %18 = vector.shape_cast %17 : vector<2xf32> to vector<2x1xf32>
    %cst_11 = arith.constant 6.400000e+01 : f32
    %19 = vector.broadcast %cst_11 : f32 to vector<2x1xf32>
    %20 = arith.divf %18, %19 : vector<2x1xf32>
    %21 = vector.broadcast %13 : vector<2x1xf32> to vector<2x64xf32>
    %22 = arith.subf %9, %21 : vector<2x64xf32>
    %cst_12 = arith.constant 9.99999974E-6 : f32
    %23 = vector.broadcast %cst_12 : f32 to vector<2x1xf32>
    %24 = arith.addf %20, %23 : vector<2x1xf32>
    %25 = math.rsqrt %24 : vector<2x1xf32>
    %26 = vector.broadcast %25 : vector<2x1xf32> to vector<2x64xf32>
    %27 = arith.mulf %22, %26 : vector<2x64xf32>
    %c0_13 = arith.constant 0 : index
    %c0_14 = arith.constant 0 : index
    %28 = vector.load %arg3[%c0_13, %c0_14] : memref<1x64xf32, #tpu.memory_space<vmem>>, vector<1x64xf32>
    %29 = vector.broadcast %28 : vector<1x64xf32> to vector<2x64xf32>
    %30 = arith.mulf %27, %29 : vector<2x64xf32>
    %c0_15 = arith.constant 0 : index
    %c0_16 = arith.constant 0 : index
    %31 = vector.load %arg4[%c0_15, %c0_16] : memref<1x64xf32, #tpu.memory_space<vmem>>, vector<1x64xf32>
    %32 = vector.broadcast %31 : vector<1x64xf32> to vector<2x64xf32>
    %33 = arith.addf %30, %32 : vector<2x64xf32>
    %cst_17 = arith.constant 0.000000e+00 : f32
    %34 = vector.broadcast %cst_17 : f32 to vector<2x64xf32>
    %35 = arith.cmpf ogt, %33, %34 : vector<2x64xf32>
    %c0_18 = arith.constant 0 : index
    %c0_19 = arith.constant 0 : index
    %36 = vector.load %arg5[%c0_18, %c0_19] : memref<1x64xf32, #tpu.memory_space<vmem>>, vector<1x64xf32>
    %37 = vector.broadcast %36 : vector<1x64xf32> to vector<2x64xf32>
    %38 = arith.mulf %33, %37 : vector<2x64xf32>
    %39 = arith.select %35, %33, %38 : vector<2x64xi1>, vector<2x64xf32>
    %c0_20 = arith.constant 0 : index
    %c0_21 = arith.constant 0 : index
    %40 = vector.load %arg6[%c0_20, %c0_21] : memref<64x3xf32, #tpu.memory_space<vmem>>, vector<64x3xf32>
    %cst_22 = arith.constant dense<0.000000e+00> : vector<2x3xf32>
    %41 = tpu.matmul %39, %40, %cst_22 {dimension_numbers = #tpu.dot_dimension_numbers<[1], [0], [0], [1], [0, 0, 1, 1], [], []>} : vector<2x64xf32>, vector<64x3xf32>, vector<2x3xf32> -> vector<2x3xf32>
    %c0_23 = arith.constant 0 : index
    %c0_24 = arith.constant 0 : index
    %42 = vector.load %arg7[%c0_23, %c0_24] : memref<1x3xf32, #tpu.memory_space<vmem>>, vector<1x3xf32>
    %43 = vector.broadcast %42 : vector<1x3xf32> to vector<2x3xf32>
    %44 = arith.addf %41, %43 : vector<2x3xf32>
    %c0_25 = arith.constant 0 : index
    %c0_26 = arith.constant 0 : index
    %45 = vector.load %arg8[%c0_25, %c0_26] : memref<2x3xf32, #tpu.memory_space<vmem>>, vector<2x3xf32>
    tpu.vector_store %arg8[%c0_25, %c0_26], %44 {strides = array<i32>} : memref<2x3xf32, #tpu.memory_space<vmem>>, vector<2x3xf32>,
    return
  }
}

</mosaic_0001>

<llo_original>
// kernel: sam2_classifier_forward.7
$region0: #{sam2_classifier_forward.7}
  #allocation0 [shape = 'u32[]', space=smem, size = 0x4, offset = 0x4, fixed_abs, tag = 'smem constant byte address 0x4 - core index']
  #allocation1 [shape = 'u32[144,128]{1,0:T(1,128)}', space=vmem, size = 0x12000, scoped, tag = 'internal scratch']
  %s0 = inlined_call_operand.vmem [shape: bf16[2,16,16], index: 0, kind: input, shape index: {}]
  %s1 = inlined_call_operand.vmem [shape: f32[16,64], index: 1, kind: input, shape index: {}]
  %s2 = inlined_call_operand.vmem [shape: f32[1,64], index: 2, kind: input, shape index: {}]
  %s3 = inlined_call_operand.vmem [shape: f32[1,64], index: 3, kind: input, shape index: {}]
  %s4 = inlined_call_operand.vmem [shape: f32[1,64], index: 4, kind: input, shape index: {}]
  %s5 = inlined_call_operand.vmem [shape: f32[1,64], index: 5, kind: input, shape index: {}]
  %s6 = inlined_call_operand.vmem [shape: f32[64,3], index: 6, kind: input, shape index: {}]
  %s7 = inlined_call_operand.vmem [shape: f32[1,3], index: 7, kind: input, shape index: {}]
  %s8 = inlined_call_operand.hbm [shape: f32[2,3], index: 8, kind: output, shape index: {}]
  %s9 = sld [smem:[#allocation0]]
  $region42: #{sam2_classifier_forward.7} parent=0
    _
  %s11 = ssub.s32 1, %s9
  %s12 = scalar_select 0, %s11, %s9
  $region1: #{sam2_classifier_forward.7} parent=0
    #allocation2 [shape = 'u8[1024]{0}', space=vmem, size = 0x400, scoped, tag = 'output window, operand 0, single buffered']
    #allocation3 [shape = 's32[1]{0}', space=sflag, size = 0x4, scoped, tag = 'scoped memory for sam2_classifier_forward.7']
    %13 = vsyncpa [#allocation3], 0
    // Predicated region
    $region2: #{sam2_classifier_forward.7} parent=1 // pred_check
      _
    $region3: #{sam2_classifier_forward.7} parent=1 // pred_check_branch
      %15 = sbr.rel (0) target = $region5
    $region4: #{sam2_classifier_forward.7} parent=1 // pred_region
      _
    $region5: #{sam2_classifier_forward.7} parent=1 // pred_fallthru
      _
    // Predicated region
    $region6: #{sam2_classifier_forward.7} parent=1 // pred_check
      _
    $region7: #{sam2_classifier_forward.7} parent=1 // pred_check_branch
      %17 = sbr.rel (0) target = $region9
    $region8: #{sam2_classifier_forward.7} parent=1 // pred_region
      _
    $region9: #{sam2_classifier_forward.7} parent=1 // pred_fallthru
      _
    // Predicated region
    $region10: #{sam2_classifier_forward.7} parent=1 // pred_check
      _
    $region11: #{sam2_classifier_forward.7} parent=1 // pred_check_branch
      %19 = sbr.rel (0) target = $region13
    $region12: #{sam2_classifier_forward.7} parent=1 // pred_region
      _
    $region13: #{sam2_classifier_forward.7} parent=1 // pred_fallthru
      _
    // Predicated region
    $region14: #{sam2_classifier_forward.7} parent=1 // pred_check
      _
    $region15: #{sam2_classifier_forward.7} parent=1 // pred_check_branch
      %21 = sbr.rel (0) target = $region17
    $region16: #{sam2_classifier_forward.7} parent=1 // pred_region
      _
    $region17: #{sam2_classifier_forward.7} parent=1 // pred_fallthru
      _
    // Predicated region
    $region18: #{sam2_classifier_forward.7} parent=1 // pred_check
      _
    $region19: #{sam2_classifier_forward.7} parent=1 // pred_check_branch
      %23 = sbr.rel (0) target = $region21
    $region20: #{sam2_classifier_forward.7} parent=1 // pred_region
      _
    $region21: #{sam2_classifier_forward.7} parent=1 // pred_fallthru
      _
    // Predicated region
    $region22: #{sam2_classifier_forward.7} parent=1 // pred_check
      _
    $region23: #{sam2_classifier_forward.7} parent=1 // pred_check_branch
      %25 = sbr.rel (0) target = $region25
    $region24: #{sam2_classifier_forward.7} parent=1 // pred_region
      _
    $region25: #{sam2_classifier_forward.7} parent=1 // pred_fallthru
      _
    // Predicated region
    $region26: #{sam2_classifier_forward.7} parent=1 // pred_check
      _
    $region27: #{sam2_classifier_forward.7} parent=1 // pred_check_branch
      %27 = sbr.rel (0) target = $region29
    $region28: #{sam2_classifier_forward.7} parent=1 // pred_region
      _
    $region29: #{sam2_classifier_forward.7} parent=1 // pred_fallthru
      _
    // Predicated region
    $region30: #{sam2_classifier_forward.7} parent=1 // pred_check
      _
    $region31: #{sam2_classifier_forward.7} parent=1 // pred_check_branch
      %29 = sbr.rel (0) target = $region33
    $region32: #{sam2_classifier_forward.7} parent=1 // pred_region
      _
    $region33: #{sam2_classifier_forward.7} parent=1 // pred_fallthru
      _
    %v30 = vld [vmem:[%s0] sm:$0xf]
    %v31 = vld [vmem:[%s0 + $0x4] sm:$0xf]
    %v32 = vld [vmem:[%s0 + $0x8] sm:$0xf]
    %v33 = vld [vmem:[%s0 + $0xc] sm:$0xf]
    %v34 = vunpack.c.l.bf16 %v30
    %v35 = vunpack.c.l.bf16 %v31
    %v36 = vunpack.c.l.bf16 %v32
    %v37 = vunpack.c.l.bf16 %v33
    %vm38 = vcmask 130048
    %v39 = vsel %vm38, %v34, 0.0
    %v40 = vsel %vm38, %v35, 0.0
    %v41 = vadd.f32 %v39, %v40
    %v42 = vrot.slane %v41, 4
    %v43 = vadd.f32 %v41, %v42
    %v44 = vrot.slane %v43, 2
    %v45 = vadd.f32 %v43, %v44
    %v46 = vrot.slane %v45, 1
    %v47 = vadd.f32 %v45, %v46
    %v48 = vsel %vm38, %v36, 0.0
    %v49 = vsel %vm38, %v37, 0.0
    %v50 = vadd.f32 %v48, %v49
    %v51 = vrot.slane %v50, 4
    %v52 = vadd.f32 %v50, %v51
    %v53 = vrot.slane %v52, 2
    %v54 = vadd.f32 %v52, %v53
    %v55 = vrot.slane %v54, 1
    %v56 = vadd.f32 %v54, %v55
    %v57 = vrcp.pop 16.0
    %v58 = vmul.f32 %v47, %v57
    %v59 = vmul.f32 %v56, %v57
    %v60 = vld [vmem:[%s1] sm:$0xff]
    %v61 = vld [vmem:[%s1 + $0x8] sm:$0xff]
    %v62 = vld [vmem:[%s2] sm:$0x1]
    %v64 = vlaneseq
    %v65 = vshrl.u32 %v64, 7
    %v66 = vsub.s32 0, %v65
    %v67 = vrot.slane %v62, %v66
    %vm71 = vcmask 1041409
    %v72 = vsel %vm71, %v59, %v58
    %v73 = vsel %vm38, %v72, 0
    %75 = vmatprep.subr.mxu0 0.0
    %76 = vmatpush1.msra.mxu0 %v60
    %77 = vmatprep.subr.mxu0 0.0
    %78 = vmatpush1.msra.mxu0 %v61
    %79 = vmatprep.subr.mxu0 0.0
    %80 = vmatpush1.msra.mxu0 0.0
    %81 = vmatprep.subr.mxu0 0.0
    %82 = vmatpush1.msra.mxu0 0.0
    %83 = vmatprep.subr.mxu0 0.0
    %84 = vmatpush1.msra.mxu0 0.0
    %85 = vmatprep.subr.mxu0 0.0
    %86 = vmatpush1.msra.mxu0 0.0
    %87 = vmatprep.subr.mxu0 0.0
    %88 = vmatpush1.msra.mxu0 0.0
    %89 = vmatprep.subr.mxu0 0.0
    %90 = vmatpush1.msra.mxu0 0.0
    %91 = vmatprep.subr.mxu0 0.0
    %92 = vmatpush1.msra.mxu0 0.0
    %93 = vmatprep.subr.mxu0 0.0
    %94 = vmatpush1.msra.mxu0 0.0
    %95 = vmatprep.subr.mxu0 0.0
    %96 = vmatpush1.msra.mxu0 0.0
    %97 = vmatprep.subr.mxu0 0.0
    %98 = vmatpush1.msra.mxu0 0.0
    %99 = vmatprep.subr.mxu0 0.0
    %100 = vmatpush1.msra.mxu0 0.0
    %101 = vmatprep.subr.mxu0 0.0
    %102 = vmatpush1.msra.mxu0 0.0
    %103 = vmatprep.subr.mxu0 0.0
    %104 = vmatpush1.msra.mxu0 0.0
    %105 = vmatprep.subr.mxu0 0.0
    %106 = vmatpush1.msra.mxu0 0.0
    %107 = vmatprep.subr.mxu0 0.0
    %108 = vmatpush1.msra.mxu0 0.0
    %109 = vmatprep.subr.mxu0 0.0
    %110 = vmatpush1.msra.mxu0 0.0
    %111 = vmatprep.subr.mxu0 0.0
    %112 = vmatpush1.msra.mxu0 0.0
    %113 = vmatprep.subr.mxu0 0.0
    %114 = vmatpush1.msra.mxu0 0.0
    %115 = vmatprep.subr.mxu0 0.0
    %116 = vmatpush1.msra.mxu0 0.0
    %117 = vmatprep.subr.mxu0 0.0
    %118 = vmatpush1.msra.mxu0 0.0
    %119 = vmatprep.subr.mxu0 0.0
    %120 = vmatpush1.msra.mxu0 0.0
    %121 = vmatprep.subr.mxu0 0.0
    %122 = vmatpush1.msra.mxu0 0.0
    %123 = vmatprep.subr.mxu0 0.0
    %124 = vmatpush1.msra.mxu0 0.0
    %125 = vmatprep.subr.mxu0 0.0
    %126 = vmatpush1.msra.mxu0 0.0
    %127 = vmatprep.subr.mxu0 0.0
    %128 = vmatpush1.msra.mxu0 0.0
    %129 = vmatprep.subr.mxu0 0.0
    %130 = vmatpush1.msra.mxu0 0.0
    %131 = vmatprep.subr.mxu0 0.0
    %132 = vmatpush1.msra.mxu0 0.0
    %133 = vmatprep.subr.mxu0 0.0
    %134 = vmatpush1.msra.mxu0 0.0
    %135 = vmatprep.subr.mxu0 0.0
    %136 = vmatpush1.msra.mxu0 0.0
    %137 = vmatprep.subr.mxu0 0.0
    %138 = vmatpush1.msra.mxu0 0.0
    %139 = vmatprep.mubr.f32.mxu0 0.0
    %140 = vmatmul.mubr.f32.gmra.mrb[0].mxu0 %v73
    %v141 = vpop.f32.mrb[0].mxu0
    %v142 = vadd.f32 %v67, %v141
    %v143 = vpop.f32.mrb[0].mxu0
    %144 = vdwg.mxu0
    %vm145 = vcmask 517120
    %v146 = vsel %vm145, %v142, 0.0
    %147 = vadd.xlane.f32.xlu0 %v146
    %v148 = vpop.xlane.xlu0 %147
    %v149 = vrcp.pop 64.0
    %v150 = vmul.f32 %v148, %v149
    %v151 = vsub.f32 %v142, %v150
    %v152 = vmul.f32 %v151, %v151
    %v153 = vsel %vm145, %v152, 0.0
    %154 = vadd.xlane.f32.xlu0 %v153
    %v155 = vpop.xlane.xlu0 %154
    %v156 = vmul.f32 %v155, %v149
    %v157 = vadd.f32 %v156, 1e-05
    %v158 = vrsqrt.pop %v157
    %v159 = vmul.f32 %v151, %v158
    %v160 = vld [vmem:[%s3] sm:$0x1]
    %v162 = vlaneseq
    %v163 = vshrl.u32 %v162, 7
    %v164 = vsub.s32 0, %v163
    %v165 = vrot.slane %v160, %v164
    %v167 = vmul.f32 %v159, %v165
    %v168 = vld [vmem:[%s4] sm:$0x1]
    %v170 = vlaneseq
    %v171 = vshrl.u32 %v170, 7
    %v172 = vsub.s32 0, %v171
    %v173 = vrot.slane %v168, %v172
    %v175 = vadd.f32 %v167, %v173
    %vm176 = vcmp.gt.f32.partialorder %v175, 0.0
    %v177 = vld [vmem:[%s5] sm:$0x1]
    %v179 = vlaneseq
    %v180 = vshrl.u32 %v179, 7
    %v181 = vsub.s32 0, %v180
    %v182 = vrot.slane %v177, %v181
    %v184 = vmul.f32 %v175, %v182
    %v185 = vsel %vm176, %v175, %v184
    %v186 = vld [vmem:[%s6] sm:$0xff]
    %v187 = vld [vmem:[%s6 + $0x8] sm:$0xff]
    %v188 = vld [vmem:[%s6 + $0x10] sm:$0xff]
    %v189 = vld [vmem:[%s6 + $0x18] sm:$0xff]
    %v190 = vld [vmem:[%s6 + $0x20] sm:$0xff]
    %v191 = vld [vmem:[%s6 + $0x28] sm:$0xff]
    %v192 = vld [vmem:[%s6 + $0x30] sm:$0xff]
    %v193 = vld [vmem:[%s6 + $0x38] sm:$0xff]
    %v194 = vld [vmem:[%s7] sm:$0x1]
    %v196 = vlaneseq
    %v197 = vshrl.u32 %v196, 7
    %v198 = vsub.s32 0, %v197
    %v199 = vrot.slane %v194, %v198
    %vm201 = vcmask 523264
    %v203 = vsel %vm201, %v185, 0
    %205 = vmatprep.subr.mxu0 0.0
    %206 = vmatpush1.msra.mxu0 %v186
    %207 = vmatprep.subr.mxu0 0.0
    %208 = vmatpush1.msra.mxu0 %v187
    %209 = vmatprep.subr.mxu0 0.0
    %210 = vmatpush1.msra.mxu0 %v188
    %211 = vmatprep.subr.mxu0 0.0
    %212 = vmatpush1.msra.mxu0 %v189
    %213 = vmatprep.subr.mxu0 0.0
    %214 = vmatpush1.msra.mxu0 %v190
    %215 = vmatprep.subr.mxu0 0.0
    %216 = vmatpush1.msra.mxu0 %v191
    %217 = vmatprep.subr.mxu0 0.0
    %218 = vmatpush1.msra.mxu0 %v192
    %219 = vmatprep.subr.mxu0 0.0
    %220 = vmatpush1.msra.mxu0 %v193
    %221 = vmatprep.subr.mxu0 0.0
    %222 = vmatpush1.msra.mxu0 0.0
    %223 = vmatprep.subr.mxu0 0.0
    %224 = vmatpush1.msra.mxu0 0.0
    %225 = vmatprep.subr.mxu0 0.0
    %226 = vmatpush1.msra.mxu0 0.0
    %227 = vmatprep.subr.mxu0 0.0
    %228 = vmatpush1.msra.mxu0 0.0
    %229 = vmatprep.subr.mxu0 0.0
    %230 = vmatpush1.msra.mxu0 0.0
    %231 = vmatprep.subr.mxu0 0.0
    %232 = vmatpush1.msra.mxu0 0.0
    %233 = vmatprep.subr.mxu0 0.0
    %234 = vmatpush1.msra.mxu0 0.0
    %235 = vmatprep.subr.mxu0 0.0
    %236 = vmatpush1.msra.mxu0 0.0
    %237 = vmatprep.subr.mxu0 0.0
    %238 = vmatpush1.msra.mxu0 0.0
    %239 = vmatprep.subr.mxu0 0.0
    %240 = vmatpush1.msra.mxu0 0.0
    %241 = vmatprep.subr.mxu0 0.0
    %242 = vmatpush1.msra.mxu0 0.0
    %243 = vmatprep.subr.mxu0 0.0
    %244 = vmatpush1.msra.mxu0 0.0
    %245 = vmatprep.subr.mxu0 0.0
    %246 = vmatpush1.msra.mxu0 0.0
    %247 = vmatprep.subr.mxu0 0.0
    %248 = vmatpush1.msra.mxu0 0.0
    %249 = vmatprep.subr.mxu0 0.0
    %250 = vmatpush1.msra.mxu0 0.0
    %251 = vmatprep.subr.mxu0 0.0
    %252 = vmatpush1.msra.mxu0 0.0
    %253 = vmatprep.subr.mxu0 0.0
    %254 = vmatpush1.msra.mxu0 0.0
    %255 = vmatprep.subr.mxu0 0.0
    %256 = vmatpush1.msra.mxu0 0.0
    %257 = vmatprep.subr.mxu0 0.0
    %258 = vmatpush1.msra.mxu0 0.0
    %259 = vmatprep.subr.mxu0 0.0
    %260 = vmatpush1.msra.mxu0 0.0
    %261 = vmatprep.subr.mxu0 0.0
    %262 = vmatpush1.msra.mxu0 0.0
    %263 = vmatprep.subr.mxu0 0.0
    %264 = vmatpush1.msra.mxu0 0.0
    %265 = vmatprep.subr.mxu0 0.0
    %266 = vmatpush1.msra.mxu0 0.0
    %267 = vmatprep.subr.mxu0 0.0
    %268 = vmatpush1.msra.mxu0 0.0
    %269 = vmatprep.mubr.f32.mxu0 0.0
    %270 = vmatmul.mubr.f32.gmra.mrb[0].mxu0 %v203
    %v271 = vpop.f32.mrb[0].mxu0
    %v272 = vadd.f32 %v199, %v271
    %v273 = vpop.f32.mrb[0].mxu0
    %274 = vdwg.mxu0
    %vm275 = vcmask 17408
    %276 = vst.msk [vmem:[#allocation2] sm:$0x3] %vm275, %v272
    // Predicated region
    $region34: #{sam2_classifier_forward.7} parent=1 // pred_check
      _
    $region35: #{sam2_classifier_forward.7} parent=1 // pred_check_branch
      %278 = sbr.rel (0) target = $region37
    $region36: #{sam2_classifier_forward.7} parent=1 // pred_region
      %s280 = ssub.s32 32, 32
      %281 = vsyncadd [#allocation3], %s280
      %s283 = sshll.u32 [#allocation2], 4
      %s284 = int_to_ptr.vmem [resolvable:$true] %s283
      %286 = dma.vmem_to_hbm [thread:$0]  %s284, 32, %s8, [#allocation3]
    $region37: #{sam2_classifier_forward.7} parent=1 // pred_fallthru
      _
    // Predicated region
    $region38: #{sam2_classifier_forward.7} parent=1 // pred_check
      _
    $region39: #{sam2_classifier_forward.7} parent=1 // pred_check_branch
      %288 = sbr.rel (0) target = $region41
    $region40: #{sam2_classifier_forward.7} parent=1 // pred_region
      %289 = dma.done [#allocation3], 32
    $region41: #{sam2_classifier_forward.7} parent=1 // pred_fallthru
      _
    %290 = vsyncpa [#allocation3], 1

// kernel: sam2_classifier_forward.4
$region0: #{sam2_classifier_forward.4}
  #allocation0 [shape = 'u32[]', space=smem, size = 0x4, offset = 0x4, fixed_abs, tag = 'smem constant byte address 0x4 - core index']
  #allocation1 [shape = 'u32[144,128]{1,0:T(1,128)}', space=vmem, size = 0x12000, scoped, tag = 'internal scratch']
  %s0 = inlined_call_operand.vmem [shape: bf16[512,4], index: 0, kind: input, shape index: {}]
  %s1 = inlined_call_operand.vmem [shape: bf16[512,1], index: 1, kind: input, shape index: {}]
  %s2 = inlined_call_operand.vmem [shape: bf16[4,32], index: 2, kind: input, shape index: {}]
  %s3 = inlined_call_operand.vmem [shape: bf16[4,32], index: 3, kind: input, shape index: {}]
  %s4 = inlined_call_operand.vmem [shape: f32[1,32], index: 4, kind: input, shape index: {}]
  %s5 = inlined_call_operand.vmem [shape: f32[1,32], index: 5, kind: input, shape index: {}]
  %s6 = inlined_call_operand.vmem [shape: bf16[512,32], index: 6, kind: output, shape index: {}]
  %s7 = sld [smem:[#allocation0]]
  $region34: #{sam2_classifier_forward.4} parent=0
    _
  %s9 = ssub.s32 1, %s7
  %s10 = scalar_select 0, %s9, %s7
  // Predicated region
  $region2: #{sam2_classifier_forward.4} parent=0 // pred_check
    _
  $region3: #{sam2_classifier_forward.4} parent=0 // pred_check_branch
    %12 = sbr.rel (0) target = $region5
  $region4: #{sam2_classifier_forward.4} parent=0 // pred_region
    _
  $region5: #{sam2_classifier_forward.4} parent=0 // pred_fallthru
    _
  // Predicated region
  $region6: #{sam2_classifier_forward.4} parent=0 // pred_check
    _
  $region7: #{sam2_classifier_forward.4} parent=0 // pred_check_branch
    %14 = sbr.rel (0) target = $region9
  $region8: #{sam2_classifier_forward.4} parent=0 // pred_region
    _
  $region9: #{sam2_classifier_forward.4} parent=0 // pred_fallthru
    _
  // Predicated region
  $region10: #{sam2_classifier_forward.4} parent=0 // pred_check
    _
  $region11: #{sam2_classifier_forward.4} parent=0 // pred_check_branch
    %16 = sbr.rel (0) target = $region13
  $region12: #{sam2_classifier_forward.4} parent=0 // pred_region
    _
  $region13: #{sam2_classifier_forward.4} parent=0 // pred_fallthru
    _
  // Predicated region
  $region14: #{sam2_classifier_forward.4} parent=0 // pred_check
    _
  $region15: #{sam2_classifier_forward.4} parent=0 // pred_check_branch
    %18 = sbr.rel (0) target = $region17
  $region16: #{sam2_classifier_forward.4} parent=0 // pred_region
    _
  $region17: #{sam2_classifier_forward.4} parent=0 // pred_fallthru
    _
  // Predicated region
  $region18: #{sam2_classifier_forward.4} parent=0 // pred_check
    _
  $region19: #{sam2_classifier_forward.4} parent=0 // pred_check_branch
    %20 = sbr.rel (0) target = $region21
  $region20: #{sam2_classifier_forward.4} parent=0 // pred_region
    _
  $region21: #{sam2_classifier_forward.4} parent=0 // pred_fallthru
    _
  // Predicated region
  $region22: #{sam2_classifier_forward.4} parent=0 // pred_check
    _
  $region23: #{sam2_classifier_forward.4} parent=0 // pred_check_branch
    %22 = sbr.rel (0) target = $region25
  $region24: #{sam2_classifier_forward.4} parent=0 // pred_region
    _
  $region25: #{sam2_classifier_forward.4} parent=0 // pred_fallthru
    _
  %v24 = vld [vmem:[%s0] sm:$0xf]
  %v25 = vld [vmem:[%s0 + $0x4] sm:$0xf]
  %v26 = vld [vmem:[%s0 + $0x8] sm:$0xf]
  %v27 = vld [vmem:[%s0 + $0xc] sm:$0xf]
  %v28 = vld [vmem:[%s0 + $0x10] sm:$0xf]
  %v29 = vld [vmem:[%s0 + $0x14] sm:$0xf]
  %v30 = vld [vmem:[%s0 + $0x18] sm:$0xf]
  %v31 = vld [vmem:[%s0 + $0x1c] sm:$0xf]
  %v32 = vld [vmem:[%s0 + $0x20] sm:$0xf]
  %v33 = vld [vmem:[%s0 + $0x24] sm:$0xf]
  %v34 = vld [vmem:[%s0 + $0x28] sm:$0xf]
  %v35 = vld [vmem:[%s0 + $0x2c] sm:$0xf]
  %v36 = vld [vmem:[%s0 + $0x30] sm:$0xf]
  %v37 = vld [vmem:[%s0 + $0x34] sm:$0xf]
  %v38 = vld [vmem:[%s0 + $0x38] sm:$0xf]
  %v39 = vld [vmem:[%s0 + $0x3c] sm:$0xf]
  %v40 = vld [vmem:[%s0 + $0x40] sm:$0xf]
  %v41 = vld [vmem:[%s0 + $0x44] sm:$0xf]
  %v42 = vld [vmem:[%s0 + $0x48] sm:$0xf]
  %v43 = vld [vmem:[%s0 + $0x4c] sm:$0xf]
  %v44 = vld [vmem:[%s0 + $0x50] sm:$0xf]
  %v45 = vld [vmem:[%s0 + $0x54] sm:$0xf]
  %v46 = vld [vmem:[%s0 + $0x58] sm:$0xf]
  %v47 = vld [vmem:[%s0 + $0x5c] sm:$0xf]
  %v48 = vld [vmem:[%s0 + $0x60] sm:$0xf]
  %v49 = vld [vmem:[%s0 + $0x64] sm:$0xf]
  %v50 = vld [vmem:[%s0 + $0x68] sm:$0xf]
  %v51 = vld [vmem:[%s0 + $0x6c] sm:$0xf]
  %v52 = vld [vmem:[%s0 + $0x70] sm:$0xf]
  %v53 = vld [vmem:[%s0 + $0x74] sm:$0xf]
  %v54 = vld [vmem:[%s0 + $0x78] sm:$0xf]
  %v55 = vld [vmem:[%s0 + $0x7c] sm:$0xf]
  %v56 = vld [vmem:[%s0 + $0x80] sm:$0xf]
  %v57 = vld [vmem:[%s0 + $0x84] sm:$0xf]
  %v58 = vld [vmem:[%s0 + $0x88] sm:$0xf]
  %v59 = vld [vmem:[%s0 + $0x8c] sm:$0xf]
  %v60 = vld [vmem:[%s0 + $0x90] sm:$0xf]
  %v61 = vld [vmem:[%s0 + $0x94] sm:$0xf]
  %v62 = vld [vmem:[%s0 + $0x98] sm:$0xf]
  %v63 = vld [vmem:[%s0 + $0x9c] sm:$0xf]
  %v64 = vld [vmem:[%s0 + $0xa0] sm:$0xf]
  %v65 = vld [vmem:[%s0 + $0xa4] sm:$0xf]
  %v66 = vld [vmem:[%s0 + $0xa8] sm:$0xf]
  %v67 = vld [vmem:[%s0 + $0xac] sm:$0xf]
  %v68 = vld [vmem:[%s0 + $0xb0] sm:$0xf]
  %v69 = vld [vmem:[%s0 + $0xb4] sm:$0xf]
  %v70 = vld [vmem:[%s0 + $0xb8] sm:$0xf]
  %v71 = vld [vmem:[%s0 + $0xbc] sm:$0xf]
  %v72 = vld [vmem:[%s0 + $0xc0] sm:$0xf]
  %v73 = vld [vmem:[%s0 + $0xc4] sm:$0xf]
  %v74 = vld [vmem:[%s0 + $0xc8] sm:$0xf]
  %v75 = vld [vmem:[%s0 + $0xcc] sm:$0xf]
  %v76 = vld [vmem:[%s0 + $0xd0] sm:$0xf]
  %v77 = vld [vmem:[%s0 + $0xd4] sm:$0xf]
  %v78 = vld [vmem:[%s0 + $0xd8] sm:$0xf]
  %v79 = vld [vmem:[%s0 + $0xdc] sm:$0xf]
  %v80 = vld [vmem:[%s0 + $0xe0] sm:$0xf]
  %v81 = vld [vmem:[%s0 + $0xe4] sm:$0xf]
  %v82 = vld [vmem:[%s0 + $0xe8] sm:$0xf]
  %v83 = vld [vmem:[%s0 + $0xec] sm:$0xf]
  %v84 = vld [vmem:[%s0 + $0xf0] sm:$0xf]
  %v85 = vld [vmem:[%s0 + $0xf4] sm:$0xf]
  %v86 = vld [vmem:[%s0 + $0xf8] sm:$0xf]
  %v87 = vld [vmem:[%s0 + $0xfc] sm:$0xf]
  %v88 = vld [vmem:[%s1] sm:$0xf]
  %v89 = vld [vmem:[%s1 + $0x4] sm:$0xf]
  %v90 = vld [vmem:[%s1 + $0x8] sm:$0xf]
  %v91 = vld [vmem:[%s1 + $0xc] sm:$0xf]
  %v92 = vld [vmem:[%s1 + $0x10] sm:$0xf]
  %v93 = vld [vmem:[%s1 + $0x14] sm:$0xf]
  %v94 = vld [vmem:[%s1 + $0x18] sm:$0xf]
  %v95 = vld [vmem:[%s1 + $0x1c] sm:$0xf]
  %v96 = vld [vmem:[%s1 + $0x20] sm:$0xf]
  %v97 = vld [vmem:[%s1 + $0x24] sm:$0xf]
  %v98 = vld [vmem:[%s1 + $0x28] sm:$0xf]
  %v99 = vld [vmem:[%s1 + $0x2c] sm:$0xf]
  %v100 = vld [vmem:[%s1 + $0x30] sm:$0xf]
  %v101 = vld [vmem:[%s1 + $0x34] sm:$0xf]
  %v102 = vld [vmem:[%s1 + $0x38] sm:$0xf]
  %v103 = vld [vmem:[%s1 + $0x3c] sm:$0xf]
  %v104 = vld [vmem:[%s1 + $0x40] sm:$0xf]
  %v105 = vld [vmem:[%s1 + $0x44] sm:$0xf]
  %v106 = vld [vmem:[%s1 + $0x48] sm:$0xf]
  %v107 = vld [vmem:[%s1 + $0x4c] sm:$0xf]
  %v108 = vld [vmem:[%s1 + $0x50] sm:$0xf]
  %v109 = vld [vmem:[%s1 + $0x54] sm:$0xf]
  %v110 = vld [vmem:[%s1 + $0x58] sm:$0xf]
  %v111 = vld [vmem:[%s1 + $0x5c] sm:$0xf]
  %v112 = vld [vmem:[%s1 + $0x60] sm:$0xf]
  %v113 = vld [vmem:[%s1 + $0x64] sm:$0xf]
  %v114 = vld [vmem:[%s1 + $0x68] sm:$0xf]
  %v115 = vld [vmem:[%s1 + $0x6c] sm:$0xf]
  %v116 = vld [vmem:[%s1 + $0x70] sm:$0xf]
  %v117 = vld [vmem:[%s1 + $0x74] sm:$0xf]
  %v118 = vld [vmem:[%s1 + $0x78] sm:$0xf]
  %v119 = vld [vmem:[%s1 + $0x7c] sm:$0xf]
  %v120 = vld [vmem:[%s1 + $0x80] sm:$0xf]
  %v121 = vld [vmem:[%s1 + $0x84] sm:$0xf]
  %v122 = vld [vmem:[%s1 + $0x88] sm:$0xf]
  %v123 = vld [vmem:[%s1 + $0x8c] sm:$0xf]
  %v124 = vld [vmem:[%s1 + $0x90] sm:$0xf]
  %v125 = vld [vmem:[%s1 + $0x94] sm:$0xf]
  %v126 = vld [vmem:[%s1 + $0x98] sm:$0xf]
  %v127 = vld [vmem:[%s1 + $0x9c] sm:$0xf]
  %v128 = vld [vmem:[%s1 + $0xa0] sm:$0xf]
  %v129 = vld [vmem:[%s1 + $0xa4] sm:$0xf]
  %v130 = vld [vmem:[%s1 + $0xa8] sm:$0xf]
  %v131 = vld [vmem:[%s1 + $0xac] sm:$0xf]
  %v132 = vld [vmem:[%s1 + $0xb0] sm:$0xf]
  %v133 = vld [vmem:[%s1 + $0xb4] sm:$0xf]
  %v134 = vld [vmem:[%s1 + $0xb8] sm:$0xf]
  %v135 = vld [vmem:[%s1 + $0xbc] sm:$0xf]
  %v136 = vld [vmem:[%s1 + $0xc0] sm:$0xf]
  %v137 = vld [vmem:[%s1 + $0xc4] sm:$0xf]
  %v138 = vld [vmem:[%s1 + $0xc8] sm:$0xf]
  %v139 = vld [vmem:[%s1 + $0xcc] sm:$0xf]
  %v140 = vld [vmem:[%s1 + $0xd0] sm:$0xf]
  %v141 = vld [vmem:[%s1 + $0xd4] sm:$0xf]
  %v142 = vld [vmem:[%s1 + $0xd8] sm:$0xf]
  %v143 = vld [vmem:[%s1 + $0xdc] sm:$0xf]
  %v144 = vld [vmem:[%s1 + $0xe0] sm:$0xf]
  %v145 = vld [vmem:[%s1 + $0xe4] sm:$0xf]
  %v146 = vld [vmem:[%s1 + $0xe8] sm:$0xf]
  %v147 = vld [vmem:[%s1 + $0xec] sm:$0xf]
  %v148 = vld [vmem:[%s1 + $0xf0] sm:$0xf]
  %v149 = vld [vmem:[%s1 + $0xf4] sm:$0xf]
  %v150 = vld [vmem:[%s1 + $0xf8] sm:$0xf]
  %v151 = vld [vmem:[%s1 + $0xfc] sm:$0xf]
  %153 = vset.pattern.permute.xlu0 0
  %154 = vperm.xlu0 %153, %v88
  %v155 = vpop.permute.xlu0 %154
  %v158 = vunpack.c.l.s4 839922192
  %v159 = vunpack.c.0.s8 %v158
  %v160 = vlaneseq
  %v161 = vshrl.u32 %v160, 7
  %v162 = vsub.s32 %v159, %v161
  %v163 = vrot.slane %v155, %v162
  %165 = vset.pattern.permute.xlu0 0
  %166 = vperm.xlu0 %165, %v89
  %v167 = vpop.permute.xlu0 %166
  %v170 = vunpack.c.l.s4 839922192
  %v171 = vunpack.c.0.s8 %v170
  %v172 = vlaneseq
  %v173 = vshrl.u32 %v172, 7
  %v174 = vsub.s32 %v171, %v173
  %v175 = vrot.slane %v167, %v174
  %177 = vset.pattern.permute.xlu0 0
  %178 = vperm.xlu0 %177, %v90
  %v179 = vpop.permute.xlu0 %178
  %v182 = vunpack.c.l.s4 839922192
  %v183 = vunpack.c.0.s8 %v182
  %v184 = vlaneseq
  %v185 = vshrl.u32 %v184, 7
  %v186 = vsub.s32 %v183, %v185
  %v187 = vrot.slane %v179, %v186
  %189 = vset.pattern.permute.xlu0 0
  %190 = vperm.xlu0 %189, %v91
  %v191 = vpop.permute.xlu0 %190
  %v194 = vunpack.c.l.s4 839922192
  %v195 = vunpack.c.0.s8 %v194
  %v196 = vlaneseq
  %v197 = vshrl.u32 %v196, 7
  %v198 = vsub.s32 %v195, %v197
  %v199 = vrot.slane %v191, %v198
  %201 = vset.pattern.permute.xlu0 0
  %202 = vperm.xlu0 %201, %v92
  %v203 = vpop.permute.xlu0 %202
  %v206 = vunpack.c.l.s4 839922192
  %v207 = vunpack.c.0.s8 %v206
  %v208 = vlaneseq
  %v209 = vshrl.u32 %v208, 7
  %v210 = vsub.s32 %v207, %v209
  %v211 = vrot.slane %v203, %v210
  %213 = vset.pattern.permute.xlu0 0
  %214 = vperm.xlu0 %213, %v93
  %v215 = vpop.permute.xlu0 %214
  %v218 = vunpack.c.l.s4 839922192
  %v219 = vunpack.c.0.s8 %v218
  %v220 = vlaneseq
  %v221 = vshrl.u32 %v220, 7
  %v222 = vsub.s32 %v219, %v221
  %v223 = vrot.slane %v215, %v222
  %225 = vset.pattern.permute.xlu0 0
  %226 = vperm.xlu0 %225, %v94
  %v227 = vpop.permute.xlu0 %226
  %v230 = vunpack.c.l.s4 839922192
  %v231 = vunpack.c.0.s8 %v230
  %v232 = vlaneseq
  %v233 = vshrl.u32 %v232, 7
  %v234 = vsub.s32 %v231, %v233
  %v235 = vrot.slane %v227, %v234
  %237 = vset.pattern.permute.xlu0 0
  %238 = vperm.xlu0 %237, %v95
  %v239 = vpop.permute.xlu0 %238
  %v242 = vunpack.c.l.s4 839922192
  %v243 = vunpack.c.0.s8 %v242
  %v244 = vlaneseq
  %v245 = vshrl.u32 %v244, 7
  %v246 = vsub.s32 %v243, %v245
  %v247 = vrot.slane %v239, %v246
  %249 = vset.pattern.permute.xlu0 0
  %250 = vperm.xlu0 %249, %v96
  %v251 = vpop.permute.xlu0 %250
  %v254 = vunpack.c.l.s4 839922192
  %v255 = vunpack.c.0.s8 %v254
  %v256 = vlaneseq
  %v257 = vshrl.u32 %v256, 7
  %v258 = vsub.s32 %v255, %v257
  %v259 = vrot.slane %v251, %v258
  %261 = vset.pattern.permute.xlu0 0
  %262 = vperm.xlu0 %261, %v97
  %v263 = vpop.permute.xlu0 %262
  %v266 = vunpack.c.l.s4 839922192
  %v267 = vunpack.c.0.s8 %v266
  %v268 = vlaneseq
  %v269 = vshrl.u32 %v268, 7
  %v270 = vsub.s32 %v267, %v269
  %v271 = vrot.slane %v263, %v270
  %273 = vset.pattern.permute.xlu0 0
  %274 = vperm.xlu0 %273, %v98
  %v275 = vpop.permute.xlu0 %274
  %v278 = vunpack.c.l.s4 839922192
  %v279 = vunpack.c.0.s8 %v278
  %v280 = vlaneseq
  %v281 = vshrl.u32 %v280, 7
  %v282 = vsub.s32 %v279, %v281
  %v283 = vrot.slane %v275, %v282
  %285 = vset.pattern.permute.xlu0 0
  %286 = vperm.xlu0 %285, %v99
  %v287 = vpop.permute.xlu0 %286
  %v290 = vunpack.c.l.s4 839922192
  %v291 = vunpack.c.0.s8 %v290
  %v292 = vlaneseq
  %v293 = vshrl.u32 %v292, 7
  %v294 = vsub.s32 %v291, %v293
  %v295 = vrot.slane %v287, %v294
  %297 = vset.pattern.permute.xlu0 0
  %298 = vperm.xlu0 %297, %v100
  %v299 = vpop.permute.xlu0 %298
  %v302 = vunpack.c.l.s4 839922192
  %v303 = vunpack.c.0.s8 %v302
  %v304 = vlaneseq
  %v305 = vshrl.u32 %v304, 7
  %v306 = vsub.s32 %v303, %v305
  %v307 = vrot.slane %v299, %v306
  %309 = vset.pattern.permute.xlu0 0
  %310 = vperm.xlu0 %309, %v101
  %v311 = vpop.permute.xlu0 %310
  %v314 = vunpack.c.l.s4 839922192
  %v315 = vunpack.c.0.s8 %v314
  %v316 = vlaneseq
  %v317 = vshrl.u32 %v316, 7
  %v318 = vsub.s32 %v315, %v317
  %v319 = vrot.slane %v311, %v318
  %321 = vset.pattern.permute.xlu0 0
  %322 = vperm.xlu0 %321, %v102
  %v323 = vpop.permute.xlu0 %322
  %v326 = vunpack.c.l.s4 839922192
  %v327 = vunpack.c.0.s8 %v326
  %v328 = vlaneseq
  %v329 = vshrl.u32 %v328, 7
  %v330 = vsub.s32 %v327, %v329
  %v331 = vrot.slane %v323, %v330
  %333 = vset.pattern.permute.xlu0 0
  %334 = vperm.xlu0 %333, %v103
  %v335 = vpop.permute.xlu0 %334
  %v338 = vunpack.c.l.s4 839922192
  %v339 = vunpack.c.0.s8 %v338
  %v340 = vlaneseq
  %v341 = vshrl.u32 %v340, 7
  %v342 = vsub.s32 %v339, %v341
  %v343 = vrot.slane %v335, %v342
  %345 = vset.pattern.permute.xlu0 0
  %346 = vperm.xlu0 %345, %v104
  %v347 = vpop.permute.xlu0 %346
  %v350 = vunpack.c.l.s4 839922192
  %v351 = vunpack.c.0.s8 %v350
  %v352 = vlaneseq
  %v353 = vshrl.u32 %v352, 7
  %v354 = vsub.s32 %v351, %v353
  %v355 = vrot.slane %v347, %v354
  %357 = vset.pattern.permute.xlu0 0
  %358 = vperm.xlu0 %357, %v105
  %v359 = vpop.permute.xlu0 %358
  %v362 = vunpack.c.l.s4 839922192
  %v363 = vunpack.c.0.s8 %v362
  %v364 = vlaneseq
  %v365 = vshrl.u32 %v364, 7
  %v366 = vsub.s32 %v363, %v365
  %v367 = vrot.slane %v359, %v366
  %369 = vset.pattern.permute.xlu0 0
  %370 = vperm.xlu0 %369, %v106
  %v371 = vpop.permute.xlu0 %370
  %v374 = vunpack.c.l.s4 839922192
  %v375 = vunpack.c.0.s8 %v374
  %v376 = vlaneseq
  %v377 = vshrl.u32 %v376, 7
  %v378 = vsub.s32 %v375, %v377
  %v379 = vrot.slane %v371, %v378
  %381 = vset.pattern.permute.xlu0 0
  %382 = vperm.xlu0 %381, %v107
  %v383 = vpop.permute.xlu0 %382
  %v386 = vunpack.c.l.s4 839922192
  %v387 = vunpack.c.0.s8 %v386
  %v388 = vlaneseq
  %v389 = vshrl.u32 %v388, 7
  %v390 = vsub.s32 %v387, %v389
  %v391 = vrot.slane %v383, %v390
  %393 = vset.pattern.permute.xlu0 0
  %394 = vperm.xlu0 %393, %v108
  %v395 = vpop.permute.xlu0 %394
  %v398 = vunpack.c.l.s4 839922192
  %v399 = vunpack.c.0.s8 %v398
  %v400 = vlaneseq
  %v401 = vshrl.u32 %v400, 7
  %v402 = vsub.s32 %v399, %v401
  %v403 = vrot.slane %v395, %v402
  %405 = vset.pattern.permute.xlu0 0
  %406 = vperm.xlu0 %405, %v109
  %v407 = vpop.permute.xlu0 %406
  %v410 = vunpack.c.l.s4 839922192
  %v411 = vunpack.c.0.s8 %v410
  %v412 = vlaneseq
  %v413 = vshrl.u32 %v412, 7
  %v414 = vsub.s32 %v411, %v413
  %v415 = vrot.slane %v407, %v414
  %417 = vset.pattern.permute.xlu0 0
  %418 = vperm.xlu0 %417, %v110
  %v419 = vpop.permute.xlu0 %418
  %v422 = vunpack.c.l.s4 839922192
  %v423 = vunpack.c.0.s8 %v422
  %v424 = vlaneseq
  %v425 = vshrl.u32 %v424, 7
  %v426 = vsub.s32 %v423, %v425
  %v427 = vrot.slane %v419, %v426
  %429 = vset.pattern.permute.xlu0 0
  %430 = vperm.xlu0 %429, %v111
  %v431 = vpop.permute.xlu0 %430
  %v434 = vunpack.c.l.s4 839922192
  %v435 = vunpack.c.0.s8 %v434
  %v436 = vlaneseq
  %v437 = vshrl.u32 %v436, 7
  %v438 = vsub.s32 %v435, %v437
  %v439 = vrot.slane %v431, %v438
  %441 = vset.pattern.permute.xlu0 0
  %442 = vperm.xlu0 %441, %v112
  %v443 = vpop.permute.xlu0 %442
  %v446 = vunpack.c.l.s4 839922192
  %v447 = vunpack.c.0.s8 %v446
  %v448 = vlaneseq
  %v449 = vshrl.u32 %v448, 7
  %v450 = vsub.s32 %v447, %v449
  %v451 = vrot.slane %v443, %v450
  %453 = vset.pattern.permute.xlu0 0
  %454 = vperm.xlu0 %453, %v113
  %v455 = vpop.permute.xlu0 %454
  %v458 = vunpack.c.l.s4 839922192
  %v459 = vunpack.c.0.s8 %v458
  %v460 = vlaneseq
  %v461 = vshrl.u32 %v460, 7
  %v462 = vsub.s32 %v459, %v461
  %v463 = vrot.slane %v455, %v462
  %465 = vset.pattern.permute.xlu0 0
  %466 = vperm.xlu0 %465, %v114
  %v467 = vpop.permute.xlu0 %466
  %v470 = vunpack.c.l.s4 839922192
  %v471 = vunpack.c.0.s8 %v470
  %v472 = vlaneseq
  %v473 = vshrl.u32 %v472, 7
  %v474 = vsub.s32 %v471, %v473
  %v475 = vrot.slane %v467, %v474
  %477 = vset.pattern.permute.xlu0 0
  %478 = vperm.xlu0 %477, %v115
  %v479 = vpop.permute.xlu0 %478
  %v482 = vunpack.c.l.s4 839922192
  %v483 = vunpack.c.0.s8 %v482
  %v484 = vlaneseq
  %v485 = vshrl.u32 %v484, 7
  %v486 = vsub.s32 %v483, %v485
  %v487 = vrot.slane %v479, %v486
  %489 = vset.pattern.permute.xlu0 0
  %490 = vperm.xlu0 %489, %v116
  %v491 = vpop.permute.xlu0 %490
  %v494 = vunpack.c.l.s4 839922192
  %v495 = vunpack.c.0.s8 %v494
  %v496 = vlaneseq
  %v497 = vshrl.u32 %v496, 7
  %v498 = vsub.s32 %v495, %v497
  %v499 = vrot.slane %v491, %v498
  %501 = vset.pattern.permute.xlu0 0
  %502 = vperm.xlu0 %501, %v117
  %v503 = vpop.permute.xlu0 %502
  %v506 = vunpack.c.l.s4 839922192
  %v507 = vunpack.c.0.s8 %v506
  %v508 = vlaneseq
  %v509 = vshrl.u32 %v508, 7
  %v510 = vsub.s32 %v507, %v509
  %v511 = vrot.slane %v503, %v510
  %513 = vset.pattern.permute.xlu0 0
  %514 = vperm.xlu0 %513, %v118
  %v515 = vpop.permute.xlu0 %514
  %v518 = vunpack.c.l.s4 839922192
  %v519 = vunpack.c.0.s8 %v518
  %v520 = vlaneseq
  %v521 = vshrl.u32 %v520, 7
  %v522 = vsub.s32 %v519, %v521
  %v523 = vrot.slane %v515, %v522
  %525 = vset.pattern.permute.xlu0 0
  %526 = vperm.xlu0 %525, %v119
  %v527 = vpop.permute.xlu0 %526
  %v530 = vunpack.c.l.s4 839922192
  %v531 = vunpack.c.0.s8 %v530
  %v532 = vlaneseq
  %v533 = vshrl.u32 %v532, 7
  %v534 = vsub.s32 %v531, %v533
  %v535 = vrot.slane %v527, %v534
  %537 = vset.pattern.permute.xlu0 0
  %538 = vperm.xlu0 %537, %v120
  %v539 = vpop.permute.xlu0 %538
  %v542 = vunpack.c.l.s4 839922192
  %v543 = vunpack.c.0.s8 %v542
  %v544 = vlaneseq
  %v545 = vshrl.u32 %v544, 7
  %v546 = vsub.s32 %v543, %v545
  %v547 = vrot.slane %v539, %v546
  %549 = vset.pattern.permute.xlu0 0
  %550 = vperm.xlu0 %549, %v121
  %v551 = vpop.permute.xlu0 %550
  %v554 = vunpack.c.l.s4 839922192
  %v555 = vunpack.c.0.s8 %v554
  %v556 = vlaneseq
  %v557 = vshrl.u32 %v556, 7
  %v558 = vsub.s32 %v555, %v557
  %v559 = vrot.slane %v551, %v558
  %561 = vset.pattern.permute.xlu0 0
  %562 = vperm.xlu0 %561, %v122
  %v563 = vpop.permute.xlu0 %562
  %v566 = vunpack.c.l.s4 839922192
  %v567 = vunpack.c.0.s8 %v566
  %v568 = vlaneseq
  %v569 = vshrl.u32 %v568, 7
  %v570 = vsub.s32 %v567, %v569
  %v571 = vrot.slane %v563, %v570
  %573 = vset.pattern.permute.xlu0 0
  %574 = vperm.xlu0 %573, %v123
  %v575 = vpop.permute.xlu0 %574
  %v578 = vunpack.c.l.s4 839922192
  %v579 = vunpack.c.0.s8 %v578
  %v580 = vlaneseq
  %v581 = vshrl.u32 %v580, 7
  %v582 = vsub.s32 %v579, %v581
  %v583 = vrot.slane %v575, %v582
  %585 = vset.pattern.permute.xlu0 0
  %586 = vperm.xlu0 %585, %v124
  %v587 = vpop.permute.xlu0 %586
  %v590 = vunpack.c.l.s4 839922192
  %v591 = vunpack.c.0.s8 %v590
  %v592 = vlaneseq
  %v593 = vshrl.u32 %v592, 7
  %v594 = vsub.s32 %v591, %v593
  %v595 = vrot.slane %v587, %v594
  %597 = vset.pattern.permute.xlu0 0
  %598 = vperm.xlu0 %597, %v125
  %v599 = vpop.permute.xlu0 %598
  %v602 = vunpack.c.l.s4 839922192
  %v603 = vunpack.c.0.s8 %v602
  %v604 = vlaneseq
  %v605 = vshrl.u32 %v604, 7
  %v606 = vsub.s32 %v603, %v605
  %v607 = vrot.slane %v599, %v606
  %609 = vset.pattern.permute.xlu0 0
  %610 = vperm.xlu0 %609, %v126
  %v611 = vpop.permute.xlu0 %610
  %v614 = vunpack.c.l.s4 839922192
  %v615 = vunpack.c.0.s8 %v614
  %v616 = vlaneseq
  %v617 = vshrl.u32 %v616, 7
  %v618 = vsub.s32 %v615, %v617
  %v619 = vrot.slane %v611, %v618
  %621 = vset.pattern.permute.xlu0 0
  %622 = vperm.xlu0 %621, %v127
  %v623 = vpop.permute.xlu0 %622
  %v626 = vunpack.c.l.s4 839922192
  %v627 = vunpack.c.0.s8 %v626
  %v628 = vlaneseq
  %v629 = vshrl.u32 %v628, 7
  %v630 = vsub.s32 %v627, %v629
  %v631 = vrot.slane %v623, %v630
  %633 = vset.pattern.permute.xlu0 0
  %634 = vperm.xlu0 %633, %v128
  %v635 = vpop.permute.xlu0 %634
  %v638 = vunpack.c.l.s4 839922192
  %v639 = vunpack.c.0.s8 %v638
  %v640 = vlaneseq
  %v641 = vshrl.u32 %v640, 7
  %v642 = vsub.s32 %v639, %v641
  %v643 = vrot.slane %v635, %v642
  %645 = vset.pattern.permute.xlu0 0
  %646 = vperm.xlu0 %645, %v129
  %v647 = vpop.permute.xlu0 %646
  %v650 = vunpack.c.l.s4 839922192
  %v651 = vunpack.c.0.s8 %v650
  %v652 = vlaneseq
  %v653 = vshrl.u32 %v652, 7
  %v654 = vsub.s32 %v651, %v653
  %v655 = vrot.slane %v647, %v654
  %657 = vset.pattern.permute.xlu0 0
  %658 = vperm.xlu0 %657, %v130
  %v659 = vpop.permute.xlu0 %658
  %v662 = vunpack.c.l.s4 839922192
  %v663 = vunpack.c.0.s8 %v662
  %v664 = vlaneseq
  %v665 = vshrl.u32 %v664, 7
  %v666 = vsub.s32 %v663, %v665
  %v667 = vrot.slane %v659, %v666
  %669 = vset.pattern.permute.xlu0 0
  %670 = vperm.xlu0 %669, %v131
  %v671 = vpop.permute.xlu0 %670
  %v674 = vunpack.c.l.s4 839922192
  %v675 = vunpack.c.0.s8 %v674
  %v676 = vlaneseq
  %v677 = vshrl.u32 %v676, 7
  %v678 = vsub.s32 %v675, %v677
  %v679 = vrot.slane %v671, %v678
  %681 = vset.pattern.permute.xlu0 0
  %682 = vperm.xlu0 %681, %v132
  %v683 = vpop.permute.xlu0 %682
  %v686 = vunpack.c.l.s4 839922192
  %v687 = vunpack.c.0.s8 %v686
  %v688 = vlaneseq
  %v689 = vshrl.u32 %v688, 7
  %v690 = vsub.s32 %v687, %v689
  %v691 = vrot.slane %v683, %v690
  %693 = vset.pattern.permute.xlu0 0
  %694 = vperm.xlu0 %693, %v133
  %v695 = vpop.permute.xlu0 %694
  %v698 = vunpack.c.l.s4 839922192
  %v699 = vunpack.c.0.s8 %v698
  %v700 = vlaneseq
  %v701 = vshrl.u32 %v700, 7
  %v702 = vsub.s32 %v699, %v701
  %v703 = vrot.slane %v695, %v702
  %705 = vset.pattern.permute.xlu0 0
  %706 = vperm.xlu0 %705, %v134
  %v707 = vpop.permute.xlu0 %706
  %v710 = vunpack.c.l.s4 839922192
  %v711 = vunpack.c.0.s8 %v710
  %v712 = vlaneseq
  %v713 = vshrl.u32 %v712, 7
  %v714 = vsub.s32 %v711, %v713
  %v715 = vrot.slane %v707, %v714
  %717 = vset.pattern.permute.xlu0 0
  %718 = vperm.xlu0 %717, %v135
  %v719 = vpop.permute.xlu0 %718
  %v722 = vunpack.c.l.s4 839922192
  %v723 = vunpack.c.0.s8 %v722
  %v724 = vlaneseq
  %v725 = vshrl.u32 %v724, 7
  %v726 = vsub.s32 %v723, %v725
  %v727 = vrot.slane %v719, %v726
  %729 = vset.pattern.permute.xlu0 0
  %730 = vperm.xlu0 %729, %v136
  %v731 = vpop.permute.xlu0 %730
  %v734 = vunpack.c.l.s4 839922192
  %v735 = vunpack.c.0.s8 %v734
  %v736 = vlaneseq
  %v737 = vshrl.u32 %v736, 7
  %v738 = vsub.s32 %v735, %v737
  %v739 = vrot.slane %v731, %v738
  %741 = vset.pattern.permute.xlu0 0
  %742 = vperm.xlu0 %741, %v137
  %v743 = vpop.permute.xlu0 %742
  %v746 = vunpack.c.l.s4 839922192
  %v747 = vunpack.c.0.s8 %v746
  %v748 = vlaneseq
  %v749 = vshrl.u32 %v748, 7
  %v750 = vsub.s32 %v747, %v749
  %v751 = vrot.slane %v743, %v750
  %753 = vset.pattern.permute.xlu0 0
  %754 = vperm.xlu0 %753, %v138
  %v755 = vpop.permute.xlu0 %754
  %v758 = vunpack.c.l.s4 839922192
  %v759 = vunpack.c.0.s8 %v758
  %v760 = vlaneseq
  %v761 = vshrl.u32 %v760, 7
  %v762 = vsub.s32 %v759, %v761
  %v763 = vrot.slane %v755, %v762
  %765 = vset.pattern.permute.xlu0 0
  %766 = vperm.xlu0 %765, %v139
  %v767 = vpop.permute.xlu0 %766
  %v770 = vunpack.c.l.s4 839922192
  %v771 = vunpack.c.0.s8 %v770
  %v772 = vlaneseq
  %v773 = vshrl.u32 %v772, 7
  %v774 = vsub.s32 %v771, %v773
  %v775 = vrot.slane %v767, %v774
  %777 = vset.pattern.permute.xlu0 0
  %778 = vperm.xlu0 %777, %v140
  %v779 = vpop.permute.xlu0 %778
  %v782 = vunpack.c.l.s4 839922192
  %v783 = vunpack.c.0.s8 %v782
  %v784 = vlaneseq
  %v785 = vshrl.u32 %v784, 7
  %v786 = vsub.s32 %v783, %v785
  %v787 = vrot.slane %v779, %v786
  %789 = vset.pattern.permute.xlu0 0
  %790 = vperm.xlu0 %789, %v141
  %v791 = vpop.permute.xlu0 %790
  %v794 = vunpack.c.l.s4 839922192
  %v795 = vunpack.c.0.s8 %v794
  %v796 = vlaneseq
  %v797 = vshrl.u32 %v796, 7
  %v798 = vsub.s32 %v795, %v797
  %v799 = vrot.slane %v791, %v798
  %801 = vset.pattern.permute.xlu0 0
  %802 = vperm.xlu0 %801, %v142
  %v803 = vpop.permute.xlu0 %802
  %v806 = vunpack.c.l.s4 839922192
  %v807 = vunpack.c.0.s8 %v806
  %v808 = vlaneseq
  %v809 = vshrl.u32 %v808, 7
  %v810 = vsub.s32 %v807, %v809
  %v811 = vrot.slane %v803, %v810
  %813 = vset.pattern.permute.xlu0 0
  %814 = vperm.xlu0 %813, %v143
  %v815 = vpop.permute.xlu0 %814
  %v818 = vunpack.c.l.s4 839922192
  %v819 = vunpack.c.0.s8 %v818
  %v820 = vlaneseq
  %v821 = vshrl.u32 %v820, 7
  %v822 = vsub.s32 %v819, %v821
  %v823 = vrot.slane %v815, %v822
  %825 = vset.pattern.permute.xlu0 0
  %826 = vperm.xlu0 %825, %v144
  %v827 = vpop.permute.xlu0 %826
  %v830 = vunpack.c.l.s4 839922192
  %v831 = vunpack.c.0.s8 %v830
  %v832 = vlaneseq
  %v833 = vshrl.u32 %v832, 7
  %v834 = vsub.s32 %v831, %v833
  %v835 = vrot.slane %v827, %v834
  %837 = vset.pattern.permute.xlu0 0
  %838 = vperm.xlu0 %837, %v145
  %v839 = vpop.permute.xlu0 %838
  %v842 = vunpack.c.l.s4 839922192
  %v843 = vunpack.c.0.s8 %v842
  %v844 = vlaneseq
  %v845 = vshrl.u32 %v844, 7
  %v846 = vsub.s32 %v843, %v845
  %v847 = vrot.slane %v839, %v846
  %849 = vset.pattern.permute.xlu0 0
  %850 = vperm.xlu0 %849, %v146
  %v851 = vpop.permute.xlu0 %850
  %v854 = vunpack.c.l.s4 839922192
  %v855 = vunpack.c.0.s8 %v854
  %v856 = vlaneseq
  %v857 = vshrl.u32 %v856, 7
  %v858 = vsub.s32 %v855, %v857
  %v859 = vrot.slane %v851, %v858
  %861 = vset.pattern.permute.xlu0 0
  %862 = vperm.xlu0 %861, %v147
  %v863 = vpop.permute.xlu0 %862
  %v866 = vunpack.c.l.s4 839922192
  %v867 = vunpack.c.0.s8 %v866
  %v868 = vlaneseq
  %v869 = vshrl.u32 %v868, 7
  %v870 = vsub.s32 %v867, %v869
  %v871 = vrot.slane %v863, %v870
  %873 = vset.pattern.permute.xlu0 0
  %874 = vperm.xlu0 %873, %v148
  %v875 = vpop.permute.xlu0 %874
  %v878 = vunpack.c.l.s4 839922192
  %v879 = vunpack.c.0.s8 %v878
  %v880 = vlaneseq
  %v881 = vshrl.u32 %v880, 7
  %v882 = vsub.s32 %v879, %v881
  %v883 = vrot.slane %v875, %v882
  %885 = vset.pattern.permute.xlu0 0
  %886 = vperm.xlu0 %885, %v149
  %v887 = vpop.permute.xlu0 %886
  %v890 = vunpack.c.l.s4 839922192
  %v891 = vunpack.c.0.s8 %v890
  %v892 = vlaneseq
  %v893 = vshrl.u32 %v892, 7
  %v894 = vsub.s32 %v891, %v893
  %v895 = vrot.slane %v887, %v894
  %897 = vset.pattern.permute.xlu0 0
  %898 = vperm.xlu0 %897, %v150
  %v899 = vpop.permute.xlu0 %898
  %v902 = vunpack.c.l.s4 839922192
  %v903 = vunpack.c.0.s8 %v902
  %v904 = vlaneseq
  %v905 = vshrl.u32 %v904, 7
  %v906 = vsub.s32 %v903, %v905
  %v907 = vrot.slane %v899, %v906
  %909 = vset.pattern.permute.xlu0 0
  %910 = vperm.xlu0 %909, %v151
  %v911 = vpop.permute.xlu0 %910
  %v914 = vunpack.c.l.s4 839922192
  %v915 = vunpack.c.0.s8 %v914
  %v916 = vlaneseq
  %v917 = vshrl.u32 %v916, 7
  %v918 = vsub.s32 %v915, %v917
  %v919 = vrot.slane %v911, %v918
  %v920 = vmul.bf16 %v24, %v163
  %v921 = vmul.bf16 %v25, %v175
  %v922 = vmul.bf16 %v26, %v187
  %v923 = vmul.bf16 %v27, %v199
  %v924 = vmul.bf16 %v28, %v211
  %v925 = vmul.bf16 %v29, %v223
  %v926 = vmul.bf16 %v30, %v235
  %v927 = vmul.bf16 %v31, %v247
  %v928 = vmul.bf16 %v32, %v259
  %v929 = vmul.bf16 %v33, %v271
  %v930 = vmul.bf16 %v34, %v283
  %v931 = vmul.bf16 %v35, %v295
  %v932 = vmul.bf16 %v36, %v307
  %v933 = vmul.bf16 %v37, %v319
  %v934 = vmul.bf16 %v38, %v331
  %v935 = vmul.bf16 %v39, %v343
  %v936 = vmul.bf16 %v40, %v355
  %v937 = vmul.bf16 %v41, %v367
  %v938 = vmul.bf16 %v42, %v379
  %v939 = vmul.bf16 %v43, %v391
  %v940 = vmul.bf16 %v44, %v403
  %v941 = vmul.bf16 %v45, %v415
  %v942 = vmul.bf16 %v46, %v427
  %v943 = vmul.bf16 %v47, %v439
  %v944 = vmul.bf16 %v48, %v451
  %v945 = vmul.bf16 %v49, %v463
  %v946 = vmul.bf16 %v50, %v475
  %v947 = vmul.bf16 %v51, %v487
  %v948 = vmul.bf16 %v52, %v499
  %v949 = vmul.bf16 %v53, %v511
  %v950 = vmul.bf16 %v54, %v523
  %v951 = vmul.bf16 %v55, %v535
  %v952 = vmul.bf16 %v56, %v547
  %v953 = vmul.bf16 %v57, %v559
  %v954 = vmul.bf16 %v58, %v571
  %v955 = vmul.bf16 %v59, %v583
  %v956 = vmul.bf16 %v60, %v595
  %v957 = vmul.bf16 %v61, %v607
  %v958 = vmul.bf16 %v62, %v619
  %v959 = vmul.bf16 %v63, %v631
  %v960 = vmul.bf16 %v64, %v643
  %v961 = vmul.bf16 %v65, %v655
  %v962 = vmul.bf16 %v66, %v667
  %v963 = vmul.bf16 %v67, %v679
  %v964 = vmul.bf16 %v68, %v691
  %v965 = vmul.bf16 %v69, %v703
  %v966 = vmul.bf16 %v70, %v715
  %v967 = vmul.bf16 %v71, %v727
  %v968 = vmul.bf16 %v72, %v739
  %v969 = vmul.bf16 %v73, %v751
  %v970 = vmul.bf16 %v74, %v763
  %v971 = vmul.bf16 %v75, %v775
  %v972 = vmul.bf16 %v76, %v787
  %v973 = vmul.bf16 %v77, %v799
  %v974 = vmul.bf16 %v78, %v811
  %v975 = vmul.bf16 %v79, %v823
  %v976 = vmul.bf16 %v80, %v835
  %v977 = vmul.bf16 %v81, %v847
  %v978 = vmul.bf16 %v82, %v859
  %v979 = vmul.bf16 %v83, %v871
  %v980 = vmul.bf16 %v84, %v883
  %v981 = vmul.bf16 %v85, %v895
  %v982 = vmul.bf16 %v86, %v907
  %v983 = vmul.bf16 %v87, %v919
  %v984 = vld [vmem:[%s2] sm:$0x3]
  %v985 = vld [vmem:[%s3] sm:$0x3]
  %v1050 = vunpack.c.l.b16 %v920
  %v1051 = vunpack.c.l.b16 %v921
  %v1052 = vunpack.c.l.b16 %v922
  %v1053 = vunpack.c.l.b16 %v923
  %v1054 = vunpack.c.l.b16 %v924
  %v1055 = vunpack.c.l.b16 %v925
  %v1056 = vunpack.c.l.b16 %v926
  %v1057 = vunpack.c.l.b16 %v927
  %v1058 = vunpack.c.l.b16 %v928
  %v1059 = vunpack.c.l.b16 %v929
  %v1060 = vunpack.c.l.b16 %v930
  %v1061 = vunpack.c.l.b16 %v931
  %v1062 = vunpack.c.l.b16 %v932
  %v1063 = vunpack.c.l.b16 %v933
  %v1064 = vunpack.c.l.b16 %v934
  %v1065 = vunpack.c.l.b16 %v935
  %v1066 = vunpack.c.l.b16 %v936
  %v1067 = vunpack.c.l.b16 %v937
  %v1068 = vunpack.c.l.b16 %v938
  %v1069 = vunpack.c.l.b16 %v939
  %v1070 = vunpack.c.l.b16 %v940
  %v1071 = vunpack.c.l.b16 %v941
  %v1072 = vunpack.c.l.b16 %v942
  %v1073 = vunpack.c.l.b16 %v943
  %v1074 = vunpack.c.l.b16 %v944
  %v1075 = vunpack.c.l.b16 %v945
  %v1076 = vunpack.c.l.b16 %v946
  %v1077 = vunpack.c.l.b16 %v947
  %v1078 = vunpack.c.l.b16 %v948
  %v1079 = vunpack.c.l.b16 %v949
  %v1080 = vunpack.c.l.b16 %v950
  %v1081 = vunpack.c.l.b16 %v951
  %v1082 = vunpack.c.l.b16 %v952
  %v1083 = vunpack.c.l.b16 %v953
  %v1084 = vunpack.c.l.b16 %v954
  %v1085 = vunpack.c.l.b16 %v955
  %v1086 = vunpack.c.l.b16 %v956
  %v1087 = vunpack.c.l.b16 %v957
  %v1088 = vunpack.c.l.b16 %v958
  %v1089 = vunpack.c.l.b16 %v959
  %v1090 = vunpack.c.l.b16 %v960
  %v1091 = vunpack.c.l.b16 %v961
  %v1092 = vunpack.c.l.b16 %v962
  %v1093 = vunpack.c.l.b16 %v963
  %v1094 = vunpack.c.l.b16 %v964
  %v1095 = vunpack.c.l.b16 %v965
  %v1096 = vunpack.c.l.b16 %v966
  %v1097 = vunpack.c.l.b16 %v967
  %v1098 = vunpack.c.l.b16 %v968
  %v1099 = vunpack.c.l.b16 %v969
  %v1100 = vunpack.c.l.b16 %v970
  %v1101 = vunpack.c.l.b16 %v971
  %v1102 = vunpack.c.l.b16 %v972
  %v1103 = vunpack.c.l.b16 %v973
  %v1104 = vunpack.c.l.b16 %v974
  %v1105 = vunpack.c.l.b16 %v975
  %v1106 = vunpack.c.l.b16 %v976
  %v1107 = vunpack.c.l.b16 %v977
  %v1108 = vunpack.c.l.b16 %v978
  %v1109 = vunpack.c.l.b16 %v979
  %v1110 = vunpack.c.l.b16 %v980
  %v1111 = vunpack.c.l.b16 %v981
  %v1112 = vunpack.c.l.b16 %v982
  %v1113 = vunpack.c.l.b16 %v983
  %v1114 = vpack.c.b16 %v1051, %v1050
  %v1115 = vpack.c.b16 %v1053, %v1052
  %v1116 = vpack.c.b16 %v1055, %v1054
  %v1117 = vpack.c.b16 %v1057, %v1056
  %v1118 = vpack.c.b16 %v1059, %v1058
  %v1119 = vpack.c.b16 %v1061, %v1060
  %v1120 = vpack.c.b16 %v1063, %v1062
  %v1121 = vpack.c.b16 %v1065, %v1064
  %v1122 = vpack.c.b16 %v1067, %v1066
  %v1123 = vpack.c.b16 %v1069, %v1068
  %v1124 = vpack.c.b16 %v1071, %v1070
  %v1125 = vpack.c.b16 %v1073, %v1072
  %v1126 = vpack.c.b16 %v1075, %v1074
  %v1127 = vpack.c.b16 %v1077, %v1076
  %v1128 = vpack.c.b16 %v1079, %v1078
  %v1129 = vpack.c.b16 %v1081, %v1080
  %v1130 = vpack.c.b16 %v1083, %v1082
  %v1131 = vpack.c.b16 %v1085, %v1084
  %v1132 = vpack.c.b16 %v1087, %v1086
  %v1133 = vpack.c.b16 %v1089, %v1088
  %v1134 = vpack.c.b16 %v1091, %v1090
  %v1135 = vpack.c.b16 %v1093, %v1092
  %v1136 = vpack.c.b16 %v1095, %v1094
  %v1137 = vpack.c.b16 %v1097, %v1096
  %v1138 = vpack.c.b16 %v1099, %v1098
  %v1139 = vpack.c.b16 %v1101, %v1100
  %v1140 = vpack.c.b16 %v1103, %v1102
  %v1141 = vpack.c.b16 %v1105, %v1104
  %v1142 = vpack.c.b16 %v1107, %v1106
  %v1143 = vpack.c.b16 %v1109, %v1108
  %v1144 = vpack.c.b16 %v1111, %v1110
  %v1145 = vpack.c.b16 %v1113, %v1112
  %vm1146 = vcmask 31744
  %v1148 = vsel %vm1146, %v1114, 0
  %v1151 = vsel %vm1146, %v1115, 0
  %v1154 = vsel %vm1146, %v1116, 0
  %v1157 = vsel %vm1146, %v1117, 0
  %v1160 = vsel %vm1146, %v1118, 0
  %v1163 = vsel %vm1146, %v1119, 0
  %v1166 = vsel %vm1146, %v1120, 0
  %v1169 = vsel %vm1146, %v1121, 0
  %v1172 = vsel %vm1146, %v1122, 0
  %v1175 = vsel %vm1146, %v1123, 0
  %v1178 = vsel %vm1146, %v1124, 0
  %v1181 = vsel %vm1146, %v1125, 0
  %v1184 = vsel %vm1146, %v1126, 0
  %v1187 = vsel %vm1146, %v1127, 0
  %v1190 = vsel %vm1146, %v1128, 0
  %v1193 = vsel %vm1146, %v1129, 0
  %v1196 = vsel %vm1146, %v1130, 0
  %v1199 = vsel %vm1146, %v1131, 0
  %v1202 = vsel %vm1146, %v1132, 0
  %v1205 = vsel %vm1146, %v1133, 0
  %v1208 = vsel %vm1146, %v1134, 0
  %v1211 = vsel %vm1146, %v1135, 0
  %v1214 = vsel %vm1146, %v1136, 0
  %v1217 = vsel %vm1146, %v1137, 0
  %v1220 = vsel %vm1146, %v1138, 0
  %v1223 = vsel %vm1146, %v1139, 0
  %v1226 = vsel %vm1146, %v1140, 0
  %v1229 = vsel %vm1146, %v1141, 0
  %v1232 = vsel %vm1146, %v1142, 0
  %v1235 = vsel %vm1146, %v1143, 0
  %v1238 = vsel %vm1146, %v1144, 0
  %v1241 = vsel %vm1146, %v1145, 0
  %vm1243 = vcmask 1041408
  %v1245 = vsel %vm1243, %v985, 0
  %1247 = vmatprep.subr.bf16.mxu0 0
  %1248 = vmatpush1.bf16.msra.mxu0 %v1245
  %1249 = vmatprep.subr.bf16.mxu0 0
  %1250 = vmatpush1.bf16.msra.mxu0 0
  %1251 = vmatprep.subr.bf16.mxu0 0
  %1252 = vmatpush1.bf16.msra.mxu0 0
  %1253 = vmatprep.subr.bf16.mxu0 0
  %1254 = vmatpush1.bf16.msra.mxu0 0
  %1255 = vmatprep.subr.bf16.mxu0 0
  %1256 = vmatpush1.bf16.msra.mxu0 0
  %1257 = vmatprep.subr.bf16.mxu0 0
  %1258 = vmatpush1.bf16.msra.mxu0 0
  %1259 = vmatprep.subr.bf16.mxu0 0
  %1260 = vmatpush1.bf16.msra.mxu0 0
  %1261 = vmatprep.subr.bf16.mxu0 0
  %1262 = vmatpush1.bf16.msra.mxu0 0
  %1263 = vmatprep.subr.bf16.mxu0 0
  %1264 = vmatpush1.bf16.msra.mxu0 0
  %1265 = vmatprep.subr.bf16.mxu0 0
  %1266 = vmatpush1.bf16.msra.mxu0 0
  %1267 = vmatprep.subr.bf16.mxu0 0
  %1268 = vmatpush1.bf16.msra.mxu0 0
  %1269 = vmatprep.subr.bf16.mxu0 0
  %1270 = vmatpush1.bf16.msra.mxu0 0
  %1271 = vmatprep.subr.bf16.mxu0 0
  %1272 = vmatpush1.bf16.msra.mxu0 0
  %1273 = vmatprep.subr.bf16.mxu0 0
  %1274 = vmatpush1.bf16.msra.mxu0 0
  %1275 = vmatprep.subr.bf16.mxu0 0
  %1276 = vmatpush1.bf16.msra.mxu0 0
  %1277 = vmatprep.subr.bf16.mxu0 0
  %1278 = vmatpush1.bf16.msra.mxu0 0
  %1279 = vmatprep.mubr.bf16.mxu0 0
  %1280 = vmatmul.mubr.bf16.gmra.mrb[0].mxu0 %v1148
  %v1281 = vpop.f32.mrb[0].mxu0
  %v1282 = vadd.f32 0.0, %v1281
  %v1283 = vpop.f32.mrb[0].mxu0
  %v1284 = vpop.f32.mrb[0].mxu0
  %v1285 = vadd.f32 0.0, %v1284
  %v1286 = vpop.f32.mrb[0].mxu0
  %1287 = vmatprep.mubr.bf16.mxu0 0
  %1288 = vmatmul.mubr.bf16.gmra.mrb[0].mxu0 %v1151
  %v1289 = vpop.f32.mrb[0].mxu0
  %v1290 = vadd.f32 0.0, %v1289
  %v1291 = vpop.f32.mrb[0].mxu0
  %v1292 = vpop.f32.mrb[0].mxu0
  %v1293 = vadd.f32 0.0, %v1292
  %v1294 = vpop.f32.mrb[0].mxu0
  %1295 = vmatprep.mubr.bf16.mxu0 0
  %1296 = vmatmul.mubr.bf16.gmra.mrb[0].mxu0 %v1154
  %v1297 = vpop.f32.mrb[0].mxu0
  %v1298 = vadd.f32 0.0, %v1297
  %v1299 = vpop.f32.mrb[0].mxu0
  %v1300 = vpop.f32.mrb[0].mxu0
  %v1301 = vadd.f32 0.0, %v1300
  %v1302 = vpop.f32.mrb[0].mxu0
  %1303 = vmatprep.mubr.bf16.mxu0 0
  %1304 = vmatmul.mubr.bf16.gmra.mrb[0].mxu0 %v1157
  %v1305 = vpop.f32.mrb[0].mxu0
  %v1306 = vadd.f32 0.0, %v1305
  %v1307 = vpop.f32.mrb[0].mxu0
  %v1308 = vpop.f32.mrb[0].mxu0
  %v1309 = vadd.f32 0.0, %v1308
  %v1310 = vpop.f32.mrb[0].mxu0
  %1311 = vmatprep.mubr.bf16.mxu0 0
  %1312 = vmatmul.mubr.bf16.gmra.mrb[0].mxu0 %v1160
  %v1313 = vpop.f32.mrb[0].mxu0
  %v1314 = vadd.f32 0.0, %v1313
  %v1315 = vpop.f32.mrb[0].mxu0
  %v1316 = vpop.f32.mrb[0].mxu0
  %v1317 = vadd.f32 0.0, %v1316
  %v1318 = vpop.f32.mrb[0].mxu0
  %1319 = vmatprep.mubr.bf16.mxu0 0
  %1320 = vmatmul.mubr.bf16.gmra.mrb[0].mxu0 %v1163
  %v1321 = vpop.f32.mrb[0].mxu0
  %v1322 = vadd.f32 0.0, %v1321
  %v1323 = vpop.f32.mrb[0].mxu0
  %v1324 = vpop.f32.mrb[0].mxu0
  %v1325 = vadd.f32 0.0, %v1324
  %v1326 = vpop.f32.mrb[0].mxu0
  %1327 = vmatprep.mubr.bf16.mxu0 0
  %1328 = vmatmul.mubr.bf16.gmra.mrb[0].mxu0 %v1166
  %v1329 = vpop.f32.mrb[0].mxu0
  %v1330 = vadd.f32 0.0, %v1329
  %v1331 = vpop.f32.mrb[0].mxu0
  %v1332 = vpop.f32.mrb[0].mxu0
  %v1333 = vadd.f32 0.0, %v1332
  %v1334 = vpop.f32.mrb[0].mxu0
  %1335 = vmatprep.mubr.bf16.mxu0 0
  %1336 = vmatmul.mubr.bf16.gmra.mrb[0].mxu0 %v1169
  %v1337 = vpop.f32.mrb[0].mxu0
  %v1338 = vadd.f32 0.0, %v1337
  %v1339 = vpop.f32.mrb[0].mxu0
  %v1340 = vpop.f32.mrb[0].mxu0
  %v1341 = vadd.f32 0.0, %v1340
  %v1342 = vpop.f32.mrb[0].mxu0
  %1343 = vmatprep.mubr.bf16.mxu0 0
  %1344 = vmatmul.mubr.bf16.gmra.mrb[0].mxu0 %v1172
  %v1345 = vpop.f32.mrb[0].mxu0
  %v1346 = vadd.f32 0.0, %v1345
  %v1347 = vpop.f32.mrb[0].mxu0
  %v1348 = vpop.f32.mrb[0].mxu0
  %v1349 = vadd.f32 0.0, %v1348
  %v1350 = vpop.f32.mrb[0].mxu0
  %1351 = vmatprep.mubr.bf16.mxu0 0
  %1352 = vmatmul.mubr.bf16.gmra.mrb[0].mxu0 %v1175
  %v1353 = vpop.f32.mrb[0].mxu0
  %v1354 = vadd.f32 0.0, %v1353
  %v1355 = vpop.f32.mrb[0].mxu0
  %v1356 = vpop.f32.mrb[0].mxu0
  %v1357 = vadd.f32 0.0, %v1356
  %v1358 = vpop.f32.mrb[0].mxu0
  %1359 = vmatprep.mubr.bf16.mxu0 0
  %1360 = vmatmul.mubr.bf16.gmra.mrb[0].mxu0 %v1178
  %v1361 = vpop.f32.mrb[0].mxu0
  %v1362 = vadd.f32 0.0, %v1361
  %v1363 = vpop.f32.mrb[0].mxu0
  %v1364 = vpop.f32.mrb[0].mxu0
  %v1365 = vadd.f32 0.0, %v1364
  %v1366 = vpop.f32.mrb[0].mxu0
  %1367 = vmatprep.mubr.bf16.mxu0 0
  %1368 = vmatmul.mubr.bf16.gmra.mrb[0].mxu0 %v1181
  %v1369 = vpop.f32.mrb[0].mxu0
  %v1370 = vadd.f32 0.0, %v1369
  %v1371 = vpop.f32.mrb[0].mxu0
  %v1372 = vpop.f32.mrb[0].mxu0
  %v1373 = vadd.f32 0.0, %v1372
  %v1374 = vpop.f32.mrb[0].mxu0
  %1375 = vmatprep.mubr.bf16.mxu0 0
  %1376 = vmatmul.mubr.bf16.gmra.mrb[0].mxu0 %v1184
  %v1377 = vpop.f32.mrb[0].mxu0
  %v1378 = vadd.f32 0.0, %v1377
  %v1379 = vpop.f32.mrb[0].mxu0
  %v1380 = vpop.f32.mrb[0].mxu0
  %v1381 = vadd.f32 0.0, %v1380
  %v1382 = vpop.f32.mrb[0].mxu0
  %1383 = vmatprep.mubr.bf16.mxu0 0
  %1384 = vmatmul.mubr.bf16.gmra.mrb[0].mxu0 %v1187
  %v1385 = vpop.f32.mrb[0].mxu0
  %v1386 = vadd.f32 0.0, %v1385
  %v1387 = vpop.f32.mrb[0].mxu0
  %v1388 = vpop.f32.mrb[0].mxu0
  %v1389 = vadd.f32 0.0, %v1388
  %v1390 = vpop.f32.mrb[0].mxu0
  %1391 = vmatprep.mubr.bf16.mxu0 0
  %1392 = vmatmul.mubr.bf16.gmra.mrb[0].mxu0 %v1190
  %v1393 = vpop.f32.mrb[0].mxu0
  %v1394 = vadd.f32 0.0, %v1393
  %v1395 = vpop.f32.mrb[0].mxu0
  %v1396 = vpop.f32.mrb[0].mxu0
  %v1397 = vadd.f32 0.0, %v1396
  %v1398 = vpop.f32.mrb[0].mxu0
  %1399 = vmatprep.mubr.bf16.mxu0 0
  %1400 = vmatmul.mubr.bf16.gmra.mrb[0].mxu0 %v1193
  %v1401 = vpop.f32.mrb[0].mxu0
  %v1402 = vadd.f32 0.0, %v1401
  %v1403 = vpop.f32.mrb[0].mxu0
  %v1404 = vpop.f32.mrb[0].mxu0
  %v1405 = vadd.f32 0.0, %v1404
  %v1406 = vpop.f32.mrb[0].mxu0
  %1407 = vmatprep.mubr.bf16.mxu0 0
  %1408 = vmatmul.mubr.bf16.gmra.mrb[0].mxu0 %v1196
  %v1409 = vpop.f32.mrb[0].mxu0
  %v1410 = vadd.f32 0.0, %v1409
  %v1411 = vpop.f32.mrb[0].mxu0
  %v1412 = vpop.f32.mrb[0].mxu0
  %v1413 = vadd.f32 0.0, %v1412
  %v1414 = vpop.f32.mrb[0].mxu0
  %1415 = vmatprep.mubr.bf16.mxu0 0
  %1416 = vmatmul.mubr.bf16.gmra.mrb[0].mxu0 %v1199
  %v1417 = vpop.f32.mrb[0].mxu0
  %v1418 = vadd.f32 0.0, %v1417
  %v1419 = vpop.f32.mrb[0].mxu0
  %v1420 = vpop.f32.mrb[0].mxu0
  %v1421 = vadd.f32 0.0, %v1420
  %v1422 = vpop.f32.mrb[0].mxu0
  %1423 = vmatprep.mubr.bf16.mxu0 0
  %1424 = vmatmul.mubr.bf16.gmra.mrb[0].mxu0 %v1202
  %v1425 = vpop.f32.mrb[0].mxu0
  %v1426 = vadd.f32 0.0, %v1425
  %v1427 = vpop.f32.mrb[0].mxu0
  %v1428 = vpop.f32.mrb[0].mxu0
  %v1429 = vadd.f32 0.0, %v1428
  %v1430 = vpop.f32.mrb[0].mxu0
  %1431 = vmatprep.mubr.bf16.mxu0 0
  %1432 = vmatmul.mubr.bf16.gmra.mrb[0].mxu0 %v1205
  %v1433 = vpop.f32.mrb[0].mxu0
  %v1434 = vadd.f32 0.0, %v1433
  %v1435 = vpop.f32.mrb[0].mxu0
  %v1436 = vpop.f32.mrb[0].mxu0
  %v1437 = vadd.f32 0.0, %v1436
  %v1438 = vpop.f32.mrb[0].mxu0
  %1439 = vmatprep.mubr.bf16.mxu0 0
  %1440 = vmatmul.mubr.bf16.gmra.mrb[0].mxu0 %v1208
  %v1441 = vpop.f32.mrb[0].mxu0
  %v1442 = vadd.f32 0.0, %v1441
  %v1443 = vpop.f32.mrb[0].mxu0
  %v1444 = vpop.f32.mrb[0].mxu0
  %v1445 = vadd.f32 0.0, %v1444
  %v1446 = vpop.f32.mrb[0].mxu0
  %1447 = vmatprep.mubr.bf16.mxu0 0
  %1448 = vmatmul.mubr.bf16.gmra.mrb[0].mxu0 %v1211
  %v1449 = vpop.f32.mrb[0].mxu0
  %v1450 = vadd.f32 0.0, %v1449
  %v1451 = vpop.f32.mrb[0].mxu0
  %v1452 = vpop.f32.mrb[0].mxu0
  %v1453 = vadd.f32 0.0, %v1452
  %v1454 = vpop.f32.mrb[0].mxu0
  %1455 = vmatprep.mubr.bf16.mxu0 0
  %1456 = vmatmul.mubr.bf16.gmra.mrb[0].mxu0 %v1214
  %v1457 = vpop.f32.mrb[0].mxu0
  %v1458 = vadd.f32 0.0, %v1457
  %v1459 = vpop.f32.mrb[0].mxu0
  %v1460 = vpop.f32.mrb[0].mxu0
  %v1461 = vadd.f32 0.0, %v1460
  %v1462 = vpop.f32.mrb[0].mxu0
  %1463 = vmatprep.mubr.bf16.mxu0 0
  %1464 = vmatmul.mubr.bf16.gmra.mrb[0].mxu0 %v1217
  %v1465 = vpop.f32.mrb[0].mxu0
  %v1466 = vadd.f32 0.0, %v1465
  %v1467 = vpop.f32.mrb[0].mxu0
  %v1468 = vpop.f32.mrb[0].mxu0
  %v1469 = vadd.f32 0.0, %v1468
  %v1470 = vpop.f32.mrb[0].mxu0
  %1471 = vmatprep.mubr.bf16.mxu0 0
  %1472 = vmatmul.mubr.bf16.gmra.mrb[0].mxu0 %v1220
  %v1473 = vpop.f32.mrb[0].mxu0
  %v1474 = vadd.f32 0.0, %v1473
  %v1475 = vpop.f32.mrb[0].mxu0
  %v1476 = vpop.f32.mrb[0].mxu0
  %v1477 = vadd.f32 0.0, %v1476
  %v1478 = vpop.f32.mrb[0].mxu0
  %1479 = vmatprep.mubr.bf16.mxu0 0
  %1480 = vmatmul.mubr.bf16.gmra.mrb[0].mxu0 %v1223
  %v1481 = vpop.f32.mrb[0].mxu0
  %v1482 = vadd.f32 0.0, %v1481
  %v1483 = vpop.f32.mrb[0].mxu0
  %v1484 = vpop.f32.mrb[0].mxu0
  %v1485 = vadd.f32 0.0, %v1484
  %v1486 = vpop.f32.mrb[0].mxu0
  %1487 = vmatprep.mubr.bf16.mxu0 0
  %1488 = vmatmul.mubr.bf16.gmra.mrb[0].mxu0 %v1226
  %v1489 = vpop.f32.mrb[0].mxu0
  %v1490 = vadd.f32 0.0, %v1489
  %v1491 = vpop.f32.mrb[0].mxu0
  %v1492 = vpop.f32.mrb[0].mxu0
  %v1493 = vadd.f32 0.0, %v1492
  %v1494 = vpop.f32.mrb[0].mxu0
  %1495 = vmatprep.mubr.bf16.mxu0 0
  %1496 = vmatmul.mubr.bf16.gmra.mrb[0].mxu0 %v1229
  %v1497 = vpop.f32.mrb[0].mxu0
  %v1498 = vadd.f32 0.0, %v1497
  %v1499 = vpop.f32.mrb[0].mxu0
  %v1500 = vpop.f32.mrb[0].mxu0
  %v1501 = vadd.f32 0.0, %v1500
  %v1502 = vpop.f32.mrb[0].mxu0
  %1503 = vmatprep.mubr.bf16.mxu0 0
  %1504 = vmatmul.mubr.bf16.gmra.mrb[0].mxu0 %v1232
  %v1505 = vpop.f32.mrb[0].mxu0
  %v1506 = vadd.f32 0.0, %v1505
  %v1507 = vpop.f32.mrb[0].mxu0
  %v1508 = vpop.f32.mrb[0].mxu0
  %v1509 = vadd.f32 0.0, %v1508
  %v1510 = vpop.f32.mrb[0].mxu0
  %1511 = vmatprep.mubr.bf16.mxu0 0
  %1512 = vmatmul.mubr.bf16.gmra.mrb[0].mxu0 %v1235
  %v1513 = vpop.f32.mrb[0].mxu0
  %v1514 = vadd.f32 0.0, %v1513
  %v1515 = vpop.f32.mrb[0].mxu0
  %v1516 = vpop.f32.mrb[0].mxu0
  %v1517 = vadd.f32 0.0, %v1516
  %v1518 = vpop.f32.mrb[0].mxu0
  %1519 = vmatprep.mubr.bf16.mxu0 0
  %1520 = vmatmul.mubr.bf16.gmra.mrb[0].mxu0 %v1238
  %v1521 = vpop.f32.mrb[0].mxu0
  %v1522 = vadd.f32 0.0, %v1521
  %v1523 = vpop.f32.mrb[0].mxu0
  %v1524 = vpop.f32.mrb[0].mxu0
  %v1525 = vadd.f32 0.0, %v1524
  %v1526 = vpop.f32.mrb[0].mxu0
  %1527 = vmatprep.mubr.bf16.mxu0 0
  %1528 = vmatmul.mubr.bf16.gmra.mrb[0].mxu0 %v1241
  %v1529 = vpop.f32.mrb[0].mxu0
  %v1530 = vadd.f32 0.0, %v1529
  %v1531 = vpop.f32.mrb[0].mxu0
  %v1532 = vpop.f32.mrb[0].mxu0
  %v1533 = vadd.f32 0.0, %v1532
  %v1534 = vpop.f32.mrb[0].mxu0
  %1535 = vdwg.mxu0
  %v1600 = vunpack.c.l.b16 %v24
  %v1601 = vunpack.c.l.b16 %v25
  %v1602 = vunpack.c.l.b16 %v26
  %v1603 = vunpack.c.l.b16 %v27
  %v1604 = vunpack.c.l.b16 %v28
  %v1605 = vunpack.c.l.b16 %v29
  %v1606 = vunpack.c.l.b16 %v30
  %v1607 = vunpack.c.l.b16 %v31
  %v1608 = vunpack.c.l.b16 %v32
  %v1609 = vunpack.c.l.b16 %v33
  %v1610 = vunpack.c.l.b16 %v34
  %v1611 = vunpack.c.l.b16 %v35
  %v1612 = vunpack.c.l.b16 %v36
  %v1613 = vunpack.c.l.b16 %v37
  %v1614 = vunpack.c.l.b16 %v38
  %v1615 = vunpack.c.l.b16 %v39
  %v1616 = vunpack.c.l.b16 %v40
  %v1617 = vunpack.c.l.b16 %v41
  %v1618 = vunpack.c.l.b16 %v42
  %v1619 = vunpack.c.l.b16 %v43
  %v1620 = vunpack.c.l.b16 %v44
  %v1621 = vunpack.c.l.b16 %v45
  %v1622 = vunpack.c.l.b16 %v46
  %v1623 = vunpack.c.l.b16 %v47
  %v1624 = vunpack.c.l.b16 %v48
  %v1625 = vunpack.c.l.b16 %v49
  %v1626 = vunpack.c.l.b16 %v50
  %v1627 = vunpack.c.l.b16 %v51
  %v1628 = vunpack.c.l.b16 %v52
  %v1629 = vunpack.c.l.b16 %v53
  %v1630 = vunpack.c.l.b16 %v54
  %v1631 = vunpack.c.l.b16 %v55
  %v1632 = vunpack.c.l.b16 %v56
  %v1633 = vunpack.c.l.b16 %v57
  %v1634 = vunpack.c.l.b16 %v58
  %v1635 = vunpack.c.l.b16 %v59
  %v1636 = vunpack.c.l.b16 %v60
  %v1637 = vunpack.c.l.b16 %v61
  %v1638 = vunpack.c.l.b16 %v62
  %v1639 = vunpack.c.l.b16 %v63
  %v1640 = vunpack.c.l.b16 %v64
  %v1641 = vunpack.c.l.b16 %v65
  %v1642 = vunpack.c.l.b16 %v66
  %v1643 = vunpack.c.l.b16 %v67
  %v1644 = vunpack.c.l.b16 %v68
  %v1645 = vunpack.c.l.b16 %v69
  %v1646 = vunpack.c.l.b16 %v70
  %v1647 = vunpack.c.l.b16 %v71
  %v1648 = vunpack.c.l.b16 %v72
  %v1649 = vunpack.c.l.b16 %v73
  %v1650 = vunpack.c.l.b16 %v74
  %v1651 = vunpack.c.l.b16 %v75
  %v1652 = vunpack.c.l.b16 %v76
  %v1653 = vunpack.c.l.b16 %v77
  %v1654 = vunpack.c.l.b16 %v78
  %v1655 = vunpack.c.l.b16 %v79
  %v1656 = vunpack.c.l.b16 %v80
  %v1657 = vunpack.c.l.b16 %v81
  %v1658 = vunpack.c.l.b16 %v82
  %v1659 = vunpack.c.l.b16 %v83
  %v1660 = vunpack.c.l.b16 %v84
  %v1661 = vunpack.c.l.b16 %v85
  %v1662 = vunpack.c.l.b16 %v86
  %v1663 = vunpack.c.l.b16 %v87
  %v1664 = vpack.c.b16 %v1601, %v1600
  %v1665 = vpack.c.b16 %v1603, %v1602
  %v1666 = vpack.c.b16 %v1605, %v1604
  %v1667 = vpack.c.b16 %v1607, %v1606
  %v1668 = vpack.c.b16 %v1609, %v1608
  %v1669 = vpack.c.b16 %v1611, %v1610
  %v1670 = vpack.c.b16 %v1613, %v1612
  %v1671 = vpack.c.b16 %v1615, %v1614
  %v1672 = vpack.c.b16 %v1617, %v1616
  %v1673 = vpack.c.b16 %v1619, %v1618
  %v1674 = vpack.c.b16 %v1621, %v1620
  %v1675 = vpack.c.b16 %v1623, %v1622
  %v1676 = vpack.c.b16 %v1625, %v1624
  %v1677 = vpack.c.b16 %v1627, %v1626
  %v1678 = vpack.c.b16 %v1629, %v1628
  %v1679 = vpack.c.b16 %v1631, %v1630
  %v1680 = vpack.c.b16 %v1633, %v1632
  %v1681 = vpack.c.b16 %v1635, %v1634
  %v1682 = vpack.c.b16 %v1637, %v1636
  %v1683 = vpack.c.b16 %v1639, %v1638
  %v1684 = vpack.c.b16 %v1641, %v1640
  %v1685 = vpack.c.b16 %v1643, %v1642
  %v1686 = vpack.c.b16 %v1645, %v1644
  %v1687 = vpack.c.b16 %v1647, %v1646
  %v1688 = vpack.c.b16 %v1649, %v1648
  %v1689 = vpack.c.b16 %v1651, %v1650
  %v1690 = vpack.c.b16 %v1653, %v1652
  %v1691 = vpack.c.b16 %v1655, %v1654
  %v1692 = vpack.c.b16 %v1657, %v1656
  %v1693 = vpack.c.b16 %v1659, %v1658
  %v1694 = vpack.c.b16 %v1661, %v1660
  %v1695 = vpack.c.b16 %v1663, %v1662
  %v1697 = vsel %vm1146, %v1664, 0
  %v1700 = vsel %vm1146, %v1665, 0
  %v1703 = vsel %vm1146, %v1666, 0
  %v1706 = vsel %vm1146, %v1667, 0
  %v1709 = vsel %vm1146, %v1668, 0
  %v1712 = vsel %vm1146, %v1669, 0
  %v1715 = vsel %vm1146, %v1670, 0
  %v1718 = vsel %vm1146, %v1671, 0
  %v1721 = vsel %vm1146, %v1672, 0
  %v1724 = vsel %vm1146, %v1673, 0
  %v1727 = vsel %vm1146, %v1674, 0
  %v1730 = vsel %vm1146, %v1675, 0
  %v1733 = vsel %vm1146, %v1676, 0
  %v1736 = vsel %vm1146, %v1677, 0
  %v1739 = vsel %vm1146, %v1678, 0
  %v1742 = vsel %vm1146, %v1679, 0
  %v1745 = vsel %vm1146, %v1680, 0
  %v1748 = vsel %vm1146, %v1681, 0
  %v1751 = vsel %vm1146, %v1682, 0
  %v1754 = vsel %vm1146, %v1683, 0
  %v1757 = vsel %vm1146, %v1684, 0
  %v1760 = vsel %vm1146, %v1685, 0
  %v1763 = vsel %vm1146, %v1686, 0
  %v1766 = vsel %vm1146, %v1687, 0
  %v1769 = vsel %vm1146, %v1688, 0
  %v1772 = vsel %vm1146, %v1689, 0
  %v1775 = vsel %vm1146, %v1690, 0
  %v1778 = vsel %vm1146, %v1691, 0
  %v1781 = vsel %vm1146, %v1692, 0
  %v1784 = vsel %vm1146, %v1693, 0
  %v1787 = vsel %vm1146, %v1694, 0
  %v1790 = vsel %vm1146, %v1695, 0
  %v1793 = vsel %vm1243, %v984, 0
  %1795 = vmatprep.subr.bf16.mxu0 0
  %1796 = vmatpush1.bf16.msra.mxu0 %v1793
  %1797 = vmatprep.subr.bf16.mxu0 0
  %1798 = vmatpush1.bf16.msra.mxu0 0
  %1799 = vmatprep.subr.bf16.mxu0 0
  %1800 = vmatpush1.bf16.msra.mxu0 0
  %1801 = vmatprep.subr.bf16.mxu0 0
  %1802 = vmatpush1.bf16.msra.mxu0 0
  %1803 = vmatprep.subr.bf16.mxu0 0
  %1804 = vmatpush1.bf16.msra.mxu0 0
  %1805 = vmatprep.subr.bf16.mxu0 0
  %1806 = vmatpush1.bf16.msra.mxu0 0
  %1807 = vmatprep.subr.bf16.mxu0 0
  %1808 = vmatpush1.bf16.msra.mxu0 0
  %1809 = vmatprep.subr.bf16.mxu0 0
  %1810 = vmatpush1.bf16.msra.mxu0 0
  %1811 = vmatprep.subr.bf16.mxu0 0
  %1812 = vmatpush1.bf16.msra.mxu0 0
  %1813 = vmatprep.subr.bf16.mxu0 0
  %1814 = vmatpush1.bf16.msra.mxu0 0
  %1815 = vmatprep.subr.bf16.mxu0 0
  %1816 = vmatpush1.bf16.msra.mxu0 0
  %1817 = vmatprep.subr.bf16.mxu0 0
  %1818 = vmatpush1.bf16.msra.mxu0 0
  %1819 = vmatprep.subr.bf16.mxu0 0
  %1820 = vmatpush1.bf16.msra.mxu0 0
  %1821 = vmatprep.subr.bf16.mxu0 0
  %1822 = vmatpush1.bf16.msra.mxu0 0
  %1823 = vmatprep.subr.bf16.mxu0 0
  %1824 = vmatpush1.bf16.msra.mxu0 0
  %1825 = vmatprep.subr.bf16.mxu0 0
  %1826 = vmatpush1.bf16.msra.mxu0 0
  %1827 = vmatprep.mubr.bf16.mxu0 0
  %1828 = vmatmul.mubr.bf16.gmra.mrb[0].mxu0 %v1697
  %v1829 = vpop.f32.mrb[0].mxu0
  %v1830 = vadd.f32 %v1282, %v1829
  %v1831 = vpop.f32.mrb[0].mxu0
  %v1832 = vpop.f32.mrb[0].mxu0
  %v1833 = vadd.f32 %v1285, %v1832
  %v1834 = vpop.f32.mrb[0].mxu0
  %1835 = vmatprep.mubr.bf16.mxu0 0
  %1836 = vmatmul.mubr.bf16.gmra.mrb[0].mxu0 %v1700
  %v1837 = vpop.f32.mrb[0].mxu0
  %v1838 = vadd.f32 %v1290, %v1837
  %v1839 = vpop.f32.mrb[0].mxu0
  %v1840 = vpop.f32.mrb[0].mxu0
  %v1841 = vadd.f32 %v1293, %v1840
  %v1842 = vpop.f32.mrb[0].mxu0
  %1843 = vmatprep.mubr.bf16.mxu0 0
  %1844 = vmatmul.mubr.bf16.gmra.mrb[0].mxu0 %v1703
  %v1845 = vpop.f32.mrb[0].mxu0
  %v1846 = vadd.f32 %v1298, %v1845
  %v1847 = vpop.f32.mrb[0].mxu0
  %v1848 = vpop.f32.mrb[0].mxu0
  %v1849 = vadd.f32 %v1301, %v1848
  %v1850 = vpop.f32.mrb[0].mxu0
  %1851 = vmatprep.mubr.bf16.mxu0 0
  %1852 = vmatmul.mubr.bf16.gmra.mrb[0].mxu0 %v1706
  %v1853 = vpop.f32.mrb[0].mxu0
  %v1854 = vadd.f32 %v1306, %v1853
  %v1855 = vpop.f32.mrb[0].mxu0
  %v1856 = vpop.f32.mrb[0].mxu0
  %v1857 = vadd.f32 %v1309, %v1856
  %v1858 = vpop.f32.mrb[0].mxu0
  %1859 = vmatprep.mubr.bf16.mxu0 0
  %1860 = vmatmul.mubr.bf16.gmra.mrb[0].mxu0 %v1709
  %v1861 = vpop.f32.mrb[0].mxu0
  %v1862 = vadd.f32 %v1314, %v1861
  %v1863 = vpop.f32.mrb[0].mxu0
  %v1864 = vpop.f32.mrb[0].mxu0
  %v1865 = vadd.f32 %v1317, %v1864
  %v1866 = vpop.f32.mrb[0].mxu0
  %1867 = vmatprep.mubr.bf16.mxu0 0
  %1868 = vmatmul.mubr.bf16.gmra.mrb[0].mxu0 %v1712
  %v1869 = vpop.f32.mrb[0].mxu0
  %v1870 = vadd.f32 %v1322, %v1869
  %v1871 = vpop.f32.mrb[0].mxu0
  %v1872 = vpop.f32.mrb[0].mxu0
  %v1873 = vadd.f32 %v1325, %v1872
  %v1874 = vpop.f32.mrb[0].mxu0
  %1875 = vmatprep.mubr.bf16.mxu0 0
  %1876 = vmatmul.mubr.bf16.gmra.mrb[0].mxu0 %v1715
  %v1877 = vpop.f32.mrb[0].mxu0
  %v1878 = vadd.f32 %v1330, %v1877
  %v1879 = vpop.f32.mrb[0].mxu0
  %v1880 = vpop.f32.mrb[0].mxu0
  %v1881 = vadd.f32 %v1333, %v1880
  %v1882 = vpop.f32.mrb[0].mxu0
  %1883 = vmatprep.mubr.bf16.mxu0 0
  %1884 = vmatmul.mubr.bf16.gmra.mrb[0].mxu0 %v1718
  %v1885 = vpop.f32.mrb[0].mxu0
  %v1886 = vadd.f32 %v1338, %v1885
  %v1887 = vpop.f32.mrb[0].mxu0
  %v1888 = vpop.f32.mrb[0].mxu0
  %v1889 = vadd.f32 %v1341, %v1888
  %v1890 = vpop.f32.mrb[0].mxu0
  %1891 = vmatprep.mubr.bf16.mxu0 0
  %1892 = vmatmul.mubr.bf16.gmra.mrb[0].mxu0 %v1721
  %v1893 = vpop.f32.mrb[0].mxu0
  %v1894 = vadd.f32 %v1346, %v1893
  %v1895 = vpop.f32.mrb[0].mxu0
  %v1896 = vpop.f32.mrb[0].mxu0
  %v1897 = vadd.f32 %v1349, %v1896
  %v1898 = vpop.f32.mrb[0].mxu0
  %1899 = vmatprep.mubr.bf16.mxu0 0
  %1900 = vmatmul.mubr.bf16.gmra.mrb[0].mxu0 %v1724
  %v1901 = vpop.f32.mrb[0].mxu0
  %v1902 = vadd.f32 %v1354, %v1901
  %v1903 = vpop.f32.mrb[0].mxu0
  %v1904 = vpop.f32.mrb[0].mxu0
  %v1905 = vadd.f32 %v1357, %v1904
  %v1906 = vpop.f32.mrb[0].mxu0
  %1907 = vmatprep.mubr.bf16.mxu0 0
  %1908 = vmatmul.mubr.bf16.gmra.mrb[0].mxu0 %v1727
  %v1909 = vpop.f32.mrb[0].mxu0
  %v1910 = vadd.f32 %v1362, %v1909
  %v1911 = vpop.f32.mrb[0].mxu0
  %v1912 = vpop.f32.mrb[0].mxu0
  %v1913 = vadd.f32 %v1365, %v1912
  %v1914 = vpop.f32.mrb[0].mxu0
  %1915 = vmatprep.mubr.bf16.mxu0 0
  %1916 = vmatmul.mubr.bf16.gmra.mrb[0].mxu0 %v1730
  %v1917 = vpop.f32.mrb[0].mxu0
  %v1918 = vadd.f32 %v1370, %v1917
  %v1919 = vpop.f32.mrb[0].mxu0
  %v1920 = vpop.f32.mrb[0].mxu0
  %v1921 = vadd.f32 %v1373, %v1920
  %v1922 = vpop.f32.mrb[0].mxu0
  %1923 = vmatprep.mubr.bf16.mxu0 0
  %1924 = vmatmul.mubr.bf16.gmra.mrb[0].mxu0 %v1733
  %v1925 = vpop.f32.mrb[0].mxu0
  %v1926 = vadd.f32 %v1378, %v1925
  %v1927 = vpop.f32.mrb[0].mxu0
  %v1928 = vpop.f32.mrb[0].mxu0
  %v1929 = vadd.f32 %v1381, %v1928
  %v1930 = vpop.f32.mrb[0].mxu0
  %1931 = vmatprep.mubr.bf16.mxu0 0
  %1932 = vmatmul.mubr.bf16.gmra.mrb[0].mxu0 %v1736
  %v1933 = vpop.f32.mrb[0].mxu0
  %v1934 = vadd.f32 %v1386, %v1933
  %v1935 = vpop.f32.mrb[0].mxu0
  %v1936 = vpop.f32.mrb[0].mxu0
  %v1937 = vadd.f32 %v1389, %v1936
  %v1938 = vpop.f32.mrb[0].mxu0
  %1939 = vmatprep.mubr.bf16.mxu0 0
  %1940 = vmatmul.mubr.bf16.gmra.mrb[0].mxu0 %v1739
  %v1941 = vpop.f32.mrb[0].mxu0
  %v1942 = vadd.f32 %v1394, %v1941
  %v1943 = vpop.f32.mrb[0].mxu0
  %v1944 = vpop.f32.mrb[0].mxu0
  %v1945 = vadd.f32 %v1397, %v1944
  %v1946 = vpop.f32.mrb[0].mxu0
  %1947 = vmatprep.mubr.bf16.mxu0 0
  %1948 = vmatmul.mubr.bf16.gmra.mrb[0].mxu0 %v1742
  %v1949 = vpop.f32.mrb[0].mxu0
  %v1950 = vadd.f32 %v1402, %v1949
  %v1951 = vpop.f32.mrb[0].mxu0
  %v1952 = vpop.f32.mrb[0].mxu0
  %v1953 = vadd.f32 %v1405, %v1952
  %v1954 = vpop.f32.mrb[0].mxu0
  %1955 = vmatprep.mubr.bf16.mxu0 0
  %1956 = vmatmul.mubr.bf16.gmra.mrb[0].mxu0 %v1745
  %v1957 = vpop.f32.mrb[0].mxu0
  %v1958 = vadd.f32 %v1410, %v1957
  %v1959 = vpop.f32.mrb[0].mxu0
  %v1960 = vpop.f32.mrb[0].mxu0
  %v1961 = vadd.f32 %v1413, %v1960
  %v1962 = vpop.f32.mrb[0].mxu0
  %1963 = vmatprep.mubr.bf16.mxu0 0
  %1964 = vmatmul.mubr.bf16.gmra.mrb[0].mxu0 %v1748
  %v1965 = vpop.f32.mrb[0].mxu0
  %v1966 = vadd.f32 %v1418, %v1965
  %v1967 = vpop.f32.mrb[0].mxu0
  %v1968 = vpop.f32.mrb[0].mxu0
  %v1969 = vadd.f32 %v1421, %v1968
  %v1970 = vpop.f32.mrb[0].mxu0
  %1971 = vmatprep.mubr.bf16.mxu0 0
  %1972 = vmatmul.mubr.bf16.gmra.mrb[0].mxu0 %v1751
  %v1973 = vpop.f32.mrb[0].mxu0
  %v1974 = vadd.f32 %v1426, %v1973
  %v1975 = vpop.f32.mrb[0].mxu0
  %v1976 = vpop.f32.mrb[0].mxu0
  %v1977 = vadd.f32 %v1429, %v1976
  %v1978 = vpop.f32.mrb[0].mxu0
  %1979 = vmatprep.mubr.bf16.mxu0 0
  %1980 = vmatmul.mubr.bf16.gmra.mrb[0].mxu0 %v1754
  %v1981 = vpop.f32.mrb[0].mxu0
  %v1982 = vadd.f32 %v1434, %v1981
  %v1983 = vpop.f32.mrb[0].mxu0
  %v1984 = vpop.f32.mrb[0].mxu0
  %v1985 = vadd.f32 %v1437, %v1984
  %v1986 = vpop.f32.mrb[0].mxu0
  %1987 = vmatprep.mubr.bf16.mxu0 0
  %1988 = vmatmul.mubr.bf16.gmra.mrb[0].mxu0 %v1757
  %v1989 = vpop.f32.mrb[0].mxu0
  %v1990 = vadd.f32 %v1442, %v1989
  %v1991 = vpop.f32.mrb[0].mxu0
  %v1992 = vpop.f32.mrb[0].mxu0
  %v1993 = vadd.f32 %v1445, %v1992
  %v1994 = vpop.f32.mrb[0].mxu0
  %1995 = vmatprep.mubr.bf16.mxu0 0
  %1996 = vmatmul.mubr.bf16.gmra.mrb[0].mxu0 %v1760
  %v1997 = vpop.f32.mrb[0].mxu0
  %v1998 = vadd.f32 %v1450, %v1997
  %v1999 = vpop.f32.mrb[0].mxu0
  %v2000 = vpop.f32.mrb[0].mxu0
  %v2001 = vadd.f32 %v1453, %v2000
  %v2002 = vpop.f32.mrb[0].mxu0
  %2003 = vmatprep.mubr.bf16.mxu0 0
  %2004 = vmatmul.mubr.bf16.gmra.mrb[0].mxu0 %v1763
  %v2005 = vpop.f32.mrb[0].mxu0
  %v2006 = vadd.f32 %v1458, %v2005
  %v2007 = vpop.f32.mrb[0].mxu0
  %v2008 = vpop.f32.mrb[0].mxu0
  %v2009 = vadd.f32 %v1461, %v2008
  %v2010 = vpop.f32.mrb[0].mxu0
  %2011 = vmatprep.mubr.bf16.mxu0 0
  %2012 = vmatmul.mubr.bf16.gmra.mrb[0].mxu0 %v1766
  %v2013 = vpop.f32.mrb[0].mxu0
  %v2014 = vadd.f32 %v1466, %v2013
  %v2015 = vpop.f32.mrb[0].mxu0
  %v2016 = vpop.f32.mrb[0].mxu0
  %v2017 = vadd.f32 %v1469, %v2016
  %v2018 = vpop.f32.mrb[0].mxu0
  %2019 = vmatprep.mubr.bf16.mxu0 0
  %2020 = vmatmul.mubr.bf16.gmra.mrb[0].mxu0 %v1769
  %v2021 = vpop.f32.mrb[0].mxu0
  %v2022 = vadd.f32 %v1474, %v2021
  %v2023 = vpop.f32.mrb[0].mxu0
  %v2024 = vpop.f32.mrb[0].mxu0
  %v2025 = vadd.f32 %v1477, %v2024
  %v2026 = vpop.f32.mrb[0].mxu0
  %2027 = vmatprep.mubr.bf16.mxu0 0
  %2028 = vmatmul.mubr.bf16.gmra.mrb[0].mxu0 %v1772
  %v2029 = vpop.f32.mrb[0].mxu0
  %v2030 = vadd.f32 %v1482, %v2029
  %v2031 = vpop.f32.mrb[0].mxu0
  %v2032 = vpop.f32.mrb[0].mxu0
  %v2033 = vadd.f32 %v1485, %v2032
  %v2034 = vpop.f32.mrb[0].mxu0
  %2035 = vmatprep.mubr.bf16.mxu0 0
  %2036 = vmatmul.mubr.bf16.gmra.mrb[0].mxu0 %v1775
  %v2037 = vpop.f32.mrb[0].mxu0
  %v2038 = vadd.f32 %v1490, %v2037
  %v2039 = vpop.f32.mrb[0].mxu0
  %v2040 = vpop.f32.mrb[0].mxu0
  %v2041 = vadd.f32 %v1493, %v2040
  %v2042 = vpop.f32.mrb[0].mxu0
  %2043 = vmatprep.mubr.bf16.mxu0 0
  %2044 = vmatmul.mubr.bf16.gmra.mrb[0].mxu0 %v1778
  %v2045 = vpop.f32.mrb[0].mxu0
  %v2046 = vadd.f32 %v1498, %v2045
  %v2047 = vpop.f32.mrb[0].mxu0
  %v2048 = vpop.f32.mrb[0].mxu0
  %v2049 = vadd.f32 %v1501, %v2048
  %v2050 = vpop.f32.mrb[0].mxu0
  %2051 = vmatprep.mubr.bf16.mxu0 0
  %2052 = vmatmul.mubr.bf16.gmra.mrb[0].mxu0 %v1781
  %v2053 = vpop.f32.mrb[0].mxu0
  %v2054 = vadd.f32 %v1506, %v2053
  %v2055 = vpop.f32.mrb[0].mxu0
  %v2056 = vpop.f32.mrb[0].mxu0
  %v2057 = vadd.f32 %v1509, %v2056
  %v2058 = vpop.f32.mrb[0].mxu0
  %2059 = vmatprep.mubr.bf16.mxu0 0
  %2060 = vmatmul.mubr.bf16.gmra.mrb[0].mxu0 %v1784
  %v2061 = vpop.f32.mrb[0].mxu0
  %v2062 = vadd.f32 %v1514, %v2061
  %v2063 = vpop.f32.mrb[0].mxu0
  %v2064 = vpop.f32.mrb[0].mxu0
  %v2065 = vadd.f32 %v1517, %v2064
  %v2066 = vpop.f32.mrb[0].mxu0
  %2067 = vmatprep.mubr.bf16.mxu0 0
  %2068 = vmatmul.mubr.bf16.gmra.mrb[0].mxu0 %v1787
  %v2069 = vpop.f32.mrb[0].mxu0
  %v2070 = vadd.f32 %v1522, %v2069
  %v2071 = vpop.f32.mrb[0].mxu0
  %v2072 = vpop.f32.mrb[0].mxu0
  %v2073 = vadd.f32 %v1525, %v2072
  %v2074 = vpop.f32.mrb[0].mxu0
  %2075 = vmatprep.mubr.bf16.mxu0 0
  %2076 = vmatmul.mubr.bf16.gmra.mrb[0].mxu0 %v1790
  %v2077 = vpop.f32.mrb[0].mxu0
  %v2078 = vadd.f32 %v1530, %v2077
  %v2079 = vpop.f32.mrb[0].mxu0
  %v2080 = vpop.f32.mrb[0].mxu0
  %v2081 = vadd.f32 %v1533, %v2080
  %v2082 = vpop.f32.mrb[0].mxu0
  %2083 = vdwg.mxu0
  %v2084 = vld [vmem:[%s4] sm:$0x1]
  %v2086 = vlaneseq
  %v2087 = vshrl.u32 %v2086, 7
  %v2088 = vsub.s32 0, %v2087
  %v2089 = vrot.slane %v2084, %v2088
  %v2091 = vadd.f32 %v1830, %v2089
  %v2092 = vadd.f32 %v1833, %v2089
  %v2093 = vadd.f32 %v1838, %v2089
  %v2094 = vadd.f32 %v1841, %v2089
  %v2095 = vadd.f32 %v1846, %v2089
  %v2096 = vadd.f32 %v1849, %v2089
  %v2097 = vadd.f32 %v1854, %v2089
  %v2098 = vadd.f32 %v1857, %v2089
  %v2099 = vadd.f32 %v1862, %v2089
  %v2100 = vadd.f32 %v1865, %v2089
  %v2101 = vadd.f32 %v1870, %v2089
  %v2102 = vadd.f32 %v1873, %v2089
  %v2103 = vadd.f32 %v1878, %v2089
  %v2104 = vadd.f32 %v1881, %v2089
  %v2105 = vadd.f32 %v1886, %v2089
  %v2106 = vadd.f32 %v1889, %v2089
  %v2107 = vadd.f32 %v1894, %v2089
  %v2108 = vadd.f32 %v1897, %v2089
  %v2109 = vadd.f32 %v1902, %v2089
  %v2110 = vadd.f32 %v1905, %v2089
  %v2111 = vadd.f32 %v1910, %v2089
  %v2112 = vadd.f32 %v1913, %v2089
  %v2113 = vadd.f32 %v1918, %v2089
  %v2114 = vadd.f32 %v1921, %v2089
  %v2115 = vadd.f32 %v1926, %v2089
  %v2116 = vadd.f32 %v1929, %v2089
  %v2117 = vadd.f32 %v1934, %v2089
  %v2118 = vadd.f32 %v1937, %v2089
  %v2119 = vadd.f32 %v1942, %v2089
  %v2120 = vadd.f32 %v1945, %v2089
  %v2121 = vadd.f32 %v1950, %v2089
  %v2122 = vadd.f32 %v1953, %v2089
  %v2123 = vadd.f32 %v1958, %v2089
  %v2124 = vadd.f32 %v1961, %v2089
  %v2125 = vadd.f32 %v1966, %v2089
  %v2126 = vadd.f32 %v1969, %v2089
  %v2127 = vadd.f32 %v1974, %v2089
  %v2128 = vadd.f32 %v1977, %v2089
  %v2129 = vadd.f32 %v1982, %v2089
  %v2130 = vadd.f32 %v1985, %v2089
  %v2131 = vadd.f32 %v1990, %v2089
  %v2132 = vadd.f32 %v1993, %v2089
  %v2133 = vadd.f32 %v1998, %v2089
  %v2134 = vadd.f32 %v2001, %v2089
  %v2135 = vadd.f32 %v2006, %v2089
  %v2136 = vadd.f32 %v2009, %v2089
  %v2137 = vadd.f32 %v2014, %v2089
  %v2138 = vadd.f32 %v2017, %v2089
  %v2139 = vadd.f32 %v2022, %v2089
  %v2140 = vadd.f32 %v2025, %v2089
  %v2141 = vadd.f32 %v2030, %v2089
  %v2142 = vadd.f32 %v2033, %v2089
  %v2143 = vadd.f32 %v2038, %v2089
  %v2144 = vadd.f32 %v2041, %v2089
  %v2145 = vadd.f32 %v2046, %v2089
  %v2146 = vadd.f32 %v2049, %v2089
  %v2147 = vadd.f32 %v2054, %v2089
  %v2148 = vadd.f32 %v2057, %v2089
  %v2149 = vadd.f32 %v2062, %v2089
  %v2150 = vadd.f32 %v2065, %v2089
  %v2151 = vadd.f32 %v2070, %v2089
  %v2152 = vadd.f32 %v2073, %v2089
  %v2153 = vadd.f32 %v2078, %v2089
  %v2154 = vadd.f32 %v2081, %v2089
  %vm2155 = vcmp.gt.f32.partialorder %v2091, 0.0
  %vm2156 = vcmp.gt.f32.partialorder %v2092, 0.0
  %vm2157 = vcmp.gt.f32.partialorder %v2093, 0.0
  %vm2158 = vcmp.gt.f32.partialorder %v2094, 0.0
  %vm2159 = vcmp.gt.f32.partialorder %v2095, 0.0
  %vm2160 = vcmp.gt.f32.partialorder %v2096, 0.0
  %vm2161 = vcmp.gt.f32.partialorder %v2097, 0.0
  %vm2162 = vcmp.gt.f32.partialorder %v2098, 0.0
  %vm2163 = vcmp.gt.f32.partialorder %v2099, 0.0
  %vm2164 = vcmp.gt.f32.partialorder %v2100, 0.0
  %vm2165 = vcmp.gt.f32.partialorder %v2101, 0.0
  %vm2166 = vcmp.gt.f32.partialorder %v2102, 0.0
  %vm2167 = vcmp.gt.f32.partialorder %v2103, 0.0
  %vm2168 = vcmp.gt.f32.partialorder %v2104, 0.0
  %vm2169 = vcmp.gt.f32.partialorder %v2105, 0.0
  %vm2170 = vcmp.gt.f32.partialorder %v2106, 0.0
  %vm2171 = vcmp.gt.f32.partialorder %v2107, 0.0
  %vm2172 = vcmp.gt.f32.partialorder %v2108, 0.0
  %vm2173 = vcmp.gt.f32.partialorder %v2109, 0.0
  %vm2174 = vcmp.gt.f32.partialorder %v2110, 0.0
  %vm2175 = vcmp.gt.f32.partialorder %v2111, 0.0
  %vm2176 = vcmp.gt.f32.partialorder %v2112, 0.0
  %vm2177 = vcmp.gt.f32.partialorder %v2113, 0.0
  %vm2178 = vcmp.gt.f32.partialorder %v2114, 0.0
  %vm2179 = vcmp.gt.f32.partialorder %v2115, 0.0
  %vm2180 = vcmp.gt.f32.partialorder %v2116, 0.0
  %vm2181 = vcmp.gt.f32.partialorder %v2117, 0.0
  %vm2182 = vcmp.gt.f32.partialorder %v2118, 0.0
  %vm2183 = vcmp.gt.f32.partialorder %v2119, 0.0
  %vm2184 = vcmp.gt.f32.partialorder %v2120, 0.0
  %vm2185 = vcmp.gt.f32.partialorder %v2121, 0.0
  %vm2186 = vcmp.gt.f32.partialorder %v2122, 0.0
  %vm2187 = vcmp.gt.f32.partialorder %v2123, 0.0
  %vm2188 = vcmp.gt.f32.partialorder %v2124, 0.0
  %vm2189 = vcmp.gt.f32.partialorder %v2125, 0.0
  %vm2190 = vcmp.gt.f32.partialorder %v2126, 0.0
  %vm2191 = vcmp.gt.f32.partialorder %v2127, 0.0
  %vm2192 = vcmp.gt.f32.partialorder %v2128, 0.0
  %vm2193 = vcmp.gt.f32.partialorder %v2129, 0.0
  %vm2194 = vcmp.gt.f32.partialorder %v2130, 0.0
  %vm2195 = vcmp.gt.f32.partialorder %v2131, 0.0
  %vm2196 = vcmp.gt.f32.partialorder %v2132, 0.0
  %vm2197 = vcmp.gt.f32.partialorder %v2133, 0.0
  %vm2198 = vcmp.gt.f32.partialorder %v2134, 0.0
  %vm2199 = vcmp.gt.f32.partialorder %v2135, 0.0
  %vm2200 = vcmp.gt.f32.partialorder %v2136, 0.0
  %vm2201 = vcmp.gt.f32.partialorder %v2137, 0.0
  %vm2202 = vcmp.gt.f32.partialorder %v2138, 0.0
  %vm2203 = vcmp.gt.f32.partialorder %v2139, 0.0
  %vm2204 = vcmp.gt.f32.partialorder %v2140, 0.0
  %vm2205 = vcmp.gt.f32.partialorder %v2141, 0.0
  %vm2206 = vcmp.gt.f32.partialorder %v2142, 0.0
  %vm2207 = vcmp.gt.f32.partialorder %v2143, 0.0
  %vm2208 = vcmp.gt.f32.partialorder %v2144, 0.0
  %vm2209 = vcmp.gt.f32.partialorder %v2145, 0.0
  %vm2210 = vcmp.gt.f32.partialorder %v2146, 0.0
  %vm2211 = vcmp.gt.f32.partialorder %v2147, 0.0
  %vm2212 = vcmp.gt.f32.partialorder %v2148, 0.0
  %vm2213 = vcmp.gt.f32.partialorder %v2149, 0.0
  %vm2214 = vcmp.gt.f32.partialorder %v2150, 0.0
  %vm2215 = vcmp.gt.f32.partialorder %v2151, 0.0
  %vm2216 = vcmp.gt.f32.partialorder %v2152, 0.0
  %vm2217 = vcmp.gt.f32.partialorder %v2153, 0.0
  %vm2218 = vcmp.gt.f32.partialorder %v2154, 0.0
  %v2219 = vld [vmem:[%s5] sm:$0x1]
  %v2221 = vlaneseq
  %v2222 = vshrl.u32 %v2221, 7
  %v2223 = vsub.s32 0, %v2222
  %v2224 = vrot.slane %v2219, %v2223
  %v2226 = vmul.f32 %v2091, %v2224
  %v2227 = vmul.f32 %v2092, %v2224
  %v2228 = vmul.f32 %v2093, %v2224
  %v2229 = vmul.f32 %v2094, %v2224
  %v2230 = vmul.f32 %v2095, %v2224
  %v2231 = vmul.f32 %v2096, %v2224
  %v2232 = vmul.f32 %v2097, %v2224
  %v2233 = vmul.f32 %v2098, %v2224
  %v2234 = vmul.f32 %v2099, %v2224
  %v2235 = vmul.f32 %v2100, %v2224
  %v2236 = vmul.f32 %v2101, %v2224
  %v2237 = vmul.f32 %v2102, %v2224
  %v2238 = vmul.f32 %v2103, %v2224
  %v2239 = vmul.f32 %v2104, %v2224
  %v2240 = vmul.f32 %v2105, %v2224
  %v2241 = vmul.f32 %v2106, %v2224
  %v2242 = vmul.f32 %v2107, %v2224
  %v2243 = vmul.f32 %v2108, %v2224
  %v2244 = vmul.f32 %v2109, %v2224
  %v2245 = vmul.f32 %v2110, %v2224
  %v2246 = vmul.f32 %v2111, %v2224
  %v2247 = vmul.f32 %v2112, %v2224
  %v2248 = vmul.f32 %v2113, %v2224
  %v2249 = vmul.f32 %v2114, %v2224
  %v2250 = vmul.f32 %v2115, %v2224
  %v2251 = vmul.f32 %v2116, %v2224
  %v2252 = vmul.f32 %v2117, %v2224
  %v2253 = vmul.f32 %v2118, %v2224
  %v2254 = vmul.f32 %v2119, %v2224
  %v2255 = vmul.f32 %v2120, %v2224
  %v2256 = vmul.f32 %v2121, %v2224
  %v2257 = vmul.f32 %v2122, %v2224
  %v2258 = vmul.f32 %v2123, %v2224
  %v2259 = vmul.f32 %v2124, %v2224
  %v2260 = vmul.f32 %v2125, %v2224
  %v2261 = vmul.f32 %v2126, %v2224
  %v2262 = vmul.f32 %v2127, %v2224
  %v2263 = vmul.f32 %v2128, %v2224
  %v2264 = vmul.f32 %v2129, %v2224
  %v2265 = vmul.f32 %v2130, %v2224
  %v2266 = vmul.f32 %v2131, %v2224
  %v2267 = vmul.f32 %v2132, %v2224
  %v2268 = vmul.f32 %v2133, %v2224
  %v2269 = vmul.f32 %v2134, %v2224
  %v2270 = vmul.f32 %v2135, %v2224
  %v2271 = vmul.f32 %v2136, %v2224
  %v2272 = vmul.f32 %v2137, %v2224
  %v2273 = vmul.f32 %v2138, %v2224
  %v2274 = vmul.f32 %v2139, %v2224
  %v2275 = vmul.f32 %v2140, %v2224
  %v2276 = vmul.f32 %v2141, %v2224
  %v2277 = vmul.f32 %v2142, %v2224
  %v2278 = vmul.f32 %v2143, %v2224
  %v2279 = vmul.f32 %v2144, %v2224
  %v2280 = vmul.f32 %v2145, %v2224
  %v2281 = vmul.f32 %v2146, %v2224
  %v2282 = vmul.f32 %v2147, %v2224
  %v2283 = vmul.f32 %v2148, %v2224
  %v2284 = vmul.f32 %v2149, %v2224
  %v2285 = vmul.f32 %v2150, %v2224
  %v2286 = vmul.f32 %v2151, %v2224
  %v2287 = vmul.f32 %v2152, %v2224
  %v2288 = vmul.f32 %v2153, %v2224
  %v2289 = vmul.f32 %v2154, %v2224
  %v2290 = vsel %vm2155, %v2091, %v2226
  %v2291 = vsel %vm2156, %v2092, %v2227
  %v2292 = vsel %vm2157, %v2093, %v2228
  %v2293 = vsel %vm2158, %v2094, %v2229
  %v2294 = vsel %vm2159, %v2095, %v2230
  %v2295 = vsel %vm2160, %v2096, %v2231
  %v2296 = vsel %vm2161, %v2097, %v2232
  %v2297 = vsel %vm2162, %v2098, %v2233
  %v2298 = vsel %vm2163, %v2099, %v2234
  %v2299 = vsel %vm2164, %v2100, %v2235
  %v2300 = vsel %vm2165, %v2101, %v2236
  %v2301 = vsel %vm2166, %v2102, %v2237
  %v2302 = vsel %vm2167, %v2103, %v2238
  %v2303 = vsel %vm2168, %v2104, %v2239
  %v2304 = vsel %vm2169, %v2105, %v2240
  %v2305 = vsel %vm2170, %v2106, %v2241
  %v2306 = vsel %vm2171, %v2107, %v2242
  %v2307 = vsel %vm2172, %v2108, %v2243
  %v2308 = vsel %vm2173, %v2109, %v2244
  %v2309 = vsel %vm2174, %v2110, %v2245
  %v2310 = vsel %vm2175, %v2111, %v2246
  %v2311 = vsel %vm2176, %v2112, %v2247
  %v2312 = vsel %vm2177, %v2113, %v2248
  %v2313 = vsel %vm2178, %v2114, %v2249
  %v2314 = vsel %vm2179, %v2115, %v2250
  %v2315 = vsel %vm2180, %v2116, %v2251
  %v2316 = vsel %vm2181, %v2117, %v2252
  %v2317 = vsel %vm2182, %v2118, %v2253
  %v2318 = vsel %vm2183, %v2119, %v2254
  %v2319 = vsel %vm2184, %v2120, %v2255
  %v2320 = vsel %vm2185, %v2121, %v2256
  %v2321 = vsel %vm2186, %v2122, %v2257
  %v2322 = vsel %vm2187, %v2123, %v2258
  %v2323 = vsel %vm2188, %v2124, %v2259
  %v2324 = vsel %vm2189, %v2125, %v2260
  %v2325 = vsel %vm2190, %v2126, %v2261
  %v2326 = vsel %vm2191, %v2127, %v2262
  %v2327 = vsel %vm2192, %v2128, %v2263
  %v2328 = vsel %vm2193, %v2129, %v2264
  %v2329 = vsel %vm2194, %v2130, %v2265
  %v2330 = vsel %vm2195, %v2131, %v2266
  %v2331 = vsel %vm2196, %v2132, %v2267
  %v2332 = vsel %vm2197, %v2133, %v2268
  %v2333 = vsel %vm2198, %v2134, %v2269
  %v2334 = vsel %vm2199, %v2135, %v2270
  %v2335 = vsel %vm2200, %v2136, %v2271
  %v2336 = vsel %vm2201, %v2137, %v2272
  %v2337 = vsel %vm2202, %v2138, %v2273
  %v2338 = vsel %vm2203, %v2139, %v2274
  %v2339 = vsel %vm2204, %v2140, %v2275
  %v2340 = vsel %vm2205, %v2141, %v2276
  %v2341 = vsel %vm2206, %v2142, %v2277
  %v2342 = vsel %vm2207, %v2143, %v2278
  %v2343 = vsel %vm2208, %v2144, %v2279
  %v2344 = vsel %vm2209, %v2145, %v2280
  %v2345 = vsel %vm2210, %v2146, %v2281
  %v2346 = vsel %vm2211, %v2147, %v2282
  %v2347 = vsel %vm2212, %v2148, %v2283
  %v2348 = vsel %vm2213, %v2149, %v2284
  %v2349 = vsel %vm2214, %v2150, %v2285
  %v2350 = vsel %vm2215, %v2151, %v2286
  %v2351 = vsel %vm2216, %v2152, %v2287
  %v2352 = vsel %vm2217, %v2153, %v2288
  %v2353 = vsel %vm2218, %v2154, %v2289
  %v2354 = vpack.c.bf16 %v2291, %v2290
  %v2355 = vpack.c.bf16 %v2293, %v2292
  %v2356 = vpack.c.bf16 %v2295, %v2294
  %v2357 = vpack.c.bf16 %v2297, %v2296
  %v2358 = vpack.c.bf16 %v2299, %v2298
  %v2359 = vpack.c.bf16 %v2301, %v2300
  %v2360 = vpack.c.bf16 %v2303, %v2302
  %v2361 = vpack.c.bf16 %v2305, %v2304
  %v2362 = vpack.c.bf16 %v2307, %v2306
  %v2363 = vpack.c.bf16 %v2309, %v2308
  %v2364 = vpack.c.bf16 %v2311, %v2310
  %v2365 = vpack.c.bf16 %v2313, %v2312
  %v2366 = vpack.c.bf16 %v2315, %v2314
  %v2367 = vpack.c.bf16 %v2317, %v2316
  %v2368 = vpack.c.bf16 %v2319, %v2318
  %v2369 = vpack.c.bf16 %v2321, %v2320
  %v2370 = vpack.c.bf16 %v2323, %v2322
  %v2371 = vpack.c.bf16 %v2325, %v2324
  %v2372 = vpack.c.bf16 %v2327, %v2326
  %v2373 = vpack.c.bf16 %v2329, %v2328
  %v2374 = vpack.c.bf16 %v2331, %v2330
  %v2375 = vpack.c.bf16 %v2333, %v2332
  %v2376 = vpack.c.bf16 %v2335, %v2334
  %v2377 = vpack.c.bf16 %v2337, %v2336
  %v2378 = vpack.c.bf16 %v2339, %v2338
  %v2379 = vpack.c.bf16 %v2341, %v2340
  %v2380 = vpack.c.bf16 %v2343, %v2342
  %v2381 = vpack.c.bf16 %v2345, %v2344
  %v2382 = vpack.c.bf16 %v2347, %v2346
  %v2383 = vpack.c.bf16 %v2349, %v2348
  %v2384 = vpack.c.bf16 %v2351, %v2350
  %v2385 = vpack.c.bf16 %v2353, %v2352
  %v2418 = vunpack.c.l.b16 %v2354
  %v2419 = vunpack.c.h.b16 %v2354
  %v2420 = vunpack.c.l.b16 %v2355
  %v2421 = vunpack.c.h.b16 %v2355
  %v2422 = vunpack.c.l.b16 %v2356
  %v2423 = vunpack.c.h.b16 %v2356
  %v2424 = vunpack.c.l.b16 %v2357
  %v2425 = vunpack.c.h.b16 %v2357
  %v2426 = vunpack.c.l.b16 %v2358
  %v2427 = vunpack.c.h.b16 %v2358
  %v2428 = vunpack.c.l.b16 %v2359
  %v2429 = vunpack.c.h.b16 %v2359
  %v2430 = vunpack.c.l.b16 %v2360
  %v2431 = vunpack.c.h.b16 %v2360
  %v2432 = vunpack.c.l.b16 %v2361
  %v2433 = vunpack.c.h.b16 %v2361
  %v2434 = vunpack.c.l.b16 %v2362
  %v2435 = vunpack.c.h.b16 %v2362
  %v2436 = vunpack.c.l.b16 %v2363
  %v2437 = vunpack.c.h.b16 %v2363
  %v2438 = vunpack.c.l.b16 %v2364
  %v2439 = vunpack.c.h.b16 %v2364
  %v2440 = vunpack.c.l.b16 %v2365
  %v2441 = vunpack.c.h.b16 %v2365
  %v2442 = vunpack.c.l.b16 %v2366
  %v2443 = vunpack.c.h.b16 %v2366
  %v2444 = vunpack.c.l.b16 %v2367
  %v2445 = vunpack.c.h.b16 %v2367
  %v2446 = vunpack.c.l.b16 %v2368
  %v2447 = vunpack.c.h.b16 %v2368
  %v2448 = vunpack.c.l.b16 %v2369
  %v2449 = vunpack.c.h.b16 %v2369
  %v2450 = vunpack.c.l.b16 %v2370
  %v2451 = vunpack.c.h.b16 %v2370
  %v2452 = vunpack.c.l.b16 %v2371
  %v2453 = vunpack.c.h.b16 %v2371
  %v2454 = vunpack.c.l.b16 %v2372
  %v2455 = vunpack.c.h.b16 %v2372
  %v2456 = vunpack.c.l.b16 %v2373
  %v2457 = vunpack.c.h.b16 %v2373
  %v2458 = vunpack.c.l.b16 %v2374
  %v2459 = vunpack.c.h.b16 %v2374
  %v2460 = vunpack.c.l.b16 %v2375
  %v2461 = vunpack.c.h.b16 %v2375
  %v2462 = vunpack.c.l.b16 %v2376
  %v2463 = vunpack.c.h.b16 %v2376
  %v2464 = vunpack.c.l.b16 %v2377
  %v2465 = vunpack.c.h.b16 %v2377
  %v2466 = vunpack.c.l.b16 %v2378
  %v2467 = vunpack.c.h.b16 %v2378
  %v2468 = vunpack.c.l.b16 %v2379
  %v2469 = vunpack.c.h.b16 %v2379
  %v2470 = vunpack.c.l.b16 %v2380
  %v2471 = vunpack.c.h.b16 %v2380
  %v2472 = vunpack.c.l.b16 %v2381
  %v2473 = vunpack.c.h.b16 %v2381
  %v2474 = vunpack.c.l.b16 %v2382
  %v2475 = vunpack.c.h.b16 %v2382
  %v2476 = vunpack.c.l.b16 %v2383
  %v2477 = vunpack.c.h.b16 %v2383
  %v2478 = vunpack.c.l.b16 %v2384
  %v2479 = vunpack.c.h.b16 %v2384
  %v2480 = vunpack.c.l.b16 %v2385
  %v2481 = vunpack.c.h.b16 %v2385
  %v2482 = vpack.c.b16 %v2418, %v2418
  %v2483 = vpack.c.b16 %v2419, %v2419
  %v2484 = vpack.c.b16 %v2420, %v2420
  %v2485 = vpack.c.b16 %v2421, %v2421
  %v2486 = vpack.c.b16 %v2422, %v2422
  %v2487 = vpack.c.b16 %v2423, %v2423
  %v2488 = vpack.c.b16 %v2424, %v2424
  %v2489 = vpack.c.b16 %v2425, %v2425
  %v2490 = vpack.c.b16 %v2426, %v2426
  %v2491 = vpack.c.b16 %v2427, %v2427
  %v2492 = vpack.c.b16 %v2428, %v2428
  %v2493 = vpack.c.b16 %v2429, %v2429
  %v2494 = vpack.c.b16 %v2430, %v2430
  %v2495 = vpack.c.b16 %v2431, %v2431
  %v2496 = vpack.c.b16 %v2432, %v2432
  %v2497 = vpack.c.b16 %v2433, %v2433
  %v2498 = vpack.c.b16 %v2434, %v2434
  %v2499 = vpack.c.b16 %v2435, %v2435
  %v2500 = vpack.c.b16 %v2436, %v2436
  %v2501 = vpack.c.b16 %v2437, %v2437
  %v2502 = vpack.c.b16 %v2438, %v2438
  %v2503 = vpack.c.b16 %v2439, %v2439
  %v2504 = vpack.c.b16 %v2440, %v2440
  %v2505 = vpack.c.b16 %v2441, %v2441
  %v2506 = vpack.c.b16 %v2442, %v2442
  %v2507 = vpack.c.b16 %v2443, %v2443
  %v2508 = vpack.c.b16 %v2444, %v2444
  %v2509 = vpack.c.b16 %v2445, %v2445
  %v2510 = vpack.c.b16 %v2446, %v2446
  %v2511 = vpack.c.b16 %v2447, %v2447
  %v2512 = vpack.c.b16 %v2448, %v2448
  %v2513 = vpack.c.b16 %v2449, %v2449
  %v2514 = vpack.c.b16 %v2450, %v2450
  %v2515 = vpack.c.b16 %v2451, %v2451
  %v2516 = vpack.c.b16 %v2452, %v2452
  %v2517 = vpack.c.b16 %v2453, %v2453
  %v2518 = vpack.c.b16 %v2454, %v2454
  %v2519 = vpack.c.b16 %v2455, %v2455
  %v2520 = vpack.c.b16 %v2456, %v2456
  %v2521 = vpack.c.b16 %v2457, %v2457
  %v2522 = vpack.c.b16 %v2458, %v2458
  %v2523 = vpack.c.b16 %v2459, %v2459
  %v2524 = vpack.c.b16 %v2460, %v2460
  %v2525 = vpack.c.b16 %v2461, %v2461
  %v2526 = vpack.c.b16 %v2462, %v2462
  %v2527 = vpack.c.b16 %v2463, %v2463
  %v2528 = vpack.c.b16 %v2464, %v2464
  %v2529 = vpack.c.b16 %v2465, %v2465
  %v2530 = vpack.c.b16 %v2466, %v2466
  %v2531 = vpack.c.b16 %v2467, %v2467
  %v2532 = vpack.c.b16 %v2468, %v2468
  %v2533 = vpack.c.b16 %v2469, %v2469
  %v2534 = vpack.c.b16 %v2470, %v2470
  %v2535 = vpack.c.b16 %v2471, %v2471
  %v2536 = vpack.c.b16 %v2472, %v2472
  %v2537 = vpack.c.b16 %v2473, %v2473
  %v2538 = vpack.c.b16 %v2474, %v2474
  %v2539 = vpack.c.b16 %v2475, %v2475
  %v2540 = vpack.c.b16 %v2476, %v2476
  %v2541 = vpack.c.b16 %v2477, %v2477
  %v2542 = vpack.c.b16 %v2478, %v2478
  %v2543 = vpack.c.b16 %v2479, %v2479
  %v2544 = vpack.c.b16 %v2480, %v2480
  %v2545 = vpack.c.b16 %v2481, %v2481
  %vm2610 = vcmask 257024
  %2611 = vst.msk [vmem:[%s6] sm:$0xf] %vm2610, %v2482
  %2612 = vst.msk [vmem:[%s6 + $0x4] sm:$0xf] %vm2610, %v2483
  %2613 = vst.msk [vmem:[%s6 + $0x8] sm:$0xf] %vm2610, %v2484
  %2614 = vst.msk [vmem:[%s6 + $0xc] sm:$0xf] %vm2610, %v2485
  %2615 = vst.msk [vmem:[%s6 + $0x10] sm:$0xf] %vm2610, %v2486
  %2616 = vst.msk [vmem:[%s6 + $0x14] sm:$0xf] %vm2610, %v2487
  %2617 = vst.msk [vmem:[%s6 + $0x18] sm:$0xf] %vm2610, %v2488
  %2618 = vst.msk [vmem:[%s6 + $0x1c] sm:$0xf] %vm2610, %v2489
  %2619 = vst.msk [vmem:[%s6 + $0x20] sm:$0xf] %vm2610, %v2490
  %2620 = vst.msk [vmem:[%s6 + $0x24] sm:$0xf] %vm2610, %v2491
  %2621 = vst.msk [vmem:[%s6 + $0x28] sm:$0xf] %vm2610, %v2492
  %2622 = vst.msk [vmem:[%s6 + $0x2c] sm:$0xf] %vm2610, %v2493
  %2623 = vst.msk [vmem:[%s6 + $0x30] sm:$0xf] %vm2610, %v2494
  %2624 = vst.msk [vmem:[%s6 + $0x34] sm:$0xf] %vm2610, %v2495
  %2625 = vst.msk [vmem:[%s6 + $0x38] sm:$0xf] %vm2610, %v2496
  %2626 = vst.msk [vmem:[%s6 + $0x3c] sm:$0xf] %vm2610, %v2497
  %2627 = vst.msk [vmem:[%s6 + $0x40] sm:$0xf] %vm2610, %v2498
  %2628 = vst.msk [vmem:[%s6 + $0x44] sm:$0xf] %vm2610, %v2499
  %2629 = vst.msk [vmem:[%s6 + $0x48] sm:$0xf] %vm2610, %v2500
  %2630 = vst.msk [vmem:[%s6 + $0x4c] sm:$0xf] %vm2610, %v2501
  %2631 = vst.msk [vmem:[%s6 + $0x50] sm:$0xf] %vm2610, %v2502
  %2632 = vst.msk [vmem:[%s6 + $0x54] sm:$0xf] %vm2610, %v2503
  %2633 = vst.msk [vmem:[%s6 + $0x58] sm:$0xf] %vm2610, %v2504
  %2634 = vst.msk [vmem:[%s6 + $0x5c] sm:$0xf] %vm2610, %v2505
  %2635 = vst.msk [vmem:[%s6 + $0x60] sm:$0xf] %vm2610, %v2506
  %2636 = vst.msk [vmem:[%s6 + $0x64] sm:$0xf] %vm2610, %v2507
  %2637 = vst.msk [vmem:[%s6 + $0x68] sm:$0xf] %vm2610, %v2508
  %2638 = vst.msk [vmem:[%s6 + $0x6c] sm:$0xf] %vm2610, %v2509
  %2639 = vst.msk [vmem:[%s6 + $0x70] sm:$0xf] %vm2610, %v2510
  %2640 = vst.msk [vmem:[%s6 + $0x74] sm:$0xf] %vm2610, %v2511
  %2641 = vst.msk [vmem:[%s6 + $0x78] sm:$0xf] %vm2610, %v2512
  %2642 = vst.msk [vmem:[%s6 + $0x7c] sm:$0xf] %vm2610, %v2513
  %2643 = vst.msk [vmem:[%s6 + $0x80] sm:$0xf] %vm2610, %v2514
  %2644 = vst.msk [vmem:[%s6 + $0x84] sm:$0xf] %vm2610, %v2515
  %2645 = vst.msk [vmem:[%s6 + $0x88] sm:$0xf] %vm2610, %v2516
  %2646 = vst.msk [vmem:[%s6 + $0x8c] sm:$0xf] %vm2610, %v2517
  %2647 = vst.msk [vmem:[%s6 + $0x90] sm:$0xf] %vm2610, %v2518
  %2648 = vst.msk [vmem:[%s6 + $0x94] sm:$0xf] %vm2610, %v2519
  %2649 = vst.msk [vmem:[%s6 + $0x98] sm:$0xf] %vm2610, %v2520
  %2650 = vst.msk [vmem:[%s6 + $0x9c] sm:$0xf] %vm2610, %v2521
  %2651 = vst.msk [vmem:[%s6 + $0xa0] sm:$0xf] %vm2610, %v2522
  %2652 = vst.msk [vmem:[%s6 + $0xa4] sm:$0xf] %vm2610, %v2523
  %2653 = vst.msk [vmem:[%s6 + $0xa8] sm:$0xf] %vm2610, %v2524
  %2654 = vst.msk [vmem:[%s6 + $0xac] sm:$0xf] %vm2610, %v2525
  %2655 = vst.msk [vmem:[%s6 + $0xb0] sm:$0xf] %vm2610, %v2526
  %2656 = vst.msk [vmem:[%s6 + $0xb4] sm:$0xf] %vm2610, %v2527
  %2657 = vst.msk [vmem:[%s6 + $0xb8] sm:$0xf] %vm2610, %v2528
  %2658 = vst.msk [vmem:[%s6 + $0xbc] sm:$0xf] %vm2610, %v2529
  %2659 = vst.msk [vmem:[%s6 + $0xc0] sm:$0xf] %vm2610, %v2530
  %2660 = vst.msk [vmem:[%s6 + $0xc4] sm:$0xf] %vm2610, %v2531
  %2661 = vst.msk [vmem:[%s6 + $0xc8] sm:$0xf] %vm2610, %v2532
  %2662 = vst.msk [vmem:[%s6 + $0xcc] sm:$0xf] %vm2610, %v2533
  %2663 = vst.msk [vmem:[%s6 + $0xd0] sm:$0xf] %vm2610, %v2534
  %2664 = vst.msk [vmem:[%s6 + $0xd4] sm:$0xf] %vm2610, %v2535
  %2665 = vst.msk [vmem:[%s6 + $0xd8] sm:$0xf] %vm2610, %v2536
  %2666 = vst.msk [vmem:[%s6 + $0xdc] sm:$0xf] %vm2610, %v2537
  %2667 = vst.msk [vmem:[%s6 + $0xe0] sm:$0xf] %vm2610, %v2538
  %2668 = vst.msk [vmem:[%s6 + $0xe4] sm:$0xf] %vm2610, %v2539
  %2669 = vst.msk [vmem:[%s6 + $0xe8] sm:$0xf] %vm2610, %v2540
  %2670 = vst.msk [vmem:[%s6 + $0xec] sm:$0xf] %vm2610, %v2541
  %2671 = vst.msk [vmem:[%s6 + $0xf0] sm:$0xf] %vm2610, %v2542
  %2672 = vst.msk [vmem:[%s6 + $0xf4] sm:$0xf] %vm2610, %v2543
  %2673 = vst.msk [vmem:[%s6 + $0xf8] sm:$0xf] %vm2610, %v2544
  %2674 = vst.msk [vmem:[%s6 + $0xfc] sm:$0xf] %vm2610, %v2545
  // Predicated region
  $region26: #{sam2_classifier_forward.4} parent=0 // pred_check
    _
  $region27: #{sam2_classifier_forward.4} parent=0 // pred_check_branch
    %2676 = sbr.rel (0) target = $region29
  $region28: #{sam2_classifier_forward.4} parent=0 // pred_region
    _
  $region29: #{sam2_classifier_forward.4} parent=0 // pred_fallthru
    _
  // Predicated region
  $region30: #{sam2_classifier_forward.4} parent=0 // pred_check
    _
  $region31: #{sam2_classifier_forward.4} parent=0 // pred_check_branch
    %2678 = sbr.rel (0) target = $region33
  $region32: #{sam2_classifier_forward.4} parent=0 // pred_region
    _
  $region33: #{sam2_classifier_forward.4} parent=0 // pred_fallthru
    _

// kernel: sam2_classifier_forward.6
$region0: #{sam2_classifier_forward.6}
  #allocation0 [shape = 'u32[]', space=smem, size = 0x4, offset = 0x4, fixed_abs, tag = 'smem constant byte address 0x4 - core index']
  #allocation1 [shape = 'u32[144,128]{1,0:T(1,128)}', space=vmem, size = 0x12000, scoped, tag = 'internal scratch']
  %s0 = inlined_call_operand.vmem [shape: bf16[2,10,10,32], index: 0, kind: input, shape index: {}]
  %s1 = inlined_call_operand.vmem [shape: bf16[9,32,16], index: 1, kind: input, shape index: {}]
  %s2 = inlined_call_operand.vmem [shape: f32[1,16], index: 2, kind: input, shape index: {}]
  %s3 = inlined_call_operand.vmem [shape: f32[1,16], index: 3, kind: input, shape index: {}]
  %s4 = inlined_call_operand.vmem [shape: bf16[2,4,4,16], index: 4, kind: output, shape index: {}]
  %s5 = sld [smem:[#allocation0]]
  $region49: #{sam2_classifier_forward.6} parent=0
    _
  %s7 = ssub.s32 1, %s5
  %s8 = scalar_select 0, %s7, %s5
  loop: start=0, step=1, limit=4
  $region2: #{sam2_classifier_forward.6} parent=0 // loop_pre_header
    _
  $region3: #{sam2_classifier_forward.6} parent=0 // loop_header
    %s10 = sphi 0, %s14
    %p11 = scmp.ge.s32.totalorder %s10, 4
    %s20 = sphi 0, %s22
    %s23 = sphi 0, %s20
    %s24 = sphi 0, %s23
    %s40 = sphi 0, %s24
    %s44 = sphi 0, %s44
    %s46 = sphi 0, %s44
    %s47 = sphi 0, %s46
    %s61 = sphi 0, %s47
    %s65 = sphi 0, %s65
    %s67 = sphi 0, %s65
    %s68 = sphi 0, %s67
    %s82 = sphi 0, %s68
    %s86 = sphi 0, %s86
    %s88 = sphi 0, %s86
    %s89 = sphi 0, %s88
    %s103 = sphi 0, %s89
    %s109 = sphi 0, %s111
    %s112 = sphi 0, %s109
    %s113 = sphi 0, %s112
    %s129 = sphi 0, %s113
  $region4: #{sam2_classifier_forward.6} parent=0 // loop_header_branch
    %13 = sbr.rel (%p11) target = $region8
  $region5: #{sam2_classifier_forward.6} parent=0 // loop_body
    %s15 = ssub.s32 %s10, 1
    %s16 = ssub.s32 %s10, 2
    %s17 = sadd.s32 %s10, 1
    %s18 = ssub.s32 %s10, %s17
    %p19 = scmp.eq.s32.totalorder %s18, 0
    %s21 = sadd.s32 %s20, 1
    %s22 = scalar_select %p19, %s20, %s21
    %p25 = pneg %p19
    %p26 = scmp.eq.s32.totalorder %s10, 1
    %p27 = por %p25, %p26
    %p28 = scmp.ne.s32.totalorder %s20, %s23
    %p29 = scmp.eq.s32.totalorder %s10, 0
    %p30 = por %p28, %p29
    %p31 = scmp.ne.s32.totalorder %s20, %s23
    %p32 = scmp.eq.s32.totalorder %s15, 1
    %p33 = por %p31, %p32
    %p34 = scmp.ne.s32.totalorder %s23, %s24
    %p35 = scmp.eq.s32.totalorder %s15, 0
    %p36 = por %p34, %p35
    %p37 = scmp.ne.s32.totalorder %s23, %s24
    %p38 = scmp.eq.s32.totalorder %s16, 1
    %p39 = por %p37, %p38
    %p41 = scmp.ne.s32.totalorder %s24, %s40
    %p42 = scmp.eq.s32.totalorder %s16, 0
    %p43 = por %p41, %p42
    %s45 = sadd.s32 %s44, 1
    %p48 = scmp.eq.s32.totalorder %s10, 1
    %p49 = scmp.ne.s32.totalorder %s44, %s46
    %p50 = scmp.eq.s32.totalorder %s10, 0
    %p51 = por %p49, %p50
    %p52 = scmp.ne.s32.totalorder %s44, %s46
    %p53 = scmp.eq.s32.totalorder %s15, 1
    %p54 = por %p52, %p53
    %p55 = scmp.ne.s32.totalorder %s46, %s47
    %p56 = scmp.eq.s32.totalorder %s15, 0
    %p57 = por %p55, %p56
    %p58 = scmp.ne.s32.totalorder %s46, %s47
    %p59 = scmp.eq.s32.totalorder %s16, 1
    %p60 = por %p58, %p59
    %p62 = scmp.ne.s32.totalorder %s47, %s61
    %p63 = scmp.eq.s32.totalorder %s16, 0
    %p64 = por %p62, %p63
    %s66 = sadd.s32 %s65, 1
    %p69 = scmp.eq.s32.totalorder %s10, 1
    %p70 = scmp.ne.s32.totalorder %s65, %s67
    %p71 = scmp.eq.s32.totalorder %s10, 0
    %p72 = por %p70, %p71
    %p73 = scmp.ne.s32.totalorder %s65, %s67
    %p74 = scmp.eq.s32.totalorder %s15, 1
    %p75 = por %p73, %p74
    %p76 = scmp.ne.s32.totalorder %s67, %s68
    %p77 = scmp.eq.s32.totalorder %s15, 0
    %p78 = por %p76, %p77
    %p79 = scmp.ne.s32.totalorder %s67, %s68
    %p80 = scmp.eq.s32.totalorder %s16, 1
    %p81 = por %p79, %p80
    %p83 = scmp.ne.s32.totalorder %s68, %s82
    %p84 = scmp.eq.s32.totalorder %s16, 0
    %p85 = por %p83, %p84
    %s87 = sadd.s32 %s86, 1
    %p90 = scmp.eq.s32.totalorder %s10, 1
    %p91 = scmp.ne.s32.totalorder %s86, %s88
    %p92 = scmp.eq.s32.totalorder %s10, 0
    %p93 = por %p91, %p92
    %p94 = scmp.ne.s32.totalorder %s86, %s88
    %p95 = scmp.eq.s32.totalorder %s15, 1
    %p96 = por %p94, %p95
    %p97 = scmp.ne.s32.totalorder %s88, %s89
    %p98 = scmp.eq.s32.totalorder %s15, 0
    %p99 = por %p97, %p98
    %p100 = scmp.ne.s32.totalorder %s88, %s89
    %p101 = scmp.eq.s32.totalorder %s16, 1
    %p102 = por %p100, %p101
    %p104 = scmp.ne.s32.totalorder %s89, %s103
    %p105 = scmp.eq.s32.totalorder %s16, 0
    %p106 = por %p104, %p105
    %s107 = ssub.s32 %s10, %s17
    %p108 = scmp.eq.s32.totalorder %s107, 0
    %s110 = sadd.s32 %s109, 1
    %s111 = scalar_select %p108, %s109, %s110
    %p114 = pneg %p108
    %p115 = scmp.eq.s32.totalorder %s10, 1
    %p116 = por %p114, %p115
    %p117 = scmp.ne.s32.totalorder %s109, %s112
    %p118 = scmp.eq.s32.totalorder %s10, 0
    %p119 = por %p117, %p118
    %p120 = scmp.ne.s32.totalorder %s109, %s112
    %p121 = scmp.eq.s32.totalorder %s15, 1
    %p122 = por %p120, %p121
    %p123 = scmp.ne.s32.totalorder %s112, %s113
    %p124 = scmp.eq.s32.totalorder %s15, 0
    %p125 = por %p123, %p124
    %p126 = scmp.ne.s32.totalorder %s112, %s113
    %p127 = scmp.eq.s32.totalorder %s16, 1
    %p128 = por %p126, %p127
    %p130 = scmp.ne.s32.totalorder %s113, %s129
    %p131 = scmp.eq.s32.totalorder %s16, 0
    %p132 = por %p130, %p131
    %p133 = scmp.le.s32.totalorder 1, %s10
    %p134 = scmp.lt.s32.totalorder %s10, 3
    %p135 = pnand %p133, %p134
    %p136 = pneg %p135
    // Predicated region
    $region9: #{sam2_classifier_forward.6} parent=5 // pred_check
      _
    $region10: #{sam2_classifier_forward.6} parent=5 // pred_check_branch
      %138 = sbr.rel (%p135) target = $region12
    $region11: #{sam2_classifier_forward.6} parent=5 // pred_region
      %s139 = ssub.s32 %s10, 1
      // Predicated region
      $region13: #{sam2_classifier_forward.6} parent=11 // pred_check
        %p140 = pneg %p57
      $region14: #{sam2_classifier_forward.6} parent=11 // pred_check_branch
        %142 = sbr.rel (%p140) target = $region16
      $region15: #{sam2_classifier_forward.6} parent=11 // pred_region
        _
      $region16: #{sam2_classifier_forward.6} parent=11 // pred_fallthru
        _
      // Predicated region
      $region17: #{sam2_classifier_forward.6} parent=11 // pred_check
        %p143 = pneg %p78
      $region18: #{sam2_classifier_forward.6} parent=11 // pred_check_branch
        %145 = sbr.rel (%p143) target = $region20
      $region19: #{sam2_classifier_forward.6} parent=11 // pred_region
        _
      $region20: #{sam2_classifier_forward.6} parent=11 // pred_fallthru
        _
      // Predicated region
      $region21: #{sam2_classifier_forward.6} parent=11 // pred_check
        %p146 = pneg %p99
      $region22: #{sam2_classifier_forward.6} parent=11 // pred_check_branch
        %148 = sbr.rel (%p146) target = $region24
      $region23: #{sam2_classifier_forward.6} parent=11 // pred_region
        _
      $region24: #{sam2_classifier_forward.6} parent=11 // pred_fallthru
        _
    $region12: #{sam2_classifier_forward.6} parent=5 // pred_fallthru
      _
    %p149 = scmp.lt.s32.totalorder %s10, 2
    // Predicated region
    $region25: #{sam2_classifier_forward.6} parent=5 // pred_check
      %p150 = pneg %p149
    $region26: #{sam2_classifier_forward.6} parent=5 // pred_check_branch
      %152 = sbr.rel (%p150) target = $region28
    $region27: #{sam2_classifier_forward.6} parent=5 // pred_region
      // Predicated region
      $region29: #{sam2_classifier_forward.6} parent=27 // pred_check
        %p153 = pneg %p30
      $region30: #{sam2_classifier_forward.6} parent=27 // pred_check_branch
        %155 = sbr.rel (%p153) target = $region32
      $region31: #{sam2_classifier_forward.6} parent=27 // pred_region
        %p156 = scmp.lt.s32.totalorder %s10, 1
        %s157 = scalar_select %p156, %s10, 1
        %s158 = smul.addr %s157, 20
        %s159 = smul.addr %s158, 4
        %s160 = scalar_lea.vmem %s0, %s159
      $region32: #{sam2_classifier_forward.6} parent=27 // pred_fallthru
        _
    $region28: #{sam2_classifier_forward.6} parent=5 // pred_fallthru
      _
    %p161 = scmp.le.s32.totalorder 1, %s10
    %p162 = scmp.lt.s32.totalorder %s10, 3
    %p163 = pnand %p161, %p162
    %p164 = pneg %p163
    // Predicated region
    $region33: #{sam2_classifier_forward.6} parent=5 // pred_check
      _
    $region34: #{sam2_classifier_forward.6} parent=5 // pred_check_branch
      %166 = sbr.rel (%p163) target = $region36
    $region35: #{sam2_classifier_forward.6} parent=5 // pred_region
      %s167 = ssub.s32 %s10, 1
      %p168 = scmp.lt.s32.totalorder %s15, 1
      %s169 = scalar_select %p168, %s15, 1
      %s170 = smul.addr %s169, 20
      %s171 = smul.addr %s170, 4
      %s172 = scalar_lea.vmem %s0, %s171
      %p173 = pneg %p36
      %p174 = pneg %p33
      %p175 = pneg %p57
      %p176 = pneg %p54
      %p177 = pneg %p78
      %p178 = pneg %p75
      %p179 = pneg %p99
      %p180 = pneg %p96
      %p181 = pneg %p125
      %p182 = pneg %p122
      %p183 = scmp.lt.s32.totalorder %s15, 1
      %s184 = scalar_select %p183, %s15, 1
      %s185 = smul.addr %s184, 4
      %s186 = smul.addr %s185, 2
      %s187 = scalar_lea.vmem %s4, %s186
      %p188 = scmp.lt.s32.totalorder %s15, 1
      %s189 = scalar_select %p188, %s15, 1
      %s190 = smul.addr %s189, 20
      %s191 = smul.addr %s190, 4
      %s192 = scalar_lea.vmem %s0, %s191
      %p193 = scmp.lt.s32.totalorder %s15, 1
      %s194 = scalar_select %p193, %s15, 1
      %s195 = smul.addr %s194, 4
      %s196 = smul.addr %s195, 2
      %s197 = scalar_lea.vmem %s4, %s196
      %v199 = vld [vmem:[%s192] sm:$0xf]
      %v200 = vld [vmem:[%s192 + $0x4] sm:$0x1]
      %v201 = vld [vmem:[%s192 + $0x8] sm:$0xf]
      %v202 = vld [vmem:[%s192 + $0xc] sm:$0x1]
      %v203 = vld [vmem:[%s192 + $0x10] sm:$0xf]
      %v204 = vld [vmem:[%s192 + $0x14] sm:$0x1]
      %v205 = vld [vmem:[%s192 + $0x18] sm:$0xf]
      %v206 = vld [vmem:[%s192 + $0x1c] sm:$0x1]
      %v207 = vld [vmem:[%s192 + $0x20] sm:$0xf]
      %v208 = vld [vmem:[%s192 + $0x24] sm:$0x1]
      %v209 = vld [vmem:[%s192 + $0x28] sm:$0xf]
      %v210 = vld [vmem:[%s192 + $0x2c] sm:$0x1]
      %v211 = vld [vmem:[%s192 + $0x30] sm:$0xf]
      %v212 = vld [vmem:[%s192 + $0x34] sm:$0x1]
      %v213 = vld [vmem:[%s192 + $0x38] sm:$0xf]
      %v214 = vld [vmem:[%s192 + $0x3c] sm:$0x1]
      %v215 = vld [vmem:[%s192 + $0x40] sm:$0xf]
      %v216 = vld [vmem:[%s192 + $0x44] sm:$0x1]
      %v217 = vld [vmem:[%s192 + $0x48] sm:$0xf]
      %v218 = vld [vmem:[%s192 + $0x4c] sm:$0x1]
      %v219 = vld [vmem:[%s1] sm:$0xf]
      %v220 = vld [vmem:[%s1 + $0x4] sm:$0xf]
      %v221 = vld [vmem:[%s1 + $0x8] sm:$0xf]
      %v222 = vld [vmem:[%s1 + $0xc] sm:$0xf]
      %vm223 = vsmask.f32 3328
      %vm224 = vsmask.f32 7440
      %vm225 = vmor %vm223, %vm224
      %v227 = vshrl.u32 %v199, 16
      %v229 = vrot.slane %v227, 4
      %v230 = vshll.u32 %v199, 16
      %v232 = vrot.slane %v230, 5
      %v233 = vor.u32 %v229, %v232
      %v234 = vrot.slane %v233, 4
      %v236 = vshll.u32 %v200, 16
      %v238 = vrot.slane %v236, 5
      %v239 = vsel %vm225, %v234, %v238
      %v241 = vshrl.u32 %v201, 16
      %v243 = vrot.slane %v241, 4
      %v244 = vshll.u32 %v201, 16
      %v246 = vrot.slane %v244, 5
      %v247 = vor.u32 %v243, %v246
      %v248 = vrot.slane %v247, 4
      %v250 = vshll.u32 %v202, 16
      %v252 = vrot.slane %v250, 5
      %v253 = vsel %vm225, %v248, %v252
      %v255 = vshrl.u32 %v203, 16
      %v257 = vrot.slane %v255, 4
      %v258 = vshll.u32 %v203, 16
      %v260 = vrot.slane %v258, 5
      %v261 = vor.u32 %v257, %v260
      %v262 = vrot.slane %v261, 4
      %v264 = vshll.u32 %v204, 16
      %v266 = vrot.slane %v264, 5
      %v267 = vsel %vm225, %v262, %v266
      %v269 = vshrl.u32 %v205, 16
      %v271 = vrot.slane %v269, 4
      %v272 = vshll.u32 %v205, 16
      %v274 = vrot.slane %v272, 5
      %v275 = vor.u32 %v271, %v274
      %v276 = vrot.slane %v275, 4
      %v278 = vshll.u32 %v206, 16
      %v280 = vrot.slane %v278, 5
      %v281 = vsel %vm225, %v276, %v280
      %v283 = vshrl.u32 %v207, 16
      %v285 = vrot.slane %v283, 4
      %v286 = vshll.u32 %v207, 16
      %v288 = vrot.slane %v286, 5
      %v289 = vor.u32 %v285, %v288
      %v290 = vrot.slane %v289, 4
      %v292 = vshll.u32 %v208, 16
      %v294 = vrot.slane %v292, 5
      %v295 = vsel %vm225, %v290, %v294
      %v297 = vshrl.u32 %v209, 16
      %v299 = vrot.slane %v297, 4
      %v300 = vshll.u32 %v209, 16
      %v302 = vrot.slane %v300, 5
      %v303 = vor.u32 %v299, %v302
      %v304 = vrot.slane %v303, 4
      %v306 = vshll.u32 %v210, 16
      %v308 = vrot.slane %v306, 5
      %v309 = vsel %vm225, %v304, %v308
      %v311 = vshrl.u32 %v211, 16
      %v313 = vrot.slane %v311, 4
      %v314 = vshll.u32 %v211, 16
      %v316 = vrot.slane %v314, 5
      %v317 = vor.u32 %v313, %v316
      %v318 = vrot.slane %v317, 4
      %v320 = vshll.u32 %v212, 16
      %v322 = vrot.slane %v320, 5
      %v323 = vsel %vm225, %v318, %v322
      %v325 = vshrl.u32 %v213, 16
      %v327 = vrot.slane %v325, 4
      %v328 = vshll.u32 %v213, 16
      %v330 = vrot.slane %v328, 5
      %v331 = vor.u32 %v327, %v330
      %v332 = vrot.slane %v331, 4
      %v334 = vshll.u32 %v214, 16
      %v336 = vrot.slane %v334, 5
      %v337 = vsel %vm225, %v332, %v336
      %s338 = scalar_lea.vmem %s1, 16
      %v339 = vld [vmem:[%s338] sm:$0xf]
      %v340 = vld [vmem:[%s338 + $0x4] sm:$0xf]
      %v341 = vld [vmem:[%s338 + $0x8] sm:$0xf]
      %v342 = vld [vmem:[%s338 + $0xc] sm:$0xf]
      %v343 = vunpack.c.l.b16 %v239
      %v344 = vunpack.c.l.b16 %v253
      %v345 = vunpack.c.l.b16 %v267
      %v346 = vunpack.c.l.b16 %v281
      %v347 = vunpack.c.l.b16 %v295
      %v348 = vunpack.c.l.b16 %v309
      %v349 = vunpack.c.l.b16 %v323
      %v350 = vunpack.c.l.b16 %v337
      %v351 = vpack.c.b16 %v344, %v343
      %v352 = vpack.c.b16 %v346, %v345
      %v353 = vpack.c.b16 %v348, %v347
      %v354 = vpack.c.b16 %v350, %v349
      %v359 = vunpack.c.l.b16 %v339
      %v360 = vunpack.c.l.b16 %v340
      %v361 = vunpack.c.l.b16 %v341
      %v362 = vunpack.c.l.b16 %v342
      %v363 = vpack.c.b16 %v360, %v359
      %v364 = vpack.c.b16 %v362, %v361
      %vm367 = vcmask 261120
      %v369 = vsel %vm367, %v351, 0
      %v372 = vsel %vm367, %v352, 0
      %v375 = vsel %vm367, %v353, 0
      %v378 = vsel %vm367, %v354, 0
      %380 = vmatprep.subr.bf16.mxu0 0
      %381 = vmatpush1.bf16.msra.mxu0 %v363
      %382 = vmatprep.subr.bf16.mxu0 0
      %383 = vmatpush1.bf16.msra.mxu0 %v364
      %384 = vmatprep.subr.bf16.mxu0 0
      %385 = vmatpush1.bf16.msra.mxu0 0
      %386 = vmatprep.subr.bf16.mxu0 0
      %387 = vmatpush1.bf16.msra.mxu0 0
      %388 = vmatprep.subr.bf16.mxu0 0
      %389 = vmatpush1.bf16.msra.mxu0 0
      %390 = vmatprep.subr.bf16.mxu0 0
      %391 = vmatpush1.bf16.msra.mxu0 0
      %392 = vmatprep.subr.bf16.mxu0 0
      %393 = vmatpush1.bf16.msra.mxu0 0
      %394 = vmatprep.subr.bf16.mxu0 0
      %395 = vmatpush1.bf16.msra.mxu0 0
      %396 = vmatprep.subr.bf16.mxu0 0
      %397 = vmatpush1.bf16.msra.mxu0 0
      %398 = vmatprep.subr.bf16.mxu0 0
      %399 = vmatpush1.bf16.msra.mxu0 0
      %400 = vmatprep.subr.bf16.mxu0 0
      %401 = vmatpush1.bf16.msra.mxu0 0
      %402 = vmatprep.subr.bf16.mxu0 0
      %403 = vmatpush1.bf16.msra.mxu0 0
      %404 = vmatprep.subr.bf16.mxu0 0
      %405 = vmatpush1.bf16.msra.mxu0 0
      %406 = vmatprep.subr.bf16.mxu0 0
      %407 = vmatpush1.bf16.msra.mxu0 0
      %408 = vmatprep.subr.bf16.mxu0 0
      %409 = vmatpush1.bf16.msra.mxu0 0
      %410 = vmatprep.subr.bf16.mxu0 0
      %411 = vmatpush1.bf16.msra.mxu0 0
      %412 = vmatprep.mubr.bf16.mxu0 0
      %413 = vmatmul.mubr.bf16.gmra.mrb[0].mxu0 %v369
      %v414 = vpop.f32.mrb[0].mxu0
      %v415 = vadd.f32 0.0, %v414
      %v416 = vpop.f32.mrb[0].mxu0
      %v417 = vpop.f32.mrb[0].mxu0
      %v418 = vadd.f32 0.0, %v417
      %v419 = vpop.f32.mrb[0].mxu0
      %420 = vmatprep.mubr.bf16.mxu0 0
      %421 = vmatmul.mubr.bf16.gmra.mrb[0].mxu0 %v372
      %v422 = vpop.f32.mrb[0].mxu0
      %v423 = vadd.f32 0.0, %v422
      %v424 = vpop.f32.mrb[0].mxu0
      %v425 = vpop.f32.mrb[0].mxu0
      %v426 = vadd.f32 0.0, %v425
      %v427 = vpop.f32.mrb[0].mxu0
      %428 = vmatprep.mubr.bf16.mxu0 0
      %429 = vmatmul.mubr.bf16.gmra.mrb[0].mxu0 %v375
      %v430 = vpop.f32.mrb[0].mxu0
      %v431 = vadd.f32 0.0, %v430
      %v432 = vpop.f32.mrb[0].mxu0
      %v433 = vpop.f32.mrb[0].mxu0
      %v434 = vadd.f32 0.0, %v433
      %v435 = vpop.f32.mrb[0].mxu0
      %436 = vmatprep.mubr.bf16.mxu0 0
      %437 = vmatmul.mubr.bf16.gmra.mrb[0].mxu0 %v378
      %v438 = vpop.f32.mrb[0].mxu0
      %v439 = vadd.f32 0.0, %v438
      %v440 = vpop.f32.mrb[0].mxu0
      %v441 = vpop.f32.mrb[0].mxu0
      %v442 = vadd.f32 0.0, %v441
      %v443 = vpop.f32.mrb[0].mxu0
      %444 = vdwg.mxu0
      %v453 = vunpack.c.l.b16 %v199
      %v454 = vunpack.c.l.b16 %v201
      %v455 = vunpack.c.l.b16 %v203
      %v456 = vunpack.c.l.b16 %v205
      %v457 = vunpack.c.l.b16 %v207
      %v458 = vunpack.c.l.b16 %v209
      %v459 = vunpack.c.l.b16 %v211
      %v460 = vunpack.c.l.b16 %v213
      %v461 = vpack.c.b16 %v454, %v453
      %v462 = vpack.c.b16 %v456, %v455
      %v463 = vpack.c.b16 %v458, %v457
      %v464 = vpack.c.b16 %v460, %v459
      %v469 = vunpack.c.l.b16 %v219
      %v470 = vunpack.c.l.b16 %v220
      %v471 = vunpack.c.l.b16 %v221
      %v472 = vunpack.c.l.b16 %v222
      %v473 = vpack.c.b16 %v470, %v469
      %v474 = vpack.c.b16 %v472, %v471
      %v478 = vsel %vm367, %v461, 0
      %v481 = vsel %vm367, %v462, 0
      %v484 = vsel %vm367, %v463, 0
      %v487 = vsel %vm367, %v464, 0
      %489 = vmatprep.subr.bf16.mxu0 0
      %490 = vmatpush1.bf16.msra.mxu0 %v473
      %491 = vmatprep.subr.bf16.mxu0 0
      %492 = vmatpush1.bf16.msra.mxu0 %v474
      %493 = vmatprep.subr.bf16.mxu0 0
      %494 = vmatpush1.bf16.msra.mxu0 0
      %495 = vmatprep.subr.bf16.mxu0 0
      %496 = vmatpush1.bf16.msra.mxu0 0
      %497 = vmatprep.subr.bf16.mxu0 0
      %498 = vmatpush1.bf16.msra.mxu0 0
      %499 = vmatprep.subr.bf16.mxu0 0
      %500 = vmatpush1.bf16.msra.mxu0 0
      %501 = vmatprep.subr.bf16.mxu0 0
      %502 = vmatpush1.bf16.msra.mxu0 0
      %503 = vmatprep.subr.bf16.mxu0 0
      %504 = vmatpush1.bf16.msra.mxu0 0
      %505 = vmatprep.subr.bf16.mxu0 0
      %506 = vmatpush1.bf16.msra.mxu0 0
      %507 = vmatprep.subr.bf16.mxu0 0
      %508 = vmatpush1.bf16.msra.mxu0 0
      %509 = vmatprep.subr.bf16.mxu0 0
      %510 = vmatpush1.bf16.msra.mxu0 0
      %511 = vmatprep.subr.bf16.mxu0 0
      %512 = vmatpush1.bf16.msra.mxu0 0
      %513 = vmatprep.subr.bf16.mxu0 0
      %514 = vmatpush1.bf16.msra.mxu0 0
      %515 = vmatprep.subr.bf16.mxu0 0
      %516 = vmatpush1.bf16.msra.mxu0 0
      %517 = vmatprep.subr.bf16.mxu0 0
      %518 = vmatpush1.bf16.msra.mxu0 0
      %519 = vmatprep.subr.bf16.mxu0 0
      %520 = vmatpush1.bf16.msra.mxu0 0
      %521 = vmatprep.mubr.bf16.mxu0 0
      %522 = vmatmul.mubr.bf16.gmra.mrb[0].mxu0 %v478
      %v523 = vpop.f32.mrb[0].mxu0
      %v524 = vadd.f32 %v415, %v523
      %v525 = vpop.f32.mrb[0].mxu0
      %v526 = vpop.f32.mrb[0].mxu0
      %v527 = vadd.f32 %v418, %v526
      %v528 = vpop.f32.mrb[0].mxu0
      %529 = vmatprep.mubr.bf16.mxu0 0
      %530 = vmatmul.mubr.bf16.gmra.mrb[0].mxu0 %v481
      %v531 = vpop.f32.mrb[0].mxu0
      %v532 = vadd.f32 %v423, %v531
      %v533 = vpop.f32.mrb[0].mxu0
      %v534 = vpop.f32.mrb[0].mxu0
      %v535 = vadd.f32 %v426, %v534
      %v536 = vpop.f32.mrb[0].mxu0
      %537 = vmatprep.mubr.bf16.mxu0 0
      %538 = vmatmul.mubr.bf16.gmra.mrb[0].mxu0 %v484
      %v539 = vpop.f32.mrb[0].mxu0
      %v540 = vadd.f32 %v431, %v539
      %v541 = vpop.f32.mrb[0].mxu0
      %v542 = vpop.f32.mrb[0].mxu0
      %v543 = vadd.f32 %v434, %v542
      %v544 = vpop.f32.mrb[0].mxu0
      %545 = vmatprep.mubr.bf16.mxu0 0
      %546 = vmatmul.mubr.bf16.gmra.mrb[0].mxu0 %v487
      %v547 = vpop.f32.mrb[0].mxu0
      %v548 = vadd.f32 %v439, %v547
      %v549 = vpop.f32.mrb[0].mxu0
      %v550 = vpop.f32.mrb[0].mxu0
      %v551 = vadd.f32 %v442, %v550
      %v552 = vpop.f32.mrb[0].mxu0
      %553 = vdwg.mxu0
      %vm562 = vcmask 1042432
      %vm563 = vcmask 1046532
      %vm564 = vmor %vm562, %vm563
      %v565 = vrot.slane %v199, 5
      %v566 = vrot.slane %v565, 4
      %v567 = vrot.slane %v200, 5
      %v568 = vsel %vm564, %v566, %v567
      %v569 = vrot.slane %v201, 5
      %v570 = vrot.slane %v569, 4
      %v571 = vrot.slane %v202, 5
      %v572 = vsel %vm564, %v570, %v571
      %v573 = vrot.slane %v203, 5
      %v574 = vrot.slane %v573, 4
      %v575 = vrot.slane %v204, 5
      %v576 = vsel %vm564, %v574, %v575
      %v577 = vrot.slane %v205, 5
      %v578 = vrot.slane %v577, 4
      %v579 = vrot.slane %v206, 5
      %v580 = vsel %vm564, %v578, %v579
      %v581 = vrot.slane %v207, 5
      %v582 = vrot.slane %v581, 4
      %v583 = vrot.slane %v208, 5
      %v584 = vsel %vm564, %v582, %v583
      %v585 = vrot.slane %v209, 5
      %v586 = vrot.slane %v585, 4
      %v587 = vrot.slane %v210, 5
      %v588 = vsel %vm564, %v586, %v587
      %v589 = vrot.slane %v211, 5
      %v590 = vrot.slane %v589, 4
      %v591 = vrot.slane %v212, 5
      %v592 = vsel %vm564, %v590, %v591
      %v593 = vrot.slane %v213, 5
      %v594 = vrot.slane %v593, 4
      %v595 = vrot.slane %v214, 5
      %v596 = vsel %vm564, %v594, %v595
      %s597 = scalar_lea.vmem %s1, 32
      %v598 = vld [vmem:[%s597] sm:$0xf]
      %v599 = vld [vmem:[%s597 + $0x4] sm:$0xf]
      %v600 = vld [vmem:[%s597 + $0x8] sm:$0xf]
      %v601 = vld [vmem:[%s597 + $0xc] sm:$0xf]
      %v602 = vunpack.c.l.b16 %v568
      %v603 = vunpack.c.l.b16 %v572
      %v604 = vunpack.c.l.b16 %v576
      %v605 = vunpack.c.l.b16 %v580
      %v606 = vunpack.c.l.b16 %v584
      %v607 = vunpack.c.l.b16 %v588
      %v608 = vunpack.c.l.b16 %v592
      %v609 = vunpack.c.l.b16 %v596
      %v610 = vpack.c.b16 %v603, %v602
      %v611 = vpack.c.b16 %v605, %v604
      %v612 = vpack.c.b16 %v607, %v606
      %v613 = vpack.c.b16 %v609, %v608
      %v618 = vunpack.c.l.b16 %v598
      %v619 = vunpack.c.l.b16 %v599
      %v620 = vunpack.c.l.b16 %v600
      %v621 = vunpack.c.l.b16 %v601
      %v622 = vpack.c.b16 %v619, %v618
      %v623 = vpack.c.b16 %v621, %v620
      %v627 = vsel %vm367, %v610, 0
      %v630 = vsel %vm367, %v611, 0
      %v633 = vsel %vm367, %v612, 0
      %v636 = vsel %vm367, %v613, 0
      %638 = vmatprep.subr.bf16.mxu0 0
      %639 = vmatpush1.bf16.msra.mxu0 %v622
      %640 = vmatprep.subr.bf16.mxu0 0
      %641 = vmatpush1.bf16.msra.mxu0 %v623
      %642 = vmatprep.subr.bf16.mxu0 0
      %643 = vmatpush1.bf16.msra.mxu0 0
      %644 = vmatprep.subr.bf16.mxu0 0
      %645 = vmatpush1.bf16.msra.mxu0 0
      %646 = vmatprep.subr.bf16.mxu0 0
      %647 = vmatpush1.bf16.msra.mxu0 0
      %648 = vmatprep.subr.bf16.mxu0 0
      %649 = vmatpush1.bf16.msra.mxu0 0
      %650 = vmatprep.subr.bf16.mxu0 0
      %651 = vmatpush1.bf16.msra.mxu0 0
      %652 = vmatprep.subr.bf16.mxu0 0
      %653 = vmatpush1.bf16.msra.mxu0 0
      %654 = vmatprep.subr.bf16.mxu0 0
      %655 = vmatpush1.bf16.msra.mxu0 0
      %656 = vmatprep.subr.bf16.mxu0 0
      %657 = vmatpush1.bf16.msra.mxu0 0
      %658 = vmatprep.subr.bf16.mxu0 0
      %659 = vmatpush1.bf16.msra.mxu0 0
      %660 = vmatprep.subr.bf16.mxu0 0
      %661 = vmatpush1.bf16.msra.mxu0 0
      %662 = vmatprep.subr.bf16.mxu0 0
      %663 = vmatpush1.bf16.msra.mxu0 0
      %664 = vmatprep.subr.bf16.mxu0 0
      %665 = vmatpush1.bf16.msra.mxu0 0
      %666 = vmatprep.subr.bf16.mxu0 0
      %667 = vmatpush1.bf16.msra.mxu0 0
      %668 = vmatprep.subr.bf16.mxu0 0
      %669 = vmatpush1.bf16.msra.mxu0 0
      %670 = vmatprep.mubr.bf16.mxu0 0
      %671 = vmatmul.mubr.bf16.gmra.mrb[0].mxu0 %v627
      %v672 = vpop.f32.mrb[0].mxu0
      %v673 = vadd.f32 0.0, %v672
      %v674 = vpop.f32.mrb[0].mxu0
      %v675 = vpop.f32.mrb[0].mxu0
      %v676 = vadd.f32 0.0, %v675
      %v677 = vpop.f32.mrb[0].mxu0
      %678 = vmatprep.mubr.bf16.mxu0 0
      %679 = vmatmul.mubr.bf16.gmra.mrb[0].mxu0 %v630
      %v680 = vpop.f32.mrb[0].mxu0
      %v681 = vadd.f32 0.0, %v680
      %v682 = vpop.f32.mrb[0].mxu0
      %v683 = vpop.f32.mrb[0].mxu0
      %v684 = vadd.f32 0.0, %v683
      %v685 = vpop.f32.mrb[0].mxu0
      %686 = vmatprep.mubr.bf16.mxu0 0
      %687 = vmatmul.mubr.bf16.gmra.mrb[0].mxu0 %v633
      %v688 = vpop.f32.mrb[0].mxu0
      %v689 = vadd.f32 0.0, %v688
      %v690 = vpop.f32.mrb[0].mxu0
      %v691 = vpop.f32.mrb[0].mxu0
      %v692 = vadd.f32 0.0, %v691
      %v693 = vpop.f32.mrb[0].mxu0
      %694 = vmatprep.mubr.bf16.mxu0 0
      %695 = vmatmul.mubr.bf16.gmra.mrb[0].mxu0 %v636
      %v696 = vpop.f32.mrb[0].mxu0
      %v697 = vadd.f32 0.0, %v696
      %v698 = vpop.f32.mrb[0].mxu0
      %v699 = vpop.f32.mrb[0].mxu0
      %v700 = vadd.f32 0.0, %v699
      %v701 = vpop.f32.mrb[0].mxu0
      %702 = vdwg.mxu0
      %v703 = vadd.f32 %v524, %v673
      %v704 = vadd.f32 %v527, %v676
      %v705 = vadd.f32 %v532, %v681
      %v706 = vadd.f32 %v535, %v684
      %v707 = vadd.f32 %v540, %v689
      %v708 = vadd.f32 %v543, %v692
      %v709 = vadd.f32 %v548, %v697
      %v710 = vadd.f32 %v551, %v700
      %s711 = scalar_lea.vmem %s1, 48
      %v712 = vld [vmem:[%s711] sm:$0xf]
      %v713 = vld [vmem:[%s711 + $0x4] sm:$0xf]
      %v714 = vld [vmem:[%s711 + $0x8] sm:$0xf]
      %v715 = vld [vmem:[%s711 + $0xc] sm:$0xf]
      %v717 = vunpack.c.l.b16 %v215
      %v718 = vpack.c.b16 %v455, %v454
      %v719 = vpack.c.b16 %v457, %v456
      %v720 = vpack.c.b16 %v459, %v458
      %v721 = vpack.c.b16 %v717, %v460
      %v726 = vunpack.c.l.b16 %v712
      %v727 = vunpack.c.l.b16 %v713
      %v728 = vunpack.c.l.b16 %v714
      %v729 = vunpack.c.l.b16 %v715
      %v730 = vpack.c.b16 %v727, %v726
      %v731 = vpack.c.b16 %v729, %v728
      %v735 = vsel %vm367, %v718, 0
      %v738 = vsel %vm367, %v719, 0
      %v741 = vsel %vm367, %v720, 0
      %v744 = vsel %vm367, %v721, 0
      %746 = vmatprep.subr.bf16.mxu0 0
      %747 = vmatpush1.bf16.msra.mxu0 %v730
      %748 = vmatprep.subr.bf16.mxu0 0
      %749 = vmatpush1.bf16.msra.mxu0 %v731
      %750 = vmatprep.subr.bf16.mxu0 0
      %751 = vmatpush1.bf16.msra.mxu0 0
      %752 = vmatprep.subr.bf16.mxu0 0
      %753 = vmatpush1.bf16.msra.mxu0 0
      %754 = vmatprep.subr.bf16.mxu0 0
      %755 = vmatpush1.bf16.msra.mxu0 0
      %756 = vmatprep.subr.bf16.mxu0 0
      %757 = vmatpush1.bf16.msra.mxu0 0
      %758 = vmatprep.subr.bf16.mxu0 0
      %759 = vmatpush1.bf16.msra.mxu0 0
      %760 = vmatprep.subr.bf16.mxu0 0
      %761 = vmatpush1.bf16.msra.mxu0 0
      %762 = vmatprep.subr.bf16.mxu0 0
      %763 = vmatpush1.bf16.msra.mxu0 0
      %764 = vmatprep.subr.bf16.mxu0 0
      %765 = vmatpush1.bf16.msra.mxu0 0
      %766 = vmatprep.subr.bf16.mxu0 0
      %767 = vmatpush1.bf16.msra.mxu0 0
      %768 = vmatprep.subr.bf16.mxu0 0
      %769 = vmatpush1.bf16.msra.mxu0 0
      %770 = vmatprep.subr.bf16.mxu0 0
      %771 = vmatpush1.bf16.msra.mxu0 0
      %772 = vmatprep.subr.bf16.mxu0 0
      %773 = vmatpush1.bf16.msra.mxu0 0
      %774 = vmatprep.subr.bf16.mxu0 0
      %775 = vmatpush1.bf16.msra.mxu0 0
      %776 = vmatprep.subr.bf16.mxu0 0
      %777 = vmatpush1.bf16.msra.mxu0 0
      %778 = vmatprep.mubr.bf16.mxu0 0
      %779 = vmatmul.mubr.bf16.gmra.mrb[0].mxu0 %v735
      %v780 = vpop.f32.mrb[0].mxu0
      %v781 = vadd.f32 0.0, %v780
      %v782 = vpop.f32.mrb[0].mxu0
      %v783 = vpop.f32.mrb[0].mxu0
      %v784 = vadd.f32 0.0, %v783
      %v785 = vpop.f32.mrb[0].mxu0
      %786 = vmatprep.mubr.bf16.mxu0 0
      %787 = vmatmul.mubr.bf16.gmra.mrb[0].mxu0 %v738
      %v788 = vpop.f32.mrb[0].mxu0
      %v789 = vadd.f32 0.0, %v788
      %v790 = vpop.f32.mrb[0].mxu0
      %v791 = vpop.f32.mrb[0].mxu0
      %v792 = vadd.f32 0.0, %v791
      %v793 = vpop.f32.mrb[0].mxu0
      %794 = vmatprep.mubr.bf16.mxu0 0
      %795 = vmatmul.mubr.bf16.gmra.mrb[0].mxu0 %v741
      %v796 = vpop.f32.mrb[0].mxu0
      %v797 = vadd.f32 0.0, %v796
      %v798 = vpop.f32.mrb[0].mxu0
      %v799 = vpop.f32.mrb[0].mxu0
      %v800 = vadd.f32 0.0, %v799
      %v801 = vpop.f32.mrb[0].mxu0
      %802 = vmatprep.mubr.bf16.mxu0 0
      %803 = vmatmul.mubr.bf16.gmra.mrb[0].mxu0 %v744
      %v804 = vpop.f32.mrb[0].mxu0
      %v805 = vadd.f32 0.0, %v804
      %v806 = vpop.f32.mrb[0].mxu0
      %v807 = vpop.f32.mrb[0].mxu0
      %v808 = vadd.f32 0.0, %v807
      %v809 = vpop.f32.mrb[0].mxu0
      %810 = vdwg.mxu0
      %v811 = vadd.f32 %v703, %v781
      %v812 = vadd.f32 %v704, %v784
      %v813 = vadd.f32 %v705, %v789
      %v814 = vadd.f32 %v706, %v792
      %v815 = vadd.f32 %v707, %v797
      %v816 = vadd.f32 %v708, %v800
      %v817 = vadd.f32 %v709, %v805
      %v818 = vadd.f32 %v710, %v808
      %v820 = vshrl.u32 %v215, 16
      %v822 = vrot.slane %v820, 4
      %v823 = vshll.u32 %v215, 16
      %v825 = vrot.slane %v823, 5
      %v826 = vor.u32 %v822, %v825
      %v827 = vrot.slane %v826, 4
      %v829 = vshll.u32 %v216, 16
      %v831 = vrot.slane %v829, 5
      %v832 = vsel %vm225, %v827, %v831
      %s833 = scalar_lea.vmem %s1, 64
      %v834 = vld [vmem:[%s833] sm:$0xf]
      %v835 = vld [vmem:[%s833 + $0x4] sm:$0xf]
      %v836 = vld [vmem:[%s833 + $0x8] sm:$0xf]
      %v837 = vld [vmem:[%s833 + $0xc] sm:$0xf]
      %v838 = vunpack.c.l.b16 %v832
      %v839 = vpack.c.b16 %v345, %v344
      %v840 = vpack.c.b16 %v347, %v346
      %v841 = vpack.c.b16 %v349, %v348
      %v842 = vpack.c.b16 %v838, %v350
      %v847 = vunpack.c.l.b16 %v834
      %v848 = vunpack.c.l.b16 %v835
      %v849 = vunpack.c.l.b16 %v836
      %v850 = vunpack.c.l.b16 %v837
      %v851 = vpack.c.b16 %v848, %v847
      %v852 = vpack.c.b16 %v850, %v849
      %v856 = vsel %vm367, %v839, 0
      %v859 = vsel %vm367, %v840, 0
      %v862 = vsel %vm367, %v841, 0
      %v865 = vsel %vm367, %v842, 0
      %867 = vmatprep.subr.bf16.mxu0 0
      %868 = vmatpush1.bf16.msra.mxu0 %v851
      %869 = vmatprep.subr.bf16.mxu0 0
      %870 = vmatpush1.bf16.msra.mxu0 %v852
      %871 = vmatprep.subr.bf16.mxu0 0
      %872 = vmatpush1.bf16.msra.mxu0 0
      %873 = vmatprep.subr.bf16.mxu0 0
      %874 = vmatpush1.bf16.msra.mxu0 0
      %875 = vmatprep.subr.bf16.mxu0 0
      %876 = vmatpush1.bf16.msra.mxu0 0
      %877 = vmatprep.subr.bf16.mxu0 0
      %878 = vmatpush1.bf16.msra.mxu0 0
      %879 = vmatprep.subr.bf16.mxu0 0
      %880 = vmatpush1.bf16.msra.mxu0 0
      %881 = vmatprep.subr.bf16.mxu0 0
      %882 = vmatpush1.bf16.msra.mxu0 0
      %883 = vmatprep.subr.bf16.mxu0 0
      %884 = vmatpush1.bf16.msra.mxu0 0
      %885 = vmatprep.subr.bf16.mxu0 0
      %886 = vmatpush1.bf16.msra.mxu0 0
      %887 = vmatprep.subr.bf16.mxu0 0
      %888 = vmatpush1.bf16.msra.mxu0 0
      %889 = vmatprep.subr.bf16.mxu0 0
      %890 = vmatpush1.bf16.msra.mxu0 0
      %891 = vmatprep.subr.bf16.mxu0 0
      %892 = vmatpush1.bf16.msra.mxu0 0
      %893 = vmatprep.subr.bf16.mxu0 0
      %894 = vmatpush1.bf16.msra.mxu0 0
      %895 = vmatprep.subr.bf16.mxu0 0
      %896 = vmatpush1.bf16.msra.mxu0 0
      %897 = vmatprep.subr.bf16.mxu0 0
      %898 = vmatpush1.bf16.msra.mxu0 0
      %899 = vmatprep.mubr.bf16.mxu0 0
      %900 = vmatmul.mubr.bf16.gmra.mrb[0].mxu0 %v856
      %v901 = vpop.f32.mrb[0].mxu0
      %v902 = vadd.f32 0.0, %v901
      %v903 = vpop.f32.mrb[0].mxu0
      %v904 = vpop.f32.mrb[0].mxu0
      %v905 = vadd.f32 0.0, %v904
      %v906 = vpop.f32.mrb[0].mxu0
      %907 = vmatprep.mubr.bf16.mxu0 0
      %908 = vmatmul.mubr.bf16.gmra.mrb[0].mxu0 %v859
      %v909 = vpop.f32.mrb[0].mxu0
      %v910 = vadd.f32 0.0, %v909
      %v911 = vpop.f32.mrb[0].mxu0
      %v912 = vpop.f32.mrb[0].mxu0
      %v913 = vadd.f32 0.0, %v912
      %v914 = vpop.f32.mrb[0].mxu0
      %915 = vmatprep.mubr.bf16.mxu0 0
      %916 = vmatmul.mubr.bf16.gmra.mrb[0].mxu0 %v862
      %v917 = vpop.f32.mrb[0].mxu0
      %v918 = vadd.f32 0.0, %v917
      %v919 = vpop.f32.mrb[0].mxu0
      %v920 = vpop.f32.mrb[0].mxu0
      %v921 = vadd.f32 0.0, %v920
      %v922 = vpop.f32.mrb[0].mxu0
      %923 = vmatprep.mubr.bf16.mxu0 0
      %924 = vmatmul.mubr.bf16.gmra.mrb[0].mxu0 %v865
      %v925 = vpop.f32.mrb[0].mxu0
      %v926 = vadd.f32 0.0, %v925
      %v927 = vpop.f32.mrb[0].mxu0
      %v928 = vpop.f32.mrb[0].mxu0
      %v929 = vadd.f32 0.0, %v928
      %v930 = vpop.f32.mrb[0].mxu0
      %931 = vdwg.mxu0
      %v932 = vadd.f32 %v811, %v902
      %v933 = vadd.f32 %v812, %v905
      %v934 = vadd.f32 %v813, %v910
      %v935 = vadd.f32 %v814, %v913
      %v936 = vadd.f32 %v815, %v918
      %v937 = vadd.f32 %v816, %v921
      %v938 = vadd.f32 %v817, %v926
      %v939 = vadd.f32 %v818, %v929
      %v941 = vrot.slane %v215, 5
      %v942 = vrot.slane %v941, 4
      %v943 = vrot.slane %v216, 5
      %v944 = vsel %vm564, %v942, %v943
      %s945 = scalar_lea.vmem %s1, 80
      %v946 = vld [vmem:[%s945] sm:$0xf]
      %v947 = vld [vmem:[%s945 + $0x4] sm:$0xf]
      %v948 = vld [vmem:[%s945 + $0x8] sm:$0xf]
      %v949 = vld [vmem:[%s945 + $0xc] sm:$0xf]
      %v950 = vunpack.c.l.b16 %v944
      %v951 = vpack.c.b16 %v604, %v603
      %v952 = vpack.c.b16 %v606, %v605
      %v953 = vpack.c.b16 %v608, %v607
      %v954 = vpack.c.b16 %v950, %v609
      %v959 = vunpack.c.l.b16 %v946
      %v960 = vunpack.c.l.b16 %v947
      %v961 = vunpack.c.l.b16 %v948
      %v962 = vunpack.c.l.b16 %v949
      %v963 = vpack.c.b16 %v960, %v959
      %v964 = vpack.c.b16 %v962, %v961
      %v968 = vsel %vm367, %v951, 0
      %v971 = vsel %vm367, %v952, 0
      %v974 = vsel %vm367, %v953, 0
      %v977 = vsel %vm367, %v954, 0
      %979 = vmatprep.subr.bf16.mxu0 0
      %980 = vmatpush1.bf16.msra.mxu0 %v963
      %981 = vmatprep.subr.bf16.mxu0 0
      %982 = vmatpush1.bf16.msra.mxu0 %v964
      %983 = vmatprep.subr.bf16.mxu0 0
      %984 = vmatpush1.bf16.msra.mxu0 0
      %985 = vmatprep.subr.bf16.mxu0 0
      %986 = vmatpush1.bf16.msra.mxu0 0
      %987 = vmatprep.subr.bf16.mxu0 0
      %988 = vmatpush1.bf16.msra.mxu0 0
      %989 = vmatprep.subr.bf16.mxu0 0
      %990 = vmatpush1.bf16.msra.mxu0 0
      %991 = vmatprep.subr.bf16.mxu0 0
      %992 = vmatpush1.bf16.msra.mxu0 0
      %993 = vmatprep.subr.bf16.mxu0 0
      %994 = vmatpush1.bf16.msra.mxu0 0
      %995 = vmatprep.subr.bf16.mxu0 0
      %996 = vmatpush1.bf16.msra.mxu0 0
      %997 = vmatprep.subr.bf16.mxu0 0
      %998 = vmatpush1.bf16.msra.mxu0 0
      %999 = vmatprep.subr.bf16.mxu0 0
      %1000 = vmatpush1.bf16.msra.mxu0 0
      %1001 = vmatprep.subr.bf16.mxu0 0
      %1002 = vmatpush1.bf16.msra.mxu0 0
      %1003 = vmatprep.subr.bf16.mxu0 0
      %1004 = vmatpush1.bf16.msra.mxu0 0
      %1005 = vmatprep.subr.bf16.mxu0 0
      %1006 = vmatpush1.bf16.msra.mxu0 0
      %1007 = vmatprep.subr.bf16.mxu0 0
      %1008 = vmatpush1.bf16.msra.mxu0 0
      %1009 = vmatprep.subr.bf16.mxu0 0
      %1010 = vmatpush1.bf16.msra.mxu0 0
      %1011 = vmatprep.mubr.bf16.mxu0 0
      %1012 = vmatmul.mubr.bf16.gmra.mrb[0].mxu0 %v968
      %v1013 = vpop.f32.mrb[0].mxu0
      %v1014 = vadd.f32 0.0, %v1013
      %v1015 = vpop.f32.mrb[0].mxu0
      %v1016 = vpop.f32.mrb[0].mxu0
      %v1017 = vadd.f32 0.0, %v1016
      %v1018 = vpop.f32.mrb[0].mxu0
      %1019 = vmatprep.mubr.bf16.mxu0 0
      %1020 = vmatmul.mubr.bf16.gmra.mrb[0].mxu0 %v971
      %v1021 = vpop.f32.mrb[0].mxu0
      %v1022 = vadd.f32 0.0, %v1021
      %v1023 = vpop.f32.mrb[0].mxu0
      %v1024 = vpop.f32.mrb[0].mxu0
      %v1025 = vadd.f32 0.0, %v1024
      %v1026 = vpop.f32.mrb[0].mxu0
      %1027 = vmatprep.mubr.bf16.mxu0 0
      %1028 = vmatmul.mubr.bf16.gmra.mrb[0].mxu0 %v974
      %v1029 = vpop.f32.mrb[0].mxu0
      %v1030 = vadd.f32 0.0, %v1029
      %v1031 = vpop.f32.mrb[0].mxu0
      %v1032 = vpop.f32.mrb[0].mxu0
      %v1033 = vadd.f32 0.0, %v1032
      %v1034 = vpop.f32.mrb[0].mxu0
      %1035 = vmatprep.mubr.bf16.mxu0 0
      %1036 = vmatmul.mubr.bf16.gmra.mrb[0].mxu0 %v977
      %v1037 = vpop.f32.mrb[0].mxu0
      %v1038 = vadd.f32 0.0, %v1037
      %v1039 = vpop.f32.mrb[0].mxu0
      %v1040 = vpop.f32.mrb[0].mxu0
      %v1041 = vadd.f32 0.0, %v1040
      %v1042 = vpop.f32.mrb[0].mxu0
      %1043 = vdwg.mxu0
      %v1044 = vadd.f32 %v932, %v1014
      %v1045 = vadd.f32 %v933, %v1017
      %v1046 = vadd.f32 %v934, %v1022
      %v1047 = vadd.f32 %v935, %v1025
      %v1048 = vadd.f32 %v936, %v1030
      %v1049 = vadd.f32 %v937, %v1033
      %v1050 = vadd.f32 %v938, %v1038
      %v1051 = vadd.f32 %v939, %v1041
      %s1052 = scalar_lea.vmem %s1, 96
      %v1053 = vld [vmem:[%s1052] sm:$0xf]
      %v1054 = vld [vmem:[%s1052 + $0x4] sm:$0xf]
      %v1055 = vld [vmem:[%s1052 + $0x8] sm:$0xf]
      %v1056 = vld [vmem:[%s1052 + $0xc] sm:$0xf]
      %v1058 = vunpack.c.l.b16 %v217
      %v1059 = vpack.c.b16 %v1058, %v717
      %v1064 = vunpack.c.l.b16 %v1053
      %v1065 = vunpack.c.l.b16 %v1054
      %v1066 = vunpack.c.l.b16 %v1055
      %v1067 = vunpack.c.l.b16 %v1056
      %v1068 = vpack.c.b16 %v1065, %v1064
      %v1069 = vpack.c.b16 %v1067, %v1066
      %v1073 = vsel %vm367, %v1059, 0
      %1075 = vmatprep.subr.bf16.mxu0 0
      %1076 = vmatpush1.bf16.msra.mxu0 %v1068
      %1077 = vmatprep.subr.bf16.mxu0 0
      %1078 = vmatpush1.bf16.msra.mxu0 %v1069
      %1079 = vmatprep.subr.bf16.mxu0 0
      %1080 = vmatpush1.bf16.msra.mxu0 0
      %1081 = vmatprep.subr.bf16.mxu0 0
      %1082 = vmatpush1.bf16.msra.mxu0 0
      %1083 = vmatprep.subr.bf16.mxu0 0
      %1084 = vmatpush1.bf16.msra.mxu0 0
      %1085 = vmatprep.subr.bf16.mxu0 0
      %1086 = vmatpush1.bf16.msra.mxu0 0
      %1087 = vmatprep.subr.bf16.mxu0 0
      %1088 = vmatpush1.bf16.msra.mxu0 0
      %1089 = vmatprep.subr.bf16.mxu0 0
      %1090 = vmatpush1.bf16.msra.mxu0 0
      %1091 = vmatprep.subr.bf16.mxu0 0
      %1092 = vmatpush1.bf16.msra.mxu0 0
      %1093 = vmatprep.subr.bf16.mxu0 0
      %1094 = vmatpush1.bf16.msra.mxu0 0
      %1095 = vmatprep.subr.bf16.mxu0 0
      %1096 = vmatpush1.bf16.msra.mxu0 0
      %1097 = vmatprep.subr.bf16.mxu0 0
      %1098 = vmatpush1.bf16.msra.mxu0 0
      %1099 = vmatprep.subr.bf16.mxu0 0
      %1100 = vmatpush1.bf16.msra.mxu0 0
      %1101 = vmatprep.subr.bf16.mxu0 0
      %1102 = vmatpush1.bf16.msra.mxu0 0
      %1103 = vmatprep.subr.bf16.mxu0 0
      %1104 = vmatpush1.bf16.msra.mxu0 0
      %1105 = vmatprep.subr.bf16.mxu0 0
      %1106 = vmatpush1.bf16.msra.mxu0 0
      %1107 = vmatprep.mubr.bf16.mxu0 0
      %1108 = vmatmul.mubr.bf16.gmra.mrb[0].mxu0 %v481
      %v1109 = vpop.f32.mrb[0].mxu0
      %v1110 = vadd.f32 0.0, %v1109
      %v1111 = vpop.f32.mrb[0].mxu0
      %v1112 = vpop.f32.mrb[0].mxu0
      %v1113 = vadd.f32 0.0, %v1112
      %v1114 = vpop.f32.mrb[0].mxu0
      %1115 = vmatprep.mubr.bf16.mxu0 0
      %1116 = vmatmul.mubr.bf16.gmra.mrb[0].mxu0 %v484
      %v1117 = vpop.f32.mrb[0].mxu0
      %v1118 = vadd.f32 0.0, %v1117
      %v1119 = vpop.f32.mrb[0].mxu0
      %v1120 = vpop.f32.mrb[0].mxu0
      %v1121 = vadd.f32 0.0, %v1120
      %v1122 = vpop.f32.mrb[0].mxu0
      %1123 = vmatprep.mubr.bf16.mxu0 0
      %1124 = vmatmul.mubr.bf16.gmra.mrb[0].mxu0 %v487
      %v1125 = vpop.f32.mrb[0].mxu0
      %v1126 = vadd.f32 0.0, %v1125
      %v1127 = vpop.f32.mrb[0].mxu0
      %v1128 = vpop.f32.mrb[0].mxu0
      %v1129 = vadd.f32 0.0, %v1128
      %v1130 = vpop.f32.mrb[0].mxu0
      %1131 = vmatprep.mubr.bf16.mxu0 0
      %1132 = vmatmul.mubr.bf16.gmra.mrb[0].mxu0 %v1073
      %v1133 = vpop.f32.mrb[0].mxu0
      %v1134 = vadd.f32 0.0, %v1133
      %v1135 = vpop.f32.mrb[0].mxu0
      %v1136 = vpop.f32.mrb[0].mxu0
      %v1137 = vadd.f32 0.0, %v1136
      %v1138 = vpop.f32.mrb[0].mxu0
      %1139 = vdwg.mxu0
      %v1140 = vadd.f32 %v1044, %v1110
      %v1141 = vadd.f32 %v1045, %v1113
      %v1142 = vadd.f32 %v1046, %v1118
      %v1143 = vadd.f32 %v1047, %v1121
      %v1144 = vadd.f32 %v1048, %v1126
      %v1145 = vadd.f32 %v1049, %v1129
      %v1146 = vadd.f32 %v1050, %v1134
      %v1147 = vadd.f32 %v1051, %v1137
      %v1149 = vshrl.u32 %v217, 16
      %v1151 = vrot.slane %v1149, 4
      %v1152 = vshll.u32 %v217, 16
      %v1154 = vrot.slane %v1152, 5
      %v1155 = vor.u32 %v1151, %v1154
      %v1156 = vrot.slane %v1155, 4
      %v1158 = vshll.u32 %v218, 16
      %v1160 = vrot.slane %v1158, 5
      %v1161 = vsel %vm225, %v1156, %v1160
      %s1162 = scalar_lea.vmem %s1, 112
      %v1163 = vld [vmem:[%s1162] sm:$0xf]
      %v1164 = vld [vmem:[%s1162 + $0x4] sm:$0xf]
      %v1165 = vld [vmem:[%s1162 + $0x8] sm:$0xf]
      %v1166 = vld [vmem:[%s1162 + $0xc] sm:$0xf]
      %v1167 = vunpack.c.l.b16 %v1161
      %v1168 = vpack.c.b16 %v1167, %v838
      %v1173 = vunpack.c.l.b16 %v1163
      %v1174 = vunpack.c.l.b16 %v1164
      %v1175 = vunpack.c.l.b16 %v1165
      %v1176 = vunpack.c.l.b16 %v1166
      %v1177 = vpack.c.b16 %v1174, %v1173
      %v1178 = vpack.c.b16 %v1176, %v1175
      %v1182 = vsel %vm367, %v1168, 0
      %1184 = vmatprep.subr.bf16.mxu0 0
      %1185 = vmatpush1.bf16.msra.mxu0 %v1177
      %1186 = vmatprep.subr.bf16.mxu0 0
      %1187 = vmatpush1.bf16.msra.mxu0 %v1178
      %1188 = vmatprep.subr.bf16.mxu0 0
      %1189 = vmatpush1.bf16.msra.mxu0 0
      %1190 = vmatprep.subr.bf16.mxu0 0
      %1191 = vmatpush1.bf16.msra.mxu0 0
      %1192 = vmatprep.subr.bf16.mxu0 0
      %1193 = vmatpush1.bf16.msra.mxu0 0
      %1194 = vmatprep.subr.bf16.mxu0 0
      %1195 = vmatpush1.bf16.msra.mxu0 0
      %1196 = vmatprep.subr.bf16.mxu0 0
      %1197 = vmatpush1.bf16.msra.mxu0 0
      %1198 = vmatprep.subr.bf16.mxu0 0
      %1199 = vmatpush1.bf16.msra.mxu0 0
      %1200 = vmatprep.subr.bf16.mxu0 0
      %1201 = vmatpush1.bf16.msra.mxu0 0
      %1202 = vmatprep.subr.bf16.mxu0 0
      %1203 = vmatpush1.bf16.msra.mxu0 0
      %1204 = vmatprep.subr.bf16.mxu0 0
      %1205 = vmatpush1.bf16.msra.mxu0 0
      %1206 = vmatprep.subr.bf16.mxu0 0
      %1207 = vmatpush1.bf16.msra.mxu0 0
      %1208 = vmatprep.subr.bf16.mxu0 0
      %1209 = vmatpush1.bf16.msra.mxu0 0
      %1210 = vmatprep.subr.bf16.mxu0 0
      %1211 = vmatpush1.bf16.msra.mxu0 0
      %1212 = vmatprep.subr.bf16.mxu0 0
      %1213 = vmatpush1.bf16.msra.mxu0 0
      %1214 = vmatprep.subr.bf16.mxu0 0
      %1215 = vmatpush1.bf16.msra.mxu0 0
      %1216 = vmatprep.mubr.bf16.mxu0 0
      %1217 = vmatmul.mubr.bf16.gmra.mrb[0].mxu0 %v372
      %v1218 = vpop.f32.mrb[0].mxu0
      %v1219 = vadd.f32 0.0, %v1218
      %v1220 = vpop.f32.mrb[0].mxu0
      %v1221 = vpop.f32.mrb[0].mxu0
      %v1222 = vadd.f32 0.0, %v1221
      %v1223 = vpop.f32.mrb[0].mxu0
      %1224 = vmatprep.mubr.bf16.mxu0 0
      %1225 = vmatmul.mubr.bf16.gmra.mrb[0].mxu0 %v375
      %v1226 = vpop.f32.mrb[0].mxu0
      %v1227 = vadd.f32 0.0, %v1226
      %v1228 = vpop.f32.mrb[0].mxu0
      %v1229 = vpop.f32.mrb[0].mxu0
      %v1230 = vadd.f32 0.0, %v1229
      %v1231 = vpop.f32.mrb[0].mxu0
      %1232 = vmatprep.mubr.bf16.mxu0 0
      %1233 = vmatmul.mubr.bf16.gmra.mrb[0].mxu0 %v378
      %v1234 = vpop.f32.mrb[0].mxu0
      %v1235 = vadd.f32 0.0, %v1234
      %v1236 = vpop.f32.mrb[0].mxu0
      %v1237 = vpop.f32.mrb[0].mxu0
      %v1238 = vadd.f32 0.0, %v1237
      %v1239 = vpop.f32.mrb[0].mxu0
      %1240 = vmatprep.mubr.bf16.mxu0 0
      %1241 = vmatmul.mubr.bf16.gmra.mrb[0].mxu0 %v1182
      %v1242 = vpop.f32.mrb[0].mxu0
      %v1243 = vadd.f32 0.0, %v1242
      %v1244 = vpop.f32.mrb[0].mxu0
      %v1245 = vpop.f32.mrb[0].mxu0
      %v1246 = vadd.f32 0.0, %v1245
      %v1247 = vpop.f32.mrb[0].mxu0
      %1248 = vdwg.mxu0
      %v1249 = vadd.f32 %v1140, %v1219
      %v1250 = vadd.f32 %v1141, %v1222
      %v1251 = vadd.f32 %v1142, %v1227
      %v1252 = vadd.f32 %v1143, %v1230
      %v1253 = vadd.f32 %v1144, %v1235
      %v1254 = vadd.f32 %v1145, %v1238
      %v1255 = vadd.f32 %v1146, %v1243
      %v1256 = vadd.f32 %v1147, %v1246
      %v1258 = vrot.slane %v217, 5
      %v1259 = vrot.slane %v1258, 4
      %v1260 = vrot.slane %v218, 5
      %v1261 = vsel %vm564, %v1259, %v1260
      %s1262 = scalar_lea.vmem %s1, 128
      %v1263 = vld [vmem:[%s1262] sm:$0xf]
      %v1264 = vld [vmem:[%s1262 + $0x4] sm:$0xf]
      %v1265 = vld [vmem:[%s1262 + $0x8] sm:$0xf]
      %v1266 = vld [vmem:[%s1262 + $0xc] sm:$0xf]
      %v1267 = vunpack.c.l.b16 %v1261
      %v1268 = vpack.c.b16 %v1267, %v950
      %v1273 = vunpack.c.l.b16 %v1263
      %v1274 = vunpack.c.l.b16 %v1264
      %v1275 = vunpack.c.l.b16 %v1265
      %v1276 = vunpack.c.l.b16 %v1266
      %v1277 = vpack.c.b16 %v1274, %v1273
      %v1278 = vpack.c.b16 %v1276, %v1275
      %v1282 = vsel %vm367, %v1268, 0
      %1284 = vmatprep.subr.bf16.mxu0 0
      %1285 = vmatpush1.bf16.msra.mxu0 %v1277
      %1286 = vmatprep.subr.bf16.mxu0 0
      %1287 = vmatpush1.bf16.msra.mxu0 %v1278
      %1288 = vmatprep.subr.bf16.mxu0 0
      %1289 = vmatpush1.bf16.msra.mxu0 0
      %1290 = vmatprep.subr.bf16.mxu0 0
      %1291 = vmatpush1.bf16.msra.mxu0 0
      %1292 = vmatprep.subr.bf16.mxu0 0
      %1293 = vmatpush1.bf16.msra.mxu0 0
      %1294 = vmatprep.subr.bf16.mxu0 0
      %1295 = vmatpush1.bf16.msra.mxu0 0
      %1296 = vmatprep.subr.bf16.mxu0 0
      %1297 = vmatpush1.bf16.msra.mxu0 0
      %1298 = vmatprep.subr.bf16.mxu0 0
      %1299 = vmatpush1.bf16.msra.mxu0 0
      %1300 = vmatprep.subr.bf16.mxu0 0
      %1301 = vmatpush1.bf16.msra.mxu0 0
      %1302 = vmatprep.subr.bf16.mxu0 0
      %1303 = vmatpush1.bf16.msra.mxu0 0
      %1304 = vmatprep.subr.bf16.mxu0 0
      %1305 = vmatpush1.bf16.msra.mxu0 0
      %1306 = vmatprep.subr.bf16.mxu0 0
      %1307 = vmatpush1.bf16.msra.mxu0 0
      %1308 = vmatprep.subr.bf16.mxu0 0
      %1309 = vmatpush1.bf16.msra.mxu0 0
      %1310 = vmatprep.subr.bf16.mxu0 0
      %1311 = vmatpush1.bf16.msra.mxu0 0
      %1312 = vmatprep.subr.bf16.mxu0 0
      %1313 = vmatpush1.bf16.msra.mxu0 0
      %1314 = vmatprep.subr.bf16.mxu0 0
      %1315 = vmatpush1.bf16.msra.mxu0 0
      %1316 = vmatprep.mubr.bf16.mxu0 0
      %1317 = vmatmul.mubr.bf16.gmra.mrb[0].mxu0 %v630
      %v1318 = vpop.f32.mrb[0].mxu0
      %v1319 = vadd.f32 0.0, %v1318
      %v1320 = vpop.f32.mrb[0].mxu0
      %v1321 = vpop.f32.mrb[0].mxu0
      %v1322 = vadd.f32 0.0, %v1321
      %v1323 = vpop.f32.mrb[0].mxu0
      %1324 = vmatprep.mubr.bf16.mxu0 0
      %1325 = vmatmul.mubr.bf16.gmra.mrb[0].mxu0 %v633
      %v1326 = vpop.f32.mrb[0].mxu0
      %v1327 = vadd.f32 0.0, %v1326
      %v1328 = vpop.f32.mrb[0].mxu0
      %v1329 = vpop.f32.mrb[0].mxu0
      %v1330 = vadd.f32 0.0, %v1329
      %v1331 = vpop.f32.mrb[0].mxu0
      %1332 = vmatprep.mubr.bf16.mxu0 0
      %1333 = vmatmul.mubr.bf16.gmra.mrb[0].mxu0 %v636
      %v1334 = vpop.f32.mrb[0].mxu0
      %v1335 = vadd.f32 0.0, %v1334
      %v1336 = vpop.f32.mrb[0].mxu0
      %v1337 = vpop.f32.mrb[0].mxu0
      %v1338 = vadd.f32 0.0, %v1337
      %v1339 = vpop.f32.mrb[0].mxu0
      %1340 = vmatprep.mubr.bf16.mxu0 0
      %1341 = vmatmul.mubr.bf16.gmra.mrb[0].mxu0 %v1282
      %v1342 = vpop.f32.mrb[0].mxu0
      %v1343 = vadd.f32 0.0, %v1342
      %v1344 = vpop.f32.mrb[0].mxu0
      %v1345 = vpop.f32.mrb[0].mxu0
      %v1346 = vadd.f32 0.0, %v1345
      %v1347 = vpop.f32.mrb[0].mxu0
      %1348 = vdwg.mxu0
      %v1349 = vadd.f32 %v1249, %v1319
      %v1350 = vadd.f32 %v1250, %v1322
      %v1351 = vadd.f32 %v1251, %v1327
      %v1352 = vadd.f32 %v1252, %v1330
      %v1353 = vadd.f32 %v1253, %v1335
      %v1354 = vadd.f32 %v1254, %v1338
      %v1355 = vadd.f32 %v1255, %v1343
      %v1356 = vadd.f32 %v1256, %v1346
      %v1357 = vld [vmem:[%s2] sm:$0x1]
      %v1359 = vlaneseq
      %v1360 = vshrl.u32 %v1359, 7
      %v1361 = vsub.s32 0, %v1360
      %v1362 = vrot.slane %v1357, %v1361
      %v1364 = vadd.f32 %v1349, %v1362
      %v1365 = vadd.f32 %v1350, %v1362
      %v1366 = vadd.f32 %v1351, %v1362
      %v1367 = vadd.f32 %v1352, %v1362
      %v1368 = vadd.f32 %v1353, %v1362
      %v1369 = vadd.f32 %v1354, %v1362
      %v1370 = vadd.f32 %v1355, %v1362
      %v1371 = vadd.f32 %v1356, %v1362
      %vm1372 = vcmp.gt.f32.partialorder %v1364, 0.0
      %vm1373 = vcmp.gt.f32.partialorder %v1365, 0.0
      %vm1374 = vcmp.gt.f32.partialorder %v1366, 0.0
      %vm1375 = vcmp.gt.f32.partialorder %v1367, 0.0
      %vm1376 = vcmp.gt.f32.partialorder %v1368, 0.0
      %vm1377 = vcmp.gt.f32.partialorder %v1369, 0.0
      %vm1378 = vcmp.gt.f32.partialorder %v1370, 0.0
      %vm1379 = vcmp.gt.f32.partialorder %v1371, 0.0
      %v1380 = vld [vmem:[%s3] sm:$0x1]
      %v1382 = vlaneseq
      %v1383 = vshrl.u32 %v1382, 7
      %v1384 = vsub.s32 0, %v1383
      %v1385 = vrot.slane %v1380, %v1384
      %v1387 = vmul.f32 %v1364, %v1385
      %v1388 = vmul.f32 %v1365, %v1385
      %v1389 = vmul.f32 %v1366, %v1385
      %v1390 = vmul.f32 %v1367, %v1385
      %v1391 = vmul.f32 %v1368, %v1385
      %v1392 = vmul.f32 %v1369, %v1385
      %v1393 = vmul.f32 %v1370, %v1385
      %v1394 = vmul.f32 %v1371, %v1385
      %v1395 = vsel %vm1372, %v1364, %v1387
      %v1396 = vsel %vm1373, %v1365, %v1388
      %v1397 = vsel %vm1374, %v1366, %v1389
      %v1398 = vsel %vm1375, %v1367, %v1390
      %v1399 = vsel %vm1376, %v1368, %v1391
      %v1400 = vsel %vm1377, %v1369, %v1392
      %v1401 = vsel %vm1378, %v1370, %v1393
      %v1402 = vsel %vm1379, %v1371, %v1394
      %v1411 = vcombine.high %v1395, %v1395
      %v1413 = vunpack.c.l.s4 1983009808
      %v1414 = vunpack.c.0.s8 %v1413
      %v1415 = vlaneseq
      %v1416 = vshrl.u32 %v1415, 7
      %v1417 = vsub.s32 %v1414, %v1416
      %v1418 = vrot.slane %v1395, %v1417
      %v1420 = vunpack.c.l.s4 1983009808
      %v1421 = vunpack.c.0.s8 %v1420
      %v1422 = vlaneseq
      %v1423 = vshrl.u32 %v1422, 7
      %v1424 = vsub.s32 %v1421, %v1423
      %v1425 = vrot.slane %v1411, %v1424
      %v1426 = vcombine.high %v1418, %v1418
      %v1427 = vcombine.high %v1425, %v1425
      %v1428 = vcombine.high %v1396, %v1396
      %v1430 = vunpack.c.l.s4 1983009808
      %v1431 = vunpack.c.0.s8 %v1430
      %v1432 = vlaneseq
      %v1433 = vshrl.u32 %v1432, 7
      %v1434 = vsub.s32 %v1431, %v1433
      %v1435 = vrot.slane %v1396, %v1434
      %v1437 = vunpack.c.l.s4 1983009808
      %v1438 = vunpack.c.0.s8 %v1437
      %v1439 = vlaneseq
      %v1440 = vshrl.u32 %v1439, 7
      %v1441 = vsub.s32 %v1438, %v1440
      %v1442 = vrot.slane %v1428, %v1441
      %v1443 = vcombine.high %v1435, %v1435
      %v1444 = vcombine.high %v1442, %v1442
      %v1445 = vcombine.high %v1397, %v1397
      %v1447 = vunpack.c.l.s4 1983009808
      %v1448 = vunpack.c.0.s8 %v1447
      %v1449 = vlaneseq
      %v1450 = vshrl.u32 %v1449, 7
      %v1451 = vsub.s32 %v1448, %v1450
      %v1452 = vrot.slane %v1397, %v1451
      %v1454 = vunpack.c.l.s4 1983009808
      %v1455 = vunpack.c.0.s8 %v1454
      %v1456 = vlaneseq
      %v1457 = vshrl.u32 %v1456, 7
      %v1458 = vsub.s32 %v1455, %v1457
      %v1459 = vrot.slane %v1445, %v1458
      %v1460 = vcombine.high %v1452, %v1452
      %v1461 = vcombine.high %v1459, %v1459
      %v1462 = vcombine.high %v1398, %v1398
      %v1464 = vunpack.c.l.s4 1983009808
      %v1465 = vunpack.c.0.s8 %v1464
      %v1466 = vlaneseq
      %v1467 = vshrl.u32 %v1466, 7
      %v1468 = vsub.s32 %v1465, %v1467
      %v1469 = vrot.slane %v1398, %v1468
      %v1471 = vunpack.c.l.s4 1983009808
      %v1472 = vunpack.c.0.s8 %v1471
      %v1473 = vlaneseq
      %v1474 = vshrl.u32 %v1473, 7
      %v1475 = vsub.s32 %v1472, %v1474
      %v1476 = vrot.slane %v1462, %v1475
      %v1477 = vcombine.high %v1469, %v1469
      %v1478 = vcombine.high %v1476, %v1476
      %v1479 = vcombine.high %v1399, %v1399
      %v1481 = vunpack.c.l.s4 1983009808
      %v1482 = vunpack.c.0.s8 %v1481
      %v1483 = vlaneseq
      %v1484 = vshrl.u32 %v1483, 7
      %v1485 = vsub.s32 %v1482, %v1484
      %v1486 = vrot.slane %v1399, %v1485
      %v1488 = vunpack.c.l.s4 1983009808
      %v1489 = vunpack.c.0.s8 %v1488
      %v1490 = vlaneseq
      %v1491 = vshrl.u32 %v1490, 7
      %v1492 = vsub.s32 %v1489, %v1491
      %v1493 = vrot.slane %v1479, %v1492
      %v1494 = vcombine.high %v1486, %v1486
      %v1495 = vcombine.high %v1493, %v1493
      %v1496 = vcombine.high %v1400, %v1400
      %v1498 = vunpack.c.l.s4 1983009808
      %v1499 = vunpack.c.0.s8 %v1498
      %v1500 = vlaneseq
      %v1501 = vshrl.u32 %v1500, 7
      %v1502 = vsub.s32 %v1499, %v1501
      %v1503 = vrot.slane %v1400, %v1502
      %v1505 = vunpack.c.l.s4 1983009808
      %v1506 = vunpack.c.0.s8 %v1505
      %v1507 = vlaneseq
      %v1508 = vshrl.u32 %v1507, 7
      %v1509 = vsub.s32 %v1506, %v1508
      %v1510 = vrot.slane %v1496, %v1509
      %v1511 = vcombine.high %v1503, %v1503
      %v1512 = vcombine.high %v1510, %v1510
      %v1513 = vcombine.high %v1401, %v1401
      %v1515 = vunpack.c.l.s4 1983009808
      %v1516 = vunpack.c.0.s8 %v1515
      %v1517 = vlaneseq
      %v1518 = vshrl.u32 %v1517, 7
      %v1519 = vsub.s32 %v1516, %v1518
      %v1520 = vrot.slane %v1401, %v1519
      %v1522 = vunpack.c.l.s4 1983009808
      %v1523 = vunpack.c.0.s8 %v1522
      %v1524 = vlaneseq
      %v1525 = vshrl.u32 %v1524, 7
      %v1526 = vsub.s32 %v1523, %v1525
      %v1527 = vrot.slane %v1513, %v1526
      %v1528 = vcombine.high %v1520, %v1520
      %v1529 = vcombine.high %v1527, %v1527
      %v1530 = vcombine.high %v1402, %v1402
      %v1532 = vunpack.c.l.s4 1983009808
      %v1533 = vunpack.c.0.s8 %v1532
      %v1534 = vlaneseq
      %v1535 = vshrl.u32 %v1534, 7
      %v1536 = vsub.s32 %v1533, %v1535
      %v1537 = vrot.slane %v1402, %v1536
      %v1539 = vunpack.c.l.s4 1983009808
      %v1540 = vunpack.c.0.s8 %v1539
      %v1541 = vlaneseq
      %v1542 = vshrl.u32 %v1541, 7
      %v1543 = vsub.s32 %v1540, %v1542
      %v1544 = vrot.slane %v1530, %v1543
      %v1545 = vcombine.high %v1537, %v1537
      %v1546 = vcombine.high %v1544, %v1544
      %vm1579 = vcmask 123904
      %v1580 = vsel %vm1579, %v1418, -inf
      %v1581 = vrot.slane %v1580, 4
      %v1582 = vmax.f32 %v1580, %v1581
      %v1583 = vrot.slane %v1582, 2
      %v1584 = vmax.f32 %v1582, %v1583
      %v1585 = vrot.slane %v1584, 1
      %v1586 = vmax.f32 %v1584, %v1585
      %v1587 = vsel %vm1579, %v1426, -inf
      %v1588 = vrot.slane %v1587, 4
      %v1589 = vmax.f32 %v1587, %v1588
      %v1590 = vrot.slane %v1589, 2
      %v1591 = vmax.f32 %v1589, %v1590
      %v1592 = vrot.slane %v1591, 1
      %v1593 = vmax.f32 %v1591, %v1592
      %v1594 = vsel %vm1579, %v1425, -inf
      %v1595 = vrot.slane %v1594, 4
      %v1596 = vmax.f32 %v1594, %v1595
      %v1597 = vrot.slane %v1596, 2
      %v1598 = vmax.f32 %v1596, %v1597
      %v1599 = vrot.slane %v1598, 1
      %v1600 = vmax.f32 %v1598, %v1599
      %v1601 = vsel %vm1579, %v1427, -inf
      %v1602 = vrot.slane %v1601, 4
      %v1603 = vmax.f32 %v1601, %v1602
      %v1604 = vrot.slane %v1603, 2
      %v1605 = vmax.f32 %v1603, %v1604
      %v1606 = vrot.slane %v1605, 1
      %v1607 = vmax.f32 %v1605, %v1606
      %v1608 = vsel %vm1579, %v1435, -inf
      %v1609 = vrot.slane %v1608, 4
      %v1610 = vmax.f32 %v1608, %v1609
      %v1611 = vrot.slane %v1610, 2
      %v1612 = vmax.f32 %v1610, %v1611
      %v1613 = vrot.slane %v1612, 1
      %v1614 = vmax.f32 %v1612, %v1613
      %v1615 = vsel %vm1579, %v1443, -inf
      %v1616 = vrot.slane %v1615, 4
      %v1617 = vmax.f32 %v1615, %v1616
      %v1618 = vrot.slane %v1617, 2
      %v1619 = vmax.f32 %v1617, %v1618
      %v1620 = vrot.slane %v1619, 1
      %v1621 = vmax.f32 %v1619, %v1620
      %v1622 = vsel %vm1579, %v1442, -inf
      %v1623 = vrot.slane %v1622, 4
      %v1624 = vmax.f32 %v1622, %v1623
      %v1625 = vrot.slane %v1624, 2
      %v1626 = vmax.f32 %v1624, %v1625
      %v1627 = vrot.slane %v1626, 1
      %v1628 = vmax.f32 %v1626, %v1627
      %v1629 = vsel %vm1579, %v1444, -inf
      %v1630 = vrot.slane %v1629, 4
      %v1631 = vmax.f32 %v1629, %v1630
      %v1632 = vrot.slane %v1631, 2
      %v1633 = vmax.f32 %v1631, %v1632
      %v1634 = vrot.slane %v1633, 1
      %v1635 = vmax.f32 %v1633, %v1634
      %v1636 = vsel %vm1579, %v1452, -inf
      %v1637 = vrot.slane %v1636, 4
      %v1638 = vmax.f32 %v1636, %v1637
      %v1639 = vrot.slane %v1638, 2
      %v1640 = vmax.f32 %v1638, %v1639
      %v1641 = vrot.slane %v1640, 1
      %v1642 = vmax.f32 %v1640, %v1641
      %v1643 = vsel %vm1579, %v1460, -inf
      %v1644 = vrot.slane %v1643, 4
      %v1645 = vmax.f32 %v1643, %v1644
      %v1646 = vrot.slane %v1645, 2
      %v1647 = vmax.f32 %v1645, %v1646
      %v1648 = vrot.slane %v1647, 1
      %v1649 = vmax.f32 %v1647, %v1648
      %v1650 = vsel %vm1579, %v1459, -inf
      %v1651 = vrot.slane %v1650, 4
      %v1652 = vmax.f32 %v1650, %v1651
      %v1653 = vrot.slane %v1652, 2
      %v1654 = vmax.f32 %v1652, %v1653
      %v1655 = vrot.slane %v1654, 1
      %v1656 = vmax.f32 %v1654, %v1655
      %v1657 = vsel %vm1579, %v1461, -inf
      %v1658 = vrot.slane %v1657, 4
      %v1659 = vmax.f32 %v1657, %v1658
      %v1660 = vrot.slane %v1659, 2
      %v1661 = vmax.f32 %v1659, %v1660
      %v1662 = vrot.slane %v1661, 1
      %v1663 = vmax.f32 %v1661, %v1662
      %v1664 = vsel %vm1579, %v1469, -inf
      %v1665 = vrot.slane %v1664, 4
      %v1666 = vmax.f32 %v1664, %v1665
      %v1667 = vrot.slane %v1666, 2
      %v1668 = vmax.f32 %v1666, %v1667
      %v1669 = vrot.slane %v1668, 1
      %v1670 = vmax.f32 %v1668, %v1669
      %v1671 = vsel %vm1579, %v1477, -inf
      %v1672 = vrot.slane %v1671, 4
      %v1673 = vmax.f32 %v1671, %v1672
      %v1674 = vrot.slane %v1673, 2
      %v1675 = vmax.f32 %v1673, %v1674
      %v1676 = vrot.slane %v1675, 1
      %v1677 = vmax.f32 %v1675, %v1676
      %v1678 = vsel %vm1579, %v1476, -inf
      %v1679 = vrot.slane %v1678, 4
      %v1680 = vmax.f32 %v1678, %v1679
      %v1681 = vrot.slane %v1680, 2
      %v1682 = vmax.f32 %v1680, %v1681
      %v1683 = vrot.slane %v1682, 1
      %v1684 = vmax.f32 %v1682, %v1683
      %v1685 = vsel %vm1579, %v1478, -inf
      %v1686 = vrot.slane %v1685, 4
      %v1687 = vmax.f32 %v1685, %v1686
      %v1688 = vrot.slane %v1687, 2
      %v1689 = vmax.f32 %v1687, %v1688
      %v1690 = vrot.slane %v1689, 1
      %v1691 = vmax.f32 %v1689, %v1690
      %v1692 = vsel %vm1579, %v1486, -inf
      %v1693 = vrot.slane %v1692, 4
      %v1694 = vmax.f32 %v1692, %v1693
      %v1695 = vrot.slane %v1694, 2
      %v1696 = vmax.f32 %v1694, %v1695
      %v1697 = vrot.slane %v1696, 1
      %v1698 = vmax.f32 %v1696, %v1697
      %v1699 = vsel %vm1579, %v1494, -inf
      %v1700 = vrot.slane %v1699, 4
      %v1701 = vmax.f32 %v1699, %v1700
      %v1702 = vrot.slane %v1701, 2
      %v1703 = vmax.f32 %v1701, %v1702
      %v1704 = vrot.slane %v1703, 1
      %v1705 = vmax.f32 %v1703, %v1704
      %v1706 = vsel %vm1579, %v1493, -inf
      %v1707 = vrot.slane %v1706, 4
      %v1708 = vmax.f32 %v1706, %v1707
      %v1709 = vrot.slane %v1708, 2
      %v1710 = vmax.f32 %v1708, %v1709
      %v1711 = vrot.slane %v1710, 1
      %v1712 = vmax.f32 %v1710, %v1711
      %v1713 = vsel %vm1579, %v1495, -inf
      %v1714 = vrot.slane %v1713, 4
      %v1715 = vmax.f32 %v1713, %v1714
      %v1716 = vrot.slane %v1715, 2
      %v1717 = vmax.f32 %v1715, %v1716
      %v1718 = vrot.slane %v1717, 1
      %v1719 = vmax.f32 %v1717, %v1718
      %v1720 = vsel %vm1579, %v1503, -inf
      %v1721 = vrot.slane %v1720, 4
      %v1722 = vmax.f32 %v1720, %v1721
      %v1723 = vrot.slane %v1722, 2
      %v1724 = vmax.f32 %v1722, %v1723
      %v1725 = vrot.slane %v1724, 1
      %v1726 = vmax.f32 %v1724, %v1725
      %v1727 = vsel %vm1579, %v1511, -inf
      %v1728 = vrot.slane %v1727, 4
      %v1729 = vmax.f32 %v1727, %v1728
      %v1730 = vrot.slane %v1729, 2
      %v1731 = vmax.f32 %v1729, %v1730
      %v1732 = vrot.slane %v1731, 1
      %v1733 = vmax.f32 %v1731, %v1732
      %v1734 = vsel %vm1579, %v1510, -inf
      %v1735 = vrot.slane %v1734, 4
      %v1736 = vmax.f32 %v1734, %v1735
      %v1737 = vrot.slane %v1736, 2
      %v1738 = vmax.f32 %v1736, %v1737
      %v1739 = vrot.slane %v1738, 1
      %v1740 = vmax.f32 %v1738, %v1739
      %v1741 = vsel %vm1579, %v1512, -inf
      %v1742 = vrot.slane %v1741, 4
      %v1743 = vmax.f32 %v1741, %v1742
      %v1744 = vrot.slane %v1743, 2
      %v1745 = vmax.f32 %v1743, %v1744
      %v1746 = vrot.slane %v1745, 1
      %v1747 = vmax.f32 %v1745, %v1746
      %v1748 = vsel %vm1579, %v1520, -inf
      %v1749 = vrot.slane %v1748, 4
      %v1750 = vmax.f32 %v1748, %v1749
      %v1751 = vrot.slane %v1750, 2
      %v1752 = vmax.f32 %v1750, %v1751
      %v1753 = vrot.slane %v1752, 1
      %v1754 = vmax.f32 %v1752, %v1753
      %v1755 = vsel %vm1579, %v1528, -inf
      %v1756 = vrot.slane %v1755, 4
      %v1757 = vmax.f32 %v1755, %v1756
      %v1758 = vrot.slane %v1757, 2
      %v1759 = vmax.f32 %v1757, %v1758
      %v1760 = vrot.slane %v1759, 1
      %v1761 = vmax.f32 %v1759, %v1760
      %v1762 = vsel %vm1579, %v1527, -inf
      %v1763 = vrot.slane %v1762, 4
      %v1764 = vmax.f32 %v1762, %v1763
      %v1765 = vrot.slane %v1764, 2
      %v1766 = vmax.f32 %v1764, %v1765
      %v1767 = vrot.slane %v1766, 1
      %v1768 = vmax.f32 %v1766, %v1767
      %v1769 = vsel %vm1579, %v1529, -inf
      %v1770 = vrot.slane %v1769, 4
      %v1771 = vmax.f32 %v1769, %v1770
      %v1772 = vrot.slane %v1771, 2
      %v1773 = vmax.f32 %v1771, %v1772
      %v1774 = vrot.slane %v1773, 1
      %v1775 = vmax.f32 %v1773, %v1774
      %v1776 = vsel %vm1579, %v1537, -inf
      %v1777 = vrot.slane %v1776, 4
      %v1778 = vmax.f32 %v1776, %v1777
      %v1779 = vrot.slane %v1778, 2
      %v1780 = vmax.f32 %v1778, %v1779
      %v1781 = vrot.slane %v1780, 1
      %v1782 = vmax.f32 %v1780, %v1781
      %v1783 = vsel %vm1579, %v1545, -inf
      %v1784 = vrot.slane %v1783, 4
      %v1785 = vmax.f32 %v1783, %v1784
      %v1786 = vrot.slane %v1785, 2
      %v1787 = vmax.f32 %v1785, %v1786
      %v1788 = vrot.slane %v1787, 1
      %v1789 = vmax.f32 %v1787, %v1788
      %v1790 = vsel %vm1579, %v1544, -inf
      %v1791 = vrot.slane %v1790, 4
      %v1792 = vmax.f32 %v1790, %v1791
      %v1793 = vrot.slane %v1792, 2
      %v1794 = vmax.f32 %v1792, %v1793
      %v1795 = vrot.slane %v1794, 1
      %v1796 = vmax.f32 %v1794, %v1795
      %v1797 = vsel %vm1579, %v1546, -inf
      %v1798 = vrot.slane %v1797, 4
      %v1799 = vmax.f32 %v1797, %v1798
      %v1800 = vrot.slane %v1799, 2
      %v1801 = vmax.f32 %v1799, %v1800
      %v1802 = vrot.slane %v1801, 1
      %v1803 = vmax.f32 %v1801, %v1802
      %vm1804 = vcmask 130048
      %v1805 = vsel %vm1804, %v1586, -inf
      %v1806 = vsel %vm1804, %v1614, -inf
      %v1807 = vmax.f32 %v1805, %v1806
      %v1808 = vsel %vm1804, %v1593, -inf
      %v1809 = vsel %vm1804, %v1621, -inf
      %v1810 = vmax.f32 %v1808, %v1809
      %v1811 = vsel %vm1804, %v1600, -inf
      %v1812 = vsel %vm1804, %v1628, -inf
      %v1813 = vmax.f32 %v1811, %v1812
      %v1814 = vsel %vm1804, %v1607, -inf
      %v1815 = vsel %vm1804, %v1635, -inf
      %v1816 = vmax.f32 %v1814, %v1815
      %v1817 = vsel %vm1804, %v1642, -inf
      %v1818 = vsel %vm1804, %v1670, -inf
      %v1819 = vmax.f32 %v1817, %v1818
      %v1820 = vsel %vm1804, %v1649, -inf
      %v1821 = vsel %vm1804, %v1677, -inf
      %v1822 = vmax.f32 %v1820, %v1821
      %v1823 = vsel %vm1804, %v1656, -inf
      %v1824 = vsel %vm1804, %v1684, -inf
      %v1825 = vmax.f32 %v1823, %v1824
      %v1826 = vsel %vm1804, %v1663, -inf
      %v1827 = vsel %vm1804, %v1691, -inf
      %v1828 = vmax.f32 %v1826, %v1827
      %v1829 = vsel %vm1804, %v1698, -inf
      %v1830 = vsel %vm1804, %v1726, -inf
      %v1831 = vmax.f32 %v1829, %v1830
      %v1832 = vsel %vm1804, %v1705, -inf
      %v1833 = vsel %vm1804, %v1733, -inf
      %v1834 = vmax.f32 %v1832, %v1833
      %v1835 = vsel %vm1804, %v1712, -inf
      %v1836 = vsel %vm1804, %v1740, -inf
      %v1837 = vmax.f32 %v1835, %v1836
      %v1838 = vsel %vm1804, %v1719, -inf
      %v1839 = vsel %vm1804, %v1747, -inf
      %v1840 = vmax.f32 %v1838, %v1839
      %v1841 = vsel %vm1804, %v1754, -inf
      %v1842 = vsel %vm1804, %v1782, -inf
      %v1843 = vmax.f32 %v1841, %v1842
      %v1844 = vsel %vm1804, %v1761, -inf
      %v1845 = vsel %vm1804, %v1789, -inf
      %v1846 = vmax.f32 %v1844, %v1845
      %v1847 = vsel %vm1804, %v1768, -inf
      %v1848 = vsel %vm1804, %v1796, -inf
      %v1849 = vmax.f32 %v1847, %v1848
      %v1850 = vsel %vm1804, %v1775, -inf
      %v1851 = vsel %vm1804, %v1803, -inf
      %v1852 = vmax.f32 %v1850, %v1851
      %v1853 = vpack.c.bf16 %v1807, %v1807
      %v1854 = vpack.c.bf16 %v1810, %v1810
      %v1855 = vpack.c.bf16 %v1813, %v1813
      %v1856 = vpack.c.bf16 %v1816, %v1816
      %v1857 = vpack.c.bf16 %v1819, %v1819
      %v1858 = vpack.c.bf16 %v1822, %v1822
      %v1859 = vpack.c.bf16 %v1825, %v1825
      %v1860 = vpack.c.bf16 %v1828, %v1828
      %v1861 = vpack.c.bf16 %v1831, %v1831
      %v1862 = vpack.c.bf16 %v1834, %v1834
      %v1863 = vpack.c.bf16 %v1837, %v1837
      %v1864 = vpack.c.bf16 %v1840, %v1840
      %v1865 = vpack.c.bf16 %v1843, %v1843
      %v1866 = vpack.c.bf16 %v1846, %v1846
      %v1867 = vpack.c.bf16 %v1849, %v1849
      %v1868 = vpack.c.bf16 %v1852, %v1852
      %v1886 = vunpack.c.l.s4 1983009808
      %v1887 = vunpack.c.0.s8 %v1886
      %v1888 = vlaneseq
      %v1889 = vshrl.u32 %v1888, 7
      %v1890 = vsub.s32 %v1887, %v1889
      %v1891 = vrot.slane %v1853, %v1890
      %v1893 = vunpack.c.l.s4 1983009808
      %v1894 = vunpack.c.0.s8 %v1893
      %v1895 = vlaneseq
      %v1896 = vshrl.u32 %v1895, 7
      %v1897 = vsub.s32 %v1894, %v1896
      %v1898 = vrot.slane %v1854, %v1897
      %v1900 = vunpack.c.l.s4 1983009808
      %v1901 = vunpack.c.0.s8 %v1900
      %v1902 = vlaneseq
      %v1903 = vshrl.u32 %v1902, 7
      %v1904 = vsub.s32 %v1901, %v1903
      %v1905 = vrot.slane %v1855, %v1904
      %v1907 = vunpack.c.l.s4 1983009808
      %v1908 = vunpack.c.0.s8 %v1907
      %v1909 = vlaneseq
      %v1910 = vshrl.u32 %v1909, 7
      %v1911 = vsub.s32 %v1908, %v1910
      %v1912 = vrot.slane %v1856, %v1911
      %v1914 = vunpack.c.l.s4 1983009808
      %v1915 = vunpack.c.0.s8 %v1914
      %v1916 = vlaneseq
      %v1917 = vshrl.u32 %v1916, 7
      %v1918 = vsub.s32 %v1915, %v1917
      %v1919 = vrot.slane %v1857, %v1918
      %v1921 = vunpack.c.l.s4 1983009808
      %v1922 = vunpack.c.0.s8 %v1921
      %v1923 = vlaneseq
      %v1924 = vshrl.u32 %v1923, 7
      %v1925 = vsub.s32 %v1922, %v1924
      %v1926 = vrot.slane %v1858, %v1925
      %v1928 = vunpack.c.l.s4 1983009808
      %v1929 = vunpack.c.0.s8 %v1928
      %v1930 = vlaneseq
      %v1931 = vshrl.u32 %v1930, 7
      %v1932 = vsub.s32 %v1929, %v1931
      %v1933 = vrot.slane %v1859, %v1932
      %v1935 = vunpack.c.l.s4 1983009808
      %v1936 = vunpack.c.0.s8 %v1935
      %v1937 = vlaneseq
      %v1938 = vshrl.u32 %v1937, 7
      %v1939 = vsub.s32 %v1936, %v1938
      %v1940 = vrot.slane %v1860, %v1939
      %v1942 = vunpack.c.l.s4 1983009808
      %v1943 = vunpack.c.0.s8 %v1942
      %v1944 = vlaneseq
      %v1945 = vshrl.u32 %v1944, 7
      %v1946 = vsub.s32 %v1943, %v1945
      %v1947 = vrot.slane %v1861, %v1946
      %v1949 = vunpack.c.l.s4 1983009808
      %v1950 = vunpack.c.0.s8 %v1949
      %v1951 = vlaneseq
      %v1952 = vshrl.u32 %v1951, 7
      %v1953 = vsub.s32 %v1950, %v1952
      %v1954 = vrot.slane %v1862, %v1953
      %v1956 = vunpack.c.l.s4 1983009808
      %v1957 = vunpack.c.0.s8 %v1956
      %v1958 = vlaneseq
      %v1959 = vshrl.u32 %v1958, 7
      %v1960 = vsub.s32 %v1957, %v1959
      %v1961 = vrot.slane %v1863, %v1960
      %v1963 = vunpack.c.l.s4 1983009808
      %v1964 = vunpack.c.0.s8 %v1963
      %v1965 = vlaneseq
      %v1966 = vshrl.u32 %v1965, 7
      %v1967 = vsub.s32 %v1964, %v1966
      %v1968 = vrot.slane %v1864, %v1967
      %v1970 = vunpack.c.l.s4 1983009808
      %v1971 = vunpack.c.0.s8 %v1970
      %v1972 = vlaneseq
      %v1973 = vshrl.u32 %v1972, 7
      %v1974 = vsub.s32 %v1971, %v1973
      %v1975 = vrot.slane %v1865, %v1974
      %v1977 = vunpack.c.l.s4 1983009808
      %v1978 = vunpack.c.0.s8 %v1977
      %v1979 = vlaneseq
      %v1980 = vshrl.u32 %v1979, 7
      %v1981 = vsub.s32 %v1978, %v1980
      %v1982 = vrot.slane %v1866, %v1981
      %v1984 = vunpack.c.l.s4 1983009808
      %v1985 = vunpack.c.0.s8 %v1984
      %v1986 = vlaneseq
      %v1987 = vshrl.u32 %v1986, 7
      %v1988 = vsub.s32 %v1985, %v1987
      %v1989 = vrot.slane %v1867, %v1988
      %v1991 = vunpack.c.l.s4 1983009808
      %v1992 = vunpack.c.0.s8 %v1991
      %v1993 = vlaneseq
      %v1994 = vshrl.u32 %v1993, 7
      %v1995 = vsub.s32 %v1992, %v1994
      %v1996 = vrot.slane %v1868, %v1995
      %v1998 = vunpack.c.l.s4 1983009808
      %v1999 = vunpack.c.0.s8 %v1998
      %v2000 = vlaneseq
      %v2001 = vshrl.u32 %v2000, 7
      %v2002 = vsub.s32 %v1999, %v2001
      %v2003 = vrot.slane %v1891, %v2002
      %v2005 = vunpack.c.l.s4 1983009808
      %v2006 = vunpack.c.0.s8 %v2005
      %v2007 = vlaneseq
      %v2008 = vshrl.u32 %v2007, 7
      %v2009 = vsub.s32 %v2006, %v2008
      %v2010 = vrot.slane %v1898, %v2009
      %v2012 = vunpack.c.l.s4 1983009808
      %v2013 = vunpack.c.0.s8 %v2012
      %v2014 = vlaneseq
      %v2015 = vshrl.u32 %v2014, 7
      %v2016 = vsub.s32 %v2013, %v2015
      %v2017 = vrot.slane %v1905, %v2016
      %v2019 = vunpack.c.l.s4 1983009808
      %v2020 = vunpack.c.0.s8 %v2019
      %v2021 = vlaneseq
      %v2022 = vshrl.u32 %v2021, 7
      %v2023 = vsub.s32 %v2020, %v2022
      %v2024 = vrot.slane %v1912, %v2023
      %v2026 = vunpack.c.l.s4 1983009808
      %v2027 = vunpack.c.0.s8 %v2026
      %v2028 = vlaneseq
      %v2029 = vshrl.u32 %v2028, 7
      %v2030 = vsub.s32 %v2027, %v2029
      %v2031 = vrot.slane %v1919, %v2030
      %v2033 = vunpack.c.l.s4 1983009808
      %v2034 = vunpack.c.0.s8 %v2033
      %v2035 = vlaneseq
      %v2036 = vshrl.u32 %v2035, 7
      %v2037 = vsub.s32 %v2034, %v2036
      %v2038 = vrot.slane %v1926, %v2037
      %v2040 = vunpack.c.l.s4 1983009808
      %v2041 = vunpack.c.0.s8 %v2040
      %v2042 = vlaneseq
      %v2043 = vshrl.u32 %v2042, 7
      %v2044 = vsub.s32 %v2041, %v2043
      %v2045 = vrot.slane %v1933, %v2044
      %v2047 = vunpack.c.l.s4 1983009808
      %v2048 = vunpack.c.0.s8 %v2047
      %v2049 = vlaneseq
      %v2050 = vshrl.u32 %v2049, 7
      %v2051 = vsub.s32 %v2048, %v2050
      %v2052 = vrot.slane %v1940, %v2051
      %v2054 = vunpack.c.l.s4 1983009808
      %v2055 = vunpack.c.0.s8 %v2054
      %v2056 = vlaneseq
      %v2057 = vshrl.u32 %v2056, 7
      %v2058 = vsub.s32 %v2055, %v2057
      %v2059 = vrot.slane %v1947, %v2058
      %v2061 = vunpack.c.l.s4 1983009808
      %v2062 = vunpack.c.0.s8 %v2061
      %v2063 = vlaneseq
      %v2064 = vshrl.u32 %v2063, 7
      %v2065 = vsub.s32 %v2062, %v2064
      %v2066 = vrot.slane %v1954, %v2065
      %v2068 = vunpack.c.l.s4 1983009808
      %v2069 = vunpack.c.0.s8 %v2068
      %v2070 = vlaneseq
      %v2071 = vshrl.u32 %v2070, 7
      %v2072 = vsub.s32 %v2069, %v2071
      %v2073 = vrot.slane %v1961, %v2072
      %v2075 = vunpack.c.l.s4 1983009808
      %v2076 = vunpack.c.0.s8 %v2075
      %v2077 = vlaneseq
      %v2078 = vshrl.u32 %v2077, 7
      %v2079 = vsub.s32 %v2076, %v2078
      %v2080 = vrot.slane %v1968, %v2079
      %v2082 = vunpack.c.l.s4 1983009808
      %v2083 = vunpack.c.0.s8 %v2082
      %v2084 = vlaneseq
      %v2085 = vshrl.u32 %v2084, 7
      %v2086 = vsub.s32 %v2083, %v2085
      %v2087 = vrot.slane %v1975, %v2086
      %v2089 = vunpack.c.l.s4 1983009808
      %v2090 = vunpack.c.0.s8 %v2089
      %v2091 = vlaneseq
      %v2092 = vshrl.u32 %v2091, 7
      %v2093 = vsub.s32 %v2090, %v2092
      %v2094 = vrot.slane %v1982, %v2093
      %v2096 = vunpack.c.l.s4 1983009808
      %v2097 = vunpack.c.0.s8 %v2096
      %v2098 = vlaneseq
      %v2099 = vshrl.u32 %v2098, 7
      %v2100 = vsub.s32 %v2097, %v2099
      %v2101 = vrot.slane %v1989, %v2100
      %v2103 = vunpack.c.l.s4 1983009808
      %v2104 = vunpack.c.0.s8 %v2103
      %v2105 = vlaneseq
      %v2106 = vshrl.u32 %v2105, 7
      %v2107 = vsub.s32 %v2104, %v2106
      %v2108 = vrot.slane %v1996, %v2107
      %v2109 = vunpack.c.l.b16 %v2003
      %v2110 = vunpack.c.l.b16 %v2010
      %v2111 = vunpack.c.l.b16 %v2017
      %v2112 = vunpack.c.l.b16 %v2024
      %v2113 = vunpack.c.l.b16 %v2031
      %v2114 = vunpack.c.l.b16 %v2038
      %v2115 = vunpack.c.l.b16 %v2045
      %v2116 = vunpack.c.l.b16 %v2052
      %v2117 = vunpack.c.l.b16 %v2059
      %v2118 = vunpack.c.l.b16 %v2066
      %v2119 = vunpack.c.l.b16 %v2073
      %v2120 = vunpack.c.l.b16 %v2080
      %v2121 = vunpack.c.l.b16 %v2087
      %v2122 = vunpack.c.l.b16 %v2094
      %v2123 = vunpack.c.l.b16 %v2101
      %v2124 = vunpack.c.l.b16 %v2108
      %v2125 = vrot.slane %v2110, 7
      %vm2126 = vcmask 1041409
      %v2127 = vsel %vm2126, %v2125, %v2109
      %v2128 = vrot.slane %v2111, 6
      %vm2129 = vcmask 1042434
      %v2130 = vsel %vm2129, %v2128, %v2127
      %v2131 = vrot.slane %v2112, 5
      %vm2132 = vcmask 1043459
      %v2133 = vsel %vm2132, %v2131, %v2130
      %v2134 = vrot.slane %v2114, 7
      %v2135 = vsel %vm2126, %v2134, %v2113
      %v2136 = vrot.slane %v2115, 6
      %v2137 = vsel %vm2129, %v2136, %v2135
      %v2138 = vrot.slane %v2116, 5
      %v2139 = vsel %vm2132, %v2138, %v2137
      %v2140 = vrot.slane %v2118, 7
      %v2141 = vsel %vm2126, %v2140, %v2117
      %v2142 = vrot.slane %v2119, 6
      %v2143 = vsel %vm2129, %v2142, %v2141
      %v2144 = vrot.slane %v2120, 5
      %v2145 = vsel %vm2132, %v2144, %v2143
      %v2146 = vrot.slane %v2122, 7
      %v2147 = vsel %vm2126, %v2146, %v2121
      %v2148 = vrot.slane %v2123, 6
      %v2149 = vsel %vm2129, %v2148, %v2147
      %v2150 = vrot.slane %v2124, 5
      %v2151 = vsel %vm2132, %v2150, %v2149
      %v2152 = vpack.c.b16 %v2133, %v2133
      %v2153 = vpack.c.b16 %v2139, %v2139
      %v2154 = vpack.c.b16 %v2145, %v2145
      %v2155 = vpack.c.b16 %v2151, %v2151
      %v2157 = vunpack.c.l.s4 1983009808
      %v2158 = vunpack.c.0.s8 %v2157
      %v2159 = vlaneseq
      %v2160 = vshrl.u32 %v2159, 7
      %v2161 = vsub.s32 %v2158, %v2160
      %v2162 = vrot.slane %v2152, %v2161
      %v2164 = vunpack.c.l.s4 1983009808
      %v2165 = vunpack.c.0.s8 %v2164
      %v2166 = vlaneseq
      %v2167 = vshrl.u32 %v2166, 7
      %v2168 = vsub.s32 %v2165, %v2167
      %v2169 = vrot.slane %v2153, %v2168
      %v2171 = vunpack.c.l.s4 1983009808
      %v2172 = vunpack.c.0.s8 %v2171
      %v2173 = vlaneseq
      %v2174 = vshrl.u32 %v2173, 7
      %v2175 = vsub.s32 %v2172, %v2174
      %v2176 = vrot.slane %v2154, %v2175
      %v2178 = vunpack.c.l.s4 1983009808
      %v2179 = vunpack.c.0.s8 %v2178
      %v2180 = vlaneseq
      %v2181 = vshrl.u32 %v2180, 7
      %v2182 = vsub.s32 %v2179, %v2181
      %v2183 = vrot.slane %v2155, %v2182
      %2188 = vst.msk [vmem:[%s197] sm:$0x3] %vm1579, %v2162
      %2189 = vst.msk [vmem:[%s197 + $0x2] sm:$0x3] %vm1579, %v2169
      %2190 = vst.msk [vmem:[%s197 + $0x4] sm:$0x3] %vm1579, %v2176
      %2191 = vst.msk [vmem:[%s197 + $0x6] sm:$0x3] %vm1579, %v2183
      %p2192 = scmp.lt.s32.totalorder %s15, 1
      %s2193 = scalar_select %p2192, %s15, 1
      %s2194 = smul.addr %s2193, 4
      %s2195 = smul.addr %s2194, 2
      %s2196 = scalar_lea.vmem %s4, %s2195
      // Predicated region
      $region37: #{sam2_classifier_forward.6} parent=35 // pred_check
        %p2197 = pneg %p122
      $region38: #{sam2_classifier_forward.6} parent=35 // pred_check_branch
        %2199 = sbr.rel (%p2197) target = $region40
      $region39: #{sam2_classifier_forward.6} parent=35 // pred_region
        _
      $region40: #{sam2_classifier_forward.6} parent=35 // pred_fallthru
        _
    $region36: #{sam2_classifier_forward.6} parent=5 // pred_fallthru
      _
    %p2200 = scmp.le.s32.totalorder 2, %s10
    // Predicated region
    $region41: #{sam2_classifier_forward.6} parent=5 // pred_check
      %p2201 = pneg %p2200
    $region42: #{sam2_classifier_forward.6} parent=5 // pred_check_branch
      %2203 = sbr.rel (%p2201) target = $region44
    $region43: #{sam2_classifier_forward.6} parent=5 // pred_region
      %s2204 = ssub.s32 %s10, 2
      // Predicated region
      $region45: #{sam2_classifier_forward.6} parent=43 // pred_check
        %p2205 = pneg %p128
      $region46: #{sam2_classifier_forward.6} parent=43 // pred_check_branch
        %2207 = sbr.rel (%p2205) target = $region48
      $region47: #{sam2_classifier_forward.6} parent=43 // pred_region
        %p2208 = scmp.lt.s32.totalorder %s16, 1
        %s2209 = scalar_select %p2208, %s16, 1
        %s2210 = smul.addr %s2209, 4
        %s2211 = smul.addr %s2210, 2
        %s2212 = scalar_lea.vmem %s4, %s2211
      $region48: #{sam2_classifier_forward.6} parent=43 // pred_fallthru
        _
    $region44: #{sam2_classifier_forward.6} parent=5 // pred_fallthru
      _
  $region6: #{sam2_classifier_forward.6} parent=0 // loop_footer
    %s14 = sadd.s32 1, %s10
  $region7: #{sam2_classifier_forward.6} parent=0 // loop_footer_branch
    %9 = sbr.rel target = $region3
  $region8: #{sam2_classifier_forward.6} parent=0 // loop_exit
    _

// kernel: sam2_classifier_forward.5
$region0: #{sam2_classifier_forward.5}
  #allocation0 [shape = 'u32[]', space=smem, size = 0x4, offset = 0x4, fixed_abs, tag = 'smem constant byte address 0x4 - core index']
  #allocation1 [shape = 'u32[144,128]{1,0:T(1,128)}', space=vmem, size = 0x12000, scoped, tag = 'internal scratch']
  %s0 = inlined_call_operand.vmem [shape: bf16[2,18,18,32], index: 0, kind: input, shape index: {}]
  %s1 = inlined_call_operand.vmem [shape: bf16[9,32,32], index: 1, kind: input, shape index: {}]
  %s2 = inlined_call_operand.vmem [shape: f32[1,32], index: 2, kind: input, shape index: {}]
  %s3 = inlined_call_operand.vmem [shape: f32[1,32], index: 3, kind: input, shape index: {}]
  %s4 = inlined_call_operand.vmem [shape: bf16[2,8,8,32], index: 4, kind: output, shape index: {}]
  %s5 = sld [smem:[#allocation0]]
  $region49: #{sam2_classifier_forward.5} parent=0
    _
  %s7 = ssub.s32 1, %s5
  %s8 = scalar_select 0, %s7, %s5
  loop: start=0, step=1, limit=4
  $region2: #{sam2_classifier_forward.5} parent=0 // loop_pre_header
    _
  $region3: #{sam2_classifier_forward.5} parent=0 // loop_header
    %s10 = sphi 0, %s14
    %p11 = scmp.ge.s32.totalorder %s10, 4
    %s20 = sphi 0, %s22
    %s23 = sphi 0, %s20
    %s24 = sphi 0, %s23
    %s40 = sphi 0, %s24
    %s44 = sphi 0, %s44
    %s46 = sphi 0, %s44
    %s47 = sphi 0, %s46
    %s61 = sphi 0, %s47
    %s65 = sphi 0, %s65
    %s67 = sphi 0, %s65
    %s68 = sphi 0, %s67
    %s82 = sphi 0, %s68
    %s86 = sphi 0, %s86
    %s88 = sphi 0, %s86
    %s89 = sphi 0, %s88
    %s103 = sphi 0, %s89
    %s109 = sphi 0, %s111
    %s112 = sphi 0, %s109
    %s113 = sphi 0, %s112
    %s129 = sphi 0, %s113
  $region4: #{sam2_classifier_forward.5} parent=0 // loop_header_branch
    %13 = sbr.rel (%p11) target = $region8
  $region5: #{sam2_classifier_forward.5} parent=0 // loop_body
    %s15 = ssub.s32 %s10, 1
    %s16 = ssub.s32 %s10, 2
    %s17 = sadd.s32 %s10, 1
    %s18 = ssub.s32 %s10, %s17
    %p19 = scmp.eq.s32.totalorder %s18, 0
    %s21 = sadd.s32 %s20, 1
    %s22 = scalar_select %p19, %s20, %s21
    %p25 = pneg %p19
    %p26 = scmp.eq.s32.totalorder %s10, 1
    %p27 = por %p25, %p26
    %p28 = scmp.ne.s32.totalorder %s20, %s23
    %p29 = scmp.eq.s32.totalorder %s10, 0
    %p30 = por %p28, %p29
    %p31 = scmp.ne.s32.totalorder %s20, %s23
    %p32 = scmp.eq.s32.totalorder %s15, 1
    %p33 = por %p31, %p32
    %p34 = scmp.ne.s32.totalorder %s23, %s24
    %p35 = scmp.eq.s32.totalorder %s15, 0
    %p36 = por %p34, %p35
    %p37 = scmp.ne.s32.totalorder %s23, %s24
    %p38 = scmp.eq.s32.totalorder %s16, 1
    %p39 = por %p37, %p38
    %p41 = scmp.ne.s32.totalorder %s24, %s40
    %p42 = scmp.eq.s32.totalorder %s16, 0
    %p43 = por %p41, %p42
    %s45 = sadd.s32 %s44, 1
    %p48 = scmp.eq.s32.totalorder %s10, 1
    %p49 = scmp.ne.s32.totalorder %s44, %s46
    %p50 = scmp.eq.s32.totalorder %s10, 0
    %p51 = por %p49, %p50
    %p52 = scmp.ne.s32.totalorder %s44, %s46
    %p53 = scmp.eq.s32.totalorder %s15, 1
    %p54 = por %p52, %p53
    %p55 = scmp.ne.s32.totalorder %s46, %s47
    %p56 = scmp.eq.s32.totalorder %s15, 0
    %p57 = por %p55, %p56
    %p58 = scmp.ne.s32.totalorder %s46, %s47
    %p59 = scmp.eq.s32.totalorder %s16, 1
    %p60 = por %p58, %p59
    %p62 = scmp.ne.s32.totalorder %s47, %s61
    %p63 = scmp.eq.s32.totalorder %s16, 0
    %p64 = por %p62, %p63
    %s66 = sadd.s32 %s65, 1
    %p69 = scmp.eq.s32.totalorder %s10, 1
    %p70 = scmp.ne.s32.totalorder %s65, %s67
    %p71 = scmp.eq.s32.totalorder %s10, 0
    %p72 = por %p70, %p71
    %p73 = scmp.ne.s32.totalorder %s65, %s67
    %p74 = scmp.eq.s32.totalorder %s15, 1
    %p75 = por %p73, %p74
    %p76 = scmp.ne.s32.totalorder %s67, %s68
    %p77 = scmp.eq.s32.totalorder %s15, 0
    %p78 = por %p76, %p77
    %p79 = scmp.ne.s32.totalorder %s67, %s68
    %p80 = scmp.eq.s32.totalorder %s16, 1
    %p81 = por %p79, %p80
    %p83 = scmp.ne.s32.totalorder %s68, %s82
    %p84 = scmp.eq.s32.totalorder %s16, 0
    %p85 = por %p83, %p84
    %s87 = sadd.s32 %s86, 1
    %p90 = scmp.eq.s32.totalorder %s10, 1
    %p91 = scmp.ne.s32.totalorder %s86, %s88
    %p92 = scmp.eq.s32.totalorder %s10, 0
    %p93 = por %p91, %p92
    %p94 = scmp.ne.s32.totalorder %s86, %s88
    %p95 = scmp.eq.s32.totalorder %s15, 1
    %p96 = por %p94, %p95
    %p97 = scmp.ne.s32.totalorder %s88, %s89
    %p98 = scmp.eq.s32.totalorder %s15, 0
    %p99 = por %p97, %p98
    %p100 = scmp.ne.s32.totalorder %s88, %s89
    %p101 = scmp.eq.s32.totalorder %s16, 1
    %p102 = por %p100, %p101
    %p104 = scmp.ne.s32.totalorder %s89, %s103
    %p105 = scmp.eq.s32.totalorder %s16, 0
    %p106 = por %p104, %p105
    %s107 = ssub.s32 %s10, %s17
    %p108 = scmp.eq.s32.totalorder %s107, 0
    %s110 = sadd.s32 %s109, 1
    %s111 = scalar_select %p108, %s109, %s110
    %p114 = pneg %p108
    %p115 = scmp.eq.s32.totalorder %s10, 1
    %p116 = por %p114, %p115
    %p117 = scmp.ne.s32.totalorder %s109, %s112
    %p118 = scmp.eq.s32.totalorder %s10, 0
    %p119 = por %p117, %p118
    %p120 = scmp.ne.s32.totalorder %s109, %s112
    %p121 = scmp.eq.s32.totalorder %s15, 1
    %p122 = por %p120, %p121
    %p123 = scmp.ne.s32.totalorder %s112, %s113
    %p124 = scmp.eq.s32.totalorder %s15, 0
    %p125 = por %p123, %p124
    %p126 = scmp.ne.s32.totalorder %s112, %s113
    %p127 = scmp.eq.s32.totalorder %s16, 1
    %p128 = por %p126, %p127
    %p130 = scmp.ne.s32.totalorder %s113, %s129
    %p131 = scmp.eq.s32.totalorder %s16, 0
    %p132 = por %p130, %p131
    %p133 = scmp.le.s32.totalorder 1, %s10
    %p134 = scmp.lt.s32.totalorder %s10, 3
    %p135 = pnand %p133, %p134
    %p136 = pneg %p135
    // Predicated region
    $region9: #{sam2_classifier_forward.5} parent=5 // pred_check
      _
    $region10: #{sam2_classifier_forward.5} parent=5 // pred_check_branch
      %138 = sbr.rel (%p135) target = $region12
    $region11: #{sam2_classifier_forward.5} parent=5 // pred_region
      %s139 = ssub.s32 %s10, 1
      // Predicated region
      $region13: #{sam2_classifier_forward.5} parent=11 // pred_check
        %p140 = pneg %p57
      $region14: #{sam2_classifier_forward.5} parent=11 // pred_check_branch
        %142 = sbr.rel (%p140) target = $region16
      $region15: #{sam2_classifier_forward.5} parent=11 // pred_region
        _
      $region16: #{sam2_classifier_forward.5} parent=11 // pred_fallthru
        _
      // Predicated region
      $region17: #{sam2_classifier_forward.5} parent=11 // pred_check
        %p143 = pneg %p78
      $region18: #{sam2_classifier_forward.5} parent=11 // pred_check_branch
        %145 = sbr.rel (%p143) target = $region20
      $region19: #{sam2_classifier_forward.5} parent=11 // pred_region
        _
      $region20: #{sam2_classifier_forward.5} parent=11 // pred_fallthru
        _
      // Predicated region
      $region21: #{sam2_classifier_forward.5} parent=11 // pred_check
        %p146 = pneg %p99
      $region22: #{sam2_classifier_forward.5} parent=11 // pred_check_branch
        %148 = sbr.rel (%p146) target = $region24
      $region23: #{sam2_classifier_forward.5} parent=11 // pred_region
        _
      $region24: #{sam2_classifier_forward.5} parent=11 // pred_fallthru
        _
    $region12: #{sam2_classifier_forward.5} parent=5 // pred_fallthru
      _
    %p149 = scmp.lt.s32.totalorder %s10, 2
    // Predicated region
    $region25: #{sam2_classifier_forward.5} parent=5 // pred_check
      %p150 = pneg %p149
    $region26: #{sam2_classifier_forward.5} parent=5 // pred_check_branch
      %152 = sbr.rel (%p150) target = $region28
    $region27: #{sam2_classifier_forward.5} parent=5 // pred_region
      // Predicated region
      $region29: #{sam2_classifier_forward.5} parent=27 // pred_check
        %p153 = pneg %p30
      $region30: #{sam2_classifier_forward.5} parent=27 // pred_check_branch
        %155 = sbr.rel (%p153) target = $region32
      $region31: #{sam2_classifier_forward.5} parent=27 // pred_region
        %p156 = scmp.lt.s32.totalorder %s10, 1
        %s157 = scalar_select %p156, %s10, 1
        %s158 = smul.addr %s157, 54
        %s159 = smul.addr %s158, 4
        %s160 = scalar_lea.vmem %s0, %s159
      $region32: #{sam2_classifier_forward.5} parent=27 // pred_fallthru
        _
    $region28: #{sam2_classifier_forward.5} parent=5 // pred_fallthru
      _
    %p161 = scmp.le.s32.totalorder 1, %s10
    %p162 = scmp.lt.s32.totalorder %s10, 3
    %p163 = pnand %p161, %p162
    %p164 = pneg %p163
    // Predicated region
    $region33: #{sam2_classifier_forward.5} parent=5 // pred_check
      _
    $region34: #{sam2_classifier_forward.5} parent=5 // pred_check_branch
      %166 = sbr.rel (%p163) target = $region36
    $region35: #{sam2_classifier_forward.5} parent=5 // pred_region
      %s167 = ssub.s32 %s10, 1
      %p168 = scmp.lt.s32.totalorder %s15, 1
      %s169 = scalar_select %p168, %s15, 1
      %s170 = smul.addr %s169, 54
      %s171 = smul.addr %s170, 4
      %s172 = scalar_lea.vmem %s0, %s171
      %p173 = pneg %p36
      %p174 = pneg %p33
      %p175 = pneg %p57
      %p176 = pneg %p54
      %p177 = pneg %p78
      %p178 = pneg %p75
      %p179 = pneg %p99
      %p180 = pneg %p96
      %p181 = pneg %p125
      %p182 = pneg %p122
      %p183 = scmp.lt.s32.totalorder %s15, 1
      %s184 = scalar_select %p183, %s15, 1
      %s185 = smul.addr %s184, 8
      %s186 = smul.addr %s185, 4
      %s187 = scalar_lea.vmem %s4, %s186
      %p188 = scmp.lt.s32.totalorder %s15, 1
      %s189 = scalar_select %p188, %s15, 1
      %s190 = smul.addr %s189, 54
      %s191 = smul.addr %s190, 4
      %s192 = scalar_lea.vmem %s0, %s191
      %p193 = scmp.lt.s32.totalorder %s15, 1
      %s194 = scalar_select %p193, %s15, 1
      %s195 = smul.addr %s194, 8
      %s196 = smul.addr %s195, 4
      %s197 = scalar_lea.vmem %s4, %s196
      %v199 = vld [vmem:[%s192] sm:$0xf]
      %v200 = vld [vmem:[%s192 + $0x4] sm:$0xf]
      %v201 = vld [vmem:[%s192 + $0x8] sm:$0x1]
      %v202 = vld [vmem:[%s192 + $0xc] sm:$0xf]
      %v203 = vld [vmem:[%s192 + $0x10] sm:$0xf]
      %v204 = vld [vmem:[%s192 + $0x14] sm:$0x1]
      %v205 = vld [vmem:[%s192 + $0x18] sm:$0xf]
      %v206 = vld [vmem:[%s192 + $0x1c] sm:$0xf]
      %v207 = vld [vmem:[%s192 + $0x20] sm:$0x1]
      %v208 = vld [vmem:[%s192 + $0x24] sm:$0xf]
      %v209 = vld [vmem:[%s192 + $0x28] sm:$0xf]
      %v210 = vld [vmem:[%s192 + $0x2c] sm:$0x1]
      %v211 = vld [vmem:[%s192 + $0x30] sm:$0xf]
      %v212 = vld [vmem:[%s192 + $0x34] sm:$0xf]
      %v213 = vld [vmem:[%s192 + $0x38] sm:$0x1]
      %v214 = vld [vmem:[%s192 + $0x3c] sm:$0xf]
      %v215 = vld [vmem:[%s192 + $0x40] sm:$0xf]
      %v216 = vld [vmem:[%s192 + $0x44] sm:$0x1]
      %v217 = vld [vmem:[%s192 + $0x48] sm:$0xf]
      %v218 = vld [vmem:[%s192 + $0x4c] sm:$0xf]
      %v219 = vld [vmem:[%s192 + $0x50] sm:$0x1]
      %v220 = vld [vmem:[%s192 + $0x54] sm:$0xf]
      %v221 = vld [vmem:[%s192 + $0x58] sm:$0xf]
      %v222 = vld [vmem:[%s192 + $0x5c] sm:$0x1]
      %v223 = vld [vmem:[%s192 + $0x60] sm:$0xf]
      %v224 = vld [vmem:[%s192 + $0x64] sm:$0xf]
      %v225 = vld [vmem:[%s192 + $0x68] sm:$0x1]
      %v226 = vld [vmem:[%s192 + $0x6c] sm:$0xf]
      %v227 = vld [vmem:[%s192 + $0x70] sm:$0xf]
      %v228 = vld [vmem:[%s192 + $0x74] sm:$0x1]
      %v229 = vld [vmem:[%s192 + $0x78] sm:$0xf]
      %v230 = vld [vmem:[%s192 + $0x7c] sm:$0xf]
      %v231 = vld [vmem:[%s192 + $0x80] sm:$0x1]
      %v232 = vld [vmem:[%s192 + $0x84] sm:$0xf]
      %v233 = vld [vmem:[%s192 + $0x88] sm:$0xf]
      %v234 = vld [vmem:[%s192 + $0x8c] sm:$0x1]
      %v235 = vld [vmem:[%s192 + $0x90] sm:$0xf]
      %v236 = vld [vmem:[%s192 + $0x94] sm:$0xf]
      %v237 = vld [vmem:[%s192 + $0x98] sm:$0x1]
      %v238 = vld [vmem:[%s192 + $0x9c] sm:$0xf]
      %v239 = vld [vmem:[%s192 + $0xa0] sm:$0xf]
      %v240 = vld [vmem:[%s192 + $0xa4] sm:$0x1]
      %v241 = vld [vmem:[%s192 + $0xa8] sm:$0xf]
      %v242 = vld [vmem:[%s192 + $0xac] sm:$0xf]
      %v243 = vld [vmem:[%s192 + $0xb0] sm:$0x1]
      %v244 = vld [vmem:[%s192 + $0xb4] sm:$0xf]
      %v245 = vld [vmem:[%s192 + $0xb8] sm:$0xf]
      %v246 = vld [vmem:[%s192 + $0xbc] sm:$0x1]
      %v247 = vld [vmem:[%s192 + $0xc0] sm:$0xf]
      %v248 = vld [vmem:[%s192 + $0xc4] sm:$0xf]
      %v249 = vld [vmem:[%s192 + $0xc8] sm:$0x1]
      %v250 = vld [vmem:[%s192 + $0xcc] sm:$0xf]
      %v251 = vld [vmem:[%s192 + $0xd0] sm:$0xf]
      %v252 = vld [vmem:[%s192 + $0xd4] sm:$0x1]
      %v253 = vld [vmem:[%s1] sm:$0xf]
      %v254 = vld [vmem:[%s1 + $0x4] sm:$0xf]
      %v255 = vld [vmem:[%s1 + $0x8] sm:$0xf]
      %v256 = vld [vmem:[%s1 + $0xc] sm:$0xf]
      %vm257 = vsmask.f32 3328
      %vm258 = vsmask.f32 7440
      %vm259 = vmor %vm257, %vm258
      %v261 = vshrl.u32 %v199, 16
      %v263 = vrot.slane %v261, 4
      %v264 = vshll.u32 %v199, 16
      %v266 = vrot.slane %v264, 5
      %v267 = vor.u32 %v263, %v266
      %v268 = vrot.slane %v267, 4
      %v270 = vshll.u32 %v200, 16
      %v272 = vrot.slane %v270, 5
      %v273 = vsel %vm259, %v268, %v272
      %v274 = vshrl.u32 %v200, 16
      %v276 = vrot.slane %v274, 4
      %v277 = vor.u32 %v276, %v272
      %v278 = vrot.slane %v277, 4
      %v280 = vshll.u32 %v201, 16
      %v282 = vrot.slane %v280, 5
      %v283 = vsel %vm259, %v278, %v282
      %v285 = vshrl.u32 %v202, 16
      %v287 = vrot.slane %v285, 4
      %v288 = vshll.u32 %v202, 16
      %v290 = vrot.slane %v288, 5
      %v291 = vor.u32 %v287, %v290
      %v292 = vrot.slane %v291, 4
      %v294 = vshll.u32 %v203, 16
      %v296 = vrot.slane %v294, 5
      %v297 = vsel %vm259, %v292, %v296
      %v298 = vshrl.u32 %v203, 16
      %v300 = vrot.slane %v298, 4
      %v301 = vor.u32 %v300, %v296
      %v302 = vrot.slane %v301, 4
      %v304 = vshll.u32 %v204, 16
      %v306 = vrot.slane %v304, 5
      %v307 = vsel %vm259, %v302, %v306
      %v309 = vshrl.u32 %v205, 16
      %v311 = vrot.slane %v309, 4
      %v312 = vshll.u32 %v205, 16
      %v314 = vrot.slane %v312, 5
      %v315 = vor.u32 %v311, %v314
      %v316 = vrot.slane %v315, 4
      %v318 = vshll.u32 %v206, 16
      %v320 = vrot.slane %v318, 5
      %v321 = vsel %vm259, %v316, %v320
      %v322 = vshrl.u32 %v206, 16
      %v324 = vrot.slane %v322, 4
      %v325 = vor.u32 %v324, %v320
      %v326 = vrot.slane %v325, 4
      %v328 = vshll.u32 %v207, 16
      %v330 = vrot.slane %v328, 5
      %v331 = vsel %vm259, %v326, %v330
      %v333 = vshrl.u32 %v208, 16
      %v335 = vrot.slane %v333, 4
      %v336 = vshll.u32 %v208, 16
      %v338 = vrot.slane %v336, 5
      %v339 = vor.u32 %v335, %v338
      %v340 = vrot.slane %v339, 4
      %v342 = vshll.u32 %v209, 16
      %v344 = vrot.slane %v342, 5
      %v345 = vsel %vm259, %v340, %v344
      %v346 = vshrl.u32 %v209, 16
      %v348 = vrot.slane %v346, 4
      %v349 = vor.u32 %v348, %v344
      %v350 = vrot.slane %v349, 4
      %v352 = vshll.u32 %v210, 16
      %v354 = vrot.slane %v352, 5
      %v355 = vsel %vm259, %v350, %v354
      %v357 = vshrl.u32 %v211, 16
      %v359 = vrot.slane %v357, 4
      %v360 = vshll.u32 %v211, 16
      %v362 = vrot.slane %v360, 5
      %v363 = vor.u32 %v359, %v362
      %v364 = vrot.slane %v363, 4
      %v366 = vshll.u32 %v212, 16
      %v368 = vrot.slane %v366, 5
      %v369 = vsel %vm259, %v364, %v368
      %v370 = vshrl.u32 %v212, 16
      %v372 = vrot.slane %v370, 4
      %v373 = vor.u32 %v372, %v368
      %v374 = vrot.slane %v373, 4
      %v376 = vshll.u32 %v213, 16
      %v378 = vrot.slane %v376, 5
      %v379 = vsel %vm259, %v374, %v378
      %v381 = vshrl.u32 %v214, 16
      %v383 = vrot.slane %v381, 4
      %v384 = vshll.u32 %v214, 16
      %v386 = vrot.slane %v384, 5
      %v387 = vor.u32 %v383, %v386
      %v388 = vrot.slane %v387, 4
      %v390 = vshll.u32 %v215, 16
      %v392 = vrot.slane %v390, 5
      %v393 = vsel %vm259, %v388, %v392
      %v394 = vshrl.u32 %v215, 16
      %v396 = vrot.slane %v394, 4
      %v397 = vor.u32 %v396, %v392
      %v398 = vrot.slane %v397, 4
      %v400 = vshll.u32 %v216, 16
      %v402 = vrot.slane %v400, 5
      %v403 = vsel %vm259, %v398, %v402
      %v405 = vshrl.u32 %v217, 16
      %v407 = vrot.slane %v405, 4
      %v408 = vshll.u32 %v217, 16
      %v410 = vrot.slane %v408, 5
      %v411 = vor.u32 %v407, %v410
      %v412 = vrot.slane %v411, 4
      %v414 = vshll.u32 %v218, 16
      %v416 = vrot.slane %v414, 5
      %v417 = vsel %vm259, %v412, %v416
      %v418 = vshrl.u32 %v218, 16
      %v420 = vrot.slane %v418, 4
      %v421 = vor.u32 %v420, %v416
      %v422 = vrot.slane %v421, 4
      %v424 = vshll.u32 %v219, 16
      %v426 = vrot.slane %v424, 5
      %v427 = vsel %vm259, %v422, %v426
      %v429 = vshrl.u32 %v220, 16
      %v431 = vrot.slane %v429, 4
      %v432 = vshll.u32 %v220, 16
      %v434 = vrot.slane %v432, 5
      %v435 = vor.u32 %v431, %v434
      %v436 = vrot.slane %v435, 4
      %v438 = vshll.u32 %v221, 16
      %v440 = vrot.slane %v438, 5
      %v441 = vsel %vm259, %v436, %v440
      %v442 = vshrl.u32 %v221, 16
      %v444 = vrot.slane %v442, 4
      %v445 = vor.u32 %v444, %v440
      %v446 = vrot.slane %v445, 4
      %v448 = vshll.u32 %v222, 16
      %v450 = vrot.slane %v448, 5
      %v451 = vsel %vm259, %v446, %v450
      %v453 = vshrl.u32 %v223, 16
      %v455 = vrot.slane %v453, 4
      %v456 = vshll.u32 %v223, 16
      %v458 = vrot.slane %v456, 5
      %v459 = vor.u32 %v455, %v458
      %v460 = vrot.slane %v459, 4
      %v462 = vshll.u32 %v224, 16
      %v464 = vrot.slane %v462, 5
      %v465 = vsel %vm259, %v460, %v464
      %v466 = vshrl.u32 %v224, 16
      %v468 = vrot.slane %v466, 4
      %v469 = vor.u32 %v468, %v464
      %v470 = vrot.slane %v469, 4
      %v472 = vshll.u32 %v225, 16
      %v474 = vrot.slane %v472, 5
      %v475 = vsel %vm259, %v470, %v474
      %v477 = vshrl.u32 %v226, 16
      %v479 = vrot.slane %v477, 4
      %v480 = vshll.u32 %v226, 16
      %v482 = vrot.slane %v480, 5
      %v483 = vor.u32 %v479, %v482
      %v484 = vrot.slane %v483, 4
      %v486 = vshll.u32 %v227, 16
      %v488 = vrot.slane %v486, 5
      %v489 = vsel %vm259, %v484, %v488
      %v490 = vshrl.u32 %v227, 16
      %v492 = vrot.slane %v490, 4
      %v493 = vor.u32 %v492, %v488
      %v494 = vrot.slane %v493, 4
      %v496 = vshll.u32 %v228, 16
      %v498 = vrot.slane %v496, 5
      %v499 = vsel %vm259, %v494, %v498
      %v501 = vshrl.u32 %v229, 16
      %v503 = vrot.slane %v501, 4
      %v504 = vshll.u32 %v229, 16
      %v506 = vrot.slane %v504, 5
      %v507 = vor.u32 %v503, %v506
      %v508 = vrot.slane %v507, 4
      %v510 = vshll.u32 %v230, 16
      %v512 = vrot.slane %v510, 5
      %v513 = vsel %vm259, %v508, %v512
      %v514 = vshrl.u32 %v230, 16
      %v516 = vrot.slane %v514, 4
      %v517 = vor.u32 %v516, %v512
      %v518 = vrot.slane %v517, 4
      %v520 = vshll.u32 %v231, 16
      %v522 = vrot.slane %v520, 5
      %v523 = vsel %vm259, %v518, %v522
      %v525 = vshrl.u32 %v232, 16
      %v527 = vrot.slane %v525, 4
      %v528 = vshll.u32 %v232, 16
      %v530 = vrot.slane %v528, 5
      %v531 = vor.u32 %v527, %v530
      %v532 = vrot.slane %v531, 4
      %v534 = vshll.u32 %v233, 16
      %v536 = vrot.slane %v534, 5
      %v537 = vsel %vm259, %v532, %v536
      %v538 = vshrl.u32 %v233, 16
      %v540 = vrot.slane %v538, 4
      %v541 = vor.u32 %v540, %v536
      %v542 = vrot.slane %v541, 4
      %v544 = vshll.u32 %v234, 16
      %v546 = vrot.slane %v544, 5
      %v547 = vsel %vm259, %v542, %v546
      %v549 = vshrl.u32 %v235, 16
      %v551 = vrot.slane %v549, 4
      %v552 = vshll.u32 %v235, 16
      %v554 = vrot.slane %v552, 5
      %v555 = vor.u32 %v551, %v554
      %v556 = vrot.slane %v555, 4
      %v558 = vshll.u32 %v236, 16
      %v560 = vrot.slane %v558, 5
      %v561 = vsel %vm259, %v556, %v560
      %v562 = vshrl.u32 %v236, 16
      %v564 = vrot.slane %v562, 4
      %v565 = vor.u32 %v564, %v560
      %v566 = vrot.slane %v565, 4
      %v568 = vshll.u32 %v237, 16
      %v570 = vrot.slane %v568, 5
      %v571 = vsel %vm259, %v566, %v570
      %v573 = vshrl.u32 %v238, 16
      %v575 = vrot.slane %v573, 4
      %v576 = vshll.u32 %v238, 16
      %v578 = vrot.slane %v576, 5
      %v579 = vor.u32 %v575, %v578
      %v580 = vrot.slane %v579, 4
      %v582 = vshll.u32 %v239, 16
      %v584 = vrot.slane %v582, 5
      %v585 = vsel %vm259, %v580, %v584
      %v586 = vshrl.u32 %v239, 16
      %v588 = vrot.slane %v586, 4
      %v589 = vor.u32 %v588, %v584
      %v590 = vrot.slane %v589, 4
      %v592 = vshll.u32 %v240, 16
      %v594 = vrot.slane %v592, 5
      %v595 = vsel %vm259, %v590, %v594
      %v597 = vshrl.u32 %v241, 16
      %v599 = vrot.slane %v597, 4
      %v600 = vshll.u32 %v241, 16
      %v602 = vrot.slane %v600, 5
      %v603 = vor.u32 %v599, %v602
      %v604 = vrot.slane %v603, 4
      %v606 = vshll.u32 %v242, 16
      %v608 = vrot.slane %v606, 5
      %v609 = vsel %vm259, %v604, %v608
      %v610 = vshrl.u32 %v242, 16
      %v612 = vrot.slane %v610, 4
      %v613 = vor.u32 %v612, %v608
      %v614 = vrot.slane %v613, 4
      %v616 = vshll.u32 %v243, 16
      %v618 = vrot.slane %v616, 5
      %v619 = vsel %vm259, %v614, %v618
      %v621 = vshrl.u32 %v244, 16
      %v623 = vrot.slane %v621, 4
      %v624 = vshll.u32 %v244, 16
      %v626 = vrot.slane %v624, 5
      %v627 = vor.u32 %v623, %v626
      %v628 = vrot.slane %v627, 4
      %v630 = vshll.u32 %v245, 16
      %v632 = vrot.slane %v630, 5
      %v633 = vsel %vm259, %v628, %v632
      %v634 = vshrl.u32 %v245, 16
      %v636 = vrot.slane %v634, 4
      %v637 = vor.u32 %v636, %v632
      %v638 = vrot.slane %v637, 4
      %v640 = vshll.u32 %v246, 16
      %v642 = vrot.slane %v640, 5
      %v643 = vsel %vm259, %v638, %v642
      %s644 = scalar_lea.vmem %s1, 16
      %v645 = vld [vmem:[%s644] sm:$0xf]
      %v646 = vld [vmem:[%s644 + $0x4] sm:$0xf]
      %v647 = vld [vmem:[%s644 + $0x8] sm:$0xf]
      %v648 = vld [vmem:[%s644 + $0xc] sm:$0xf]
      %v649 = vunpack.c.l.b16 %v273
      %v650 = vunpack.c.l.b16 %v283
      %v651 = vunpack.c.l.b16 %v297
      %v652 = vunpack.c.l.b16 %v307
      %v653 = vunpack.c.l.b16 %v321
      %v654 = vunpack.c.l.b16 %v331
      %v655 = vunpack.c.l.b16 %v345
      %v656 = vunpack.c.l.b16 %v355
      %v657 = vunpack.c.l.b16 %v369
      %v658 = vunpack.c.l.b16 %v379
      %v659 = vunpack.c.l.b16 %v393
      %v660 = vunpack.c.l.b16 %v403
      %v661 = vunpack.c.l.b16 %v417
      %v662 = vunpack.c.l.b16 %v427
      %v663 = vunpack.c.l.b16 %v441
      %v664 = vunpack.c.l.b16 %v451
      %v665 = vunpack.c.l.b16 %v465
      %v666 = vunpack.c.l.b16 %v475
      %v667 = vunpack.c.l.b16 %v489
      %v668 = vunpack.c.l.b16 %v499
      %v669 = vunpack.c.l.b16 %v513
      %v670 = vunpack.c.l.b16 %v523
      %v671 = vunpack.c.l.b16 %v537
      %v672 = vunpack.c.l.b16 %v547
      %v673 = vunpack.c.l.b16 %v561
      %v674 = vunpack.c.l.b16 %v571
      %v675 = vunpack.c.l.b16 %v585
      %v676 = vunpack.c.l.b16 %v595
      %v677 = vunpack.c.l.b16 %v609
      %v678 = vunpack.c.l.b16 %v619
      %v679 = vunpack.c.l.b16 %v633
      %v680 = vunpack.c.l.b16 %v643
      %v681 = vpack.c.b16 %v650, %v649
      %v682 = vpack.c.b16 %v652, %v651
      %v683 = vpack.c.b16 %v654, %v653
      %v684 = vpack.c.b16 %v656, %v655
      %v685 = vpack.c.b16 %v658, %v657
      %v686 = vpack.c.b16 %v660, %v659
      %v687 = vpack.c.b16 %v662, %v661
      %v688 = vpack.c.b16 %v664, %v663
      %v689 = vpack.c.b16 %v666, %v665
      %v690 = vpack.c.b16 %v668, %v667
      %v691 = vpack.c.b16 %v670, %v669
      %v692 = vpack.c.b16 %v672, %v671
      %v693 = vpack.c.b16 %v674, %v673
      %v694 = vpack.c.b16 %v676, %v675
      %v695 = vpack.c.b16 %v678, %v677
      %v696 = vpack.c.b16 %v680, %v679
      %v701 = vunpack.c.l.b16 %v645
      %v702 = vunpack.c.l.b16 %v646
      %v703 = vunpack.c.l.b16 %v647
      %v704 = vunpack.c.l.b16 %v648
      %v705 = vpack.c.b16 %v702, %v701
      %v706 = vpack.c.b16 %v704, %v703
      %vm709 = vcmask 261120
      %v711 = vsel %vm709, %v681, 0
      %v714 = vsel %vm709, %v682, 0
      %v717 = vsel %vm709, %v683, 0
      %v720 = vsel %vm709, %v684, 0
      %v723 = vsel %vm709, %v685, 0
      %v726 = vsel %vm709, %v686, 0
      %v729 = vsel %vm709, %v687, 0
      %v732 = vsel %vm709, %v688, 0
      %v735 = vsel %vm709, %v689, 0
      %v738 = vsel %vm709, %v690, 0
      %v741 = vsel %vm709, %v691, 0
      %v744 = vsel %vm709, %v692, 0
      %v747 = vsel %vm709, %v693, 0
      %v750 = vsel %vm709, %v694, 0
      %v753 = vsel %vm709, %v695, 0
      %v756 = vsel %vm709, %v696, 0
      %758 = vmatprep.subr.bf16.mxu0 0
      %759 = vmatpush1.bf16.msra.mxu0 %v705
      %760 = vmatprep.subr.bf16.mxu0 0
      %761 = vmatpush1.bf16.msra.mxu0 %v706
      %762 = vmatprep.subr.bf16.mxu0 0
      %763 = vmatpush1.bf16.msra.mxu0 0
      %764 = vmatprep.subr.bf16.mxu0 0
      %765 = vmatpush1.bf16.msra.mxu0 0
      %766 = vmatprep.subr.bf16.mxu0 0
      %767 = vmatpush1.bf16.msra.mxu0 0
      %768 = vmatprep.subr.bf16.mxu0 0
      %769 = vmatpush1.bf16.msra.mxu0 0
      %770 = vmatprep.subr.bf16.mxu0 0
      %771 = vmatpush1.bf16.msra.mxu0 0
      %772 = vmatprep.subr.bf16.mxu0 0
      %773 = vmatpush1.bf16.msra.mxu0 0
      %774 = vmatprep.subr.bf16.mxu0 0
      %775 = vmatpush1.bf16.msra.mxu0 0
      %776 = vmatprep.subr.bf16.mxu0 0
      %777 = vmatpush1.bf16.msra.mxu0 0
      %778 = vmatprep.subr.bf16.mxu0 0
      %779 = vmatpush1.bf16.msra.mxu0 0
      %780 = vmatprep.subr.bf16.mxu0 0
      %781 = vmatpush1.bf16.msra.mxu0 0
      %782 = vmatprep.subr.bf16.mxu0 0
      %783 = vmatpush1.bf16.msra.mxu0 0
      %784 = vmatprep.subr.bf16.mxu0 0
      %785 = vmatpush1.bf16.msra.mxu0 0
      %786 = vmatprep.subr.bf16.mxu0 0
      %787 = vmatpush1.bf16.msra.mxu0 0
      %788 = vmatprep.subr.bf16.mxu0 0
      %789 = vmatpush1.bf16.msra.mxu0 0
      %790 = vmatprep.mubr.bf16.mxu0 0
      %791 = vmatmul.mubr.bf16.gmra.mrb[0].mxu0 %v711
      %v792 = vpop.f32.mrb[0].mxu0
      %v793 = vadd.f32 0.0, %v792
      %v794 = vpop.f32.mrb[0].mxu0
      %v795 = vpop.f32.mrb[0].mxu0
      %v796 = vadd.f32 0.0, %v795
      %v797 = vpop.f32.mrb[0].mxu0
      %798 = vmatprep.mubr.bf16.mxu0 0
      %799 = vmatmul.mubr.bf16.gmra.mrb[0].mxu0 %v714
      %v800 = vpop.f32.mrb[0].mxu0
      %v801 = vadd.f32 0.0, %v800
      %v802 = vpop.f32.mrb[0].mxu0
      %v803 = vpop.f32.mrb[0].mxu0
      %v804 = vadd.f32 0.0, %v803
      %v805 = vpop.f32.mrb[0].mxu0
      %806 = vmatprep.mubr.bf16.mxu0 0
      %807 = vmatmul.mubr.bf16.gmra.mrb[0].mxu0 %v717
      %v808 = vpop.f32.mrb[0].mxu0
      %v809 = vadd.f32 0.0, %v808
      %v810 = vpop.f32.mrb[0].mxu0
      %v811 = vpop.f32.mrb[0].mxu0
      %v812 = vadd.f32 0.0, %v811
      %v813 = vpop.f32.mrb[0].mxu0
      %814 = vmatprep.mubr.bf16.mxu0 0
      %815 = vmatmul.mubr.bf16.gmra.mrb[0].mxu0 %v720
      %v816 = vpop.f32.mrb[0].mxu0
      %v817 = vadd.f32 0.0, %v816
      %v818 = vpop.f32.mrb[0].mxu0
      %v819 = vpop.f32.mrb[0].mxu0
      %v820 = vadd.f32 0.0, %v819
      %v821 = vpop.f32.mrb[0].mxu0
      %822 = vmatprep.mubr.bf16.mxu0 0
      %823 = vmatmul.mubr.bf16.gmra.mrb[0].mxu0 %v723
      %v824 = vpop.f32.mrb[0].mxu0
      %v825 = vadd.f32 0.0, %v824
      %v826 = vpop.f32.mrb[0].mxu0
      %v827 = vpop.f32.mrb[0].mxu0
      %v828 = vadd.f32 0.0, %v827
      %v829 = vpop.f32.mrb[0].mxu0
      %830 = vmatprep.mubr.bf16.mxu0 0
      %831 = vmatmul.mubr.bf16.gmra.mrb[0].mxu0 %v726
      %v832 = vpop.f32.mrb[0].mxu0
      %v833 = vadd.f32 0.0, %v832
      %v834 = vpop.f32.mrb[0].mxu0
      %v835 = vpop.f32.mrb[0].mxu0
      %v836 = vadd.f32 0.0, %v835
      %v837 = vpop.f32.mrb[0].mxu0
      %838 = vmatprep.mubr.bf16.mxu0 0
      %839 = vmatmul.mubr.bf16.gmra.mrb[0].mxu0 %v729
      %v840 = vpop.f32.mrb[0].mxu0
      %v841 = vadd.f32 0.0, %v840
      %v842 = vpop.f32.mrb[0].mxu0
      %v843 = vpop.f32.mrb[0].mxu0
      %v844 = vadd.f32 0.0, %v843
      %v845 = vpop.f32.mrb[0].mxu0
      %846 = vmatprep.mubr.bf16.mxu0 0
      %847 = vmatmul.mubr.bf16.gmra.mrb[0].mxu0 %v732
      %v848 = vpop.f32.mrb[0].mxu0
      %v849 = vadd.f32 0.0, %v848
      %v850 = vpop.f32.mrb[0].mxu0
      %v851 = vpop.f32.mrb[0].mxu0
      %v852 = vadd.f32 0.0, %v851
      %v853 = vpop.f32.mrb[0].mxu0
      %854 = vmatprep.mubr.bf16.mxu0 0
      %855 = vmatmul.mubr.bf16.gmra.mrb[0].mxu0 %v735
      %v856 = vpop.f32.mrb[0].mxu0
      %v857 = vadd.f32 0.0, %v856
      %v858 = vpop.f32.mrb[0].mxu0
      %v859 = vpop.f32.mrb[0].mxu0
      %v860 = vadd.f32 0.0, %v859
      %v861 = vpop.f32.mrb[0].mxu0
      %862 = vmatprep.mubr.bf16.mxu0 0
      %863 = vmatmul.mubr.bf16.gmra.mrb[0].mxu0 %v738
      %v864 = vpop.f32.mrb[0].mxu0
      %v865 = vadd.f32 0.0, %v864
      %v866 = vpop.f32.mrb[0].mxu0
      %v867 = vpop.f32.mrb[0].mxu0
      %v868 = vadd.f32 0.0, %v867
      %v869 = vpop.f32.mrb[0].mxu0
      %870 = vmatprep.mubr.bf16.mxu0 0
      %871 = vmatmul.mubr.bf16.gmra.mrb[0].mxu0 %v741
      %v872 = vpop.f32.mrb[0].mxu0
      %v873 = vadd.f32 0.0, %v872
      %v874 = vpop.f32.mrb[0].mxu0
      %v875 = vpop.f32.mrb[0].mxu0
      %v876 = vadd.f32 0.0, %v875
      %v877 = vpop.f32.mrb[0].mxu0
      %878 = vmatprep.mubr.bf16.mxu0 0
      %879 = vmatmul.mubr.bf16.gmra.mrb[0].mxu0 %v744
      %v880 = vpop.f32.mrb[0].mxu0
      %v881 = vadd.f32 0.0, %v880
      %v882 = vpop.f32.mrb[0].mxu0
      %v883 = vpop.f32.mrb[0].mxu0
      %v884 = vadd.f32 0.0, %v883
      %v885 = vpop.f32.mrb[0].mxu0
      %886 = vmatprep.mubr.bf16.mxu0 0
      %887 = vmatmul.mubr.bf16.gmra.mrb[0].mxu0 %v747
      %v888 = vpop.f32.mrb[0].mxu0
      %v889 = vadd.f32 0.0, %v888
      %v890 = vpop.f32.mrb[0].mxu0
      %v891 = vpop.f32.mrb[0].mxu0
      %v892 = vadd.f32 0.0, %v891
      %v893 = vpop.f32.mrb[0].mxu0
      %894 = vmatprep.mubr.bf16.mxu0 0
      %895 = vmatmul.mubr.bf16.gmra.mrb[0].mxu0 %v750
      %v896 = vpop.f32.mrb[0].mxu0
      %v897 = vadd.f32 0.0, %v896
      %v898 = vpop.f32.mrb[0].mxu0
      %v899 = vpop.f32.mrb[0].mxu0
      %v900 = vadd.f32 0.0, %v899
      %v901 = vpop.f32.mrb[0].mxu0
      %902 = vmatprep.mubr.bf16.mxu0 0
      %903 = vmatmul.mubr.bf16.gmra.mrb[0].mxu0 %v753
      %v904 = vpop.f32.mrb[0].mxu0
      %v905 = vadd.f32 0.0, %v904
      %v906 = vpop.f32.mrb[0].mxu0
      %v907 = vpop.f32.mrb[0].mxu0
      %v908 = vadd.f32 0.0, %v907
      %v909 = vpop.f32.mrb[0].mxu0
      %910 = vmatprep.mubr.bf16.mxu0 0
      %911 = vmatmul.mubr.bf16.gmra.mrb[0].mxu0 %v756
      %v912 = vpop.f32.mrb[0].mxu0
      %v913 = vadd.f32 0.0, %v912
      %v914 = vpop.f32.mrb[0].mxu0
      %v915 = vpop.f32.mrb[0].mxu0
      %v916 = vadd.f32 0.0, %v915
      %v917 = vpop.f32.mrb[0].mxu0
      %918 = vdwg.mxu0
      %v951 = vunpack.c.l.b16 %v199
      %v952 = vunpack.c.l.b16 %v200
      %v953 = vunpack.c.l.b16 %v202
      %v954 = vunpack.c.l.b16 %v203
      %v955 = vunpack.c.l.b16 %v205
      %v956 = vunpack.c.l.b16 %v206
      %v957 = vunpack.c.l.b16 %v208
      %v958 = vunpack.c.l.b16 %v209
      %v959 = vunpack.c.l.b16 %v211
      %v960 = vunpack.c.l.b16 %v212
      %v961 = vunpack.c.l.b16 %v214
      %v962 = vunpack.c.l.b16 %v215
      %v963 = vunpack.c.l.b16 %v217
      %v964 = vunpack.c.l.b16 %v218
      %v965 = vunpack.c.l.b16 %v220
      %v966 = vunpack.c.l.b16 %v221
      %v967 = vunpack.c.l.b16 %v223
      %v968 = vunpack.c.l.b16 %v224
      %v969 = vunpack.c.l.b16 %v226
      %v970 = vunpack.c.l.b16 %v227
      %v971 = vunpack.c.l.b16 %v229
      %v972 = vunpack.c.l.b16 %v230
      %v973 = vunpack.c.l.b16 %v232
      %v974 = vunpack.c.l.b16 %v233
      %v975 = vunpack.c.l.b16 %v235
      %v976 = vunpack.c.l.b16 %v236
      %v977 = vunpack.c.l.b16 %v238
      %v978 = vunpack.c.l.b16 %v239
      %v979 = vunpack.c.l.b16 %v241
      %v980 = vunpack.c.l.b16 %v242
      %v981 = vunpack.c.l.b16 %v244
      %v982 = vunpack.c.l.b16 %v245
      %v983 = vpack.c.b16 %v952, %v951
      %v984 = vpack.c.b16 %v954, %v953
      %v985 = vpack.c.b16 %v956, %v955
      %v986 = vpack.c.b16 %v958, %v957
      %v987 = vpack.c.b16 %v960, %v959
      %v988 = vpack.c.b16 %v962, %v961
      %v989 = vpack.c.b16 %v964, %v963
      %v990 = vpack.c.b16 %v966, %v965
      %v991 = vpack.c.b16 %v968, %v967
      %v992 = vpack.c.b16 %v970, %v969
      %v993 = vpack.c.b16 %v972, %v971
      %v994 = vpack.c.b16 %v974, %v973
      %v995 = vpack.c.b16 %v976, %v975
      %v996 = vpack.c.b16 %v978, %v977
      %v997 = vpack.c.b16 %v980, %v979
      %v998 = vpack.c.b16 %v982, %v981
      %v1003 = vunpack.c.l.b16 %v253
      %v1004 = vunpack.c.l.b16 %v254
      %v1005 = vunpack.c.l.b16 %v255
      %v1006 = vunpack.c.l.b16 %v256
      %v1007 = vpack.c.b16 %v1004, %v1003
      %v1008 = vpack.c.b16 %v1006, %v1005
      %v1012 = vsel %vm709, %v983, 0
      %v1015 = vsel %vm709, %v984, 0
      %v1018 = vsel %vm709, %v985, 0
      %v1021 = vsel %vm709, %v986, 0
      %v1024 = vsel %vm709, %v987, 0
      %v1027 = vsel %vm709, %v988, 0
      %v1030 = vsel %vm709, %v989, 0
      %v1033 = vsel %vm709, %v990, 0
      %v1036 = vsel %vm709, %v991, 0
      %v1039 = vsel %vm709, %v992, 0
      %v1042 = vsel %vm709, %v993, 0
      %v1045 = vsel %vm709, %v994, 0
      %v1048 = vsel %vm709, %v995, 0
      %v1051 = vsel %vm709, %v996, 0
      %v1054 = vsel %vm709, %v997, 0
      %v1057 = vsel %vm709, %v998, 0
      %1059 = vmatprep.subr.bf16.mxu0 0
      %1060 = vmatpush1.bf16.msra.mxu0 %v1007
      %1061 = vmatprep.subr.bf16.mxu0 0
      %1062 = vmatpush1.bf16.msra.mxu0 %v1008
      %1063 = vmatprep.subr.bf16.mxu0 0
      %1064 = vmatpush1.bf16.msra.mxu0 0
      %1065 = vmatprep.subr.bf16.mxu0 0
      %1066 = vmatpush1.bf16.msra.mxu0 0
      %1067 = vmatprep.subr.bf16.mxu0 0
      %1068 = vmatpush1.bf16.msra.mxu0 0
      %1069 = vmatprep.subr.bf16.mxu0 0
      %1070 = vmatpush1.bf16.msra.mxu0 0
      %1071 = vmatprep.subr.bf16.mxu0 0
      %1072 = vmatpush1.bf16.msra.mxu0 0
      %1073 = vmatprep.subr.bf16.mxu0 0
      %1074 = vmatpush1.bf16.msra.mxu0 0
      %1075 = vmatprep.subr.bf16.mxu0 0
      %1076 = vmatpush1.bf16.msra.mxu0 0
      %1077 = vmatprep.subr.bf16.mxu0 0
      %1078 = vmatpush1.bf16.msra.mxu0 0
      %1079 = vmatprep.subr.bf16.mxu0 0
      %1080 = vmatpush1.bf16.msra.mxu0 0
      %1081 = vmatprep.subr.bf16.mxu0 0
      %1082 = vmatpush1.bf16.msra.mxu0 0
      %1083 = vmatprep.subr.bf16.mxu0 0
      %1084 = vmatpush1.bf16.msra.mxu0 0
      %1085 = vmatprep.subr.bf16.mxu0 0
      %1086 = vmatpush1.bf16.msra.mxu0 0
      %1087 = vmatprep.subr.bf16.mxu0 0
      %1088 = vmatpush1.bf16.msra.mxu0 0
      %1089 = vmatprep.subr.bf16.mxu0 0
      %1090 = vmatpush1.bf16.msra.mxu0 0
      %1091 = vmatprep.mubr.bf16.mxu0 0
      %1092 = vmatmul.mubr.bf16.gmra.mrb[0].mxu0 %v1012
      %v1093 = vpop.f32.mrb[0].mxu0
      %v1094 = vadd.f32 %v793, %v1093
      %v1095 = vpop.f32.mrb[0].mxu0
      %v1096 = vpop.f32.mrb[0].mxu0
      %v1097 = vadd.f32 %v796, %v1096
      %v1098 = vpop.f32.mrb[0].mxu0
      %1099 = vmatprep.mubr.bf16.mxu0 0
      %1100 = vmatmul.mubr.bf16.gmra.mrb[0].mxu0 %v1015
      %v1101 = vpop.f32.mrb[0].mxu0
      %v1102 = vadd.f32 %v801, %v1101
      %v1103 = vpop.f32.mrb[0].mxu0
      %v1104 = vpop.f32.mrb[0].mxu0
      %v1105 = vadd.f32 %v804, %v1104
      %v1106 = vpop.f32.mrb[0].mxu0
      %1107 = vmatprep.mubr.bf16.mxu0 0
      %1108 = vmatmul.mubr.bf16.gmra.mrb[0].mxu0 %v1018
      %v1109 = vpop.f32.mrb[0].mxu0
      %v1110 = vadd.f32 %v809, %v1109
      %v1111 = vpop.f32.mrb[0].mxu0
      %v1112 = vpop.f32.mrb[0].mxu0
      %v1113 = vadd.f32 %v812, %v1112
      %v1114 = vpop.f32.mrb[0].mxu0
      %1115 = vmatprep.mubr.bf16.mxu0 0
      %1116 = vmatmul.mubr.bf16.gmra.mrb[0].mxu0 %v1021
      %v1117 = vpop.f32.mrb[0].mxu0
      %v1118 = vadd.f32 %v817, %v1117
      %v1119 = vpop.f32.mrb[0].mxu0
      %v1120 = vpop.f32.mrb[0].mxu0
      %v1121 = vadd.f32 %v820, %v1120
      %v1122 = vpop.f32.mrb[0].mxu0
      %1123 = vmatprep.mubr.bf16.mxu0 0
      %1124 = vmatmul.mubr.bf16.gmra.mrb[0].mxu0 %v1024
      %v1125 = vpop.f32.mrb[0].mxu0
      %v1126 = vadd.f32 %v825, %v1125
      %v1127 = vpop.f32.mrb[0].mxu0
      %v1128 = vpop.f32.mrb[0].mxu0
      %v1129 = vadd.f32 %v828, %v1128
      %v1130 = vpop.f32.mrb[0].mxu0
      %1131 = vmatprep.mubr.bf16.mxu0 0
      %1132 = vmatmul.mubr.bf16.gmra.mrb[0].mxu0 %v1027
      %v1133 = vpop.f32.mrb[0].mxu0
      %v1134 = vadd.f32 %v833, %v1133
      %v1135 = vpop.f32.mrb[0].mxu0
      %v1136 = vpop.f32.mrb[0].mxu0
      %v1137 = vadd.f32 %v836, %v1136
      %v1138 = vpop.f32.mrb[0].mxu0
      %1139 = vmatprep.mubr.bf16.mxu0 0
      %1140 = vmatmul.mubr.bf16.gmra.mrb[0].mxu0 %v1030
      %v1141 = vpop.f32.mrb[0].mxu0
      %v1142 = vadd.f32 %v841, %v1141
      %v1143 = vpop.f32.mrb[0].mxu0
      %v1144 = vpop.f32.mrb[0].mxu0
      %v1145 = vadd.f32 %v844, %v1144
      %v1146 = vpop.f32.mrb[0].mxu0
      %1147 = vmatprep.mubr.bf16.mxu0 0
      %1148 = vmatmul.mubr.bf16.gmra.mrb[0].mxu0 %v1033
      %v1149 = vpop.f32.mrb[0].mxu0
      %v1150 = vadd.f32 %v849, %v1149
      %v1151 = vpop.f32.mrb[0].mxu0
      %v1152 = vpop.f32.mrb[0].mxu0
      %v1153 = vadd.f32 %v852, %v1152
      %v1154 = vpop.f32.mrb[0].mxu0
      %1155 = vmatprep.mubr.bf16.mxu0 0
      %1156 = vmatmul.mubr.bf16.gmra.mrb[0].mxu0 %v1036
      %v1157 = vpop.f32.mrb[0].mxu0
      %v1158 = vadd.f32 %v857, %v1157
      %v1159 = vpop.f32.mrb[0].mxu0
      %v1160 = vpop.f32.mrb[0].mxu0
      %v1161 = vadd.f32 %v860, %v1160
      %v1162 = vpop.f32.mrb[0].mxu0
      %1163 = vmatprep.mubr.bf16.mxu0 0
      %1164 = vmatmul.mubr.bf16.gmra.mrb[0].mxu0 %v1039
      %v1165 = vpop.f32.mrb[0].mxu0
      %v1166 = vadd.f32 %v865, %v1165
      %v1167 = vpop.f32.mrb[0].mxu0
      %v1168 = vpop.f32.mrb[0].mxu0
      %v1169 = vadd.f32 %v868, %v1168
      %v1170 = vpop.f32.mrb[0].mxu0
      %1171 = vmatprep.mubr.bf16.mxu0 0
      %1172 = vmatmul.mubr.bf16.gmra.mrb[0].mxu0 %v1042
      %v1173 = vpop.f32.mrb[0].mxu0
      %v1174 = vadd.f32 %v873, %v1173
      %v1175 = vpop.f32.mrb[0].mxu0
      %v1176 = vpop.f32.mrb[0].mxu0
      %v1177 = vadd.f32 %v876, %v1176
      %v1178 = vpop.f32.mrb[0].mxu0
      %1179 = vmatprep.mubr.bf16.mxu0 0
      %1180 = vmatmul.mubr.bf16.gmra.mrb[0].mxu0 %v1045
      %v1181 = vpop.f32.mrb[0].mxu0
      %v1182 = vadd.f32 %v881, %v1181
      %v1183 = vpop.f32.mrb[0].mxu0
      %v1184 = vpop.f32.mrb[0].mxu0
      %v1185 = vadd.f32 %v884, %v1184
      %v1186 = vpop.f32.mrb[0].mxu0
      %1187 = vmatprep.mubr.bf16.mxu0 0
      %1188 = vmatmul.mubr.bf16.gmra.mrb[0].mxu0 %v1048
      %v1189 = vpop.f32.mrb[0].mxu0
      %v1190 = vadd.f32 %v889, %v1189
      %v1191 = vpop.f32.mrb[0].mxu0
      %v1192 = vpop.f32.mrb[0].mxu0
      %v1193 = vadd.f32 %v892, %v1192
      %v1194 = vpop.f32.mrb[0].mxu0
      %1195 = vmatprep.mubr.bf16.mxu0 0
      %1196 = vmatmul.mubr.bf16.gmra.mrb[0].mxu0 %v1051
      %v1197 = vpop.f32.mrb[0].mxu0
      %v1198 = vadd.f32 %v897, %v1197
      %v1199 = vpop.f32.mrb[0].mxu0
      %v1200 = vpop.f32.mrb[0].mxu0
      %v1201 = vadd.f32 %v900, %v1200
      %v1202 = vpop.f32.mrb[0].mxu0
      %1203 = vmatprep.mubr.bf16.mxu0 0
      %1204 = vmatmul.mubr.bf16.gmra.mrb[0].mxu0 %v1054
      %v1205 = vpop.f32.mrb[0].mxu0
      %v1206 = vadd.f32 %v905, %v1205
      %v1207 = vpop.f32.mrb[0].mxu0
      %v1208 = vpop.f32.mrb[0].mxu0
      %v1209 = vadd.f32 %v908, %v1208
      %v1210 = vpop.f32.mrb[0].mxu0
      %1211 = vmatprep.mubr.bf16.mxu0 0
      %1212 = vmatmul.mubr.bf16.gmra.mrb[0].mxu0 %v1057
      %v1213 = vpop.f32.mrb[0].mxu0
      %v1214 = vadd.f32 %v913, %v1213
      %v1215 = vpop.f32.mrb[0].mxu0
      %v1216 = vpop.f32.mrb[0].mxu0
      %v1217 = vadd.f32 %v916, %v1216
      %v1218 = vpop.f32.mrb[0].mxu0
      %1219 = vdwg.mxu0
      %vm1236 = vcmask 1042432
      %vm1237 = vcmask 1046532
      %vm1238 = vmor %vm1236, %vm1237
      %v1239 = vrot.slane %v199, 5
      %v1240 = vrot.slane %v1239, 4
      %v1241 = vrot.slane %v200, 5
      %v1242 = vsel %vm1238, %v1240, %v1241
      %v1243 = vrot.slane %v1241, 4
      %v1244 = vrot.slane %v201, 5
      %v1245 = vsel %vm1238, %v1243, %v1244
      %v1246 = vrot.slane %v202, 5
      %v1247 = vrot.slane %v1246, 4
      %v1248 = vrot.slane %v203, 5
      %v1249 = vsel %vm1238, %v1247, %v1248
      %v1250 = vrot.slane %v1248, 4
      %v1251 = vrot.slane %v204, 5
      %v1252 = vsel %vm1238, %v1250, %v1251
      %v1253 = vrot.slane %v205, 5
      %v1254 = vrot.slane %v1253, 4
      %v1255 = vrot.slane %v206, 5
      %v1256 = vsel %vm1238, %v1254, %v1255
      %v1257 = vrot.slane %v1255, 4
      %v1258 = vrot.slane %v207, 5
      %v1259 = vsel %vm1238, %v1257, %v1258
      %v1260 = vrot.slane %v208, 5
      %v1261 = vrot.slane %v1260, 4
      %v1262 = vrot.slane %v209, 5
      %v1263 = vsel %vm1238, %v1261, %v1262
      %v1264 = vrot.slane %v1262, 4
      %v1265 = vrot.slane %v210, 5
      %v1266 = vsel %vm1238, %v1264, %v1265
      %v1267 = vrot.slane %v211, 5
      %v1268 = vrot.slane %v1267, 4
      %v1269 = vrot.slane %v212, 5
      %v1270 = vsel %vm1238, %v1268, %v1269
      %v1271 = vrot.slane %v1269, 4
      %v1272 = vrot.slane %v213, 5
      %v1273 = vsel %vm1238, %v1271, %v1272
      %v1274 = vrot.slane %v214, 5
      %v1275 = vrot.slane %v1274, 4
      %v1276 = vrot.slane %v215, 5
      %v1277 = vsel %vm1238, %v1275, %v1276
      %v1278 = vrot.slane %v1276, 4
      %v1279 = vrot.slane %v216, 5
      %v1280 = vsel %vm1238, %v1278, %v1279
      %v1281 = vrot.slane %v217, 5
      %v1282 = vrot.slane %v1281, 4
      %v1283 = vrot.slane %v218, 5
      %v1284 = vsel %vm1238, %v1282, %v1283
      %v1285 = vrot.slane %v1283, 4
      %v1286 = vrot.slane %v219, 5
      %v1287 = vsel %vm1238, %v1285, %v1286
      %v1288 = vrot.slane %v220, 5
      %v1289 = vrot.slane %v1288, 4
      %v1290 = vrot.slane %v221, 5
      %v1291 = vsel %vm1238, %v1289, %v1290
      %v1292 = vrot.slane %v1290, 4
      %v1293 = vrot.slane %v222, 5
      %v1294 = vsel %vm1238, %v1292, %v1293
      %v1295 = vrot.slane %v223, 5
      %v1296 = vrot.slane %v1295, 4
      %v1297 = vrot.slane %v224, 5
      %v1298 = vsel %vm1238, %v1296, %v1297
      %v1299 = vrot.slane %v1297, 4
      %v1300 = vrot.slane %v225, 5
      %v1301 = vsel %vm1238, %v1299, %v1300
      %v1302 = vrot.slane %v226, 5
      %v1303 = vrot.slane %v1302, 4
      %v1304 = vrot.slane %v227, 5
      %v1305 = vsel %vm1238, %v1303, %v1304
      %v1306 = vrot.slane %v1304, 4
      %v1307 = vrot.slane %v228, 5
      %v1308 = vsel %vm1238, %v1306, %v1307
      %v1309 = vrot.slane %v229, 5
      %v1310 = vrot.slane %v1309, 4
      %v1311 = vrot.slane %v230, 5
      %v1312 = vsel %vm1238, %v1310, %v1311
      %v1313 = vrot.slane %v1311, 4
      %v1314 = vrot.slane %v231, 5
      %v1315 = vsel %vm1238, %v1313, %v1314
      %v1316 = vrot.slane %v232, 5
      %v1317 = vrot.slane %v1316, 4
      %v1318 = vrot.slane %v233, 5
      %v1319 = vsel %vm1238, %v1317, %v1318
      %v1320 = vrot.slane %v1318, 4
      %v1321 = vrot.slane %v234, 5
      %v1322 = vsel %vm1238, %v1320, %v1321
      %v1323 = vrot.slane %v235, 5
      %v1324 = vrot.slane %v1323, 4
      %v1325 = vrot.slane %v236, 5
      %v1326 = vsel %vm1238, %v1324, %v1325
      %v1327 = vrot.slane %v1325, 4
      %v1328 = vrot.slane %v237, 5
      %v1329 = vsel %vm1238, %v1327, %v1328
      %v1330 = vrot.slane %v238, 5
      %v1331 = vrot.slane %v1330, 4
      %v1332 = vrot.slane %v239, 5
      %v1333 = vsel %vm1238, %v1331, %v1332
      %v1334 = vrot.slane %v1332, 4
      %v1335 = vrot.slane %v240, 5
      %v1336 = vsel %vm1238, %v1334, %v1335
      %v1337 = vrot.slane %v241, 5
      %v1338 = vrot.slane %v1337, 4
      %v1339 = vrot.slane %v242, 5
      %v1340 = vsel %vm1238, %v1338, %v1339
      %v1341 = vrot.slane %v1339, 4
      %v1342 = vrot.slane %v243, 5
      %v1343 = vsel %vm1238, %v1341, %v1342
      %v1344 = vrot.slane %v244, 5
      %v1345 = vrot.slane %v1344, 4
      %v1346 = vrot.slane %v245, 5
      %v1347 = vsel %vm1238, %v1345, %v1346
      %v1348 = vrot.slane %v1346, 4
      %v1349 = vrot.slane %v246, 5
      %v1350 = vsel %vm1238, %v1348, %v1349
      %s1351 = scalar_lea.vmem %s1, 32
      %v1352 = vld [vmem:[%s1351] sm:$0xf]
      %v1353 = vld [vmem:[%s1351 + $0x4] sm:$0xf]
      %v1354 = vld [vmem:[%s1351 + $0x8] sm:$0xf]
      %v1355 = vld [vmem:[%s1351 + $0xc] sm:$0xf]
      %v1356 = vunpack.c.l.b16 %v1242
      %v1357 = vunpack.c.l.b16 %v1245
      %v1358 = vunpack.c.l.b16 %v1249
      %v1359 = vunpack.c.l.b16 %v1252
      %v1360 = vunpack.c.l.b16 %v1256
      %v1361 = vunpack.c.l.b16 %v1259
      %v1362 = vunpack.c.l.b16 %v1263
      %v1363 = vunpack.c.l.b16 %v1266
      %v1364 = vunpack.c.l.b16 %v1270
      %v1365 = vunpack.c.l.b16 %v1273
      %v1366 = vunpack.c.l.b16 %v1277
      %v1367 = vunpack.c.l.b16 %v1280
      %v1368 = vunpack.c.l.b16 %v1284
      %v1369 = vunpack.c.l.b16 %v1287
      %v1370 = vunpack.c.l.b16 %v1291
      %v1371 = vunpack.c.l.b16 %v1294
      %v1372 = vunpack.c.l.b16 %v1298
      %v1373 = vunpack.c.l.b16 %v1301
      %v1374 = vunpack.c.l.b16 %v1305
      %v1375 = vunpack.c.l.b16 %v1308
      %v1376 = vunpack.c.l.b16 %v1312
      %v1377 = vunpack.c.l.b16 %v1315
      %v1378 = vunpack.c.l.b16 %v1319
      %v1379 = vunpack.c.l.b16 %v1322
      %v1380 = vunpack.c.l.b16 %v1326
      %v1381 = vunpack.c.l.b16 %v1329
      %v1382 = vunpack.c.l.b16 %v1333
      %v1383 = vunpack.c.l.b16 %v1336
      %v1384 = vunpack.c.l.b16 %v1340
      %v1385 = vunpack.c.l.b16 %v1343
      %v1386 = vunpack.c.l.b16 %v1347
      %v1387 = vunpack.c.l.b16 %v1350
      %v1388 = vpack.c.b16 %v1357, %v1356
      %v1389 = vpack.c.b16 %v1359, %v1358
      %v1390 = vpack.c.b16 %v1361, %v1360
      %v1391 = vpack.c.b16 %v1363, %v1362
      %v1392 = vpack.c.b16 %v1365, %v1364
      %v1393 = vpack.c.b16 %v1367, %v1366
      %v1394 = vpack.c.b16 %v1369, %v1368
      %v1395 = vpack.c.b16 %v1371, %v1370
      %v1396 = vpack.c.b16 %v1373, %v1372
      %v1397 = vpack.c.b16 %v1375, %v1374
      %v1398 = vpack.c.b16 %v1377, %v1376
      %v1399 = vpack.c.b16 %v1379, %v1378
      %v1400 = vpack.c.b16 %v1381, %v1380
      %v1401 = vpack.c.b16 %v1383, %v1382
      %v1402 = vpack.c.b16 %v1385, %v1384
      %v1403 = vpack.c.b16 %v1387, %v1386
      %v1408 = vunpack.c.l.b16 %v1352
      %v1409 = vunpack.c.l.b16 %v1353
      %v1410 = vunpack.c.l.b16 %v1354
      %v1411 = vunpack.c.l.b16 %v1355
      %v1412 = vpack.c.b16 %v1409, %v1408
      %v1413 = vpack.c.b16 %v1411, %v1410
      %v1417 = vsel %vm709, %v1388, 0
      %v1420 = vsel %vm709, %v1389, 0
      %v1423 = vsel %vm709, %v1390, 0
      %v1426 = vsel %vm709, %v1391, 0
      %v1429 = vsel %vm709, %v1392, 0
      %v1432 = vsel %vm709, %v1393, 0
      %v1435 = vsel %vm709, %v1394, 0
      %v1438 = vsel %vm709, %v1395, 0
      %v1441 = vsel %vm709, %v1396, 0
      %v1444 = vsel %vm709, %v1397, 0
      %v1447 = vsel %vm709, %v1398, 0
      %v1450 = vsel %vm709, %v1399, 0
      %v1453 = vsel %vm709, %v1400, 0
      %v1456 = vsel %vm709, %v1401, 0
      %v1459 = vsel %vm709, %v1402, 0
      %v1462 = vsel %vm709, %v1403, 0
      %1464 = vmatprep.subr.bf16.mxu0 0
      %1465 = vmatpush1.bf16.msra.mxu0 %v1412
      %1466 = vmatprep.subr.bf16.mxu0 0
      %1467 = vmatpush1.bf16.msra.mxu0 %v1413
      %1468 = vmatprep.subr.bf16.mxu0 0
      %1469 = vmatpush1.bf16.msra.mxu0 0
      %1470 = vmatprep.subr.bf16.mxu0 0
      %1471 = vmatpush1.bf16.msra.mxu0 0
      %1472 = vmatprep.subr.bf16.mxu0 0
      %1473 = vmatpush1.bf16.msra.mxu0 0
      %1474 = vmatprep.subr.bf16.mxu0 0
      %1475 = vmatpush1.bf16.msra.mxu0 0
      %1476 = vmatprep.subr.bf16.mxu0 0
      %1477 = vmatpush1.bf16.msra.mxu0 0
      %1478 = vmatprep.subr.bf16.mxu0 0
      %1479 = vmatpush1.bf16.msra.mxu0 0
      %1480 = vmatprep.subr.bf16.mxu0 0
      %1481 = vmatpush1.bf16.msra.mxu0 0
      %1482 = vmatprep.subr.bf16.mxu0 0
      %1483 = vmatpush1.bf16.msra.mxu0 0
      %1484 = vmatprep.subr.bf16.mxu0 0
      %1485 = vmatpush1.bf16.msra.mxu0 0
      %1486 = vmatprep.subr.bf16.mxu0 0
      %1487 = vmatpush1.bf16.msra.mxu0 0
      %1488 = vmatprep.subr.bf16.mxu0 0
      %1489 = vmatpush1.bf16.msra.mxu0 0
      %1490 = vmatprep.subr.bf16.mxu0 0
      %1491 = vmatpush1.bf16.msra.mxu0 0
      %1492 = vmatprep.subr.bf16.mxu0 0
      %1493 = vmatpush1.bf16.msra.mxu0 0
      %1494 = vmatprep.subr.bf16.mxu0 0
      %1495 = vmatpush1.bf16.msra.mxu0 0
      %1496 = vmatprep.mubr.bf16.mxu0 0
      %1497 = vmatmul.mubr.bf16.gmra.mrb[0].mxu0 %v1417
      %v1498 = vpop.f32.mrb[0].mxu0
      %v1499 = vadd.f32 0.0, %v1498
      %v1500 = vpop.f32.mrb[0].mxu0
      %v1501 = vpop.f32.mrb[0].mxu0
      %v1502 = vadd.f32 0.0, %v1501
      %v1503 = vpop.f32.mrb[0].mxu0
      %1504 = vmatprep.mubr.bf16.mxu0 0
      %1505 = vmatmul.mubr.bf16.gmra.mrb[0].mxu0 %v1420
      %v1506 = vpop.f32.mrb[0].mxu0
      %v1507 = vadd.f32 0.0, %v1506
      %v1508 = vpop.f32.mrb[0].mxu0
      %v1509 = vpop.f32.mrb[0].mxu0
      %v1510 = vadd.f32 0.0, %v1509
      %v1511 = vpop.f32.mrb[0].mxu0
      %1512 = vmatprep.mubr.bf16.mxu0 0
      %1513 = vmatmul.mubr.bf16.gmra.mrb[0].mxu0 %v1423
      %v1514 = vpop.f32.mrb[0].mxu0
      %v1515 = vadd.f32 0.0, %v1514
      %v1516 = vpop.f32.mrb[0].mxu0
      %v1517 = vpop.f32.mrb[0].mxu0
      %v1518 = vadd.f32 0.0, %v1517
      %v1519 = vpop.f32.mrb[0].mxu0
      %1520 = vmatprep.mubr.bf16.mxu0 0
      %1521 = vmatmul.mubr.bf16.gmra.mrb[0].mxu0 %v1426
      %v1522 = vpop.f32.mrb[0].mxu0
      %v1523 = vadd.f32 0.0, %v1522
      %v1524 = vpop.f32.mrb[0].mxu0
      %v1525 = vpop.f32.mrb[0].mxu0
      %v1526 = vadd.f32 0.0, %v1525
      %v1527 = vpop.f32.mrb[0].mxu0
      %1528 = vmatprep.mubr.bf16.mxu0 0
      %1529 = vmatmul.mubr.bf16.gmra.mrb[0].mxu0 %v1429
      %v1530 = vpop.f32.mrb[0].mxu0
      %v1531 = vadd.f32 0.0, %v1530
      %v1532 = vpop.f32.mrb[0].mxu0
      %v1533 = vpop.f32.mrb[0].mxu0
      %v1534 = vadd.f32 0.0, %v1533
      %v1535 = vpop.f32.mrb[0].mxu0
      %1536 = vmatprep.mubr.bf16.mxu0 0
      %1537 = vmatmul.mubr.bf16.gmra.mrb[0].mxu0 %v1432
      %v1538 = vpop.f32.mrb[0].mxu0
      %v1539 = vadd.f32 0.0, %v1538
      %v1540 = vpop.f32.mrb[0].mxu0
      %v1541 = vpop.f32.mrb[0].mxu0
      %v1542 = vadd.f32 0.0, %v1541
      %v1543 = vpop.f32.mrb[0].mxu0
      %1544 = vmatprep.mubr.bf16.mxu0 0
      %1545 = vmatmul.mubr.bf16.gmra.mrb[0].mxu0 %v1435
      %v1546 = vpop.f32.mrb[0].mxu0
      %v1547 = vadd.f32 0.0, %v1546
      %v1548 = vpop.f32.mrb[0].mxu0
      %v1549 = vpop.f32.mrb[0].mxu0
      %v1550 = vadd.f32 0.0, %v1549
      %v1551 = vpop.f32.mrb[0].mxu0
      %1552 = vmatprep.mubr.bf16.mxu0 0
      %1553 = vmatmul.mubr.bf16.gmra.mrb[0].mxu0 %v1438
      %v1554 = vpop.f32.mrb[0].mxu0
      %v1555 = vadd.f32 0.0, %v1554
      %v1556 = vpop.f32.mrb[0].mxu0
      %v1557 = vpop.f32.mrb[0].mxu0
      %v1558 = vadd.f32 0.0, %v1557
      %v1559 = vpop.f32.mrb[0].mxu0
      %1560 = vmatprep.mubr.bf16.mxu0 0
      %1561 = vmatmul.mubr.bf16.gmra.mrb[0].mxu0 %v1441
      %v1562 = vpop.f32.mrb[0].mxu0
      %v1563 = vadd.f32 0.0, %v1562
      %v1564 = vpop.f32.mrb[0].mxu0
      %v1565 = vpop.f32.mrb[0].mxu0
      %v1566 = vadd.f32 0.0, %v1565
      %v1567 = vpop.f32.mrb[0].mxu0
      %1568 = vmatprep.mubr.bf16.mxu0 0
      %1569 = vmatmul.mubr.bf16.gmra.mrb[0].mxu0 %v1444
      %v1570 = vpop.f32.mrb[0].mxu0
      %v1571 = vadd.f32 0.0, %v1570
      %v1572 = vpop.f32.mrb[0].mxu0
      %v1573 = vpop.f32.mrb[0].mxu0
      %v1574 = vadd.f32 0.0, %v1573
      %v1575 = vpop.f32.mrb[0].mxu0
      %1576 = vmatprep.mubr.bf16.mxu0 0
      %1577 = vmatmul.mubr.bf16.gmra.mrb[0].mxu0 %v1447
      %v1578 = vpop.f32.mrb[0].mxu0
      %v1579 = vadd.f32 0.0, %v1578
      %v1580 = vpop.f32.mrb[0].mxu0
      %v1581 = vpop.f32.mrb[0].mxu0
      %v1582 = vadd.f32 0.0, %v1581
      %v1583 = vpop.f32.mrb[0].mxu0
      %1584 = vmatprep.mubr.bf16.mxu0 0
      %1585 = vmatmul.mubr.bf16.gmra.mrb[0].mxu0 %v1450
      %v1586 = vpop.f32.mrb[0].mxu0
      %v1587 = vadd.f32 0.0, %v1586
      %v1588 = vpop.f32.mrb[0].mxu0
      %v1589 = vpop.f32.mrb[0].mxu0
      %v1590 = vadd.f32 0.0, %v1589
      %v1591 = vpop.f32.mrb[0].mxu0
      %1592 = vmatprep.mubr.bf16.mxu0 0
      %1593 = vmatmul.mubr.bf16.gmra.mrb[0].mxu0 %v1453
      %v1594 = vpop.f32.mrb[0].mxu0
      %v1595 = vadd.f32 0.0, %v1594
      %v1596 = vpop.f32.mrb[0].mxu0
      %v1597 = vpop.f32.mrb[0].mxu0
      %v1598 = vadd.f32 0.0, %v1597
      %v1599 = vpop.f32.mrb[0].mxu0
      %1600 = vmatprep.mubr.bf16.mxu0 0
      %1601 = vmatmul.mubr.bf16.gmra.mrb[0].mxu0 %v1456
      %v1602 = vpop.f32.mrb[0].mxu0
      %v1603 = vadd.f32 0.0, %v1602
      %v1604 = vpop.f32.mrb[0].mxu0
      %v1605 = vpop.f32.mrb[0].mxu0
      %v1606 = vadd.f32 0.0, %v1605
      %v1607 = vpop.f32.mrb[0].mxu0
      %1608 = vmatprep.mubr.bf16.mxu0 0
      %1609 = vmatmul.mubr.bf16.gmra.mrb[0].mxu0 %v1459
      %v1610 = vpop.f32.mrb[0].mxu0
      %v1611 = vadd.f32 0.0, %v1610
      %v1612 = vpop.f32.mrb[0].mxu0
      %v1613 = vpop.f32.mrb[0].mxu0
      %v1614 = vadd.f32 0.0, %v1613
      %v1615 = vpop.f32.mrb[0].mxu0
      %1616 = vmatprep.mubr.bf16.mxu0 0
      %1617 = vmatmul.mubr.bf16.gmra.mrb[0].mxu0 %v1462
      %v1618 = vpop.f32.mrb[0].mxu0
      %v1619 = vadd.f32 0.0, %v1618
      %v1620 = vpop.f32.mrb[0].mxu0
      %v1621 = vpop.f32.mrb[0].mxu0
      %v1622 = vadd.f32 0.0, %v1621
      %v1623 = vpop.f32.mrb[0].mxu0
      %1624 = vdwg.mxu0
      %v1625 = vadd.f32 %v1094, %v1499
      %v1626 = vadd.f32 %v1097, %v1502
      %v1627 = vadd.f32 %v1102, %v1507
      %v1628 = vadd.f32 %v1105, %v1510
      %v1629 = vadd.f32 %v1110, %v1515
      %v1630 = vadd.f32 %v1113, %v1518
      %v1631 = vadd.f32 %v1118, %v1523
      %v1632 = vadd.f32 %v1121, %v1526
      %v1633 = vadd.f32 %v1126, %v1531
      %v1634 = vadd.f32 %v1129, %v1534
      %v1635 = vadd.f32 %v1134, %v1539
      %v1636 = vadd.f32 %v1137, %v1542
      %v1637 = vadd.f32 %v1142, %v1547
      %v1638 = vadd.f32 %v1145, %v1550
      %v1639 = vadd.f32 %v1150, %v1555
      %v1640 = vadd.f32 %v1153, %v1558
      %v1641 = vadd.f32 %v1158, %v1563
      %v1642 = vadd.f32 %v1161, %v1566
      %v1643 = vadd.f32 %v1166, %v1571
      %v1644 = vadd.f32 %v1169, %v1574
      %v1645 = vadd.f32 %v1174, %v1579
      %v1646 = vadd.f32 %v1177, %v1582
      %v1647 = vadd.f32 %v1182, %v1587
      %v1648 = vadd.f32 %v1185, %v1590
      %v1649 = vadd.f32 %v1190, %v1595
      %v1650 = vadd.f32 %v1193, %v1598
      %v1651 = vadd.f32 %v1198, %v1603
      %v1652 = vadd.f32 %v1201, %v1606
      %v1653 = vadd.f32 %v1206, %v1611
      %v1654 = vadd.f32 %v1209, %v1614
      %v1655 = vadd.f32 %v1214, %v1619
      %v1656 = vadd.f32 %v1217, %v1622
      %s1657 = scalar_lea.vmem %s1, 48
      %v1658 = vld [vmem:[%s1657] sm:$0xf]
      %v1659 = vld [vmem:[%s1657 + $0x4] sm:$0xf]
      %v1660 = vld [vmem:[%s1657 + $0x8] sm:$0xf]
      %v1661 = vld [vmem:[%s1657 + $0xc] sm:$0xf]
      %v1664 = vunpack.c.l.b16 %v247
      %v1665 = vunpack.c.l.b16 %v248
      %v1666 = vpack.c.b16 %v1665, %v1664
      %v1671 = vunpack.c.l.b16 %v1658
      %v1672 = vunpack.c.l.b16 %v1659
      %v1673 = vunpack.c.l.b16 %v1660
      %v1674 = vunpack.c.l.b16 %v1661
      %v1675 = vpack.c.b16 %v1672, %v1671
      %v1676 = vpack.c.b16 %v1674, %v1673
      %v1680 = vsel %vm709, %v1666, 0
      %1682 = vmatprep.subr.bf16.mxu0 0
      %1683 = vmatpush1.bf16.msra.mxu0 %v1675
      %1684 = vmatprep.subr.bf16.mxu0 0
      %1685 = vmatpush1.bf16.msra.mxu0 %v1676
      %1686 = vmatprep.subr.bf16.mxu0 0
      %1687 = vmatpush1.bf16.msra.mxu0 0
      %1688 = vmatprep.subr.bf16.mxu0 0
      %1689 = vmatpush1.bf16.msra.mxu0 0
      %1690 = vmatprep.subr.bf16.mxu0 0
      %1691 = vmatpush1.bf16.msra.mxu0 0
      %1692 = vmatprep.subr.bf16.mxu0 0
      %1693 = vmatpush1.bf16.msra.mxu0 0
      %1694 = vmatprep.subr.bf16.mxu0 0
      %1695 = vmatpush1.bf16.msra.mxu0 0
      %1696 = vmatprep.subr.bf16.mxu0 0
      %1697 = vmatpush1.bf16.msra.mxu0 0
      %1698 = vmatprep.subr.bf16.mxu0 0
      %1699 = vmatpush1.bf16.msra.mxu0 0
      %1700 = vmatprep.subr.bf16.mxu0 0
      %1701 = vmatpush1.bf16.msra.mxu0 0
      %1702 = vmatprep.subr.bf16.mxu0 0
      %1703 = vmatpush1.bf16.msra.mxu0 0
      %1704 = vmatprep.subr.bf16.mxu0 0
      %1705 = vmatpush1.bf16.msra.mxu0 0
      %1706 = vmatprep.subr.bf16.mxu0 0
      %1707 = vmatpush1.bf16.msra.mxu0 0
      %1708 = vmatprep.subr.bf16.mxu0 0
      %1709 = vmatpush1.bf16.msra.mxu0 0
      %1710 = vmatprep.subr.bf16.mxu0 0
      %1711 = vmatpush1.bf16.msra.mxu0 0
      %1712 = vmatprep.subr.bf16.mxu0 0
      %1713 = vmatpush1.bf16.msra.mxu0 0
      %1714 = vmatprep.mubr.bf16.mxu0 0
      %1715 = vmatmul.mubr.bf16.gmra.mrb[0].mxu0 %v1015
      %v1716 = vpop.f32.mrb[0].mxu0
      %v1717 = vadd.f32 0.0, %v1716
      %v1718 = vpop.f32.mrb[0].mxu0
      %v1719 = vpop.f32.mrb[0].mxu0
      %v1720 = vadd.f32 0.0, %v1719
      %v1721 = vpop.f32.mrb[0].mxu0
      %1722 = vmatprep.mubr.bf16.mxu0 0
      %1723 = vmatmul.mubr.bf16.gmra.mrb[0].mxu0 %v1018
      %v1724 = vpop.f32.mrb[0].mxu0
      %v1725 = vadd.f32 0.0, %v1724
      %v1726 = vpop.f32.mrb[0].mxu0
      %v1727 = vpop.f32.mrb[0].mxu0
      %v1728 = vadd.f32 0.0, %v1727
      %v1729 = vpop.f32.mrb[0].mxu0
      %1730 = vmatprep.mubr.bf16.mxu0 0
      %1731 = vmatmul.mubr.bf16.gmra.mrb[0].mxu0 %v1021
      %v1732 = vpop.f32.mrb[0].mxu0
      %v1733 = vadd.f32 0.0, %v1732
      %v1734 = vpop.f32.mrb[0].mxu0
      %v1735 = vpop.f32.mrb[0].mxu0
      %v1736 = vadd.f32 0.0, %v1735
      %v1737 = vpop.f32.mrb[0].mxu0
      %1738 = vmatprep.mubr.bf16.mxu0 0
      %1739 = vmatmul.mubr.bf16.gmra.mrb[0].mxu0 %v1024
      %v1740 = vpop.f32.mrb[0].mxu0
      %v1741 = vadd.f32 0.0, %v1740
      %v1742 = vpop.f32.mrb[0].mxu0
      %v1743 = vpop.f32.mrb[0].mxu0
      %v1744 = vadd.f32 0.0, %v1743
      %v1745 = vpop.f32.mrb[0].mxu0
      %1746 = vmatprep.mubr.bf16.mxu0 0
      %1747 = vmatmul.mubr.bf16.gmra.mrb[0].mxu0 %v1027
      %v1748 = vpop.f32.mrb[0].mxu0
      %v1749 = vadd.f32 0.0, %v1748
      %v1750 = vpop.f32.mrb[0].mxu0
      %v1751 = vpop.f32.mrb[0].mxu0
      %v1752 = vadd.f32 0.0, %v1751
      %v1753 = vpop.f32.mrb[0].mxu0
      %1754 = vmatprep.mubr.bf16.mxu0 0
      %1755 = vmatmul.mubr.bf16.gmra.mrb[0].mxu0 %v1030
      %v1756 = vpop.f32.mrb[0].mxu0
      %v1757 = vadd.f32 0.0, %v1756
      %v1758 = vpop.f32.mrb[0].mxu0
      %v1759 = vpop.f32.mrb[0].mxu0
      %v1760 = vadd.f32 0.0, %v1759
      %v1761 = vpop.f32.mrb[0].mxu0
      %1762 = vmatprep.mubr.bf16.mxu0 0
      %1763 = vmatmul.mubr.bf16.gmra.mrb[0].mxu0 %v1033
      %v1764 = vpop.f32.mrb[0].mxu0
      %v1765 = vadd.f32 0.0, %v1764
      %v1766 = vpop.f32.mrb[0].mxu0
      %v1767 = vpop.f32.mrb[0].mxu0
      %v1768 = vadd.f32 0.0, %v1767
      %v1769 = vpop.f32.mrb[0].mxu0
      %1770 = vmatprep.mubr.bf16.mxu0 0
      %1771 = vmatmul.mubr.bf16.gmra.mrb[0].mxu0 %v1036
      %v1772 = vpop.f32.mrb[0].mxu0
      %v1773 = vadd.f32 0.0, %v1772
      %v1774 = vpop.f32.mrb[0].mxu0
      %v1775 = vpop.f32.mrb[0].mxu0
      %v1776 = vadd.f32 0.0, %v1775
      %v1777 = vpop.f32.mrb[0].mxu0
      %1778 = vmatprep.mubr.bf16.mxu0 0
      %1779 = vmatmul.mubr.bf16.gmra.mrb[0].mxu0 %v1039
      %v1780 = vpop.f32.mrb[0].mxu0
      %v1781 = vadd.f32 0.0, %v1780
      %v1782 = vpop.f32.mrb[0].mxu0
      %v1783 = vpop.f32.mrb[0].mxu0
      %v1784 = vadd.f32 0.0, %v1783
      %v1785 = vpop.f32.mrb[0].mxu0
      %1786 = vmatprep.mubr.bf16.mxu0 0
      %1787 = vmatmul.mubr.bf16.gmra.mrb[0].mxu0 %v1042
      %v1788 = vpop.f32.mrb[0].mxu0
      %v1789 = vadd.f32 0.0, %v1788
      %v1790 = vpop.f32.mrb[0].mxu0
      %v1791 = vpop.f32.mrb[0].mxu0
      %v1792 = vadd.f32 0.0, %v1791
      %v1793 = vpop.f32.mrb[0].mxu0
      %1794 = vmatprep.mubr.bf16.mxu0 0
      %1795 = vmatmul.mubr.bf16.gmra.mrb[0].mxu0 %v1045
      %v1796 = vpop.f32.mrb[0].mxu0
      %v1797 = vadd.f32 0.0, %v1796
      %v1798 = vpop.f32.mrb[0].mxu0
      %v1799 = vpop.f32.mrb[0].mxu0
      %v1800 = vadd.f32 0.0, %v1799
      %v1801 = vpop.f32.mrb[0].mxu0
      %1802 = vmatprep.mubr.bf16.mxu0 0
      %1803 = vmatmul.mubr.bf16.gmra.mrb[0].mxu0 %v1048
      %v1804 = vpop.f32.mrb[0].mxu0
      %v1805 = vadd.f32 0.0, %v1804
      %v1806 = vpop.f32.mrb[0].mxu0
      %v1807 = vpop.f32.mrb[0].mxu0
      %v1808 = vadd.f32 0.0, %v1807
      %v1809 = vpop.f32.mrb[0].mxu0
      %1810 = vmatprep.mubr.bf16.mxu0 0
      %1811 = vmatmul.mubr.bf16.gmra.mrb[0].mxu0 %v1051
      %v1812 = vpop.f32.mrb[0].mxu0
      %v1813 = vadd.f32 0.0, %v1812
      %v1814 = vpop.f32.mrb[0].mxu0
      %v1815 = vpop.f32.mrb[0].mxu0
      %v1816 = vadd.f32 0.0, %v1815
      %v1817 = vpop.f32.mrb[0].mxu0
      %1818 = vmatprep.mubr.bf16.mxu0 0
      %1819 = vmatmul.mubr.bf16.gmra.mrb[0].mxu0 %v1054
      %v1820 = vpop.f32.mrb[0].mxu0
      %v1821 = vadd.f32 0.0, %v1820
      %v1822 = vpop.f32.mrb[0].mxu0
      %v1823 = vpop.f32.mrb[0].mxu0
      %v1824 = vadd.f32 0.0, %v1823
      %v1825 = vpop.f32.mrb[0].mxu0
      %1826 = vmatprep.mubr.bf16.mxu0 0
      %1827 = vmatmul.mubr.bf16.gmra.mrb[0].mxu0 %v1057
      %v1828 = vpop.f32.mrb[0].mxu0
      %v1829 = vadd.f32 0.0, %v1828
      %v1830 = vpop.f32.mrb[0].mxu0
      %v1831 = vpop.f32.mrb[0].mxu0
      %v1832 = vadd.f32 0.0, %v1831
      %v1833 = vpop.f32.mrb[0].mxu0
      %1834 = vmatprep.mubr.bf16.mxu0 0
      %1835 = vmatmul.mubr.bf16.gmra.mrb[0].mxu0 %v1680
      %v1836 = vpop.f32.mrb[0].mxu0
      %v1837 = vadd.f32 0.0, %v1836
      %v1838 = vpop.f32.mrb[0].mxu0
      %v1839 = vpop.f32.mrb[0].mxu0
      %v1840 = vadd.f32 0.0, %v1839
      %v1841 = vpop.f32.mrb[0].mxu0
      %1842 = vdwg.mxu0
      %v1843 = vadd.f32 %v1625, %v1717
      %v1844 = vadd.f32 %v1626, %v1720
      %v1845 = vadd.f32 %v1627, %v1725
      %v1846 = vadd.f32 %v1628, %v1728
      %v1847 = vadd.f32 %v1629, %v1733
      %v1848 = vadd.f32 %v1630, %v1736
      %v1849 = vadd.f32 %v1631, %v1741
      %v1850 = vadd.f32 %v1632, %v1744
      %v1851 = vadd.f32 %v1633, %v1749
      %v1852 = vadd.f32 %v1634, %v1752
      %v1853 = vadd.f32 %v1635, %v1757
      %v1854 = vadd.f32 %v1636, %v1760
      %v1855 = vadd.f32 %v1637, %v1765
      %v1856 = vadd.f32 %v1638, %v1768
      %v1857 = vadd.f32 %v1639, %v1773
      %v1858 = vadd.f32 %v1640, %v1776
      %v1859 = vadd.f32 %v1641, %v1781
      %v1860 = vadd.f32 %v1642, %v1784
      %v1861 = vadd.f32 %v1643, %v1789
      %v1862 = vadd.f32 %v1644, %v1792
      %v1863 = vadd.f32 %v1645, %v1797
      %v1864 = vadd.f32 %v1646, %v1800
      %v1865 = vadd.f32 %v1647, %v1805
      %v1866 = vadd.f32 %v1648, %v1808
      %v1867 = vadd.f32 %v1649, %v1813
      %v1868 = vadd.f32 %v1650, %v1816
      %v1869 = vadd.f32 %v1651, %v1821
      %v1870 = vadd.f32 %v1652, %v1824
      %v1871 = vadd.f32 %v1653, %v1829
      %v1872 = vadd.f32 %v1654, %v1832
      %v1873 = vadd.f32 %v1655, %v1837
      %v1874 = vadd.f32 %v1656, %v1840
      %v1876 = vshrl.u32 %v247, 16
      %v1878 = vrot.slane %v1876, 4
      %v1879 = vshll.u32 %v247, 16
      %v1881 = vrot.slane %v1879, 5
      %v1882 = vor.u32 %v1878, %v1881
      %v1883 = vrot.slane %v1882, 4
      %v1885 = vshll.u32 %v248, 16
      %v1887 = vrot.slane %v1885, 5
      %v1888 = vsel %vm259, %v1883, %v1887
      %v1889 = vshrl.u32 %v248, 16
      %v1891 = vrot.slane %v1889, 4
      %v1892 = vor.u32 %v1891, %v1887
      %v1893 = vrot.slane %v1892, 4
      %v1895 = vshll.u32 %v249, 16
      %v1897 = vrot.slane %v1895, 5
      %v1898 = vsel %vm259, %v1893, %v1897
      %s1899 = scalar_lea.vmem %s1, 64
      %v1900 = vld [vmem:[%s1899] sm:$0xf]
      %v1901 = vld [vmem:[%s1899 + $0x4] sm:$0xf]
      %v1902 = vld [vmem:[%s1899 + $0x8] sm:$0xf]
      %v1903 = vld [vmem:[%s1899 + $0xc] sm:$0xf]
      %v1904 = vunpack.c.l.b16 %v1888
      %v1905 = vunpack.c.l.b16 %v1898
      %v1906 = vpack.c.b16 %v1905, %v1904
      %v1911 = vunpack.c.l.b16 %v1900
      %v1912 = vunpack.c.l.b16 %v1901
      %v1913 = vunpack.c.l.b16 %v1902
      %v1914 = vunpack.c.l.b16 %v1903
      %v1915 = vpack.c.b16 %v1912, %v1911
      %v1916 = vpack.c.b16 %v1914, %v1913
      %v1920 = vsel %vm709, %v1906, 0
      %1922 = vmatprep.subr.bf16.mxu0 0
      %1923 = vmatpush1.bf16.msra.mxu0 %v1915
      %1924 = vmatprep.subr.bf16.mxu0 0
      %1925 = vmatpush1.bf16.msra.mxu0 %v1916
      %1926 = vmatprep.subr.bf16.mxu0 0
      %1927 = vmatpush1.bf16.msra.mxu0 0
      %1928 = vmatprep.subr.bf16.mxu0 0
      %1929 = vmatpush1.bf16.msra.mxu0 0
      %1930 = vmatprep.subr.bf16.mxu0 0
      %1931 = vmatpush1.bf16.msra.mxu0 0
      %1932 = vmatprep.subr.bf16.mxu0 0
      %1933 = vmatpush1.bf16.msra.mxu0 0
      %1934 = vmatprep.subr.bf16.mxu0 0
      %1935 = vmatpush1.bf16.msra.mxu0 0
      %1936 = vmatprep.subr.bf16.mxu0 0
      %1937 = vmatpush1.bf16.msra.mxu0 0
      %1938 = vmatprep.subr.bf16.mxu0 0
      %1939 = vmatpush1.bf16.msra.mxu0 0
      %1940 = vmatprep.subr.bf16.mxu0 0
      %1941 = vmatpush1.bf16.msra.mxu0 0
      %1942 = vmatprep.subr.bf16.mxu0 0
      %1943 = vmatpush1.bf16.msra.mxu0 0
      %1944 = vmatprep.subr.bf16.mxu0 0
      %1945 = vmatpush1.bf16.msra.mxu0 0
      %1946 = vmatprep.subr.bf16.mxu0 0
      %1947 = vmatpush1.bf16.msra.mxu0 0
      %1948 = vmatprep.subr.bf16.mxu0 0
      %1949 = vmatpush1.bf16.msra.mxu0 0
      %1950 = vmatprep.subr.bf16.mxu0 0
      %1951 = vmatpush1.bf16.msra.mxu0 0
      %1952 = vmatprep.subr.bf16.mxu0 0
      %1953 = vmatpush1.bf16.msra.mxu0 0
      %1954 = vmatprep.mubr.bf16.mxu0 0
      %1955 = vmatmul.mubr.bf16.gmra.mrb[0].mxu0 %v714
      %v1956 = vpop.f32.mrb[0].mxu0
      %v1957 = vadd.f32 0.0, %v1956
      %v1958 = vpop.f32.mrb[0].mxu0
      %v1959 = vpop.f32.mrb[0].mxu0
      %v1960 = vadd.f32 0.0, %v1959
      %v1961 = vpop.f32.mrb[0].mxu0
      %1962 = vmatprep.mubr.bf16.mxu0 0
      %1963 = vmatmul.mubr.bf16.gmra.mrb[0].mxu0 %v717
      %v1964 = vpop.f32.mrb[0].mxu0
      %v1965 = vadd.f32 0.0, %v1964
      %v1966 = vpop.f32.mrb[0].mxu0
      %v1967 = vpop.f32.mrb[0].mxu0
      %v1968 = vadd.f32 0.0, %v1967
      %v1969 = vpop.f32.mrb[0].mxu0
      %1970 = vmatprep.mubr.bf16.mxu0 0
      %1971 = vmatmul.mubr.bf16.gmra.mrb[0].mxu0 %v720
      %v1972 = vpop.f32.mrb[0].mxu0
      %v1973 = vadd.f32 0.0, %v1972
      %v1974 = vpop.f32.mrb[0].mxu0
      %v1975 = vpop.f32.mrb[0].mxu0
      %v1976 = vadd.f32 0.0, %v1975
      %v1977 = vpop.f32.mrb[0].mxu0
      %1978 = vmatprep.mubr.bf16.mxu0 0
      %1979 = vmatmul.mubr.bf16.gmra.mrb[0].mxu0 %v723
      %v1980 = vpop.f32.mrb[0].mxu0
      %v1981 = vadd.f32 0.0, %v1980
      %v1982 = vpop.f32.mrb[0].mxu0
      %v1983 = vpop.f32.mrb[0].mxu0
      %v1984 = vadd.f32 0.0, %v1983
      %v1985 = vpop.f32.mrb[0].mxu0
      %1986 = vmatprep.mubr.bf16.mxu0 0
      %1987 = vmatmul.mubr.bf16.gmra.mrb[0].mxu0 %v726
      %v1988 = vpop.f32.mrb[0].mxu0
      %v1989 = vadd.f32 0.0, %v1988
      %v1990 = vpop.f32.mrb[0].mxu0
      %v1991 = vpop.f32.mrb[0].mxu0
      %v1992 = vadd.f32 0.0, %v1991
      %v1993 = vpop.f32.mrb[0].mxu0
      %1994 = vmatprep.mubr.bf16.mxu0 0
      %1995 = vmatmul.mubr.bf16.gmra.mrb[0].mxu0 %v729
      %v1996 = vpop.f32.mrb[0].mxu0
      %v1997 = vadd.f32 0.0, %v1996
      %v1998 = vpop.f32.mrb[0].mxu0
      %v1999 = vpop.f32.mrb[0].mxu0
      %v2000 = vadd.f32 0.0, %v1999
      %v2001 = vpop.f32.mrb[0].mxu0
      %2002 = vmatprep.mubr.bf16.mxu0 0
      %2003 = vmatmul.mubr.bf16.gmra.mrb[0].mxu0 %v732
      %v2004 = vpop.f32.mrb[0].mxu0
      %v2005 = vadd.f32 0.0, %v2004
      %v2006 = vpop.f32.mrb[0].mxu0
      %v2007 = vpop.f32.mrb[0].mxu0
      %v2008 = vadd.f32 0.0, %v2007
      %v2009 = vpop.f32.mrb[0].mxu0
      %2010 = vmatprep.mubr.bf16.mxu0 0
      %2011 = vmatmul.mubr.bf16.gmra.mrb[0].mxu0 %v735
      %v2012 = vpop.f32.mrb[0].mxu0
      %v2013 = vadd.f32 0.0, %v2012
      %v2014 = vpop.f32.mrb[0].mxu0
      %v2015 = vpop.f32.mrb[0].mxu0
      %v2016 = vadd.f32 0.0, %v2015
      %v2017 = vpop.f32.mrb[0].mxu0
      %2018 = vmatprep.mubr.bf16.mxu0 0
      %2019 = vmatmul.mubr.bf16.gmra.mrb[0].mxu0 %v738
      %v2020 = vpop.f32.mrb[0].mxu0
      %v2021 = vadd.f32 0.0, %v2020
      %v2022 = vpop.f32.mrb[0].mxu0
      %v2023 = vpop.f32.mrb[0].mxu0
      %v2024 = vadd.f32 0.0, %v2023
      %v2025 = vpop.f32.mrb[0].mxu0
      %2026 = vmatprep.mubr.bf16.mxu0 0
      %2027 = vmatmul.mubr.bf16.gmra.mrb[0].mxu0 %v741
      %v2028 = vpop.f32.mrb[0].mxu0
      %v2029 = vadd.f32 0.0, %v2028
      %v2030 = vpop.f32.mrb[0].mxu0
      %v2031 = vpop.f32.mrb[0].mxu0
      %v2032 = vadd.f32 0.0, %v2031
      %v2033 = vpop.f32.mrb[0].mxu0
      %2034 = vmatprep.mubr.bf16.mxu0 0
      %2035 = vmatmul.mubr.bf16.gmra.mrb[0].mxu0 %v744
      %v2036 = vpop.f32.mrb[0].mxu0
      %v2037 = vadd.f32 0.0, %v2036
      %v2038 = vpop.f32.mrb[0].mxu0
      %v2039 = vpop.f32.mrb[0].mxu0
      %v2040 = vadd.f32 0.0, %v2039
      %v2041 = vpop.f32.mrb[0].mxu0
      %2042 = vmatprep.mubr.bf16.mxu0 0
      %2043 = vmatmul.mubr.bf16.gmra.mrb[0].mxu0 %v747
      %v2044 = vpop.f32.mrb[0].mxu0
      %v2045 = vadd.f32 0.0, %v2044
      %v2046 = vpop.f32.mrb[0].mxu0
      %v2047 = vpop.f32.mrb[0].mxu0
      %v2048 = vadd.f32 0.0, %v2047
      %v2049 = vpop.f32.mrb[0].mxu0
      %2050 = vmatprep.mubr.bf16.mxu0 0
      %2051 = vmatmul.mubr.bf16.gmra.mrb[0].mxu0 %v750
      %v2052 = vpop.f32.mrb[0].mxu0
      %v2053 = vadd.f32 0.0, %v2052
      %v2054 = vpop.f32.mrb[0].mxu0
      %v2055 = vpop.f32.mrb[0].mxu0
      %v2056 = vadd.f32 0.0, %v2055
      %v2057 = vpop.f32.mrb[0].mxu0
      %2058 = vmatprep.mubr.bf16.mxu0 0
      %2059 = vmatmul.mubr.bf16.gmra.mrb[0].mxu0 %v753
      %v2060 = vpop.f32.mrb[0].mxu0
      %v2061 = vadd.f32 0.0, %v2060
      %v2062 = vpop.f32.mrb[0].mxu0
      %v2063 = vpop.f32.mrb[0].mxu0
      %v2064 = vadd.f32 0.0, %v2063
      %v2065 = vpop.f32.mrb[0].mxu0
      %2066 = vmatprep.mubr.bf16.mxu0 0
      %2067 = vmatmul.mubr.bf16.gmra.mrb[0].mxu0 %v756
      %v2068 = vpop.f32.mrb[0].mxu0
      %v2069 = vadd.f32 0.0, %v2068
      %v2070 = vpop.f32.mrb[0].mxu0
      %v2071 = vpop.f32.mrb[0].mxu0
      %v2072 = vadd.f32 0.0, %v2071
      %v2073 = vpop.f32.mrb[0].mxu0
      %2074 = vmatprep.mubr.bf16.mxu0 0
      %2075 = vmatmul.mubr.bf16.gmra.mrb[0].mxu0 %v1920
      %v2076 = vpop.f32.mrb[0].mxu0
      %v2077 = vadd.f32 0.0, %v2076
      %v2078 = vpop.f32.mrb[0].mxu0
      %v2079 = vpop.f32.mrb[0].mxu0
      %v2080 = vadd.f32 0.0, %v2079
      %v2081 = vpop.f32.mrb[0].mxu0
      %2082 = vdwg.mxu0
      %v2083 = vadd.f32 %v1843, %v1957
      %v2084 = vadd.f32 %v1844, %v1960
      %v2085 = vadd.f32 %v1845, %v1965
      %v2086 = vadd.f32 %v1846, %v1968
      %v2087 = vadd.f32 %v1847, %v1973
      %v2088 = vadd.f32 %v1848, %v1976
      %v2089 = vadd.f32 %v1849, %v1981
      %v2090 = vadd.f32 %v1850, %v1984
      %v2091 = vadd.f32 %v1851, %v1989
      %v2092 = vadd.f32 %v1852, %v1992
      %v2093 = vadd.f32 %v1853, %v1997
      %v2094 = vadd.f32 %v1854, %v2000
      %v2095 = vadd.f32 %v1855, %v2005
      %v2096 = vadd.f32 %v1856, %v2008
      %v2097 = vadd.f32 %v1857, %v2013
      %v2098 = vadd.f32 %v1858, %v2016
      %v2099 = vadd.f32 %v1859, %v2021
      %v2100 = vadd.f32 %v1860, %v2024
      %v2101 = vadd.f32 %v1861, %v2029
      %v2102 = vadd.f32 %v1862, %v2032
      %v2103 = vadd.f32 %v1863, %v2037
      %v2104 = vadd.f32 %v1864, %v2040
      %v2105 = vadd.f32 %v1865, %v2045
      %v2106 = vadd.f32 %v1866, %v2048
      %v2107 = vadd.f32 %v1867, %v2053
      %v2108 = vadd.f32 %v1868, %v2056
      %v2109 = vadd.f32 %v1869, %v2061
      %v2110 = vadd.f32 %v1870, %v2064
      %v2111 = vadd.f32 %v1871, %v2069
      %v2112 = vadd.f32 %v1872, %v2072
      %v2113 = vadd.f32 %v1873, %v2077
      %v2114 = vadd.f32 %v1874, %v2080
      %v2116 = vrot.slane %v247, 5
      %v2117 = vrot.slane %v2116, 4
      %v2118 = vrot.slane %v248, 5
      %v2119 = vsel %vm1238, %v2117, %v2118
      %v2120 = vrot.slane %v2118, 4
      %v2121 = vrot.slane %v249, 5
      %v2122 = vsel %vm1238, %v2120, %v2121
      %s2123 = scalar_lea.vmem %s1, 80
      %v2124 = vld [vmem:[%s2123] sm:$0xf]
      %v2125 = vld [vmem:[%s2123 + $0x4] sm:$0xf]
      %v2126 = vld [vmem:[%s2123 + $0x8] sm:$0xf]
      %v2127 = vld [vmem:[%s2123 + $0xc] sm:$0xf]
      %v2128 = vunpack.c.l.b16 %v2119
      %v2129 = vunpack.c.l.b16 %v2122
      %v2130 = vpack.c.b16 %v2129, %v2128
      %v2135 = vunpack.c.l.b16 %v2124
      %v2136 = vunpack.c.l.b16 %v2125
      %v2137 = vunpack.c.l.b16 %v2126
      %v2138 = vunpack.c.l.b16 %v2127
      %v2139 = vpack.c.b16 %v2136, %v2135
      %v2140 = vpack.c.b16 %v2138, %v2137
      %v2144 = vsel %vm709, %v2130, 0
      %2146 = vmatprep.subr.bf16.mxu0 0
      %2147 = vmatpush1.bf16.msra.mxu0 %v2139
      %2148 = vmatprep.subr.bf16.mxu0 0
      %2149 = vmatpush1.bf16.msra.mxu0 %v2140
      %2150 = vmatprep.subr.bf16.mxu0 0
      %2151 = vmatpush1.bf16.msra.mxu0 0
      %2152 = vmatprep.subr.bf16.mxu0 0
      %2153 = vmatpush1.bf16.msra.mxu0 0
      %2154 = vmatprep.subr.bf16.mxu0 0
      %2155 = vmatpush1.bf16.msra.mxu0 0
      %2156 = vmatprep.subr.bf16.mxu0 0
      %2157 = vmatpush1.bf16.msra.mxu0 0
      %2158 = vmatprep.subr.bf16.mxu0 0
      %2159 = vmatpush1.bf16.msra.mxu0 0
      %2160 = vmatprep.subr.bf16.mxu0 0
      %2161 = vmatpush1.bf16.msra.mxu0 0
      %2162 = vmatprep.subr.bf16.mxu0 0
      %2163 = vmatpush1.bf16.msra.mxu0 0
      %2164 = vmatprep.subr.bf16.mxu0 0
      %2165 = vmatpush1.bf16.msra.mxu0 0
      %2166 = vmatprep.subr.bf16.mxu0 0
      %2167 = vmatpush1.bf16.msra.mxu0 0
      %2168 = vmatprep.subr.bf16.mxu0 0
      %2169 = vmatpush1.bf16.msra.mxu0 0
      %2170 = vmatprep.subr.bf16.mxu0 0
      %2171 = vmatpush1.bf16.msra.mxu0 0
      %2172 = vmatprep.subr.bf16.mxu0 0
      %2173 = vmatpush1.bf16.msra.mxu0 0
      %2174 = vmatprep.subr.bf16.mxu0 0
      %2175 = vmatpush1.bf16.msra.mxu0 0
      %2176 = vmatprep.subr.bf16.mxu0 0
      %2177 = vmatpush1.bf16.msra.mxu0 0
      %2178 = vmatprep.mubr.bf16.mxu0 0
      %2179 = vmatmul.mubr.bf16.gmra.mrb[0].mxu0 %v1420
      %v2180 = vpop.f32.mrb[0].mxu0
      %v2181 = vadd.f32 0.0, %v2180
      %v2182 = vpop.f32.mrb[0].mxu0
      %v2183 = vpop.f32.mrb[0].mxu0
      %v2184 = vadd.f32 0.0, %v2183
      %v2185 = vpop.f32.mrb[0].mxu0
      %2186 = vmatprep.mubr.bf16.mxu0 0
      %2187 = vmatmul.mubr.bf16.gmra.mrb[0].mxu0 %v1423
      %v2188 = vpop.f32.mrb[0].mxu0
      %v2189 = vadd.f32 0.0, %v2188
      %v2190 = vpop.f32.mrb[0].mxu0
      %v2191 = vpop.f32.mrb[0].mxu0
      %v2192 = vadd.f32 0.0, %v2191
      %v2193 = vpop.f32.mrb[0].mxu0
      %2194 = vmatprep.mubr.bf16.mxu0 0
      %2195 = vmatmul.mubr.bf16.gmra.mrb[0].mxu0 %v1426
      %v2196 = vpop.f32.mrb[0].mxu0
      %v2197 = vadd.f32 0.0, %v2196
      %v2198 = vpop.f32.mrb[0].mxu0
      %v2199 = vpop.f32.mrb[0].mxu0
      %v2200 = vadd.f32 0.0, %v2199
      %v2201 = vpop.f32.mrb[0].mxu0
      %2202 = vmatprep.mubr.bf16.mxu0 0
      %2203 = vmatmul.mubr.bf16.gmra.mrb[0].mxu0 %v1429
      %v2204 = vpop.f32.mrb[0].mxu0
      %v2205 = vadd.f32 0.0, %v2204
      %v2206 = vpop.f32.mrb[0].mxu0
      %v2207 = vpop.f32.mrb[0].mxu0
      %v2208 = vadd.f32 0.0, %v2207
      %v2209 = vpop.f32.mrb[0].mxu0
      %2210 = vmatprep.mubr.bf16.mxu0 0
      %2211 = vmatmul.mubr.bf16.gmra.mrb[0].mxu0 %v1432
      %v2212 = vpop.f32.mrb[0].mxu0
      %v2213 = vadd.f32 0.0, %v2212
      %v2214 = vpop.f32.mrb[0].mxu0
      %v2215 = vpop.f32.mrb[0].mxu0
      %v2216 = vadd.f32 0.0, %v2215
      %v2217 = vpop.f32.mrb[0].mxu0
      %2218 = vmatprep.mubr.bf16.mxu0 0
      %2219 = vmatmul.mubr.bf16.gmra.mrb[0].mxu0 %v1435
      %v2220 = vpop.f32.mrb[0].mxu0
      %v2221 = vadd.f32 0.0, %v2220
      %v2222 = vpop.f32.mrb[0].mxu0
      %v2223 = vpop.f32.mrb[0].mxu0
      %v2224 = vadd.f32 0.0, %v2223
      %v2225 = vpop.f32.mrb[0].mxu0
      %2226 = vmatprep.mubr.bf16.mxu0 0
      %2227 = vmatmul.mubr.bf16.gmra.mrb[0].mxu0 %v1438
      %v2228 = vpop.f32.mrb[0].mxu0
      %v2229 = vadd.f32 0.0, %v2228
      %v2230 = vpop.f32.mrb[0].mxu0
      %v2231 = vpop.f32.mrb[0].mxu0
      %v2232 = vadd.f32 0.0, %v2231
      %v2233 = vpop.f32.mrb[0].mxu0
      %2234 = vmatprep.mubr.bf16.mxu0 0
      %2235 = vmatmul.mubr.bf16.gmra.mrb[0].mxu0 %v1441
      %v2236 = vpop.f32.mrb[0].mxu0
      %v2237 = vadd.f32 0.0, %v2236
      %v2238 = vpop.f32.mrb[0].mxu0
      %v2239 = vpop.f32.mrb[0].mxu0
      %v2240 = vadd.f32 0.0, %v2239
      %v2241 = vpop.f32.mrb[0].mxu0
      %2242 = vmatprep.mubr.bf16.mxu0 0
      %2243 = vmatmul.mubr.bf16.gmra.mrb[0].mxu0 %v1444
      %v2244 = vpop.f32.mrb[0].mxu0
      %v2245 = vadd.f32 0.0, %v2244
      %v2246 = vpop.f32.mrb[0].mxu0
      %v2247 = vpop.f32.mrb[0].mxu0
      %v2248 = vadd.f32 0.0, %v2247
      %v2249 = vpop.f32.mrb[0].mxu0
      %2250 = vmatprep.mubr.bf16.mxu0 0
      %2251 = vmatmul.mubr.bf16.gmra.mrb[0].mxu0 %v1447
      %v2252 = vpop.f32.mrb[0].mxu0
      %v2253 = vadd.f32 0.0, %v2252
      %v2254 = vpop.f32.mrb[0].mxu0
      %v2255 = vpop.f32.mrb[0].mxu0
      %v2256 = vadd.f32 0.0, %v2255
      %v2257 = vpop.f32.mrb[0].mxu0
      %2258 = vmatprep.mubr.bf16.mxu0 0
      %2259 = vmatmul.mubr.bf16.gmra.mrb[0].mxu0 %v1450
      %v2260 = vpop.f32.mrb[0].mxu0
      %v2261 = vadd.f32 0.0, %v2260
      %v2262 = vpop.f32.mrb[0].mxu0
      %v2263 = vpop.f32.mrb[0].mxu0
      %v2264 = vadd.f32 0.0, %v2263
      %v2265 = vpop.f32.mrb[0].mxu0
      %2266 = vmatprep.mubr.bf16.mxu0 0
      %2267 = vmatmul.mubr.bf16.gmra.mrb[0].mxu0 %v1453
      %v2268 = vpop.f32.mrb[0].mxu0
      %v2269 = vadd.f32 0.0, %v2268
      %v2270 = vpop.f32.mrb[0].mxu0
      %v2271 = vpop.f32.mrb[0].mxu0
      %v2272 = vadd.f32 0.0, %v2271
      %v2273 = vpop.f32.mrb[0].mxu0
      %2274 = vmatprep.mubr.bf16.mxu0 0
      %2275 = vmatmul.mubr.bf16.gmra.mrb[0].mxu0 %v1456
      %v2276 = vpop.f32.mrb[0].mxu0
      %v2277 = vadd.f32 0.0, %v2276
      %v2278 = vpop.f32.mrb[0].mxu0
      %v2279 = vpop.f32.mrb[0].mxu0
      %v2280 = vadd.f32 0.0, %v2279
      %v2281 = vpop.f32.mrb[0].mxu0
      %2282 = vmatprep.mubr.bf16.mxu0 0
      %2283 = vmatmul.mubr.bf16.gmra.mrb[0].mxu0 %v1459
      %v2284 = vpop.f32.mrb[0].mxu0
      %v2285 = vadd.f32 0.0, %v2284
      %v2286 = vpop.f32.mrb[0].mxu0
      %v2287 = vpop.f32.mrb[0].mxu0
      %v2288 = vadd.f32 0.0, %v2287
      %v2289 = vpop.f32.mrb[0].mxu0
      %2290 = vmatprep.mubr.bf16.mxu0 0
      %2291 = vmatmul.mubr.bf16.gmra.mrb[0].mxu0 %v1462
      %v2292 = vpop.f32.mrb[0].mxu0
      %v2293 = vadd.f32 0.0, %v2292
      %v2294 = vpop.f32.mrb[0].mxu0
      %v2295 = vpop.f32.mrb[0].mxu0
      %v2296 = vadd.f32 0.0, %v2295
      %v2297 = vpop.f32.mrb[0].mxu0
      %2298 = vmatprep.mubr.bf16.mxu0 0
      %2299 = vmatmul.mubr.bf16.gmra.mrb[0].mxu0 %v2144
      %v2300 = vpop.f32.mrb[0].mxu0
      %v2301 = vadd.f32 0.0, %v2300
      %v2302 = vpop.f32.mrb[0].mxu0
      %v2303 = vpop.f32.mrb[0].mxu0
      %v2304 = vadd.f32 0.0, %v2303
      %v2305 = vpop.f32.mrb[0].mxu0
      %2306 = vdwg.mxu0
      %v2307 = vadd.f32 %v2083, %v2181
      %v2308 = vadd.f32 %v2084, %v2184
      %v2309 = vadd.f32 %v2085, %v2189
      %v2310 = vadd.f32 %v2086, %v2192
      %v2311 = vadd.f32 %v2087, %v2197
      %v2312 = vadd.f32 %v2088, %v2200
      %v2313 = vadd.f32 %v2089, %v2205
      %v2314 = vadd.f32 %v2090, %v2208
      %v2315 = vadd.f32 %v2091, %v2213
      %v2316 = vadd.f32 %v2092, %v2216
      %v2317 = vadd.f32 %v2093, %v2221
      %v2318 = vadd.f32 %v2094, %v2224
      %v2319 = vadd.f32 %v2095, %v2229
      %v2320 = vadd.f32 %v2096, %v2232
      %v2321 = vadd.f32 %v2097, %v2237
      %v2322 = vadd.f32 %v2098, %v2240
      %v2323 = vadd.f32 %v2099, %v2245
      %v2324 = vadd.f32 %v2100, %v2248
      %v2325 = vadd.f32 %v2101, %v2253
      %v2326 = vadd.f32 %v2102, %v2256
      %v2327 = vadd.f32 %v2103, %v2261
      %v2328 = vadd.f32 %v2104, %v2264
      %v2329 = vadd.f32 %v2105, %v2269
      %v2330 = vadd.f32 %v2106, %v2272
      %v2331 = vadd.f32 %v2107, %v2277
      %v2332 = vadd.f32 %v2108, %v2280
      %v2333 = vadd.f32 %v2109, %v2285
      %v2334 = vadd.f32 %v2110, %v2288
      %v2335 = vadd.f32 %v2111, %v2293
      %v2336 = vadd.f32 %v2112, %v2296
      %v2337 = vadd.f32 %v2113, %v2301
      %v2338 = vadd.f32 %v2114, %v2304
      %s2339 = scalar_lea.vmem %s1, 96
      %v2340 = vld [vmem:[%s2339] sm:$0xf]
      %v2341 = vld [vmem:[%s2339 + $0x4] sm:$0xf]
      %v2342 = vld [vmem:[%s2339 + $0x8] sm:$0xf]
      %v2343 = vld [vmem:[%s2339 + $0xc] sm:$0xf]
      %v2346 = vunpack.c.l.b16 %v250
      %v2347 = vunpack.c.l.b16 %v251
      %v2348 = vpack.c.b16 %v2347, %v2346
      %v2353 = vunpack.c.l.b16 %v2340
      %v2354 = vunpack.c.l.b16 %v2341
      %v2355 = vunpack.c.l.b16 %v2342
      %v2356 = vunpack.c.l.b16 %v2343
      %v2357 = vpack.c.b16 %v2354, %v2353
      %v2358 = vpack.c.b16 %v2356, %v2355
      %v2362 = vsel %vm709, %v2348, 0
      %2364 = vmatprep.subr.bf16.mxu0 0
      %2365 = vmatpush1.bf16.msra.mxu0 %v2357
      %2366 = vmatprep.subr.bf16.mxu0 0
      %2367 = vmatpush1.bf16.msra.mxu0 %v2358
      %2368 = vmatprep.subr.bf16.mxu0 0
      %2369 = vmatpush1.bf16.msra.mxu0 0
      %2370 = vmatprep.subr.bf16.mxu0 0
      %2371 = vmatpush1.bf16.msra.mxu0 0
      %2372 = vmatprep.subr.bf16.mxu0 0
      %2373 = vmatpush1.bf16.msra.mxu0 0
      %2374 = vmatprep.subr.bf16.mxu0 0
      %2375 = vmatpush1.bf16.msra.mxu0 0
      %2376 = vmatprep.subr.bf16.mxu0 0
      %2377 = vmatpush1.bf16.msra.mxu0 0
      %2378 = vmatprep.subr.bf16.mxu0 0
      %2379 = vmatpush1.bf16.msra.mxu0 0
      %2380 = vmatprep.subr.bf16.mxu0 0
      %2381 = vmatpush1.bf16.msra.mxu0 0
      %2382 = vmatprep.subr.bf16.mxu0 0
      %2383 = vmatpush1.bf16.msra.mxu0 0
      %2384 = vmatprep.subr.bf16.mxu0 0
      %2385 = vmatpush1.bf16.msra.mxu0 0
      %2386 = vmatprep.subr.bf16.mxu0 0
      %2387 = vmatpush1.bf16.msra.mxu0 0
      %2388 = vmatprep.subr.bf16.mxu0 0
      %2389 = vmatpush1.bf16.msra.mxu0 0
      %2390 = vmatprep.subr.bf16.mxu0 0
      %2391 = vmatpush1.bf16.msra.mxu0 0
      %2392 = vmatprep.subr.bf16.mxu0 0
      %2393 = vmatpush1.bf16.msra.mxu0 0
      %2394 = vmatprep.subr.bf16.mxu0 0
      %2395 = vmatpush1.bf16.msra.mxu0 0
      %2396 = vmatprep.mubr.bf16.mxu0 0
      %2397 = vmatmul.mubr.bf16.gmra.mrb[0].mxu0 %v1018
      %v2398 = vpop.f32.mrb[0].mxu0
      %v2399 = vadd.f32 0.0, %v2398
      %v2400 = vpop.f32.mrb[0].mxu0
      %v2401 = vpop.f32.mrb[0].mxu0
      %v2402 = vadd.f32 0.0, %v2401
      %v2403 = vpop.f32.mrb[0].mxu0
      %2404 = vmatprep.mubr.bf16.mxu0 0
      %2405 = vmatmul.mubr.bf16.gmra.mrb[0].mxu0 %v1021
      %v2406 = vpop.f32.mrb[0].mxu0
      %v2407 = vadd.f32 0.0, %v2406
      %v2408 = vpop.f32.mrb[0].mxu0
      %v2409 = vpop.f32.mrb[0].mxu0
      %v2410 = vadd.f32 0.0, %v2409
      %v2411 = vpop.f32.mrb[0].mxu0
      %2412 = vmatprep.mubr.bf16.mxu0 0
      %2413 = vmatmul.mubr.bf16.gmra.mrb[0].mxu0 %v1024
      %v2414 = vpop.f32.mrb[0].mxu0
      %v2415 = vadd.f32 0.0, %v2414
      %v2416 = vpop.f32.mrb[0].mxu0
      %v2417 = vpop.f32.mrb[0].mxu0
      %v2418 = vadd.f32 0.0, %v2417
      %v2419 = vpop.f32.mrb[0].mxu0
      %2420 = vmatprep.mubr.bf16.mxu0 0
      %2421 = vmatmul.mubr.bf16.gmra.mrb[0].mxu0 %v1027
      %v2422 = vpop.f32.mrb[0].mxu0
      %v2423 = vadd.f32 0.0, %v2422
      %v2424 = vpop.f32.mrb[0].mxu0
      %v2425 = vpop.f32.mrb[0].mxu0
      %v2426 = vadd.f32 0.0, %v2425
      %v2427 = vpop.f32.mrb[0].mxu0
      %2428 = vmatprep.mubr.bf16.mxu0 0
      %2429 = vmatmul.mubr.bf16.gmra.mrb[0].mxu0 %v1030
      %v2430 = vpop.f32.mrb[0].mxu0
      %v2431 = vadd.f32 0.0, %v2430
      %v2432 = vpop.f32.mrb[0].mxu0
      %v2433 = vpop.f32.mrb[0].mxu0
      %v2434 = vadd.f32 0.0, %v2433
      %v2435 = vpop.f32.mrb[0].mxu0
      %2436 = vmatprep.mubr.bf16.mxu0 0
      %2437 = vmatmul.mubr.bf16.gmra.mrb[0].mxu0 %v1033
      %v2438 = vpop.f32.mrb[0].mxu0
      %v2439 = vadd.f32 0.0, %v2438
      %v2440 = vpop.f32.mrb[0].mxu0
      %v2441 = vpop.f32.mrb[0].mxu0
      %v2442 = vadd.f32 0.0, %v2441
      %v2443 = vpop.f32.mrb[0].mxu0
      %2444 = vmatprep.mubr.bf16.mxu0 0
      %2445 = vmatmul.mubr.bf16.gmra.mrb[0].mxu0 %v1036
      %v2446 = vpop.f32.mrb[0].mxu0
      %v2447 = vadd.f32 0.0, %v2446
      %v2448 = vpop.f32.mrb[0].mxu0
      %v2449 = vpop.f32.mrb[0].mxu0
      %v2450 = vadd.f32 0.0, %v2449
      %v2451 = vpop.f32.mrb[0].mxu0
      %2452 = vmatprep.mubr.bf16.mxu0 0
      %2453 = vmatmul.mubr.bf16.gmra.mrb[0].mxu0 %v1039
      %v2454 = vpop.f32.mrb[0].mxu0
      %v2455 = vadd.f32 0.0, %v2454
      %v2456 = vpop.f32.mrb[0].mxu0
      %v2457 = vpop.f32.mrb[0].mxu0
      %v2458 = vadd.f32 0.0, %v2457
      %v2459 = vpop.f32.mrb[0].mxu0
      %2460 = vmatprep.mubr.bf16.mxu0 0
      %2461 = vmatmul.mubr.bf16.gmra.mrb[0].mxu0 %v1042
      %v2462 = vpop.f32.mrb[0].mxu0
      %v2463 = vadd.f32 0.0, %v2462
      %v2464 = vpop.f32.mrb[0].mxu0
      %v2465 = vpop.f32.mrb[0].mxu0
      %v2466 = vadd.f32 0.0, %v2465
      %v2467 = vpop.f32.mrb[0].mxu0
      %2468 = vmatprep.mubr.bf16.mxu0 0
      %2469 = vmatmul.mubr.bf16.gmra.mrb[0].mxu0 %v1045
      %v2470 = vpop.f32.mrb[0].mxu0
      %v2471 = vadd.f32 0.0, %v2470
      %v2472 = vpop.f32.mrb[0].mxu0
      %v2473 = vpop.f32.mrb[0].mxu0
      %v2474 = vadd.f32 0.0, %v2473
      %v2475 = vpop.f32.mrb[0].mxu0
      %2476 = vmatprep.mubr.bf16.mxu0 0
      %2477 = vmatmul.mubr.bf16.gmra.mrb[0].mxu0 %v1048
      %v2478 = vpop.f32.mrb[0].mxu0
      %v2479 = vadd.f32 0.0, %v2478
      %v2480 = vpop.f32.mrb[0].mxu0
      %v2481 = vpop.f32.mrb[0].mxu0
      %v2482 = vadd.f32 0.0, %v2481
      %v2483 = vpop.f32.mrb[0].mxu0
      %2484 = vmatprep.mubr.bf16.mxu0 0
      %2485 = vmatmul.mubr.bf16.gmra.mrb[0].mxu0 %v1051
      %v2486 = vpop.f32.mrb[0].mxu0
      %v2487 = vadd.f32 0.0, %v2486
      %v2488 = vpop.f32.mrb[0].mxu0
      %v2489 = vpop.f32.mrb[0].mxu0
      %v2490 = vadd.f32 0.0, %v2489
      %v2491 = vpop.f32.mrb[0].mxu0
      %2492 = vmatprep.mubr.bf16.mxu0 0
      %2493 = vmatmul.mubr.bf16.gmra.mrb[0].mxu0 %v1054
      %v2494 = vpop.f32.mrb[0].mxu0
      %v2495 = vadd.f32 0.0, %v2494
      %v2496 = vpop.f32.mrb[0].mxu0
      %v2497 = vpop.f32.mrb[0].mxu0
      %v2498 = vadd.f32 0.0, %v2497
      %v2499 = vpop.f32.mrb[0].mxu0
      %2500 = vmatprep.mubr.bf16.mxu0 0
      %2501 = vmatmul.mubr.bf16.gmra.mrb[0].mxu0 %v1057
      %v2502 = vpop.f32.mrb[0].mxu0
      %v2503 = vadd.f32 0.0, %v2502
      %v2504 = vpop.f32.mrb[0].mxu0
      %v2505 = vpop.f32.mrb[0].mxu0
      %v2506 = vadd.f32 0.0, %v2505
      %v2507 = vpop.f32.mrb[0].mxu0
      %2508 = vmatprep.mubr.bf16.mxu0 0
      %2509 = vmatmul.mubr.bf16.gmra.mrb[0].mxu0 %v1680
      %v2510 = vpop.f32.mrb[0].mxu0
      %v2511 = vadd.f32 0.0, %v2510
      %v2512 = vpop.f32.mrb[0].mxu0
      %v2513 = vpop.f32.mrb[0].mxu0
      %v2514 = vadd.f32 0.0, %v2513
      %v2515 = vpop.f32.mrb[0].mxu0
      %2516 = vmatprep.mubr.bf16.mxu0 0
      %2517 = vmatmul.mubr.bf16.gmra.mrb[0].mxu0 %v2362
      %v2518 = vpop.f32.mrb[0].mxu0
      %v2519 = vadd.f32 0.0, %v2518
      %v2520 = vpop.f32.mrb[0].mxu0
      %v2521 = vpop.f32.mrb[0].mxu0
      %v2522 = vadd.f32 0.0, %v2521
      %v2523 = vpop.f32.mrb[0].mxu0
      %2524 = vdwg.mxu0
      %v2525 = vadd.f32 %v2307, %v2399
      %v2526 = vadd.f32 %v2308, %v2402
      %v2527 = vadd.f32 %v2309, %v2407
      %v2528 = vadd.f32 %v2310, %v2410
      %v2529 = vadd.f32 %v2311, %v2415
      %v2530 = vadd.f32 %v2312, %v2418
      %v2531 = vadd.f32 %v2313, %v2423
      %v2532 = vadd.f32 %v2314, %v2426
      %v2533 = vadd.f32 %v2315, %v2431
      %v2534 = vadd.f32 %v2316, %v2434
      %v2535 = vadd.f32 %v2317, %v2439
      %v2536 = vadd.f32 %v2318, %v2442
      %v2537 = vadd.f32 %v2319, %v2447
      %v2538 = vadd.f32 %v2320, %v2450
      %v2539 = vadd.f32 %v2321, %v2455
      %v2540 = vadd.f32 %v2322, %v2458
      %v2541 = vadd.f32 %v2323, %v2463
      %v2542 = vadd.f32 %v2324, %v2466
      %v2543 = vadd.f32 %v2325, %v2471
      %v2544 = vadd.f32 %v2326, %v2474
      %v2545 = vadd.f32 %v2327, %v2479
      %v2546 = vadd.f32 %v2328, %v2482
      %v2547 = vadd.f32 %v2329, %v2487
      %v2548 = vadd.f32 %v2330, %v2490
      %v2549 = vadd.f32 %v2331, %v2495
      %v2550 = vadd.f32 %v2332, %v2498
      %v2551 = vadd.f32 %v2333, %v2503
      %v2552 = vadd.f32 %v2334, %v2506
      %v2553 = vadd.f32 %v2335, %v2511
      %v2554 = vadd.f32 %v2336, %v2514
      %v2555 = vadd.f32 %v2337, %v2519
      %v2556 = vadd.f32 %v2338, %v2522
      %v2558 = vshrl.u32 %v250, 16
      %v2560 = vrot.slane %v2558, 4
      %v2561 = vshll.u32 %v250, 16
      %v2563 = vrot.slane %v2561, 5
      %v2564 = vor.u32 %v2560, %v2563
      %v2565 = vrot.slane %v2564, 4
      %v2567 = vshll.u32 %v251, 16
      %v2569 = vrot.slane %v2567, 5
      %v2570 = vsel %vm259, %v2565, %v2569
      %v2571 = vshrl.u32 %v251, 16
      %v2573 = vrot.slane %v2571, 4
      %v2574 = vor.u32 %v2573, %v2569
      %v2575 = vrot.slane %v2574, 4
      %v2577 = vshll.u32 %v252, 16
      %v2579 = vrot.slane %v2577, 5
      %v2580 = vsel %vm259, %v2575, %v2579
      %s2581 = scalar_lea.vmem %s1, 112
      %v2582 = vld [vmem:[%s2581] sm:$0xf]
      %v2583 = vld [vmem:[%s2581 + $0x4] sm:$0xf]
      %v2584 = vld [vmem:[%s2581 + $0x8] sm:$0xf]
      %v2585 = vld [vmem:[%s2581 + $0xc] sm:$0xf]
      %v2586 = vunpack.c.l.b16 %v2570
      %v2587 = vunpack.c.l.b16 %v2580
      %v2588 = vpack.c.b16 %v2587, %v2586
      %v2593 = vunpack.c.l.b16 %v2582
      %v2594 = vunpack.c.l.b16 %v2583
      %v2595 = vunpack.c.l.b16 %v2584
      %v2596 = vunpack.c.l.b16 %v2585
      %v2597 = vpack.c.b16 %v2594, %v2593
      %v2598 = vpack.c.b16 %v2596, %v2595
      %v2602 = vsel %vm709, %v2588, 0
      %2604 = vmatprep.subr.bf16.mxu0 0
      %2605 = vmatpush1.bf16.msra.mxu0 %v2597
      %2606 = vmatprep.subr.bf16.mxu0 0
      %2607 = vmatpush1.bf16.msra.mxu0 %v2598
      %2608 = vmatprep.subr.bf16.mxu0 0
      %2609 = vmatpush1.bf16.msra.mxu0 0
      %2610 = vmatprep.subr.bf16.mxu0 0
      %2611 = vmatpush1.bf16.msra.mxu0 0
      %2612 = vmatprep.subr.bf16.mxu0 0
      %2613 = vmatpush1.bf16.msra.mxu0 0
      %2614 = vmatprep.subr.bf16.mxu0 0
      %2615 = vmatpush1.bf16.msra.mxu0 0
      %2616 = vmatprep.subr.bf16.mxu0 0
      %2617 = vmatpush1.bf16.msra.mxu0 0
      %2618 = vmatprep.subr.bf16.mxu0 0
      %2619 = vmatpush1.bf16.msra.mxu0 0
      %2620 = vmatprep.subr.bf16.mxu0 0
      %2621 = vmatpush1.bf16.msra.mxu0 0
      %2622 = vmatprep.subr.bf16.mxu0 0
      %2623 = vmatpush1.bf16.msra.mxu0 0
      %2624 = vmatprep.subr.bf16.mxu0 0
      %2625 = vmatpush1.bf16.msra.mxu0 0
      %2626 = vmatprep.subr.bf16.mxu0 0
      %2627 = vmatpush1.bf16.msra.mxu0 0
      %2628 = vmatprep.subr.bf16.mxu0 0
      %2629 = vmatpush1.bf16.msra.mxu0 0
      %2630 = vmatprep.subr.bf16.mxu0 0
      %2631 = vmatpush1.bf16.msra.mxu0 0
      %2632 = vmatprep.subr.bf16.mxu0 0
      %2633 = vmatpush1.bf16.msra.mxu0 0
      %2634 = vmatprep.subr.bf16.mxu0 0
      %2635 = vmatpush1.bf16.msra.mxu0 0
      %2636 = vmatprep.mubr.bf16.mxu0 0
      %2637 = vmatmul.mubr.bf16.gmra.mrb[0].mxu0 %v717
      %v2638 = vpop.f32.mrb[0].mxu0
      %v2639 = vadd.f32 0.0, %v2638
      %v2640 = vpop.f32.mrb[0].mxu0
      %v2641 = vpop.f32.mrb[0].mxu0
      %v2642 = vadd.f32 0.0, %v2641
      %v2643 = vpop.f32.mrb[0].mxu0
      %2644 = vmatprep.mubr.bf16.mxu0 0
      %2645 = vmatmul.mubr.bf16.gmra.mrb[0].mxu0 %v720
      %v2646 = vpop.f32.mrb[0].mxu0
      %v2647 = vadd.f32 0.0, %v2646
      %v2648 = vpop.f32.mrb[0].mxu0
      %v2649 = vpop.f32.mrb[0].mxu0
      %v2650 = vadd.f32 0.0, %v2649
      %v2651 = vpop.f32.mrb[0].mxu0
      %2652 = vmatprep.mubr.bf16.mxu0 0
      %2653 = vmatmul.mubr.bf16.gmra.mrb[0].mxu0 %v723
      %v2654 = vpop.f32.mrb[0].mxu0
      %v2655 = vadd.f32 0.0, %v2654
      %v2656 = vpop.f32.mrb[0].mxu0
      %v2657 = vpop.f32.mrb[0].mxu0
      %v2658 = vadd.f32 0.0, %v2657
      %v2659 = vpop.f32.mrb[0].mxu0
      %2660 = vmatprep.mubr.bf16.mxu0 0
      %2661 = vmatmul.mubr.bf16.gmra.mrb[0].mxu0 %v726
      %v2662 = vpop.f32.mrb[0].mxu0
      %v2663 = vadd.f32 0.0, %v2662
      %v2664 = vpop.f32.mrb[0].mxu0
      %v2665 = vpop.f32.mrb[0].mxu0
      %v2666 = vadd.f32 0.0, %v2665
      %v2667 = vpop.f32.mrb[0].mxu0
      %2668 = vmatprep.mubr.bf16.mxu0 0
      %2669 = vmatmul.mubr.bf16.gmra.mrb[0].mxu0 %v729
      %v2670 = vpop.f32.mrb[0].mxu0
      %v2671 = vadd.f32 0.0, %v2670
      %v2672 = vpop.f32.mrb[0].mxu0
      %v2673 = vpop.f32.mrb[0].mxu0
      %v2674 = vadd.f32 0.0, %v2673
      %v2675 = vpop.f32.mrb[0].mxu0
      %2676 = vmatprep.mubr.bf16.mxu0 0
      %2677 = vmatmul.mubr.bf16.gmra.mrb[0].mxu0 %v732
      %v2678 = vpop.f32.mrb[0].mxu0
      %v2679 = vadd.f32 0.0, %v2678
      %v2680 = vpop.f32.mrb[0].mxu0
      %v2681 = vpop.f32.mrb[0].mxu0
      %v2682 = vadd.f32 0.0, %v2681
      %v2683 = vpop.f32.mrb[0].mxu0
      %2684 = vmatprep.mubr.bf16.mxu0 0
      %2685 = vmatmul.mubr.bf16.gmra.mrb[0].mxu0 %v735
      %v2686 = vpop.f32.mrb[0].mxu0
      %v2687 = vadd.f32 0.0, %v2686
      %v2688 = vpop.f32.mrb[0].mxu0
      %v2689 = vpop.f32.mrb[0].mxu0
      %v2690 = vadd.f32 0.0, %v2689
      %v2691 = vpop.f32.mrb[0].mxu0
      %2692 = vmatprep.mubr.bf16.mxu0 0
      %2693 = vmatmul.mubr.bf16.gmra.mrb[0].mxu0 %v738
      %v2694 = vpop.f32.mrb[0].mxu0
      %v2695 = vadd.f32 0.0, %v2694
      %v2696 = vpop.f32.mrb[0].mxu0
      %v2697 = vpop.f32.mrb[0].mxu0
      %v2698 = vadd.f32 0.0, %v2697
      %v2699 = vpop.f32.mrb[0].mxu0
      %2700 = vmatprep.mubr.bf16.mxu0 0
      %2701 = vmatmul.mubr.bf16.gmra.mrb[0].mxu0 %v741
      %v2702 = vpop.f32.mrb[0].mxu0
      %v2703 = vadd.f32 0.0, %v2702
      %v2704 = vpop.f32.mrb[0].mxu0
      %v2705 = vpop.f32.mrb[0].mxu0
      %v2706 = vadd.f32 0.0, %v2705
      %v2707 = vpop.f32.mrb[0].mxu0
      %2708 = vmatprep.mubr.bf16.mxu0 0
      %2709 = vmatmul.mubr.bf16.gmra.mrb[0].mxu0 %v744
      %v2710 = vpop.f32.mrb[0].mxu0
      %v2711 = vadd.f32 0.0, %v2710
      %v2712 = vpop.f32.mrb[0].mxu0
      %v2713 = vpop.f32.mrb[0].mxu0
      %v2714 = vadd.f32 0.0, %v2713
      %v2715 = vpop.f32.mrb[0].mxu0
      %2716 = vmatprep.mubr.bf16.mxu0 0
      %2717 = vmatmul.mubr.bf16.gmra.mrb[0].mxu0 %v747
      %v2718 = vpop.f32.mrb[0].mxu0
      %v2719 = vadd.f32 0.0, %v2718
      %v2720 = vpop.f32.mrb[0].mxu0
      %v2721 = vpop.f32.mrb[0].mxu0
      %v2722 = vadd.f32 0.0, %v2721
      %v2723 = vpop.f32.mrb[0].mxu0
      %2724 = vmatprep.mubr.bf16.mxu0 0
      %2725 = vmatmul.mubr.bf16.gmra.mrb[0].mxu0 %v750
      %v2726 = vpop.f32.mrb[0].mxu0
      %v2727 = vadd.f32 0.0, %v2726
      %v2728 = vpop.f32.mrb[0].mxu0
      %v2729 = vpop.f32.mrb[0].mxu0
      %v2730 = vadd.f32 0.0, %v2729
      %v2731 = vpop.f32.mrb[0].mxu0
      %2732 = vmatprep.mubr.bf16.mxu0 0
      %2733 = vmatmul.mubr.bf16.gmra.mrb[0].mxu0 %v753
      %v2734 = vpop.f32.mrb[0].mxu0
      %v2735 = vadd.f32 0.0, %v2734
      %v2736 = vpop.f32.mrb[0].mxu0
      %v2737 = vpop.f32.mrb[0].mxu0
      %v2738 = vadd.f32 0.0, %v2737
      %v2739 = vpop.f32.mrb[0].mxu0
      %2740 = vmatprep.mubr.bf16.mxu0 0
      %2741 = vmatmul.mubr.bf16.gmra.mrb[0].mxu0 %v756
      %v2742 = vpop.f32.mrb[0].mxu0
      %v2743 = vadd.f32 0.0, %v2742
      %v2744 = vpop.f32.mrb[0].mxu0
      %v2745 = vpop.f32.mrb[0].mxu0
      %v2746 = vadd.f32 0.0, %v2745
      %v2747 = vpop.f32.mrb[0].mxu0
      %2748 = vmatprep.mubr.bf16.mxu0 0
      %2749 = vmatmul.mubr.bf16.gmra.mrb[0].mxu0 %v1920
      %v2750 = vpop.f32.mrb[0].mxu0
      %v2751 = vadd.f32 0.0, %v2750
      %v2752 = vpop.f32.mrb[0].mxu0
      %v2753 = vpop.f32.mrb[0].mxu0
      %v2754 = vadd.f32 0.0, %v2753
      %v2755 = vpop.f32.mrb[0].mxu0
      %2756 = vmatprep.mubr.bf16.mxu0 0
      %2757 = vmatmul.mubr.bf16.gmra.mrb[0].mxu0 %v2602
      %v2758 = vpop.f32.mrb[0].mxu0
      %v2759 = vadd.f32 0.0, %v2758
      %v2760 = vpop.f32.mrb[0].mxu0
      %v2761 = vpop.f32.mrb[0].mxu0
      %v2762 = vadd.f32 0.0, %v2761
      %v2763 = vpop.f32.mrb[0].mxu0
      %2764 = vdwg.mxu0
      %v2765 = vadd.f32 %v2525, %v2639
      %v2766 = vadd.f32 %v2526, %v2642
      %v2767 = vadd.f32 %v2527, %v2647
      %v2768 = vadd.f32 %v2528, %v2650
      %v2769 = vadd.f32 %v2529, %v2655
      %v2770 = vadd.f32 %v2530, %v2658
      %v2771 = vadd.f32 %v2531, %v2663
      %v2772 = vadd.f32 %v2532, %v2666
      %v2773 = vadd.f32 %v2533, %v2671
      %v2774 = vadd.f32 %v2534, %v2674
      %v2775 = vadd.f32 %v2535, %v2679
      %v2776 = vadd.f32 %v2536, %v2682
      %v2777 = vadd.f32 %v2537, %v2687
      %v2778 = vadd.f32 %v2538, %v2690
      %v2779 = vadd.f32 %v2539, %v2695
      %v2780 = vadd.f32 %v2540, %v2698
      %v2781 = vadd.f32 %v2541, %v2703
      %v2782 = vadd.f32 %v2542, %v2706
      %v2783 = vadd.f32 %v2543, %v2711
      %v2784 = vadd.f32 %v2544, %v2714
      %v2785 = vadd.f32 %v2545, %v2719
      %v2786 = vadd.f32 %v2546, %v2722
      %v2787 = vadd.f32 %v2547, %v2727
      %v2788 = vadd.f32 %v2548, %v2730
      %v2789 = vadd.f32 %v2549, %v2735
      %v2790 = vadd.f32 %v2550, %v2738
      %v2791 = vadd.f32 %v2551, %v2743
      %v2792 = vadd.f32 %v2552, %v2746
      %v2793 = vadd.f32 %v2553, %v2751
      %v2794 = vadd.f32 %v2554, %v2754
      %v2795 = vadd.f32 %v2555, %v2759
      %v2796 = vadd.f32 %v2556, %v2762
      %v2798 = vrot.slane %v250, 5
      %v2799 = vrot.slane %v2798, 4
      %v2800 = vrot.slane %v251, 5
      %v2801 = vsel %vm1238, %v2799, %v2800
      %v2802 = vrot.slane %v2800, 4
      %v2803 = vrot.slane %v252, 5
      %v2804 = vsel %vm1238, %v2802, %v2803
      %s2805 = scalar_lea.vmem %s1, 128
      %v2806 = vld [vmem:[%s2805] sm:$0xf]
      %v2807 = vld [vmem:[%s2805 + $0x4] sm:$0xf]
      %v2808 = vld [vmem:[%s2805 + $0x8] sm:$0xf]
      %v2809 = vld [vmem:[%s2805 + $0xc] sm:$0xf]
      %v2810 = vunpack.c.l.b16 %v2801
      %v2811 = vunpack.c.l.b16 %v2804
      %v2812 = vpack.c.b16 %v2811, %v2810
      %v2817 = vunpack.c.l.b16 %v2806
      %v2818 = vunpack.c.l.b16 %v2807
      %v2819 = vunpack.c.l.b16 %v2808
      %v2820 = vunpack.c.l.b16 %v2809
      %v2821 = vpack.c.b16 %v2818, %v2817
      %v2822 = vpack.c.b16 %v2820, %v2819
      %v2826 = vsel %vm709, %v2812, 0
      %2828 = vmatprep.subr.bf16.mxu0 0
      %2829 = vmatpush1.bf16.msra.mxu0 %v2821
      %2830 = vmatprep.subr.bf16.mxu0 0
      %2831 = vmatpush1.bf16.msra.mxu0 %v2822
      %2832 = vmatprep.subr.bf16.mxu0 0
      %2833 = vmatpush1.bf16.msra.mxu0 0
      %2834 = vmatprep.subr.bf16.mxu0 0
      %2835 = vmatpush1.bf16.msra.mxu0 0
      %2836 = vmatprep.subr.bf16.mxu0 0
      %2837 = vmatpush1.bf16.msra.mxu0 0
      %2838 = vmatprep.subr.bf16.mxu0 0
      %2839 = vmatpush1.bf16.msra.mxu0 0
      %2840 = vmatprep.subr.bf16.mxu0 0
      %2841 = vmatpush1.bf16.msra.mxu0 0
      %2842 = vmatprep.subr.bf16.mxu0 0
      %2843 = vmatpush1.bf16.msra.mxu0 0
      %2844 = vmatprep.subr.bf16.mxu0 0
      %2845 = vmatpush1.bf16.msra.mxu0 0
      %2846 = vmatprep.subr.bf16.mxu0 0
      %2847 = vmatpush1.bf16.msra.mxu0 0
      %2848 = vmatprep.subr.bf16.mxu0 0
      %2849 = vmatpush1.bf16.msra.mxu0 0
      %2850 = vmatprep.subr.bf16.mxu0 0
      %2851 = vmatpush1.bf16.msra.mxu0 0
      %2852 = vmatprep.subr.bf16.mxu0 0
      %2853 = vmatpush1.bf16.msra.mxu0 0
      %2854 = vmatprep.subr.bf16.mxu0 0
      %2855 = vmatpush1.bf16.msra.mxu0 0
      %2856 = vmatprep.subr.bf16.mxu0 0
      %2857 = vmatpush1.bf16.msra.mxu0 0
      %2858 = vmatprep.subr.bf16.mxu0 0
      %2859 = vmatpush1.bf16.msra.mxu0 0
      %2860 = vmatprep.mubr.bf16.mxu0 0
      %2861 = vmatmul.mubr.bf16.gmra.mrb[0].mxu0 %v1423
      %v2862 = vpop.f32.mrb[0].mxu0
      %v2863 = vadd.f32 0.0, %v2862
      %v2864 = vpop.f32.mrb[0].mxu0
      %v2865 = vpop.f32.mrb[0].mxu0
      %v2866 = vadd.f32 0.0, %v2865
      %v2867 = vpop.f32.mrb[0].mxu0
      %2868 = vmatprep.mubr.bf16.mxu0 0
      %2869 = vmatmul.mubr.bf16.gmra.mrb[0].mxu0 %v1426
      %v2870 = vpop.f32.mrb[0].mxu0
      %v2871 = vadd.f32 0.0, %v2870
      %v2872 = vpop.f32.mrb[0].mxu0
      %v2873 = vpop.f32.mrb[0].mxu0
      %v2874 = vadd.f32 0.0, %v2873
      %v2875 = vpop.f32.mrb[0].mxu0
      %2876 = vmatprep.mubr.bf16.mxu0 0
      %2877 = vmatmul.mubr.bf16.gmra.mrb[0].mxu0 %v1429
      %v2878 = vpop.f32.mrb[0].mxu0
      %v2879 = vadd.f32 0.0, %v2878
      %v2880 = vpop.f32.mrb[0].mxu0
      %v2881 = vpop.f32.mrb[0].mxu0
      %v2882 = vadd.f32 0.0, %v2881
      %v2883 = vpop.f32.mrb[0].mxu0
      %2884 = vmatprep.mubr.bf16.mxu0 0
      %2885 = vmatmul.mubr.bf16.gmra.mrb[0].mxu0 %v1432
      %v2886 = vpop.f32.mrb[0].mxu0
      %v2887 = vadd.f32 0.0, %v2886
      %v2888 = vpop.f32.mrb[0].mxu0
      %v2889 = vpop.f32.mrb[0].mxu0
      %v2890 = vadd.f32 0.0, %v2889
      %v2891 = vpop.f32.mrb[0].mxu0
      %2892 = vmatprep.mubr.bf16.mxu0 0
      %2893 = vmatmul.mubr.bf16.gmra.mrb[0].mxu0 %v1435
      %v2894 = vpop.f32.mrb[0].mxu0
      %v2895 = vadd.f32 0.0, %v2894
      %v2896 = vpop.f32.mrb[0].mxu0
      %v2897 = vpop.f32.mrb[0].mxu0
      %v2898 = vadd.f32 0.0, %v2897
      %v2899 = vpop.f32.mrb[0].mxu0
      %2900 = vmatprep.mubr.bf16.mxu0 0
      %2901 = vmatmul.mubr.bf16.gmra.mrb[0].mxu0 %v1438
      %v2902 = vpop.f32.mrb[0].mxu0
      %v2903 = vadd.f32 0.0, %v2902
      %v2904 = vpop.f32.mrb[0].mxu0
      %v2905 = vpop.f32.mrb[0].mxu0
      %v2906 = vadd.f32 0.0, %v2905
      %v2907 = vpop.f32.mrb[0].mxu0
      %2908 = vmatprep.mubr.bf16.mxu0 0
      %2909 = vmatmul.mubr.bf16.gmra.mrb[0].mxu0 %v1441
      %v2910 = vpop.f32.mrb[0].mxu0
      %v2911 = vadd.f32 0.0, %v2910
      %v2912 = vpop.f32.mrb[0].mxu0
      %v2913 = vpop.f32.mrb[0].mxu0
      %v2914 = vadd.f32 0.0, %v2913
      %v2915 = vpop.f32.mrb[0].mxu0
      %2916 = vmatprep.mubr.bf16.mxu0 0
      %2917 = vmatmul.mubr.bf16.gmra.mrb[0].mxu0 %v1444
      %v2918 = vpop.f32.mrb[0].mxu0
      %v2919 = vadd.f32 0.0, %v2918
      %v2920 = vpop.f32.mrb[0].mxu0
      %v2921 = vpop.f32.mrb[0].mxu0
      %v2922 = vadd.f32 0.0, %v2921
      %v2923 = vpop.f32.mrb[0].mxu0
      %2924 = vmatprep.mubr.bf16.mxu0 0
      %2925 = vmatmul.mubr.bf16.gmra.mrb[0].mxu0 %v1447
      %v2926 = vpop.f32.mrb[0].mxu0
      %v2927 = vadd.f32 0.0, %v2926
      %v2928 = vpop.f32.mrb[0].mxu0
      %v2929 = vpop.f32.mrb[0].mxu0
      %v2930 = vadd.f32 0.0, %v2929
      %v2931 = vpop.f32.mrb[0].mxu0
      %2932 = vmatprep.mubr.bf16.mxu0 0
      %2933 = vmatmul.mubr.bf16.gmra.mrb[0].mxu0 %v1450
      %v2934 = vpop.f32.mrb[0].mxu0
      %v2935 = vadd.f32 0.0, %v2934
      %v2936 = vpop.f32.mrb[0].mxu0
      %v2937 = vpop.f32.mrb[0].mxu0
      %v2938 = vadd.f32 0.0, %v2937
      %v2939 = vpop.f32.mrb[0].mxu0
      %2940 = vmatprep.mubr.bf16.mxu0 0
      %2941 = vmatmul.mubr.bf16.gmra.mrb[0].mxu0 %v1453
      %v2942 = vpop.f32.mrb[0].mxu0
      %v2943 = vadd.f32 0.0, %v2942
      %v2944 = vpop.f32.mrb[0].mxu0
      %v2945 = vpop.f32.mrb[0].mxu0
      %v2946 = vadd.f32 0.0, %v2945
      %v2947 = vpop.f32.mrb[0].mxu0
      %2948 = vmatprep.mubr.bf16.mxu0 0
      %2949 = vmatmul.mubr.bf16.gmra.mrb[0].mxu0 %v1456
      %v2950 = vpop.f32.mrb[0].mxu0
      %v2951 = vadd.f32 0.0, %v2950
      %v2952 = vpop.f32.mrb[0].mxu0
      %v2953 = vpop.f32.mrb[0].mxu0
      %v2954 = vadd.f32 0.0, %v2953
      %v2955 = vpop.f32.mrb[0].mxu0
      %2956 = vmatprep.mubr.bf16.mxu0 0
      %2957 = vmatmul.mubr.bf16.gmra.mrb[0].mxu0 %v1459
      %v2958 = vpop.f32.mrb[0].mxu0
      %v2959 = vadd.f32 0.0, %v2958
      %v2960 = vpop.f32.mrb[0].mxu0
      %v2961 = vpop.f32.mrb[0].mxu0
      %v2962 = vadd.f32 0.0, %v2961
      %v2963 = vpop.f32.mrb[0].mxu0
      %2964 = vmatprep.mubr.bf16.mxu0 0
      %2965 = vmatmul.mubr.bf16.gmra.mrb[0].mxu0 %v1462
      %v2966 = vpop.f32.mrb[0].mxu0
      %v2967 = vadd.f32 0.0, %v2966
      %v2968 = vpop.f32.mrb[0].mxu0
      %v2969 = vpop.f32.mrb[0].mxu0
      %v2970 = vadd.f32 0.0, %v2969
      %v2971 = vpop.f32.mrb[0].mxu0
      %2972 = vmatprep.mubr.bf16.mxu0 0
      %2973 = vmatmul.mubr.bf16.gmra.mrb[0].mxu0 %v2144
      %v2974 = vpop.f32.mrb[0].mxu0
      %v2975 = vadd.f32 0.0, %v2974
      %v2976 = vpop.f32.mrb[0].mxu0
      %v2977 = vpop.f32.mrb[0].mxu0
      %v2978 = vadd.f32 0.0, %v2977
      %v2979 = vpop.f32.mrb[0].mxu0
      %2980 = vmatprep.mubr.bf16.mxu0 0
      %2981 = vmatmul.mubr.bf16.gmra.mrb[0].mxu0 %v2826
      %v2982 = vpop.f32.mrb[0].mxu0
      %v2983 = vadd.f32 0.0, %v2982
      %v2984 = vpop.f32.mrb[0].mxu0
      %v2985 = vpop.f32.mrb[0].mxu0
      %v2986 = vadd.f32 0.0, %v2985
      %v2987 = vpop.f32.mrb[0].mxu0
      %2988 = vdwg.mxu0
      %v2989 = vadd.f32 %v2765, %v2863
      %v2990 = vadd.f32 %v2766, %v2866
      %v2991 = vadd.f32 %v2767, %v2871
      %v2992 = vadd.f32 %v2768, %v2874
      %v2993 = vadd.f32 %v2769, %v2879
      %v2994 = vadd.f32 %v2770, %v2882
      %v2995 = vadd.f32 %v2771, %v2887
      %v2996 = vadd.f32 %v2772, %v2890
      %v2997 = vadd.f32 %v2773, %v2895
      %v2998 = vadd.f32 %v2774, %v2898
      %v2999 = vadd.f32 %v2775, %v2903
      %v3000 = vadd.f32 %v2776, %v2906
      %v3001 = vadd.f32 %v2777, %v2911
      %v3002 = vadd.f32 %v2778, %v2914
      %v3003 = vadd.f32 %v2779, %v2919
      %v3004 = vadd.f32 %v2780, %v2922
      %v3005 = vadd.f32 %v2781, %v2927
      %v3006 = vadd.f32 %v2782, %v2930
      %v3007 = vadd.f32 %v2783, %v2935
      %v3008 = vadd.f32 %v2784, %v2938
      %v3009 = vadd.f32 %v2785, %v2943
      %v3010 = vadd.f32 %v2786, %v2946
      %v3011 = vadd.f32 %v2787, %v2951
      %v3012 = vadd.f32 %v2788, %v2954
      %v3013 = vadd.f32 %v2789, %v2959
      %v3014 = vadd.f32 %v2790, %v2962
      %v3015 = vadd.f32 %v2791, %v2967
      %v3016 = vadd.f32 %v2792, %v2970
      %v3017 = vadd.f32 %v2793, %v2975
      %v3018 = vadd.f32 %v2794, %v2978
      %v3019 = vadd.f32 %v2795, %v2983
      %v3020 = vadd.f32 %v2796, %v2986
      %v3021 = vld [vmem:[%s2] sm:$0x1]
      %v3023 = vlaneseq
      %v3024 = vshrl.u32 %v3023, 7
      %v3025 = vsub.s32 0, %v3024
      %v3026 = vrot.slane %v3021, %v3025
      %v3028 = vadd.f32 %v2989, %v3026
      %v3029 = vadd.f32 %v2990, %v3026
      %v3030 = vadd.f32 %v2991, %v3026
      %v3031 = vadd.f32 %v2992, %v3026
      %v3032 = vadd.f32 %v2993, %v3026
      %v3033 = vadd.f32 %v2994, %v3026
      %v3034 = vadd.f32 %v2995, %v3026
      %v3035 = vadd.f32 %v2996, %v3026
      %v3036 = vadd.f32 %v2997, %v3026
      %v3037 = vadd.f32 %v2998, %v3026
      %v3038 = vadd.f32 %v2999, %v3026
      %v3039 = vadd.f32 %v3000, %v3026
      %v3040 = vadd.f32 %v3001, %v3026
      %v3041 = vadd.f32 %v3002, %v3026
      %v3042 = vadd.f32 %v3003, %v3026
      %v3043 = vadd.f32 %v3004, %v3026
      %v3044 = vadd.f32 %v3005, %v3026
      %v3045 = vadd.f32 %v3006, %v3026
      %v3046 = vadd.f32 %v3007, %v3026
      %v3047 = vadd.f32 %v3008, %v3026
      %v3048 = vadd.f32 %v3009, %v3026
      %v3049 = vadd.f32 %v3010, %v3026
      %v3050 = vadd.f32 %v3011, %v3026
      %v3051 = vadd.f32 %v3012, %v3026
      %v3052 = vadd.f32 %v3013, %v3026
      %v3053 = vadd.f32 %v3014, %v3026
      %v3054 = vadd.f32 %v3015, %v3026
      %v3055 = vadd.f32 %v3016, %v3026
      %v3056 = vadd.f32 %v3017, %v3026
      %v3057 = vadd.f32 %v3018, %v3026
      %v3058 = vadd.f32 %v3019, %v3026
      %v3059 = vadd.f32 %v3020, %v3026
      %vm3060 = vcmp.gt.f32.partialorder %v3028, 0.0
      %vm3061 = vcmp.gt.f32.partialorder %v3029, 0.0
      %vm3062 = vcmp.gt.f32.partialorder %v3030, 0.0
      %vm3063 = vcmp.gt.f32.partialorder %v3031, 0.0
      %vm3064 = vcmp.gt.f32.partialorder %v3032, 0.0
      %vm3065 = vcmp.gt.f32.partialorder %v3033, 0.0
      %vm3066 = vcmp.gt.f32.partialorder %v3034, 0.0
      %vm3067 = vcmp.gt.f32.partialorder %v3035, 0.0
      %vm3068 = vcmp.gt.f32.partialorder %v3036, 0.0
      %vm3069 = vcmp.gt.f32.partialorder %v3037, 0.0
      %vm3070 = vcmp.gt.f32.partialorder %v3038, 0.0
      %vm3071 = vcmp.gt.f32.partialorder %v3039, 0.0
      %vm3072 = vcmp.gt.f32.partialorder %v3040, 0.0
      %vm3073 = vcmp.gt.f32.partialorder %v3041, 0.0
      %vm3074 = vcmp.gt.f32.partialorder %v3042, 0.0
      %vm3075 = vcmp.gt.f32.partialorder %v3043, 0.0
      %vm3076 = vcmp.gt.f32.partialorder %v3044, 0.0
      %vm3077 = vcmp.gt.f32.partialorder %v3045, 0.0
      %vm3078 = vcmp.gt.f32.partialorder %v3046, 0.0
      %vm3079 = vcmp.gt.f32.partialorder %v3047, 0.0
      %vm3080 = vcmp.gt.f32.partialorder %v3048, 0.0
      %vm3081 = vcmp.gt.f32.partialorder %v3049, 0.0
      %vm3082 = vcmp.gt.f32.partialorder %v3050, 0.0
      %vm3083 = vcmp.gt.f32.partialorder %v3051, 0.0
      %vm3084 = vcmp.gt.f32.partialorder %v3052, 0.0
      %vm3085 = vcmp.gt.f32.partialorder %v3053, 0.0
      %vm3086 = vcmp.gt.f32.partialorder %v3054, 0.0
      %vm3087 = vcmp.gt.f32.partialorder %v3055, 0.0
      %vm3088 = vcmp.gt.f32.partialorder %v3056, 0.0
      %vm3089 = vcmp.gt.f32.partialorder %v3057, 0.0
      %vm3090 = vcmp.gt.f32.partialorder %v3058, 0.0
      %vm3091 = vcmp.gt.f32.partialorder %v3059, 0.0
      %v3092 = vld [vmem:[%s3] sm:$0x1]
      %v3094 = vlaneseq
      %v3095 = vshrl.u32 %v3094, 7
      %v3096 = vsub.s32 0, %v3095
      %v3097 = vrot.slane %v3092, %v3096
      %v3099 = vmul.f32 %v3028, %v3097
      %v3100 = vmul.f32 %v3029, %v3097
      %v3101 = vmul.f32 %v3030, %v3097
      %v3102 = vmul.f32 %v3031, %v3097
      %v3103 = vmul.f32 %v3032, %v3097
      %v3104 = vmul.f32 %v3033, %v3097
      %v3105 = vmul.f32 %v3034, %v3097
      %v3106 = vmul.f32 %v3035, %v3097
      %v3107 = vmul.f32 %v3036, %v3097
      %v3108 = vmul.f32 %v3037, %v3097
      %v3109 = vmul.f32 %v3038, %v3097
      %v3110 = vmul.f32 %v3039, %v3097
      %v3111 = vmul.f32 %v3040, %v3097
      %v3112 = vmul.f32 %v3041, %v3097
      %v3113 = vmul.f32 %v3042, %v3097
      %v3114 = vmul.f32 %v3043, %v3097
      %v3115 = vmul.f32 %v3044, %v3097
      %v3116 = vmul.f32 %v3045, %v3097
      %v3117 = vmul.f32 %v3046, %v3097
      %v3118 = vmul.f32 %v3047, %v3097
      %v3119 = vmul.f32 %v3048, %v3097
      %v3120 = vmul.f32 %v3049, %v3097
      %v3121 = vmul.f32 %v3050, %v3097
      %v3122 = vmul.f32 %v3051, %v3097
      %v3123 = vmul.f32 %v3052, %v3097
      %v3124 = vmul.f32 %v3053, %v3097
      %v3125 = vmul.f32 %v3054, %v3097
      %v3126 = vmul.f32 %v3055, %v3097
      %v3127 = vmul.f32 %v3056, %v3097
      %v3128 = vmul.f32 %v3057, %v3097
      %v3129 = vmul.f32 %v3058, %v3097
      %v3130 = vmul.f32 %v3059, %v3097
      %v3131 = vsel %vm3060, %v3028, %v3099
      %v3132 = vsel %vm3061, %v3029, %v3100
      %v3133 = vsel %vm3062, %v3030, %v3101
      %v3134 = vsel %vm3063, %v3031, %v3102
      %v3135 = vsel %vm3064, %v3032, %v3103
      %v3136 = vsel %vm3065, %v3033, %v3104
      %v3137 = vsel %vm3066, %v3034, %v3105
      %v3138 = vsel %vm3067, %v3035, %v3106
      %v3139 = vsel %vm3068, %v3036, %v3107
      %v3140 = vsel %vm3069, %v3037, %v3108
      %v3141 = vsel %vm3070, %v3038, %v3109
      %v3142 = vsel %vm3071, %v3039, %v3110
      %v3143 = vsel %vm3072, %v3040, %v3111
      %v3144 = vsel %vm3073, %v3041, %v3112
      %v3145 = vsel %vm3074, %v3042, %v3113
      %v3146 = vsel %vm3075, %v3043, %v3114
      %v3147 = vsel %vm3076, %v3044, %v3115
      %v3148 = vsel %vm3077, %v3045, %v3116
      %v3149 = vsel %vm3078, %v3046, %v3117
      %v3150 = vsel %vm3079, %v3047, %v3118
      %v3151 = vsel %vm3080, %v3048, %v3119
      %v3152 = vsel %vm3081, %v3049, %v3120
      %v3153 = vsel %vm3082, %v3050, %v3121
      %v3154 = vsel %vm3083, %v3051, %v3122
      %v3155 = vsel %vm3084, %v3052, %v3123
      %v3156 = vsel %vm3085, %v3053, %v3124
      %v3157 = vsel %vm3086, %v3054, %v3125
      %v3158 = vsel %vm3087, %v3055, %v3126
      %v3159 = vsel %vm3088, %v3056, %v3127
      %v3160 = vsel %vm3089, %v3057, %v3128
      %v3161 = vsel %vm3090, %v3058, %v3129
      %v3162 = vsel %vm3091, %v3059, %v3130
      %v3195 = vcombine.high %v3131, %v3131
      %v3197 = vunpack.c.l.s4 1983009808
      %v3198 = vunpack.c.0.s8 %v3197
      %v3199 = vlaneseq
      %v3200 = vshrl.u32 %v3199, 7
      %v3201 = vsub.s32 %v3198, %v3200
      %v3202 = vrot.slane %v3131, %v3201
      %v3204 = vunpack.c.l.s4 1983009808
      %v3205 = vunpack.c.0.s8 %v3204
      %v3206 = vlaneseq
      %v3207 = vshrl.u32 %v3206, 7
      %v3208 = vsub.s32 %v3205, %v3207
      %v3209 = vrot.slane %v3195, %v3208
      %v3210 = vcombine.high %v3202, %v3202
      %v3211 = vcombine.high %v3209, %v3209
      %v3212 = vcombine.high %v3132, %v3132
      %v3214 = vunpack.c.l.s4 1983009808
      %v3215 = vunpack.c.0.s8 %v3214
      %v3216 = vlaneseq
      %v3217 = vshrl.u32 %v3216, 7
      %v3218 = vsub.s32 %v3215, %v3217
      %v3219 = vrot.slane %v3132, %v3218
      %v3221 = vunpack.c.l.s4 1983009808
      %v3222 = vunpack.c.0.s8 %v3221
      %v3223 = vlaneseq
      %v3224 = vshrl.u32 %v3223, 7
      %v3225 = vsub.s32 %v3222, %v3224
      %v3226 = vrot.slane %v3212, %v3225
      %v3227 = vcombine.high %v3219, %v3219
      %v3228 = vcombine.high %v3226, %v3226
      %v3229 = vcombine.high %v3133, %v3133
      %v3231 = vunpack.c.l.s4 1983009808
      %v3232 = vunpack.c.0.s8 %v3231
      %v3233 = vlaneseq
      %v3234 = vshrl.u32 %v3233, 7
      %v3235 = vsub.s32 %v3232, %v3234
      %v3236 = vrot.slane %v3133, %v3235
      %v3238 = vunpack.c.l.s4 1983009808
      %v3239 = vunpack.c.0.s8 %v3238
      %v3240 = vlaneseq
      %v3241 = vshrl.u32 %v3240, 7
      %v3242 = vsub.s32 %v3239, %v3241
      %v3243 = vrot.slane %v3229, %v3242
      %v3244 = vcombine.high %v3236, %v3236
      %v3245 = vcombine.high %v3243, %v3243
      %v3246 = vcombine.high %v3134, %v3134
      %v3248 = vunpack.c.l.s4 1983009808
      %v3249 = vunpack.c.0.s8 %v3248
      %v3250 = vlaneseq
      %v3251 = vshrl.u32 %v3250, 7
      %v3252 = vsub.s32 %v3249, %v3251
      %v3253 = vrot.slane %v3134, %v3252
      %v3255 = vunpack.c.l.s4 1983009808
      %v3256 = vunpack.c.0.s8 %v3255
      %v3257 = vlaneseq
      %v3258 = vshrl.u32 %v3257, 7
      %v3259 = vsub.s32 %v3256, %v3258
      %v3260 = vrot.slane %v3246, %v3259
      %v3261 = vcombine.high %v3253, %v3253
      %v3262 = vcombine.high %v3260, %v3260
      %v3263 = vcombine.high %v3135, %v3135
      %v3265 = vunpack.c.l.s4 1983009808
      %v3266 = vunpack.c.0.s8 %v3265
      %v3267 = vlaneseq
      %v3268 = vshrl.u32 %v3267, 7
      %v3269 = vsub.s32 %v3266, %v3268
      %v3270 = vrot.slane %v3135, %v3269
      %v3272 = vunpack.c.l.s4 1983009808
      %v3273 = vunpack.c.0.s8 %v3272
      %v3274 = vlaneseq
      %v3275 = vshrl.u32 %v3274, 7
      %v3276 = vsub.s32 %v3273, %v3275
      %v3277 = vrot.slane %v3263, %v3276
      %v3278 = vcombine.high %v3270, %v3270
      %v3279 = vcombine.high %v3277, %v3277
      %v3280 = vcombine.high %v3136, %v3136
      %v3282 = vunpack.c.l.s4 1983009808
      %v3283 = vunpack.c.0.s8 %v3282
      %v3284 = vlaneseq
      %v3285 = vshrl.u32 %v3284, 7
      %v3286 = vsub.s32 %v3283, %v3285
      %v3287 = vrot.slane %v3136, %v3286
      %v3289 = vunpack.c.l.s4 1983009808
      %v3290 = vunpack.c.0.s8 %v3289
      %v3291 = vlaneseq
      %v3292 = vshrl.u32 %v3291, 7
      %v3293 = vsub.s32 %v3290, %v3292
      %v3294 = vrot.slane %v3280, %v3293
      %v3295 = vcombine.high %v3287, %v3287
      %v3296 = vcombine.high %v3294, %v3294
      %v3297 = vcombine.high %v3137, %v3137
      %v3299 = vunpack.c.l.s4 1983009808
      %v3300 = vunpack.c.0.s8 %v3299
      %v3301 = vlaneseq
      %v3302 = vshrl.u32 %v3301, 7
      %v3303 = vsub.s32 %v3300, %v3302
      %v3304 = vrot.slane %v3137, %v3303
      %v3306 = vunpack.c.l.s4 1983009808
      %v3307 = vunpack.c.0.s8 %v3306
      %v3308 = vlaneseq
      %v3309 = vshrl.u32 %v3308, 7
      %v3310 = vsub.s32 %v3307, %v3309
      %v3311 = vrot.slane %v3297, %v3310
      %v3312 = vcombine.high %v3304, %v3304
      %v3313 = vcombine.high %v3311, %v3311
      %v3314 = vcombine.high %v3138, %v3138
      %v3316 = vunpack.c.l.s4 1983009808
      %v3317 = vunpack.c.0.s8 %v3316
      %v3318 = vlaneseq
      %v3319 = vshrl.u32 %v3318, 7
      %v3320 = vsub.s32 %v3317, %v3319
      %v3321 = vrot.slane %v3138, %v3320
      %v3323 = vunpack.c.l.s4 1983009808
      %v3324 = vunpack.c.0.s8 %v3323
      %v3325 = vlaneseq
      %v3326 = vshrl.u32 %v3325, 7
      %v3327 = vsub.s32 %v3324, %v3326
      %v3328 = vrot.slane %v3314, %v3327
      %v3329 = vcombine.high %v3321, %v3321
      %v3330 = vcombine.high %v3328, %v3328
      %v3331 = vcombine.high %v3139, %v3139
      %v3333 = vunpack.c.l.s4 1983009808
      %v3334 = vunpack.c.0.s8 %v3333
      %v3335 = vlaneseq
      %v3336 = vshrl.u32 %v3335, 7
      %v3337 = vsub.s32 %v3334, %v3336
      %v3338 = vrot.slane %v3139, %v3337
      %v3340 = vunpack.c.l.s4 1983009808
      %v3341 = vunpack.c.0.s8 %v3340
      %v3342 = vlaneseq
      %v3343 = vshrl.u32 %v3342, 7
      %v3344 = vsub.s32 %v3341, %v3343
      %v3345 = vrot.slane %v3331, %v3344
      %v3346 = vcombine.high %v3338, %v3338
      %v3347 = vcombine.high %v3345, %v3345
      %v3348 = vcombine.high %v3140, %v3140
      %v3350 = vunpack.c.l.s4 1983009808
      %v3351 = vunpack.c.0.s8 %v3350
      %v3352 = vlaneseq
      %v3353 = vshrl.u32 %v3352, 7
      %v3354 = vsub.s32 %v3351, %v3353
      %v3355 = vrot.slane %v3140, %v3354
      %v3357 = vunpack.c.l.s4 1983009808
      %v3358 = vunpack.c.0.s8 %v3357
      %v3359 = vlaneseq
      %v3360 = vshrl.u32 %v3359, 7
      %v3361 = vsub.s32 %v3358, %v3360
      %v3362 = vrot.slane %v3348, %v3361
      %v3363 = vcombine.high %v3355, %v3355
      %v3364 = vcombine.high %v3362, %v3362
      %v3365 = vcombine.high %v3141, %v3141
      %v3367 = vunpack.c.l.s4 1983009808
      %v3368 = vunpack.c.0.s8 %v3367
      %v3369 = vlaneseq
      %v3370 = vshrl.u32 %v3369, 7
      %v3371 = vsub.s32 %v3368, %v3370
      %v3372 = vrot.slane %v3141, %v3371
      %v3374 = vunpack.c.l.s4 1983009808
      %v3375 = vunpack.c.0.s8 %v3374
      %v3376 = vlaneseq
      %v3377 = vshrl.u32 %v3376, 7
      %v3378 = vsub.s32 %v3375, %v3377
      %v3379 = vrot.slane %v3365, %v3378
      %v3380 = vcombine.high %v3372, %v3372
      %v3381 = vcombine.high %v3379, %v3379
      %v3382 = vcombine.high %v3142, %v3142
      %v3384 = vunpack.c.l.s4 1983009808
      %v3385 = vunpack.c.0.s8 %v3384
      %v3386 = vlaneseq
      %v3387 = vshrl.u32 %v3386, 7
      %v3388 = vsub.s32 %v3385, %v3387
      %v3389 = vrot.slane %v3142, %v3388
      %v3391 = vunpack.c.l.s4 1983009808
      %v3392 = vunpack.c.0.s8 %v3391
      %v3393 = vlaneseq
      %v3394 = vshrl.u32 %v3393, 7
      %v3395 = vsub.s32 %v3392, %v3394
      %v3396 = vrot.slane %v3382, %v3395
      %v3397 = vcombine.high %v3389, %v3389
      %v3398 = vcombine.high %v3396, %v3396
      %v3399 = vcombine.high %v3143, %v3143
      %v3401 = vunpack.c.l.s4 1983009808
      %v3402 = vunpack.c.0.s8 %v3401
      %v3403 = vlaneseq
      %v3404 = vshrl.u32 %v3403, 7
      %v3405 = vsub.s32 %v3402, %v3404
      %v3406 = vrot.slane %v3143, %v3405
      %v3408 = vunpack.c.l.s4 1983009808
      %v3409 = vunpack.c.0.s8 %v3408
      %v3410 = vlaneseq
      %v3411 = vshrl.u32 %v3410, 7
      %v3412 = vsub.s32 %v3409, %v3411
      %v3413 = vrot.slane %v3399, %v3412
      %v3414 = vcombine.high %v3406, %v3406
      %v3415 = vcombine.high %v3413, %v3413
      %v3416 = vcombine.high %v3144, %v3144
      %v3418 = vunpack.c.l.s4 1983009808
      %v3419 = vunpack.c.0.s8 %v3418
      %v3420 = vlaneseq
      %v3421 = vshrl.u32 %v3420, 7
      %v3422 = vsub.s32 %v3419, %v3421
      %v3423 = vrot.slane %v3144, %v3422
      %v3425 = vunpack.c.l.s4 1983009808
      %v3426 = vunpack.c.0.s8 %v3425
      %v3427 = vlaneseq
      %v3428 = vshrl.u32 %v3427, 7
      %v3429 = vsub.s32 %v3426, %v3428
      %v3430 = vrot.slane %v3416, %v3429
      %v3431 = vcombine.high %v3423, %v3423
      %v3432 = vcombine.high %v3430, %v3430
      %v3433 = vcombine.high %v3145, %v3145
      %v3435 = vunpack.c.l.s4 1983009808
      %v3436 = vunpack.c.0.s8 %v3435
      %v3437 = vlaneseq
      %v3438 = vshrl.u32 %v3437, 7
      %v3439 = vsub.s32 %v3436, %v3438
      %v3440 = vrot.slane %v3145, %v3439
      %v3442 = vunpack.c.l.s4 1983009808
      %v3443 = vunpack.c.0.s8 %v3442
      %v3444 = vlaneseq
      %v3445 = vshrl.u32 %v3444, 7
      %v3446 = vsub.s32 %v3443, %v3445
      %v3447 = vrot.slane %v3433, %v3446
      %v3448 = vcombine.high %v3440, %v3440
      %v3449 = vcombine.high %v3447, %v3447
      %v3450 = vcombine.high %v3146, %v3146
      %v3452 = vunpack.c.l.s4 1983009808
      %v3453 = vunpack.c.0.s8 %v3452
      %v3454 = vlaneseq
      %v3455 = vshrl.u32 %v3454, 7
      %v3456 = vsub.s32 %v3453, %v3455
      %v3457 = vrot.slane %v3146, %v3456
      %v3459 = vunpack.c.l.s4 1983009808
      %v3460 = vunpack.c.0.s8 %v3459
      %v3461 = vlaneseq
      %v3462 = vshrl.u32 %v3461, 7
      %v3463 = vsub.s32 %v3460, %v3462
      %v3464 = vrot.slane %v3450, %v3463
      %v3465 = vcombine.high %v3457, %v3457
      %v3466 = vcombine.high %v3464, %v3464
      %v3467 = vcombine.high %v3147, %v3147
      %v3469 = vunpack.c.l.s4 1983009808
      %v3470 = vunpack.c.0.s8 %v3469
      %v3471 = vlaneseq
      %v3472 = vshrl.u32 %v3471, 7
      %v3473 = vsub.s32 %v3470, %v3472
      %v3474 = vrot.slane %v3147, %v3473
      %v3476 = vunpack.c.l.s4 1983009808
      %v3477 = vunpack.c.0.s8 %v3476
      %v3478 = vlaneseq
      %v3479 = vshrl.u32 %v3478, 7
      %v3480 = vsub.s32 %v3477, %v3479
      %v3481 = vrot.slane %v3467, %v3480
      %v3482 = vcombine.high %v3474, %v3474
      %v3483 = vcombine.high %v3481, %v3481
      %v3484 = vcombine.high %v3148, %v3148
      %v3486 = vunpack.c.l.s4 1983009808
      %v3487 = vunpack.c.0.s8 %v3486
      %v3488 = vlaneseq
      %v3489 = vshrl.u32 %v3488, 7
      %v3490 = vsub.s32 %v3487, %v3489
      %v3491 = vrot.slane %v3148, %v3490
      %v3493 = vunpack.c.l.s4 1983009808
      %v3494 = vunpack.c.0.s8 %v3493
      %v3495 = vlaneseq
      %v3496 = vshrl.u32 %v3495, 7
      %v3497 = vsub.s32 %v3494, %v3496
      %v3498 = vrot.slane %v3484, %v3497
      %v3499 = vcombine.high %v3491, %v3491
      %v3500 = vcombine.high %v3498, %v3498
      %v3501 = vcombine.high %v3149, %v3149
      %v3503 = vunpack.c.l.s4 1983009808
      %v3504 = vunpack.c.0.s8 %v3503
      %v3505 = vlaneseq
      %v3506 = vshrl.u32 %v3505, 7
      %v3507 = vsub.s32 %v3504, %v3506
      %v3508 = vrot.slane %v3149, %v3507
      %v3510 = vunpack.c.l.s4 1983009808
      %v3511 = vunpack.c.0.s8 %v3510
      %v3512 = vlaneseq
      %v3513 = vshrl.u32 %v3512, 7
      %v3514 = vsub.s32 %v3511, %v3513
      %v3515 = vrot.slane %v3501, %v3514
      %v3516 = vcombine.high %v3508, %v3508
      %v3517 = vcombine.high %v3515, %v3515
      %v3518 = vcombine.high %v3150, %v3150
      %v3520 = vunpack.c.l.s4 1983009808
      %v3521 = vunpack.c.0.s8 %v3520
      %v3522 = vlaneseq
      %v3523 = vshrl.u32 %v3522, 7
      %v3524 = vsub.s32 %v3521, %v3523
      %v3525 = vrot.slane %v3150, %v3524
      %v3527 = vunpack.c.l.s4 1983009808
      %v3528 = vunpack.c.0.s8 %v3527
      %v3529 = vlaneseq
      %v3530 = vshrl.u32 %v3529, 7
      %v3531 = vsub.s32 %v3528, %v3530
      %v3532 = vrot.slane %v3518, %v3531
      %v3533 = vcombine.high %v3525, %v3525
      %v3534 = vcombine.high %v3532, %v3532
      %v3535 = vcombine.high %v3151, %v3151
      %v3537 = vunpack.c.l.s4 1983009808
      %v3538 = vunpack.c.0.s8 %v3537
      %v3539 = vlaneseq
      %v3540 = vshrl.u32 %v3539, 7
      %v3541 = vsub.s32 %v3538, %v3540
      %v3542 = vrot.slane %v3151, %v3541
      %v3544 = vunpack.c.l.s4 1983009808
      %v3545 = vunpack.c.0.s8 %v3544
      %v3546 = vlaneseq
      %v3547 = vshrl.u32 %v3546, 7
      %v3548 = vsub.s32 %v3545, %v3547
      %v3549 = vrot.slane %v3535, %v3548
      %v3550 = vcombine.high %v3542, %v3542
      %v3551 = vcombine.high %v3549, %v3549
      %v3552 = vcombine.high %v3152, %v3152
      %v3554 = vunpack.c.l.s4 1983009808
      %v3555 = vunpack.c.0.s8 %v3554
      %v3556 = vlaneseq
      %v3557 = vshrl.u32 %v3556, 7
      %v3558 = vsub.s32 %v3555, %v3557
      %v3559 = vrot.slane %v3152, %v3558
      %v3561 = vunpack.c.l.s4 1983009808
      %v3562 = vunpack.c.0.s8 %v3561
      %v3563 = vlaneseq
      %v3564 = vshrl.u32 %v3563, 7
      %v3565 = vsub.s32 %v3562, %v3564
      %v3566 = vrot.slane %v3552, %v3565
      %v3567 = vcombine.high %v3559, %v3559
      %v3568 = vcombine.high %v3566, %v3566
      %v3569 = vcombine.high %v3153, %v3153
      %v3571 = vunpack.c.l.s4 1983009808
      %v3572 = vunpack.c.0.s8 %v3571
      %v3573 = vlaneseq
      %v3574 = vshrl.u32 %v3573, 7
      %v3575 = vsub.s32 %v3572, %v3574
      %v3576 = vrot.slane %v3153, %v3575
      %v3578 = vunpack.c.l.s4 1983009808
      %v3579 = vunpack.c.0.s8 %v3578
      %v3580 = vlaneseq
      %v3581 = vshrl.u32 %v3580, 7
      %v3582 = vsub.s32 %v3579, %v3581
      %v3583 = vrot.slane %v3569, %v3582
      %v3584 = vcombine.high %v3576, %v3576
      %v3585 = vcombine.high %v3583, %v3583
      %v3586 = vcombine.high %v3154, %v3154
      %v3588 = vunpack.c.l.s4 1983009808
      %v3589 = vunpack.c.0.s8 %v3588
      %v3590 = vlaneseq
      %v3591 = vshrl.u32 %v3590, 7
      %v3592 = vsub.s32 %v3589, %v3591
      %v3593 = vrot.slane %v3154, %v3592
      %v3595 = vunpack.c.l.s4 1983009808
      %v3596 = vunpack.c.0.s8 %v3595
      %v3597 = vlaneseq
      %v3598 = vshrl.u32 %v3597, 7
      %v3599 = vsub.s32 %v3596, %v3598
      %v3600 = vrot.slane %v3586, %v3599
      %v3601 = vcombine.high %v3593, %v3593
      %v3602 = vcombine.high %v3600, %v3600
      %v3603 = vcombine.high %v3155, %v3155
      %v3605 = vunpack.c.l.s4 1983009808
      %v3606 = vunpack.c.0.s8 %v3605
      %v3607 = vlaneseq
      %v3608 = vshrl.u32 %v3607, 7
      %v3609 = vsub.s32 %v3606, %v3608
      %v3610 = vrot.slane %v3155, %v3609
      %v3612 = vunpack.c.l.s4 1983009808
      %v3613 = vunpack.c.0.s8 %v3612
      %v3614 = vlaneseq
      %v3615 = vshrl.u32 %v3614, 7
      %v3616 = vsub.s32 %v3613, %v3615
      %v3617 = vrot.slane %v3603, %v3616
      %v3618 = vcombine.high %v3610, %v3610
      %v3619 = vcombine.high %v3617, %v3617
      %v3620 = vcombine.high %v3156, %v3156
      %v3622 = vunpack.c.l.s4 1983009808
      %v3623 = vunpack.c.0.s8 %v3622
      %v3624 = vlaneseq
      %v3625 = vshrl.u32 %v3624, 7
      %v3626 = vsub.s32 %v3623, %v3625
      %v3627 = vrot.slane %v3156, %v3626
      %v3629 = vunpack.c.l.s4 1983009808
      %v3630 = vunpack.c.0.s8 %v3629
      %v3631 = vlaneseq
      %v3632 = vshrl.u32 %v3631, 7
      %v3633 = vsub.s32 %v3630, %v3632
      %v3634 = vrot.slane %v3620, %v3633
      %v3635 = vcombine.high %v3627, %v3627
      %v3636 = vcombine.high %v3634, %v3634
      %v3637 = vcombine.high %v3157, %v3157
      %v3639 = vunpack.c.l.s4 1983009808
      %v3640 = vunpack.c.0.s8 %v3639
      %v3641 = vlaneseq
      %v3642 = vshrl.u32 %v3641, 7
      %v3643 = vsub.s32 %v3640, %v3642
      %v3644 = vrot.slane %v3157, %v3643
      %v3646 = vunpack.c.l.s4 1983009808
      %v3647 = vunpack.c.0.s8 %v3646
      %v3648 = vlaneseq
      %v3649 = vshrl.u32 %v3648, 7
      %v3650 = vsub.s32 %v3647, %v3649
      %v3651 = vrot.slane %v3637, %v3650
      %v3652 = vcombine.high %v3644, %v3644
      %v3653 = vcombine.high %v3651, %v3651
      %v3654 = vcombine.high %v3158, %v3158
      %v3656 = vunpack.c.l.s4 1983009808
      %v3657 = vunpack.c.0.s8 %v3656
      %v3658 = vlaneseq
      %v3659 = vshrl.u32 %v3658, 7
      %v3660 = vsub.s32 %v3657, %v3659
      %v3661 = vrot.slane %v3158, %v3660
      %v3663 = vunpack.c.l.s4 1983009808
      %v3664 = vunpack.c.0.s8 %v3663
      %v3665 = vlaneseq
      %v3666 = vshrl.u32 %v3665, 7
      %v3667 = vsub.s32 %v3664, %v3666
      %v3668 = vrot.slane %v3654, %v3667
      %v3669 = vcombine.high %v3661, %v3661
      %v3670 = vcombine.high %v3668, %v3668
      %v3671 = vcombine.high %v3159, %v3159
      %v3673 = vunpack.c.l.s4 1983009808
      %v3674 = vunpack.c.0.s8 %v3673
      %v3675 = vlaneseq
      %v3676 = vshrl.u32 %v3675, 7
      %v3677 = vsub.s32 %v3674, %v3676
      %v3678 = vrot.slane %v3159, %v3677
      %v3680 = vunpack.c.l.s4 1983009808
      %v3681 = vunpack.c.0.s8 %v3680
      %v3682 = vlaneseq
      %v3683 = vshrl.u32 %v3682, 7
      %v3684 = vsub.s32 %v3681, %v3683
      %v3685 = vrot.slane %v3671, %v3684
      %v3686 = vcombine.high %v3678, %v3678
      %v3687 = vcombine.high %v3685, %v3685
      %v3688 = vcombine.high %v3160, %v3160
      %v3690 = vunpack.c.l.s4 1983009808
      %v3691 = vunpack.c.0.s8 %v3690
      %v3692 = vlaneseq
      %v3693 = vshrl.u32 %v3692, 7
      %v3694 = vsub.s32 %v3691, %v3693
      %v3695 = vrot.slane %v3160, %v3694
      %v3697 = vunpack.c.l.s4 1983009808
      %v3698 = vunpack.c.0.s8 %v3697
      %v3699 = vlaneseq
      %v3700 = vshrl.u32 %v3699, 7
      %v3701 = vsub.s32 %v3698, %v3700
      %v3702 = vrot.slane %v3688, %v3701
      %v3703 = vcombine.high %v3695, %v3695
      %v3704 = vcombine.high %v3702, %v3702
      %v3705 = vcombine.high %v3161, %v3161
      %v3707 = vunpack.c.l.s4 1983009808
      %v3708 = vunpack.c.0.s8 %v3707
      %v3709 = vlaneseq
      %v3710 = vshrl.u32 %v3709, 7
      %v3711 = vsub.s32 %v3708, %v3710
      %v3712 = vrot.slane %v3161, %v3711
      %v3714 = vunpack.c.l.s4 1983009808
      %v3715 = vunpack.c.0.s8 %v3714
      %v3716 = vlaneseq
      %v3717 = vshrl.u32 %v3716, 7
      %v3718 = vsub.s32 %v3715, %v3717
      %v3719 = vrot.slane %v3705, %v3718
      %v3720 = vcombine.high %v3712, %v3712
      %v3721 = vcombine.high %v3719, %v3719
      %v3722 = vcombine.high %v3162, %v3162
      %v3724 = vunpack.c.l.s4 1983009808
      %v3725 = vunpack.c.0.s8 %v3724
      %v3726 = vlaneseq
      %v3727 = vshrl.u32 %v3726, 7
      %v3728 = vsub.s32 %v3725, %v3727
      %v3729 = vrot.slane %v3162, %v3728
      %v3731 = vunpack.c.l.s4 1983009808
      %v3732 = vunpack.c.0.s8 %v3731
      %v3733 = vlaneseq
      %v3734 = vshrl.u32 %v3733, 7
      %v3735 = vsub.s32 %v3732, %v3734
      %v3736 = vrot.slane %v3722, %v3735
      %v3737 = vcombine.high %v3729, %v3729
      %v3738 = vcombine.high %v3736, %v3736
      %vm3867 = vcmask 254976
      %v3868 = vsel %vm3867, %v3202, -inf
      %v3869 = vrot.slane %v3868, 4
      %v3870 = vmax.f32 %v3868, %v3869
      %v3871 = vrot.slane %v3870, 2
      %v3872 = vmax.f32 %v3870, %v3871
      %v3873 = vrot.slane %v3872, 1
      %v3874 = vmax.f32 %v3872, %v3873
      %v3875 = vsel %vm3867, %v3210, -inf
      %v3876 = vrot.slane %v3875, 4
      %v3877 = vmax.f32 %v3875, %v3876
      %v3878 = vrot.slane %v3877, 2
      %v3879 = vmax.f32 %v3877, %v3878
      %v3880 = vrot.slane %v3879, 1
      %v3881 = vmax.f32 %v3879, %v3880
      %v3882 = vsel %vm3867, %v3209, -inf
      %v3883 = vrot.slane %v3882, 4
      %v3884 = vmax.f32 %v3882, %v3883
      %v3885 = vrot.slane %v3884, 2
      %v3886 = vmax.f32 %v3884, %v3885
      %v3887 = vrot.slane %v3886, 1
      %v3888 = vmax.f32 %v3886, %v3887
      %v3889 = vsel %vm3867, %v3211, -inf
      %v3890 = vrot.slane %v3889, 4
      %v3891 = vmax.f32 %v3889, %v3890
      %v3892 = vrot.slane %v3891, 2
      %v3893 = vmax.f32 %v3891, %v3892
      %v3894 = vrot.slane %v3893, 1
      %v3895 = vmax.f32 %v3893, %v3894
      %v3896 = vsel %vm3867, %v3219, -inf
      %v3897 = vrot.slane %v3896, 4
      %v3898 = vmax.f32 %v3896, %v3897
      %v3899 = vrot.slane %v3898, 2
      %v3900 = vmax.f32 %v3898, %v3899
      %v3901 = vrot.slane %v3900, 1
      %v3902 = vmax.f32 %v3900, %v3901
      %v3903 = vsel %vm3867, %v3227, -inf
      %v3904 = vrot.slane %v3903, 4
      %v3905 = vmax.f32 %v3903, %v3904
      %v3906 = vrot.slane %v3905, 2
      %v3907 = vmax.f32 %v3905, %v3906
      %v3908 = vrot.slane %v3907, 1
      %v3909 = vmax.f32 %v3907, %v3908
      %v3910 = vsel %vm3867, %v3226, -inf
      %v3911 = vrot.slane %v3910, 4
      %v3912 = vmax.f32 %v3910, %v3911
      %v3913 = vrot.slane %v3912, 2
      %v3914 = vmax.f32 %v3912, %v3913
      %v3915 = vrot.slane %v3914, 1
      %v3916 = vmax.f32 %v3914, %v3915
      %v3917 = vsel %vm3867, %v3228, -inf
      %v3918 = vrot.slane %v3917, 4
      %v3919 = vmax.f32 %v3917, %v3918
      %v3920 = vrot.slane %v3919, 2
      %v3921 = vmax.f32 %v3919, %v3920
      %v3922 = vrot.slane %v3921, 1
      %v3923 = vmax.f32 %v3921, %v3922
      %v3924 = vsel %vm3867, %v3236, -inf
      %v3925 = vrot.slane %v3924, 4
      %v3926 = vmax.f32 %v3924, %v3925
      %v3927 = vrot.slane %v3926, 2
      %v3928 = vmax.f32 %v3926, %v3927
      %v3929 = vrot.slane %v3928, 1
      %v3930 = vmax.f32 %v3928, %v3929
      %v3931 = vsel %vm3867, %v3244, -inf
      %v3932 = vrot.slane %v3931, 4
      %v3933 = vmax.f32 %v3931, %v3932
      %v3934 = vrot.slane %v3933, 2
      %v3935 = vmax.f32 %v3933, %v3934
      %v3936 = vrot.slane %v3935, 1
      %v3937 = vmax.f32 %v3935, %v3936
      %v3938 = vsel %vm3867, %v3243, -inf
      %v3939 = vrot.slane %v3938, 4
      %v3940 = vmax.f32 %v3938, %v3939
      %v3941 = vrot.slane %v3940, 2
      %v3942 = vmax.f32 %v3940, %v3941
      %v3943 = vrot.slane %v3942, 1
      %v3944 = vmax.f32 %v3942, %v3943
      %v3945 = vsel %vm3867, %v3245, -inf
      %v3946 = vrot.slane %v3945, 4
      %v3947 = vmax.f32 %v3945, %v3946
      %v3948 = vrot.slane %v3947, 2
      %v3949 = vmax.f32 %v3947, %v3948
      %v3950 = vrot.slane %v3949, 1
      %v3951 = vmax.f32 %v3949, %v3950
      %v3952 = vsel %vm3867, %v3253, -inf
      %v3953 = vrot.slane %v3952, 4
      %v3954 = vmax.f32 %v3952, %v3953
      %v3955 = vrot.slane %v3954, 2
      %v3956 = vmax.f32 %v3954, %v3955
      %v3957 = vrot.slane %v3956, 1
      %v3958 = vmax.f32 %v3956, %v3957
      %v3959 = vsel %vm3867, %v3261, -inf
      %v3960 = vrot.slane %v3959, 4
      %v3961 = vmax.f32 %v3959, %v3960
      %v3962 = vrot.slane %v3961, 2
      %v3963 = vmax.f32 %v3961, %v3962
      %v3964 = vrot.slane %v3963, 1
      %v3965 = vmax.f32 %v3963, %v3964
      %v3966 = vsel %vm3867, %v3260, -inf
      %v3967 = vrot.slane %v3966, 4
      %v3968 = vmax.f32 %v3966, %v3967
      %v3969 = vrot.slane %v3968, 2
      %v3970 = vmax.f32 %v3968, %v3969
      %v3971 = vrot.slane %v3970, 1
      %v3972 = vmax.f32 %v3970, %v3971
      %v3973 = vsel %vm3867, %v3262, -inf
      %v3974 = vrot.slane %v3973, 4
      %v3975 = vmax.f32 %v3973, %v3974
      %v3976 = vrot.slane %v3975, 2
      %v3977 = vmax.f32 %v3975, %v3976
      %v3978 = vrot.slane %v3977, 1
      %v3979 = vmax.f32 %v3977, %v3978
      %v3980 = vsel %vm3867, %v3270, -inf
      %v3981 = vrot.slane %v3980, 4
      %v3982 = vmax.f32 %v3980, %v3981
      %v3983 = vrot.slane %v3982, 2
      %v3984 = vmax.f32 %v3982, %v3983
      %v3985 = vrot.slane %v3984, 1
      %v3986 = vmax.f32 %v3984, %v3985
      %v3987 = vsel %vm3867, %v3278, -inf
      %v3988 = vrot.slane %v3987, 4
      %v3989 = vmax.f32 %v3987, %v3988
      %v3990 = vrot.slane %v3989, 2
      %v3991 = vmax.f32 %v3989, %v3990
      %v3992 = vrot.slane %v3991, 1
      %v3993 = vmax.f32 %v3991, %v3992
      %v3994 = vsel %vm3867, %v3277, -inf
      %v3995 = vrot.slane %v3994, 4
      %v3996 = vmax.f32 %v3994, %v3995
      %v3997 = vrot.slane %v3996, 2
      %v3998 = vmax.f32 %v3996, %v3997
      %v3999 = vrot.slane %v3998, 1
      %v4000 = vmax.f32 %v3998, %v3999
      %v4001 = vsel %vm3867, %v3279, -inf
      %v4002 = vrot.slane %v4001, 4
      %v4003 = vmax.f32 %v4001, %v4002
      %v4004 = vrot.slane %v4003, 2
      %v4005 = vmax.f32 %v4003, %v4004
      %v4006 = vrot.slane %v4005, 1
      %v4007 = vmax.f32 %v4005, %v4006
      %v4008 = vsel %vm3867, %v3287, -inf
      %v4009 = vrot.slane %v4008, 4
      %v4010 = vmax.f32 %v4008, %v4009
      %v4011 = vrot.slane %v4010, 2
      %v4012 = vmax.f32 %v4010, %v4011
      %v4013 = vrot.slane %v4012, 1
      %v4014 = vmax.f32 %v4012, %v4013
      %v4015 = vsel %vm3867, %v3295, -inf
      %v4016 = vrot.slane %v4015, 4
      %v4017 = vmax.f32 %v4015, %v4016
      %v4018 = vrot.slane %v4017, 2
      %v4019 = vmax.f32 %v4017, %v4018
      %v4020 = vrot.slane %v4019, 1
      %v4021 = vmax.f32 %v4019, %v4020
      %v4022 = vsel %vm3867, %v3294, -inf
      %v4023 = vrot.slane %v4022, 4
      %v4024 = vmax.f32 %v4022, %v4023
      %v4025 = vrot.slane %v4024, 2
      %v4026 = vmax.f32 %v4024, %v4025
      %v4027 = vrot.slane %v4026, 1
      %v4028 = vmax.f32 %v4026, %v4027
      %v4029 = vsel %vm3867, %v3296, -inf
      %v4030 = vrot.slane %v4029, 4
      %v4031 = vmax.f32 %v4029, %v4030
      %v4032 = vrot.slane %v4031, 2
      %v4033 = vmax.f32 %v4031, %v4032
      %v4034 = vrot.slane %v4033, 1
      %v4035 = vmax.f32 %v4033, %v4034
      %v4036 = vsel %vm3867, %v3304, -inf
      %v4037 = vrot.slane %v4036, 4
      %v4038 = vmax.f32 %v4036, %v4037
      %v4039 = vrot.slane %v4038, 2
      %v4040 = vmax.f32 %v4038, %v4039
      %v4041 = vrot.slane %v4040, 1
      %v4042 = vmax.f32 %v4040, %v4041
      %v4043 = vsel %vm3867, %v3312, -inf
      %v4044 = vrot.slane %v4043, 4
      %v4045 = vmax.f32 %v4043, %v4044
      %v4046 = vrot.slane %v4045, 2
      %v4047 = vmax.f32 %v4045, %v4046
      %v4048 = vrot.slane %v4047, 1
      %v4049 = vmax.f32 %v4047, %v4048
      %v4050 = vsel %vm3867, %v3311, -inf
      %v4051 = vrot.slane %v4050, 4
      %v4052 = vmax.f32 %v4050, %v4051
      %v4053 = vrot.slane %v4052, 2
      %v4054 = vmax.f32 %v4052, %v4053
      %v4055 = vrot.slane %v4054, 1
      %v4056 = vmax.f32 %v4054, %v4055
      %v4057 = vsel %vm3867, %v3313, -inf
      %v4058 = vrot.slane %v4057, 4
      %v4059 = vmax.f32 %v4057, %v4058
      %v4060 = vrot.slane %v4059, 2
      %v4061 = vmax.f32 %v4059, %v4060
      %v4062 = vrot.slane %v4061, 1
      %v4063 = vmax.f32 %v4061, %v4062
      %v4064 = vsel %vm3867, %v3321, -inf
      %v4065 = vrot.slane %v4064, 4
      %v4066 = vmax.f32 %v4064, %v4065
      %v4067 = vrot.slane %v4066, 2
      %v4068 = vmax.f32 %v4066, %v4067
      %v4069 = vrot.slane %v4068, 1
      %v4070 = vmax.f32 %v4068, %v4069
      %v4071 = vsel %vm3867, %v3329, -inf
      %v4072 = vrot.slane %v4071, 4
      %v4073 = vmax.f32 %v4071, %v4072
      %v4074 = vrot.slane %v4073, 2
      %v4075 = vmax.f32 %v4073, %v4074
      %v4076 = vrot.slane %v4075, 1
      %v4077 = vmax.f32 %v4075, %v4076
      %v4078 = vsel %vm3867, %v3328, -inf
      %v4079 = vrot.slane %v4078, 4
      %v4080 = vmax.f32 %v4078, %v4079
      %v4081 = vrot.slane %v4080, 2
      %v4082 = vmax.f32 %v4080, %v4081
      %v4083 = vrot.slane %v4082, 1
      %v4084 = vmax.f32 %v4082, %v4083
      %v4085 = vsel %vm3867, %v3330, -inf
      %v4086 = vrot.slane %v4085, 4
      %v4087 = vmax.f32 %v4085, %v4086
      %v4088 = vrot.slane %v4087, 2
      %v4089 = vmax.f32 %v4087, %v4088
      %v4090 = vrot.slane %v4089, 1
      %v4091 = vmax.f32 %v4089, %v4090
      %v4092 = vsel %vm3867, %v3338, -inf
      %v4093 = vrot.slane %v4092, 4
      %v4094 = vmax.f32 %v4092, %v4093
      %v4095 = vrot.slane %v4094, 2
      %v4096 = vmax.f32 %v4094, %v4095
      %v4097 = vrot.slane %v4096, 1
      %v4098 = vmax.f32 %v4096, %v4097
      %v4099 = vsel %vm3867, %v3346, -inf
      %v4100 = vrot.slane %v4099, 4
      %v4101 = vmax.f32 %v4099, %v4100
      %v4102 = vrot.slane %v4101, 2
      %v4103 = vmax.f32 %v4101, %v4102
      %v4104 = vrot.slane %v4103, 1
      %v4105 = vmax.f32 %v4103, %v4104
      %v4106 = vsel %vm3867, %v3345, -inf
      %v4107 = vrot.slane %v4106, 4
      %v4108 = vmax.f32 %v4106, %v4107
      %v4109 = vrot.slane %v4108, 2
      %v4110 = vmax.f32 %v4108, %v4109
      %v4111 = vrot.slane %v4110, 1
      %v4112 = vmax.f32 %v4110, %v4111
      %v4113 = vsel %vm3867, %v3347, -inf
      %v4114 = vrot.slane %v4113, 4
      %v4115 = vmax.f32 %v4113, %v4114
      %v4116 = vrot.slane %v4115, 2
      %v4117 = vmax.f32 %v4115, %v4116
      %v4118 = vrot.slane %v4117, 1
      %v4119 = vmax.f32 %v4117, %v4118
      %v4120 = vsel %vm3867, %v3355, -inf
      %v4121 = vrot.slane %v4120, 4
      %v4122 = vmax.f32 %v4120, %v4121
      %v4123 = vrot.slane %v4122, 2
      %v4124 = vmax.f32 %v4122, %v4123
      %v4125 = vrot.slane %v4124, 1
      %v4126 = vmax.f32 %v4124, %v4125
      %v4127 = vsel %vm3867, %v3363, -inf
      %v4128 = vrot.slane %v4127, 4
      %v4129 = vmax.f32 %v4127, %v4128
      %v4130 = vrot.slane %v4129, 2
      %v4131 = vmax.f32 %v4129, %v4130
      %v4132 = vrot.slane %v4131, 1
      %v4133 = vmax.f32 %v4131, %v4132
      %v4134 = vsel %vm3867, %v3362, -inf
      %v4135 = vrot.slane %v4134, 4
      %v4136 = vmax.f32 %v4134, %v4135
      %v4137 = vrot.slane %v4136, 2
      %v4138 = vmax.f32 %v4136, %v4137
      %v4139 = vrot.slane %v4138, 1
      %v4140 = vmax.f32 %v4138, %v4139
      %v4141 = vsel %vm3867, %v3364, -inf
      %v4142 = vrot.slane %v4141, 4
      %v4143 = vmax.f32 %v4141, %v4142
      %v4144 = vrot.slane %v4143, 2
      %v4145 = vmax.f32 %v4143, %v4144
      %v4146 = vrot.slane %v4145, 1
      %v4147 = vmax.f32 %v4145, %v4146
      %v4148 = vsel %vm3867, %v3372, -inf
      %v4149 = vrot.slane %v4148, 4
      %v4150 = vmax.f32 %v4148, %v4149
      %v4151 = vrot.slane %v4150, 2
      %v4152 = vmax.f32 %v4150, %v4151
      %v4153 = vrot.slane %v4152, 1
      %v4154 = vmax.f32 %v4152, %v4153
      %v4155 = vsel %vm3867, %v3380, -inf
      %v4156 = vrot.slane %v4155, 4
      %v4157 = vmax.f32 %v4155, %v4156
      %v4158 = vrot.slane %v4157, 2
      %v4159 = vmax.f32 %v4157, %v4158
      %v4160 = vrot.slane %v4159, 1
      %v4161 = vmax.f32 %v4159, %v4160
      %v4162 = vsel %vm3867, %v3379, -inf
      %v4163 = vrot.slane %v4162, 4
      %v4164 = vmax.f32 %v4162, %v4163
      %v4165 = vrot.slane %v4164, 2
      %v4166 = vmax.f32 %v4164, %v4165
      %v4167 = vrot.slane %v4166, 1
      %v4168 = vmax.f32 %v4166, %v4167
      %v4169 = vsel %vm3867, %v3381, -inf
      %v4170 = vrot.slane %v4169, 4
      %v4171 = vmax.f32 %v4169, %v4170
      %v4172 = vrot.slane %v4171, 2
      %v4173 = vmax.f32 %v4171, %v4172
      %v4174 = vrot.slane %v4173, 1
      %v4175 = vmax.f32 %v4173, %v4174
      %v4176 = vsel %vm3867, %v3389, -inf
      %v4177 = vrot.slane %v4176, 4
      %v4178 = vmax.f32 %v4176, %v4177
      %v4179 = vrot.slane %v4178, 2
      %v4180 = vmax.f32 %v4178, %v4179
      %v4181 = vrot.slane %v4180, 1
      %v4182 = vmax.f32 %v4180, %v4181
      %v4183 = vsel %vm3867, %v3397, -inf
      %v4184 = vrot.slane %v4183, 4
      %v4185 = vmax.f32 %v4183, %v4184
      %v4186 = vrot.slane %v4185, 2
      %v4187 = vmax.f32 %v4185, %v4186
      %v4188 = vrot.slane %v4187, 1
      %v4189 = vmax.f32 %v4187, %v4188
      %v4190 = vsel %vm3867, %v3396, -inf
      %v4191 = vrot.slane %v4190, 4
      %v4192 = vmax.f32 %v4190, %v4191
      %v4193 = vrot.slane %v4192, 2
      %v4194 = vmax.f32 %v4192, %v4193
      %v4195 = vrot.slane %v4194, 1
      %v4196 = vmax.f32 %v4194, %v4195
      %v4197 = vsel %vm3867, %v3398, -inf
      %v4198 = vrot.slane %v4197, 4
      %v4199 = vmax.f32 %v4197, %v4198
      %v4200 = vrot.slane %v4199, 2
      %v4201 = vmax.f32 %v4199, %v4200
      %v4202 = vrot.slane %v4201, 1
      %v4203 = vmax.f32 %v4201, %v4202
      %v4204 = vsel %vm3867, %v3406, -inf
      %v4205 = vrot.slane %v4204, 4
      %v4206 = vmax.f32 %v4204, %v4205
      %v4207 = vrot.slane %v4206, 2
      %v4208 = vmax.f32 %v4206, %v4207
      %v4209 = vrot.slane %v4208, 1
      %v4210 = vmax.f32 %v4208, %v4209
      %v4211 = vsel %vm3867, %v3414, -inf
      %v4212 = vrot.slane %v4211, 4
      %v4213 = vmax.f32 %v4211, %v4212
      %v4214 = vrot.slane %v4213, 2
      %v4215 = vmax.f32 %v4213, %v4214
      %v4216 = vrot.slane %v4215, 1
      %v4217 = vmax.f32 %v4215, %v4216
      %v4218 = vsel %vm3867, %v3413, -inf
      %v4219 = vrot.slane %v4218, 4
      %v4220 = vmax.f32 %v4218, %v4219
      %v4221 = vrot.slane %v4220, 2
      %v4222 = vmax.f32 %v4220, %v4221
      %v4223 = vrot.slane %v4222, 1
      %v4224 = vmax.f32 %v4222, %v4223
      %v4225 = vsel %vm3867, %v3415, -inf
      %v4226 = vrot.slane %v4225, 4
      %v4227 = vmax.f32 %v4225, %v4226
      %v4228 = vrot.slane %v4227, 2
      %v4229 = vmax.f32 %v4227, %v4228
      %v4230 = vrot.slane %v4229, 1
      %v4231 = vmax.f32 %v4229, %v4230
      %v4232 = vsel %vm3867, %v3423, -inf
      %v4233 = vrot.slane %v4232, 4
      %v4234 = vmax.f32 %v4232, %v4233
      %v4235 = vrot.slane %v4234, 2
      %v4236 = vmax.f32 %v4234, %v4235
      %v4237 = vrot.slane %v4236, 1
      %v4238 = vmax.f32 %v4236, %v4237
      %v4239 = vsel %vm3867, %v3431, -inf
      %v4240 = vrot.slane %v4239, 4
      %v4241 = vmax.f32 %v4239, %v4240
      %v4242 = vrot.slane %v4241, 2
      %v4243 = vmax.f32 %v4241, %v4242
      %v4244 = vrot.slane %v4243, 1
      %v4245 = vmax.f32 %v4243, %v4244
      %v4246 = vsel %vm3867, %v3430, -inf
      %v4247 = vrot.slane %v4246, 4
      %v4248 = vmax.f32 %v4246, %v4247
      %v4249 = vrot.slane %v4248, 2
      %v4250 = vmax.f32 %v4248, %v4249
      %v4251 = vrot.slane %v4250, 1
      %v4252 = vmax.f32 %v4250, %v4251
      %v4253 = vsel %vm3867, %v3432, -inf
      %v4254 = vrot.slane %v4253, 4
      %v4255 = vmax.f32 %v4253, %v4254
      %v4256 = vrot.slane %v4255, 2
      %v4257 = vmax.f32 %v4255, %v4256
      %v4258 = vrot.slane %v4257, 1
      %v4259 = vmax.f32 %v4257, %v4258
      %v4260 = vsel %vm3867, %v3440, -inf
      %v4261 = vrot.slane %v4260, 4
      %v4262 = vmax.f32 %v4260, %v4261
      %v4263 = vrot.slane %v4262, 2
      %v4264 = vmax.f32 %v4262, %v4263
      %v4265 = vrot.slane %v4264, 1
      %v4266 = vmax.f32 %v4264, %v4265
      %v4267 = vsel %vm3867, %v3448, -inf
      %v4268 = vrot.slane %v4267, 4
      %v4269 = vmax.f32 %v4267, %v4268
      %v4270 = vrot.slane %v4269, 2
      %v4271 = vmax.f32 %v4269, %v4270
      %v4272 = vrot.slane %v4271, 1
      %v4273 = vmax.f32 %v4271, %v4272
      %v4274 = vsel %vm3867, %v3447, -inf
      %v4275 = vrot.slane %v4274, 4
      %v4276 = vmax.f32 %v4274, %v4275
      %v4277 = vrot.slane %v4276, 2
      %v4278 = vmax.f32 %v4276, %v4277
      %v4279 = vrot.slane %v4278, 1
      %v4280 = vmax.f32 %v4278, %v4279
      %v4281 = vsel %vm3867, %v3449, -inf
      %v4282 = vrot.slane %v4281, 4
      %v4283 = vmax.f32 %v4281, %v4282
      %v4284 = vrot.slane %v4283, 2
      %v4285 = vmax.f32 %v4283, %v4284
      %v4286 = vrot.slane %v4285, 1
      %v4287 = vmax.f32 %v4285, %v4286
      %v4288 = vsel %vm3867, %v3457, -inf
      %v4289 = vrot.slane %v4288, 4
      %v4290 = vmax.f32 %v4288, %v4289
      %v4291 = vrot.slane %v4290, 2
      %v4292 = vmax.f32 %v4290, %v4291
      %v4293 = vrot.slane %v4292, 1
      %v4294 = vmax.f32 %v4292, %v4293
      %v4295 = vsel %vm3867, %v3465, -inf
      %v4296 = vrot.slane %v4295, 4
      %v4297 = vmax.f32 %v4295, %v4296
      %v4298 = vrot.slane %v4297, 2
      %v4299 = vmax.f32 %v4297, %v4298
      %v4300 = vrot.slane %v4299, 1
      %v4301 = vmax.f32 %v4299, %v4300
      %v4302 = vsel %vm3867, %v3464, -inf
      %v4303 = vrot.slane %v4302, 4
      %v4304 = vmax.f32 %v4302, %v4303
      %v4305 = vrot.slane %v4304, 2
      %v4306 = vmax.f32 %v4304, %v4305
      %v4307 = vrot.slane %v4306, 1
      %v4308 = vmax.f32 %v4306, %v4307
      %v4309 = vsel %vm3867, %v3466, -inf
      %v4310 = vrot.slane %v4309, 4
      %v4311 = vmax.f32 %v4309, %v4310
      %v4312 = vrot.slane %v4311, 2
      %v4313 = vmax.f32 %v4311, %v4312
      %v4314 = vrot.slane %v4313, 1
      %v4315 = vmax.f32 %v4313, %v4314
      %v4316 = vsel %vm3867, %v3474, -inf
      %v4317 = vrot.slane %v4316, 4
      %v4318 = vmax.f32 %v4316, %v4317
      %v4319 = vrot.slane %v4318, 2
      %v4320 = vmax.f32 %v4318, %v4319
      %v4321 = vrot.slane %v4320, 1
      %v4322 = vmax.f32 %v4320, %v4321
      %v4323 = vsel %vm3867, %v3482, -inf
      %v4324 = vrot.slane %v4323, 4
      %v4325 = vmax.f32 %v4323, %v4324
      %v4326 = vrot.slane %v4325, 2
      %v4327 = vmax.f32 %v4325, %v4326
      %v4328 = vrot.slane %v4327, 1
      %v4329 = vmax.f32 %v4327, %v4328
      %v4330 = vsel %vm3867, %v3481, -inf
      %v4331 = vrot.slane %v4330, 4
      %v4332 = vmax.f32 %v4330, %v4331
      %v4333 = vrot.slane %v4332, 2
      %v4334 = vmax.f32 %v4332, %v4333
      %v4335 = vrot.slane %v4334, 1
      %v4336 = vmax.f32 %v4334, %v4335
      %v4337 = vsel %vm3867, %v3483, -inf
      %v4338 = vrot.slane %v4337, 4
      %v4339 = vmax.f32 %v4337, %v4338
      %v4340 = vrot.slane %v4339, 2
      %v4341 = vmax.f32 %v4339, %v4340
      %v4342 = vrot.slane %v4341, 1
      %v4343 = vmax.f32 %v4341, %v4342
      %v4344 = vsel %vm3867, %v3491, -inf
      %v4345 = vrot.slane %v4344, 4
      %v4346 = vmax.f32 %v4344, %v4345
      %v4347 = vrot.slane %v4346, 2
      %v4348 = vmax.f32 %v4346, %v4347
      %v4349 = vrot.slane %v4348, 1
      %v4350 = vmax.f32 %v4348, %v4349
      %v4351 = vsel %vm3867, %v3499, -inf
      %v4352 = vrot.slane %v4351, 4
      %v4353 = vmax.f32 %v4351, %v4352
      %v4354 = vrot.slane %v4353, 2
      %v4355 = vmax.f32 %v4353, %v4354
      %v4356 = vrot.slane %v4355, 1
      %v4357 = vmax.f32 %v4355, %v4356
      %v4358 = vsel %vm3867, %v3498, -inf
      %v4359 = vrot.slane %v4358, 4
      %v4360 = vmax.f32 %v4358, %v4359
      %v4361 = vrot.slane %v4360, 2
      %v4362 = vmax.f32 %v4360, %v4361
      %v4363 = vrot.slane %v4362, 1
      %v4364 = vmax.f32 %v4362, %v4363
      %v4365 = vsel %vm3867, %v3500, -inf
      %v4366 = vrot.slane %v4365, 4
      %v4367 = vmax.f32 %v4365, %v4366
      %v4368 = vrot.slane %v4367, 2
      %v4369 = vmax.f32 %v4367, %v4368
      %v4370 = vrot.slane %v4369, 1
      %v4371 = vmax.f32 %v4369, %v4370
      %v4372 = vsel %vm3867, %v3508, -inf
      %v4373 = vrot.slane %v4372, 4
      %v4374 = vmax.f32 %v4372, %v4373
      %v4375 = vrot.slane %v4374, 2
      %v4376 = vmax.f32 %v4374, %v4375
      %v4377 = vrot.slane %v4376, 1
      %v4378 = vmax.f32 %v4376, %v4377
      %v4379 = vsel %vm3867, %v3516, -inf
      %v4380 = vrot.slane %v4379, 4
      %v4381 = vmax.f32 %v4379, %v4380
      %v4382 = vrot.slane %v4381, 2
      %v4383 = vmax.f32 %v4381, %v4382
      %v4384 = vrot.slane %v4383, 1
      %v4385 = vmax.f32 %v4383, %v4384
      %v4386 = vsel %vm3867, %v3515, -inf
      %v4387 = vrot.slane %v4386, 4
      %v4388 = vmax.f32 %v4386, %v4387
      %v4389 = vrot.slane %v4388, 2
      %v4390 = vmax.f32 %v4388, %v4389
      %v4391 = vrot.slane %v4390, 1
      %v4392 = vmax.f32 %v4390, %v4391
      %v4393 = vsel %vm3867, %v3517, -inf
      %v4394 = vrot.slane %v4393, 4
      %v4395 = vmax.f32 %v4393, %v4394
      %v4396 = vrot.slane %v4395, 2
      %v4397 = vmax.f32 %v4395, %v4396
      %v4398 = vrot.slane %v4397, 1
      %v4399 = vmax.f32 %v4397, %v4398
      %v4400 = vsel %vm3867, %v3525, -inf
      %v4401 = vrot.slane %v4400, 4
      %v4402 = vmax.f32 %v4400, %v4401
      %v4403 = vrot.slane %v4402, 2
      %v4404 = vmax.f32 %v4402, %v4403
      %v4405 = vrot.slane %v4404, 1
      %v4406 = vmax.f32 %v4404, %v4405
      %v4407 = vsel %vm3867, %v3533, -inf
      %v4408 = vrot.slane %v4407, 4
      %v4409 = vmax.f32 %v4407, %v4408
      %v4410 = vrot.slane %v4409, 2
      %v4411 = vmax.f32 %v4409, %v4410
      %v4412 = vrot.slane %v4411, 1
      %v4413 = vmax.f32 %v4411, %v4412
      %v4414 = vsel %vm3867, %v3532, -inf
      %v4415 = vrot.slane %v4414, 4
      %v4416 = vmax.f32 %v4414, %v4415
      %v4417 = vrot.slane %v4416, 2
      %v4418 = vmax.f32 %v4416, %v4417
      %v4419 = vrot.slane %v4418, 1
      %v4420 = vmax.f32 %v4418, %v4419
      %v4421 = vsel %vm3867, %v3534, -inf
      %v4422 = vrot.slane %v4421, 4
      %v4423 = vmax.f32 %v4421, %v4422
      %v4424 = vrot.slane %v4423, 2
      %v4425 = vmax.f32 %v4423, %v4424
      %v4426 = vrot.slane %v4425, 1
      %v4427 = vmax.f32 %v4425, %v4426
      %v4428 = vsel %vm3867, %v3542, -inf
      %v4429 = vrot.slane %v4428, 4
      %v4430 = vmax.f32 %v4428, %v4429
      %v4431 = vrot.slane %v4430, 2
      %v4432 = vmax.f32 %v4430, %v4431
      %v4433 = vrot.slane %v4432, 1
      %v4434 = vmax.f32 %v4432, %v4433
      %v4435 = vsel %vm3867, %v3550, -inf
      %v4436 = vrot.slane %v4435, 4
      %v4437 = vmax.f32 %v4435, %v4436
      %v4438 = vrot.slane %v4437, 2
      %v4439 = vmax.f32 %v4437, %v4438
      %v4440 = vrot.slane %v4439, 1
      %v4441 = vmax.f32 %v4439, %v4440
      %v4442 = vsel %vm3867, %v3549, -inf
      %v4443 = vrot.slane %v4442, 4
      %v4444 = vmax.f32 %v4442, %v4443
      %v4445 = vrot.slane %v4444, 2
      %v4446 = vmax.f32 %v4444, %v4445
      %v4447 = vrot.slane %v4446, 1
      %v4448 = vmax.f32 %v4446, %v4447
      %v4449 = vsel %vm3867, %v3551, -inf
      %v4450 = vrot.slane %v4449, 4
      %v4451 = vmax.f32 %v4449, %v4450
      %v4452 = vrot.slane %v4451, 2
      %v4453 = vmax.f32 %v4451, %v4452
      %v4454 = vrot.slane %v4453, 1
      %v4455 = vmax.f32 %v4453, %v4454
      %v4456 = vsel %vm3867, %v3559, -inf
      %v4457 = vrot.slane %v4456, 4
      %v4458 = vmax.f32 %v4456, %v4457
      %v4459 = vrot.slane %v4458, 2
      %v4460 = vmax.f32 %v4458, %v4459
      %v4461 = vrot.slane %v4460, 1
      %v4462 = vmax.f32 %v4460, %v4461
      %v4463 = vsel %vm3867, %v3567, -inf
      %v4464 = vrot.slane %v4463, 4
      %v4465 = vmax.f32 %v4463, %v4464
      %v4466 = vrot.slane %v4465, 2
      %v4467 = vmax.f32 %v4465, %v4466
      %v4468 = vrot.slane %v4467, 1
      %v4469 = vmax.f32 %v4467, %v4468
      %v4470 = vsel %vm3867, %v3566, -inf
      %v4471 = vrot.slane %v4470, 4
      %v4472 = vmax.f32 %v4470, %v4471
      %v4473 = vrot.slane %v4472, 2
      %v4474 = vmax.f32 %v4472, %v4473
      %v4475 = vrot.slane %v4474, 1
      %v4476 = vmax.f32 %v4474, %v4475
      %v4477 = vsel %vm3867, %v3568, -inf
      %v4478 = vrot.slane %v4477, 4
      %v4479 = vmax.f32 %v4477, %v4478
      %v4480 = vrot.slane %v4479, 2
      %v4481 = vmax.f32 %v4479, %v4480
      %v4482 = vrot.slane %v4481, 1
      %v4483 = vmax.f32 %v4481, %v4482
      %v4484 = vsel %vm3867, %v3576, -inf
      %v4485 = vrot.slane %v4484, 4
      %v4486 = vmax.f32 %v4484, %v4485
      %v4487 = vrot.slane %v4486, 2
      %v4488 = vmax.f32 %v4486, %v4487
      %v4489 = vrot.slane %v4488, 1
      %v4490 = vmax.f32 %v4488, %v4489
      %v4491 = vsel %vm3867, %v3584, -inf
      %v4492 = vrot.slane %v4491, 4
      %v4493 = vmax.f32 %v4491, %v4492
      %v4494 = vrot.slane %v4493, 2
      %v4495 = vmax.f32 %v4493, %v4494
      %v4496 = vrot.slane %v4495, 1
      %v4497 = vmax.f32 %v4495, %v4496
      %v4498 = vsel %vm3867, %v3583, -inf
      %v4499 = vrot.slane %v4498, 4
      %v4500 = vmax.f32 %v4498, %v4499
      %v4501 = vrot.slane %v4500, 2
      %v4502 = vmax.f32 %v4500, %v4501
      %v4503 = vrot.slane %v4502, 1
      %v4504 = vmax.f32 %v4502, %v4503
      %v4505 = vsel %vm3867, %v3585, -inf
      %v4506 = vrot.slane %v4505, 4
      %v4507 = vmax.f32 %v4505, %v4506
      %v4508 = vrot.slane %v4507, 2
      %v4509 = vmax.f32 %v4507, %v4508
      %v4510 = vrot.slane %v4509, 1
      %v4511 = vmax.f32 %v4509, %v4510
      %v4512 = vsel %vm3867, %v3593, -inf
      %v4513 = vrot.slane %v4512, 4
      %v4514 = vmax.f32 %v4512, %v4513
      %v4515 = vrot.slane %v4514, 2
      %v4516 = vmax.f32 %v4514, %v4515
      %v4517 = vrot.slane %v4516, 1
      %v4518 = vmax.f32 %v4516, %v4517
      %v4519 = vsel %vm3867, %v3601, -inf
      %v4520 = vrot.slane %v4519, 4
      %v4521 = vmax.f32 %v4519, %v4520
      %v4522 = vrot.slane %v4521, 2
      %v4523 = vmax.f32 %v4521, %v4522
      %v4524 = vrot.slane %v4523, 1
      %v4525 = vmax.f32 %v4523, %v4524
      %v4526 = vsel %vm3867, %v3600, -inf
      %v4527 = vrot.slane %v4526, 4
      %v4528 = vmax.f32 %v4526, %v4527
      %v4529 = vrot.slane %v4528, 2
      %v4530 = vmax.f32 %v4528, %v4529
      %v4531 = vrot.slane %v4530, 1
      %v4532 = vmax.f32 %v4530, %v4531
      %v4533 = vsel %vm3867, %v3602, -inf
      %v4534 = vrot.slane %v4533, 4
      %v4535 = vmax.f32 %v4533, %v4534
      %v4536 = vrot.slane %v4535, 2
      %v4537 = vmax.f32 %v4535, %v4536
      %v4538 = vrot.slane %v4537, 1
      %v4539 = vmax.f32 %v4537, %v4538
      %v4540 = vsel %vm3867, %v3610, -inf
      %v4541 = vrot.slane %v4540, 4
      %v4542 = vmax.f32 %v4540, %v4541
      %v4543 = vrot.slane %v4542, 2
      %v4544 = vmax.f32 %v4542, %v4543
      %v4545 = vrot.slane %v4544, 1
      %v4546 = vmax.f32 %v4544, %v4545
      %v4547 = vsel %vm3867, %v3618, -inf
      %v4548 = vrot.slane %v4547, 4
      %v4549 = vmax.f32 %v4547, %v4548
      %v4550 = vrot.slane %v4549, 2
      %v4551 = vmax.f32 %v4549, %v4550
      %v4552 = vrot.slane %v4551, 1
      %v4553 = vmax.f32 %v4551, %v4552
      %v4554 = vsel %vm3867, %v3617, -inf
      %v4555 = vrot.slane %v4554, 4
      %v4556 = vmax.f32 %v4554, %v4555
      %v4557 = vrot.slane %v4556, 2
      %v4558 = vmax.f32 %v4556, %v4557
      %v4559 = vrot.slane %v4558, 1
      %v4560 = vmax.f32 %v4558, %v4559
      %v4561 = vsel %vm3867, %v3619, -inf
      %v4562 = vrot.slane %v4561, 4
      %v4563 = vmax.f32 %v4561, %v4562
      %v4564 = vrot.slane %v4563, 2
      %v4565 = vmax.f32 %v4563, %v4564
      %v4566 = vrot.slane %v4565, 1
      %v4567 = vmax.f32 %v4565, %v4566
      %v4568 = vsel %vm3867, %v3627, -inf
      %v4569 = vrot.slane %v4568, 4
      %v4570 = vmax.f32 %v4568, %v4569
      %v4571 = vrot.slane %v4570, 2
      %v4572 = vmax.f32 %v4570, %v4571
      %v4573 = vrot.slane %v4572, 1
      %v4574 = vmax.f32 %v4572, %v4573
      %v4575 = vsel %vm3867, %v3635, -inf
      %v4576 = vrot.slane %v4575, 4
      %v4577 = vmax.f32 %v4575, %v4576
      %v4578 = vrot.slane %v4577, 2
      %v4579 = vmax.f32 %v4577, %v4578
      %v4580 = vrot.slane %v4579, 1
      %v4581 = vmax.f32 %v4579, %v4580
      %v4582 = vsel %vm3867, %v3634, -inf
      %v4583 = vrot.slane %v4582, 4
      %v4584 = vmax.f32 %v4582, %v4583
      %v4585 = vrot.slane %v4584, 2
      %v4586 = vmax.f32 %v4584, %v4585
      %v4587 = vrot.slane %v4586, 1
      %v4588 = vmax.f32 %v4586, %v4587
      %v4589 = vsel %vm3867, %v3636, -inf
      %v4590 = vrot.slane %v4589, 4
      %v4591 = vmax.f32 %v4589, %v4590
      %v4592 = vrot.slane %v4591, 2
      %v4593 = vmax.f32 %v4591, %v4592
      %v4594 = vrot.slane %v4593, 1
      %v4595 = vmax.f32 %v4593, %v4594
      %v4596 = vsel %vm3867, %v3644, -inf
      %v4597 = vrot.slane %v4596, 4
      %v4598 = vmax.f32 %v4596, %v4597
      %v4599 = vrot.slane %v4598, 2
      %v4600 = vmax.f32 %v4598, %v4599
      %v4601 = vrot.slane %v4600, 1
      %v4602 = vmax.f32 %v4600, %v4601
      %v4603 = vsel %vm3867, %v3652, -inf
      %v4604 = vrot.slane %v4603, 4
      %v4605 = vmax.f32 %v4603, %v4604
      %v4606 = vrot.slane %v4605, 2
      %v4607 = vmax.f32 %v4605, %v4606
      %v4608 = vrot.slane %v4607, 1
      %v4609 = vmax.f32 %v4607, %v4608
      %v4610 = vsel %vm3867, %v3651, -inf
      %v4611 = vrot.slane %v4610, 4
      %v4612 = vmax.f32 %v4610, %v4611
      %v4613 = vrot.slane %v4612, 2
      %v4614 = vmax.f32 %v4612, %v4613
      %v4615 = vrot.slane %v4614, 1
      %v4616 = vmax.f32 %v4614, %v4615
      %v4617 = vsel %vm3867, %v3653, -inf
      %v4618 = vrot.slane %v4617, 4
      %v4619 = vmax.f32 %v4617, %v4618
      %v4620 = vrot.slane %v4619, 2
      %v4621 = vmax.f32 %v4619, %v4620
      %v4622 = vrot.slane %v4621, 1
      %v4623 = vmax.f32 %v4621, %v4622
      %v4624 = vsel %vm3867, %v3661, -inf
      %v4625 = vrot.slane %v4624, 4
      %v4626 = vmax.f32 %v4624, %v4625
      %v4627 = vrot.slane %v4626, 2
      %v4628 = vmax.f32 %v4626, %v4627
      %v4629 = vrot.slane %v4628, 1
      %v4630 = vmax.f32 %v4628, %v4629
      %v4631 = vsel %vm3867, %v3669, -inf
      %v4632 = vrot.slane %v4631, 4
      %v4633 = vmax.f32 %v4631, %v4632
      %v4634 = vrot.slane %v4633, 2
      %v4635 = vmax.f32 %v4633, %v4634
      %v4636 = vrot.slane %v4635, 1
      %v4637 = vmax.f32 %v4635, %v4636
      %v4638 = vsel %vm3867, %v3668, -inf
      %v4639 = vrot.slane %v4638, 4
      %v4640 = vmax.f32 %v4638, %v4639
      %v4641 = vrot.slane %v4640, 2
      %v4642 = vmax.f32 %v4640, %v4641
      %v4643 = vrot.slane %v4642, 1
      %v4644 = vmax.f32 %v4642, %v4643
      %v4645 = vsel %vm3867, %v3670, -inf
      %v4646 = vrot.slane %v4645, 4
      %v4647 = vmax.f32 %v4645, %v4646
      %v4648 = vrot.slane %v4647, 2
      %v4649 = vmax.f32 %v4647, %v4648
      %v4650 = vrot.slane %v4649, 1
      %v4651 = vmax.f32 %v4649, %v4650
      %v4652 = vsel %vm3867, %v3678, -inf
      %v4653 = vrot.slane %v4652, 4
      %v4654 = vmax.f32 %v4652, %v4653
      %v4655 = vrot.slane %v4654, 2
      %v4656 = vmax.f32 %v4654, %v4655
      %v4657 = vrot.slane %v4656, 1
      %v4658 = vmax.f32 %v4656, %v4657
      %v4659 = vsel %vm3867, %v3686, -inf
      %v4660 = vrot.slane %v4659, 4
      %v4661 = vmax.f32 %v4659, %v4660
      %v4662 = vrot.slane %v4661, 2
      %v4663 = vmax.f32 %v4661, %v4662
      %v4664 = vrot.slane %v4663, 1
      %v4665 = vmax.f32 %v4663, %v4664
      %v4666 = vsel %vm3867, %v3685, -inf
      %v4667 = vrot.slane %v4666, 4
      %v4668 = vmax.f32 %v4666, %v4667
      %v4669 = vrot.slane %v4668, 2
      %v4670 = vmax.f32 %v4668, %v4669
      %v4671 = vrot.slane %v4670, 1
      %v4672 = vmax.f32 %v4670, %v4671
      %v4673 = vsel %vm3867, %v3687, -inf
      %v4674 = vrot.slane %v4673, 4
      %v4675 = vmax.f32 %v4673, %v4674
      %v4676 = vrot.slane %v4675, 2
      %v4677 = vmax.f32 %v4675, %v4676
      %v4678 = vrot.slane %v4677, 1
      %v4679 = vmax.f32 %v4677, %v4678
      %v4680 = vsel %vm3867, %v3695, -inf
      %v4681 = vrot.slane %v4680, 4
      %v4682 = vmax.f32 %v4680, %v4681
      %v4683 = vrot.slane %v4682, 2
      %v4684 = vmax.f32 %v4682, %v4683
      %v4685 = vrot.slane %v4684, 1
      %v4686 = vmax.f32 %v4684, %v4685
      %v4687 = vsel %vm3867, %v3703, -inf
      %v4688 = vrot.slane %v4687, 4
      %v4689 = vmax.f32 %v4687, %v4688
      %v4690 = vrot.slane %v4689, 2
      %v4691 = vmax.f32 %v4689, %v4690
      %v4692 = vrot.slane %v4691, 1
      %v4693 = vmax.f32 %v4691, %v4692
      %v4694 = vsel %vm3867, %v3702, -inf
      %v4695 = vrot.slane %v4694, 4
      %v4696 = vmax.f32 %v4694, %v4695
      %v4697 = vrot.slane %v4696, 2
      %v4698 = vmax.f32 %v4696, %v4697
      %v4699 = vrot.slane %v4698, 1
      %v4700 = vmax.f32 %v4698, %v4699
      %v4701 = vsel %vm3867, %v3704, -inf
      %v4702 = vrot.slane %v4701, 4
      %v4703 = vmax.f32 %v4701, %v4702
      %v4704 = vrot.slane %v4703, 2
      %v4705 = vmax.f32 %v4703, %v4704
      %v4706 = vrot.slane %v4705, 1
      %v4707 = vmax.f32 %v4705, %v4706
      %v4708 = vsel %vm3867, %v3712, -inf
      %v4709 = vrot.slane %v4708, 4
      %v4710 = vmax.f32 %v4708, %v4709
      %v4711 = vrot.slane %v4710, 2
      %v4712 = vmax.f32 %v4710, %v4711
      %v4713 = vrot.slane %v4712, 1
      %v4714 = vmax.f32 %v4712, %v4713
      %v4715 = vsel %vm3867, %v3720, -inf
      %v4716 = vrot.slane %v4715, 4
      %v4717 = vmax.f32 %v4715, %v4716
      %v4718 = vrot.slane %v4717, 2
      %v4719 = vmax.f32 %v4717, %v4718
      %v4720 = vrot.slane %v4719, 1
      %v4721 = vmax.f32 %v4719, %v4720
      %v4722 = vsel %vm3867, %v3719, -inf
      %v4723 = vrot.slane %v4722, 4
      %v4724 = vmax.f32 %v4722, %v4723
      %v4725 = vrot.slane %v4724, 2
      %v4726 = vmax.f32 %v4724, %v4725
      %v4727 = vrot.slane %v4726, 1
      %v4728 = vmax.f32 %v4726, %v4727
      %v4729 = vsel %vm3867, %v3721, -inf
      %v4730 = vrot.slane %v4729, 4
      %v4731 = vmax.f32 %v4729, %v4730
      %v4732 = vrot.slane %v4731, 2
      %v4733 = vmax.f32 %v4731, %v4732
      %v4734 = vrot.slane %v4733, 1
      %v4735 = vmax.f32 %v4733, %v4734
      %v4736 = vsel %vm3867, %v3729, -inf
      %v4737 = vrot.slane %v4736, 4
      %v4738 = vmax.f32 %v4736, %v4737
      %v4739 = vrot.slane %v4738, 2
      %v4740 = vmax.f32 %v4738, %v4739
      %v4741 = vrot.slane %v4740, 1
      %v4742 = vmax.f32 %v4740, %v4741
      %v4743 = vsel %vm3867, %v3737, -inf
      %v4744 = vrot.slane %v4743, 4
      %v4745 = vmax.f32 %v4743, %v4744
      %v4746 = vrot.slane %v4745, 2
      %v4747 = vmax.f32 %v4745, %v4746
      %v4748 = vrot.slane %v4747, 1
      %v4749 = vmax.f32 %v4747, %v4748
      %v4750 = vsel %vm3867, %v3736, -inf
      %v4751 = vrot.slane %v4750, 4
      %v4752 = vmax.f32 %v4750, %v4751
      %v4753 = vrot.slane %v4752, 2
      %v4754 = vmax.f32 %v4752, %v4753
      %v4755 = vrot.slane %v4754, 1
      %v4756 = vmax.f32 %v4754, %v4755
      %v4757 = vsel %vm3867, %v3738, -inf
      %v4758 = vrot.slane %v4757, 4
      %v4759 = vmax.f32 %v4757, %v4758
      %v4760 = vrot.slane %v4759, 2
      %v4761 = vmax.f32 %v4759, %v4760
      %v4762 = vrot.slane %v4761, 1
      %v4763 = vmax.f32 %v4761, %v4762
      %v4764 = vsel %vm709, %v3874, -inf
      %v4765 = vsel %vm709, %v3930, -inf
      %v4766 = vmax.f32 %v4764, %v4765
      %v4767 = vsel %vm709, %v3881, -inf
      %v4768 = vsel %vm709, %v3937, -inf
      %v4769 = vmax.f32 %v4767, %v4768
      %v4770 = vsel %vm709, %v3888, -inf
      %v4771 = vsel %vm709, %v3944, -inf
      %v4772 = vmax.f32 %v4770, %v4771
      %v4773 = vsel %vm709, %v3895, -inf
      %v4774 = vsel %vm709, %v3951, -inf
      %v4775 = vmax.f32 %v4773, %v4774
      %v4776 = vsel %vm709, %v3902, -inf
      %v4777 = vsel %vm709, %v3958, -inf
      %v4778 = vmax.f32 %v4776, %v4777
      %v4779 = vsel %vm709, %v3909, -inf
      %v4780 = vsel %vm709, %v3965, -inf
      %v4781 = vmax.f32 %v4779, %v4780
      %v4782 = vsel %vm709, %v3916, -inf
      %v4783 = vsel %vm709, %v3972, -inf
      %v4784 = vmax.f32 %v4782, %v4783
      %v4785 = vsel %vm709, %v3923, -inf
      %v4786 = vsel %vm709, %v3979, -inf
      %v4787 = vmax.f32 %v4785, %v4786
      %v4788 = vsel %vm709, %v3986, -inf
      %v4789 = vsel %vm709, %v4042, -inf
      %v4790 = vmax.f32 %v4788, %v4789
      %v4791 = vsel %vm709, %v3993, -inf
      %v4792 = vsel %vm709, %v4049, -inf
      %v4793 = vmax.f32 %v4791, %v4792
      %v4794 = vsel %vm709, %v4000, -inf
      %v4795 = vsel %vm709, %v4056, -inf
      %v4796 = vmax.f32 %v4794, %v4795
      %v4797 = vsel %vm709, %v4007, -inf
      %v4798 = vsel %vm709, %v4063, -inf
      %v4799 = vmax.f32 %v4797, %v4798
      %v4800 = vsel %vm709, %v4014, -inf
      %v4801 = vsel %vm709, %v4070, -inf
      %v4802 = vmax.f32 %v4800, %v4801
      %v4803 = vsel %vm709, %v4021, -inf
      %v4804 = vsel %vm709, %v4077, -inf
      %v4805 = vmax.f32 %v4803, %v4804
      %v4806 = vsel %vm709, %v4028, -inf
      %v4807 = vsel %vm709, %v4084, -inf
      %v4808 = vmax.f32 %v4806, %v4807
      %v4809 = vsel %vm709, %v4035, -inf
      %v4810 = vsel %vm709, %v4091, -inf
      %v4811 = vmax.f32 %v4809, %v4810
      %v4812 = vsel %vm709, %v4098, -inf
      %v4813 = vsel %vm709, %v4154, -inf
      %v4814 = vmax.f32 %v4812, %v4813
      %v4815 = vsel %vm709, %v4105, -inf
      %v4816 = vsel %vm709, %v4161, -inf
      %v4817 = vmax.f32 %v4815, %v4816
      %v4818 = vsel %vm709, %v4112, -inf
      %v4819 = vsel %vm709, %v4168, -inf
      %v4820 = vmax.f32 %v4818, %v4819
      %v4821 = vsel %vm709, %v4119, -inf
      %v4822 = vsel %vm709, %v4175, -inf
      %v4823 = vmax.f32 %v4821, %v4822
      %v4824 = vsel %vm709, %v4126, -inf
      %v4825 = vsel %vm709, %v4182, -inf
      %v4826 = vmax.f32 %v4824, %v4825
      %v4827 = vsel %vm709, %v4133, -inf
      %v4828 = vsel %vm709, %v4189, -inf
      %v4829 = vmax.f32 %v4827, %v4828
      %v4830 = vsel %vm709, %v4140, -inf
      %v4831 = vsel %vm709, %v4196, -inf
      %v4832 = vmax.f32 %v4830, %v4831
      %v4833 = vsel %vm709, %v4147, -inf
      %v4834 = vsel %vm709, %v4203, -inf
      %v4835 = vmax.f32 %v4833, %v4834
      %v4836 = vsel %vm709, %v4210, -inf
      %v4837 = vsel %vm709, %v4266, -inf
      %v4838 = vmax.f32 %v4836, %v4837
      %v4839 = vsel %vm709, %v4217, -inf
      %v4840 = vsel %vm709, %v4273, -inf
      %v4841 = vmax.f32 %v4839, %v4840
      %v4842 = vsel %vm709, %v4224, -inf
      %v4843 = vsel %vm709, %v4280, -inf
      %v4844 = vmax.f32 %v4842, %v4843
      %v4845 = vsel %vm709, %v4231, -inf
      %v4846 = vsel %vm709, %v4287, -inf
      %v4847 = vmax.f32 %v4845, %v4846
      %v4848 = vsel %vm709, %v4238, -inf
      %v4849 = vsel %vm709, %v4294, -inf
      %v4850 = vmax.f32 %v4848, %v4849
      %v4851 = vsel %vm709, %v4245, -inf
      %v4852 = vsel %vm709, %v4301, -inf
      %v4853 = vmax.f32 %v4851, %v4852
      %v4854 = vsel %vm709, %v4252, -inf
      %v4855 = vsel %vm709, %v4308, -inf
      %v4856 = vmax.f32 %v4854, %v4855
      %v4857 = vsel %vm709, %v4259, -inf
      %v4858 = vsel %vm709, %v4315, -inf
      %v4859 = vmax.f32 %v4857, %v4858
      %v4860 = vsel %vm709, %v4322, -inf
      %v4861 = vsel %vm709, %v4378, -inf
      %v4862 = vmax.f32 %v4860, %v4861
      %v4863 = vsel %vm709, %v4329, -inf
      %v4864 = vsel %vm709, %v4385, -inf
      %v4865 = vmax.f32 %v4863, %v4864
      %v4866 = vsel %vm709, %v4336, -inf
      %v4867 = vsel %vm709, %v4392, -inf
      %v4868 = vmax.f32 %v4866, %v4867
      %v4869 = vsel %vm709, %v4343, -inf
      %v4870 = vsel %vm709, %v4399, -inf
      %v4871 = vmax.f32 %v4869, %v4870
      %v4872 = vsel %vm709, %v4350, -inf
      %v4873 = vsel %vm709, %v4406, -inf
      %v4874 = vmax.f32 %v4872, %v4873
      %v4875 = vsel %vm709, %v4357, -inf
      %v4876 = vsel %vm709, %v4413, -inf
      %v4877 = vmax.f32 %v4875, %v4876
      %v4878 = vsel %vm709, %v4364, -inf
      %v4879 = vsel %vm709, %v4420, -inf
      %v4880 = vmax.f32 %v4878, %v4879
      %v4881 = vsel %vm709, %v4371, -inf
      %v4882 = vsel %vm709, %v4427, -inf
      %v4883 = vmax.f32 %v4881, %v4882
      %v4884 = vsel %vm709, %v4434, -inf
      %v4885 = vsel %vm709, %v4490, -inf
      %v4886 = vmax.f32 %v4884, %v4885
      %v4887 = vsel %vm709, %v4441, -inf
      %v4888 = vsel %vm709, %v4497, -inf
      %v4889 = vmax.f32 %v4887, %v4888
      %v4890 = vsel %vm709, %v4448, -inf
      %v4891 = vsel %vm709, %v4504, -inf
      %v4892 = vmax.f32 %v4890, %v4891
      %v4893 = vsel %vm709, %v4455, -inf
      %v4894 = vsel %vm709, %v4511, -inf
      %v4895 = vmax.f32 %v4893, %v4894
      %v4896 = vsel %vm709, %v4462, -inf
      %v4897 = vsel %vm709, %v4518, -inf
      %v4898 = vmax.f32 %v4896, %v4897
      %v4899 = vsel %vm709, %v4469, -inf
      %v4900 = vsel %vm709, %v4525, -inf
      %v4901 = vmax.f32 %v4899, %v4900
      %v4902 = vsel %vm709, %v4476, -inf
      %v4903 = vsel %vm709, %v4532, -inf
      %v4904 = vmax.f32 %v4902, %v4903
      %v4905 = vsel %vm709, %v4483, -inf
      %v4906 = vsel %vm709, %v4539, -inf
      %v4907 = vmax.f32 %v4905, %v4906
      %v4908 = vsel %vm709, %v4546, -inf
      %v4909 = vsel %vm709, %v4602, -inf
      %v4910 = vmax.f32 %v4908, %v4909
      %v4911 = vsel %vm709, %v4553, -inf
      %v4912 = vsel %vm709, %v4609, -inf
      %v4913 = vmax.f32 %v4911, %v4912
      %v4914 = vsel %vm709, %v4560, -inf
      %v4915 = vsel %vm709, %v4616, -inf
      %v4916 = vmax.f32 %v4914, %v4915
      %v4917 = vsel %vm709, %v4567, -inf
      %v4918 = vsel %vm709, %v4623, -inf
      %v4919 = vmax.f32 %v4917, %v4918
      %v4920 = vsel %vm709, %v4574, -inf
      %v4921 = vsel %vm709, %v4630, -inf
      %v4922 = vmax.f32 %v4920, %v4921
      %v4923 = vsel %vm709, %v4581, -inf
      %v4924 = vsel %vm709, %v4637, -inf
      %v4925 = vmax.f32 %v4923, %v4924
      %v4926 = vsel %vm709, %v4588, -inf
      %v4927 = vsel %vm709, %v4644, -inf
      %v4928 = vmax.f32 %v4926, %v4927
      %v4929 = vsel %vm709, %v4595, -inf
      %v4930 = vsel %vm709, %v4651, -inf
      %v4931 = vmax.f32 %v4929, %v4930
      %v4932 = vsel %vm709, %v4658, -inf
      %v4933 = vsel %vm709, %v4714, -inf
      %v4934 = vmax.f32 %v4932, %v4933
      %v4935 = vsel %vm709, %v4665, -inf
      %v4936 = vsel %vm709, %v4721, -inf
      %v4937 = vmax.f32 %v4935, %v4936
      %v4938 = vsel %vm709, %v4672, -inf
      %v4939 = vsel %vm709, %v4728, -inf
      %v4940 = vmax.f32 %v4938, %v4939
      %v4941 = vsel %vm709, %v4679, -inf
      %v4942 = vsel %vm709, %v4735, -inf
      %v4943 = vmax.f32 %v4941, %v4942
      %v4944 = vsel %vm709, %v4686, -inf
      %v4945 = vsel %vm709, %v4742, -inf
      %v4946 = vmax.f32 %v4944, %v4945
      %v4947 = vsel %vm709, %v4693, -inf
      %v4948 = vsel %vm709, %v4749, -inf
      %v4949 = vmax.f32 %v4947, %v4948
      %v4950 = vsel %vm709, %v4700, -inf
      %v4951 = vsel %vm709, %v4756, -inf
      %v4952 = vmax.f32 %v4950, %v4951
      %v4953 = vsel %vm709, %v4707, -inf
      %v4954 = vsel %vm709, %v4763, -inf
      %v4955 = vmax.f32 %v4953, %v4954
      %v4956 = vpack.c.bf16 %v4766, %v4766
      %v4957 = vpack.c.bf16 %v4769, %v4769
      %v4958 = vpack.c.bf16 %v4772, %v4772
      %v4959 = vpack.c.bf16 %v4775, %v4775
      %v4960 = vpack.c.bf16 %v4778, %v4778
      %v4961 = vpack.c.bf16 %v4781, %v4781
      %v4962 = vpack.c.bf16 %v4784, %v4784
      %v4963 = vpack.c.bf16 %v4787, %v4787
      %v4964 = vpack.c.bf16 %v4790, %v4790
      %v4965 = vpack.c.bf16 %v4793, %v4793
      %v4966 = vpack.c.bf16 %v4796, %v4796
      %v4967 = vpack.c.bf16 %v4799, %v4799
      %v4968 = vpack.c.bf16 %v4802, %v4802
      %v4969 = vpack.c.bf16 %v4805, %v4805
      %v4970 = vpack.c.bf16 %v4808, %v4808
      %v4971 = vpack.c.bf16 %v4811, %v4811
      %v4972 = vpack.c.bf16 %v4814, %v4814
      %v4973 = vpack.c.bf16 %v4817, %v4817
      %v4974 = vpack.c.bf16 %v4820, %v4820
      %v4975 = vpack.c.bf16 %v4823, %v4823
      %v4976 = vpack.c.bf16 %v4826, %v4826
      %v4977 = vpack.c.bf16 %v4829, %v4829
      %v4978 = vpack.c.bf16 %v4832, %v4832
      %v4979 = vpack.c.bf16 %v4835, %v4835
      %v4980 = vpack.c.bf16 %v4838, %v4838
      %v4981 = vpack.c.bf16 %v4841, %v4841
      %v4982 = vpack.c.bf16 %v4844, %v4844
      %v4983 = vpack.c.bf16 %v4847, %v4847
      %v4984 = vpack.c.bf16 %v4850, %v4850
      %v4985 = vpack.c.bf16 %v4853, %v4853
      %v4986 = vpack.c.bf16 %v4856, %v4856
      %v4987 = vpack.c.bf16 %v4859, %v4859
      %v4988 = vpack.c.bf16 %v4862, %v4862
      %v4989 = vpack.c.bf16 %v4865, %v4865
      %v4990 = vpack.c.bf16 %v4868, %v4868
      %v4991 = vpack.c.bf16 %v4871, %v4871
      %v4992 = vpack.c.bf16 %v4874, %v4874
      %v4993 = vpack.c.bf16 %v4877, %v4877
      %v4994 = vpack.c.bf16 %v4880, %v4880
      %v4995 = vpack.c.bf16 %v4883, %v4883
      %v4996 = vpack.c.bf16 %v4886, %v4886
      %v4997 = vpack.c.bf16 %v4889, %v4889
      %v4998 = vpack.c.bf16 %v4892, %v4892
      %v4999 = vpack.c.bf16 %v4895, %v4895
      %v5000 = vpack.c.bf16 %v4898, %v4898
      %v5001 = vpack.c.bf16 %v4901, %v4901
      %v5002 = vpack.c.bf16 %v4904, %v4904
      %v5003 = vpack.c.bf16 %v4907, %v4907
      %v5004 = vpack.c.bf16 %v4910, %v4910
      %v5005 = vpack.c.bf16 %v4913, %v4913
      %v5006 = vpack.c.bf16 %v4916, %v4916
      %v5007 = vpack.c.bf16 %v4919, %v4919
      %v5008 = vpack.c.bf16 %v4922, %v4922
      %v5009 = vpack.c.bf16 %v4925, %v4925
      %v5010 = vpack.c.bf16 %v4928, %v4928
      %v5011 = vpack.c.bf16 %v4931, %v4931
      %v5012 = vpack.c.bf16 %v4934, %v4934
      %v5013 = vpack.c.bf16 %v4937, %v4937
      %v5014 = vpack.c.bf16 %v4940, %v4940
      %v5015 = vpack.c.bf16 %v4943, %v4943
      %v5016 = vpack.c.bf16 %v4946, %v4946
      %v5017 = vpack.c.bf16 %v4949, %v4949
      %v5018 = vpack.c.bf16 %v4952, %v4952
      %v5019 = vpack.c.bf16 %v4955, %v4955
      %v5084 = vunpack.c.l.b16 %v4956
      %v5085 = vunpack.c.l.b16 %v4957
      %v5086 = vunpack.c.l.b16 %v4958
      %v5087 = vunpack.c.l.b16 %v4959
      %v5088 = vunpack.c.l.b16 %v4960
      %v5089 = vunpack.c.l.b16 %v4961
      %v5090 = vunpack.c.l.b16 %v4962
      %v5091 = vunpack.c.l.b16 %v4963
      %v5092 = vunpack.c.l.b16 %v4964
      %v5093 = vunpack.c.l.b16 %v4965
      %v5094 = vunpack.c.l.b16 %v4966
      %v5095 = vunpack.c.l.b16 %v4967
      %v5096 = vunpack.c.l.b16 %v4968
      %v5097 = vunpack.c.l.b16 %v4969
      %v5098 = vunpack.c.l.b16 %v4970
      %v5099 = vunpack.c.l.b16 %v4971
      %v5100 = vunpack.c.l.b16 %v4972
      %v5101 = vunpack.c.l.b16 %v4973
      %v5102 = vunpack.c.l.b16 %v4974
      %v5103 = vunpack.c.l.b16 %v4975
      %v5104 = vunpack.c.l.b16 %v4976
      %v5105 = vunpack.c.l.b16 %v4977
      %v5106 = vunpack.c.l.b16 %v4978
      %v5107 = vunpack.c.l.b16 %v4979
      %v5108 = vunpack.c.l.b16 %v4980
      %v5109 = vunpack.c.l.b16 %v4981
      %v5110 = vunpack.c.l.b16 %v4982
      %v5111 = vunpack.c.l.b16 %v4983
      %v5112 = vunpack.c.l.b16 %v4984
      %v5113 = vunpack.c.l.b16 %v4985
      %v5114 = vunpack.c.l.b16 %v4986
      %v5115 = vunpack.c.l.b16 %v4987
      %v5116 = vunpack.c.l.b16 %v4988
      %v5117 = vunpack.c.l.b16 %v4989
      %v5118 = vunpack.c.l.b16 %v4990
      %v5119 = vunpack.c.l.b16 %v4991
      %v5120 = vunpack.c.l.b16 %v4992
      %v5121 = vunpack.c.l.b16 %v4993
      %v5122 = vunpack.c.l.b16 %v4994
      %v5123 = vunpack.c.l.b16 %v4995
      %v5124 = vunpack.c.l.b16 %v4996
      %v5125 = vunpack.c.l.b16 %v4997
      %v5126 = vunpack.c.l.b16 %v4998
      %v5127 = vunpack.c.l.b16 %v4999
      %v5128 = vunpack.c.l.b16 %v5000
      %v5129 = vunpack.c.l.b16 %v5001
      %v5130 = vunpack.c.l.b16 %v5002
      %v5131 = vunpack.c.l.b16 %v5003
      %v5132 = vunpack.c.l.b16 %v5004
      %v5133 = vunpack.c.l.b16 %v5005
      %v5134 = vunpack.c.l.b16 %v5006
      %v5135 = vunpack.c.l.b16 %v5007
      %v5136 = vunpack.c.l.b16 %v5008
      %v5137 = vunpack.c.l.b16 %v5009
      %v5138 = vunpack.c.l.b16 %v5010
      %v5139 = vunpack.c.l.b16 %v5011
      %v5140 = vunpack.c.l.b16 %v5012
      %v5141 = vunpack.c.l.b16 %v5013
      %v5142 = vunpack.c.l.b16 %v5014
      %v5143 = vunpack.c.l.b16 %v5015
      %v5144 = vunpack.c.l.b16 %v5016
      %v5145 = vunpack.c.l.b16 %v5017
      %v5146 = vunpack.c.l.b16 %v5018
      %v5147 = vunpack.c.l.b16 %v5019
      %v5148 = vpack.c.b16 %v5084, %v5084
      %v5149 = vpack.c.b16 %v5085, %v5085
      %v5150 = vpack.c.b16 %v5086, %v5086
      %v5151 = vpack.c.b16 %v5087, %v5087
      %v5152 = vpack.c.b16 %v5088, %v5088
      %v5153 = vpack.c.b16 %v5089, %v5089
      %v5154 = vpack.c.b16 %v5090, %v5090
      %v5155 = vpack.c.b16 %v5091, %v5091
      %v5156 = vpack.c.b16 %v5092, %v5092
      %v5157 = vpack.c.b16 %v5093, %v5093
      %v5158 = vpack.c.b16 %v5094, %v5094
      %v5159 = vpack.c.b16 %v5095, %v5095
      %v5160 = vpack.c.b16 %v5096, %v5096
      %v5161 = vpack.c.b16 %v5097, %v5097
      %v5162 = vpack.c.b16 %v5098, %v5098
      %v5163 = vpack.c.b16 %v5099, %v5099
      %v5164 = vpack.c.b16 %v5100, %v5100
      %v5165 = vpack.c.b16 %v5101, %v5101
      %v5166 = vpack.c.b16 %v5102, %v5102
      %v5167 = vpack.c.b16 %v5103, %v5103
      %v5168 = vpack.c.b16 %v5104, %v5104
      %v5169 = vpack.c.b16 %v5105, %v5105
      %v5170 = vpack.c.b16 %v5106, %v5106
      %v5171 = vpack.c.b16 %v5107, %v5107
      %v5172 = vpack.c.b16 %v5108, %v5108
      %v5173 = vpack.c.b16 %v5109, %v5109
      %v5174 = vpack.c.b16 %v5110, %v5110
      %v5175 = vpack.c.b16 %v5111, %v5111
      %v5176 = vpack.c.b16 %v5112, %v5112
      %v5177 = vpack.c.b16 %v5113, %v5113
      %v5178 = vpack.c.b16 %v5114, %v5114
      %v5179 = vpack.c.b16 %v5115, %v5115
      %v5180 = vpack.c.b16 %v5116, %v5116
      %v5181 = vpack.c.b16 %v5117, %v5117
      %v5182 = vpack.c.b16 %v5118, %v5118
      %v5183 = vpack.c.b16 %v5119, %v5119
      %v5184 = vpack.c.b16 %v5120, %v5120
      %v5185 = vpack.c.b16 %v5121, %v5121
      %v5186 = vpack.c.b16 %v5122, %v5122
      %v5187 = vpack.c.b16 %v5123, %v5123
      %v5188 = vpack.c.b16 %v5124, %v5124
      %v5189 = vpack.c.b16 %v5125, %v5125
      %v5190 = vpack.c.b16 %v5126, %v5126
      %v5191 = vpack.c.b16 %v5127, %v5127
      %v5192 = vpack.c.b16 %v5128, %v5128
      %v5193 = vpack.c.b16 %v5129, %v5129
      %v5194 = vpack.c.b16 %v5130, %v5130
      %v5195 = vpack.c.b16 %v5131, %v5131
      %v5196 = vpack.c.b16 %v5132, %v5132
      %v5197 = vpack.c.b16 %v5133, %v5133
      %v5198 = vpack.c.b16 %v5134, %v5134
      %v5199 = vpack.c.b16 %v5135, %v5135
      %v5200 = vpack.c.b16 %v5136, %v5136
      %v5201 = vpack.c.b16 %v5137, %v5137
      %v5202 = vpack.c.b16 %v5138, %v5138
      %v5203 = vpack.c.b16 %v5139, %v5139
      %v5204 = vpack.c.b16 %v5140, %v5140
      %v5205 = vpack.c.b16 %v5141, %v5141
      %v5206 = vpack.c.b16 %v5142, %v5142
      %v5207 = vpack.c.b16 %v5143, %v5143
      %v5208 = vpack.c.b16 %v5144, %v5144
      %v5209 = vpack.c.b16 %v5145, %v5145
      %v5210 = vpack.c.b16 %v5146, %v5146
      %v5211 = vpack.c.b16 %v5147, %v5147
      %v5212 = vunpack.c.l.b16 %v5148
      %v5213 = vunpack.c.l.b16 %v5149
      %v5214 = vunpack.c.l.b16 %v5150
      %v5215 = vunpack.c.l.b16 %v5151
      %v5216 = vunpack.c.l.b16 %v5152
      %v5217 = vunpack.c.l.b16 %v5153
      %v5218 = vunpack.c.l.b16 %v5154
      %v5219 = vunpack.c.l.b16 %v5155
      %v5220 = vunpack.c.l.b16 %v5156
      %v5221 = vunpack.c.l.b16 %v5157
      %v5222 = vunpack.c.l.b16 %v5158
      %v5223 = vunpack.c.l.b16 %v5159
      %v5224 = vunpack.c.l.b16 %v5160
      %v5225 = vunpack.c.l.b16 %v5161
      %v5226 = vunpack.c.l.b16 %v5162
      %v5227 = vunpack.c.l.b16 %v5163
      %v5228 = vunpack.c.l.b16 %v5164
      %v5229 = vunpack.c.l.b16 %v5165
      %v5230 = vunpack.c.l.b16 %v5166
      %v5231 = vunpack.c.l.b16 %v5167
      %v5232 = vunpack.c.l.b16 %v5168
      %v5233 = vunpack.c.l.b16 %v5169
      %v5234 = vunpack.c.l.b16 %v5170
      %v5235 = vunpack.c.l.b16 %v5171
      %v5236 = vunpack.c.l.b16 %v5172
      %v5237 = vunpack.c.l.b16 %v5173
      %v5238 = vunpack.c.l.b16 %v5174
      %v5239 = vunpack.c.l.b16 %v5175
      %v5240 = vunpack.c.l.b16 %v5176
      %v5241 = vunpack.c.l.b16 %v5177
      %v5242 = vunpack.c.l.b16 %v5178
      %v5243 = vunpack.c.l.b16 %v5179
      %v5244 = vunpack.c.l.b16 %v5180
      %v5245 = vunpack.c.l.b16 %v5181
      %v5246 = vunpack.c.l.b16 %v5182
      %v5247 = vunpack.c.l.b16 %v5183
      %v5248 = vunpack.c.l.b16 %v5184
      %v5249 = vunpack.c.l.b16 %v5185
      %v5250 = vunpack.c.l.b16 %v5186
      %v5251 = vunpack.c.l.b16 %v5187
      %v5252 = vunpack.c.l.b16 %v5188
      %v5253 = vunpack.c.l.b16 %v5189
      %v5254 = vunpack.c.l.b16 %v5190
      %v5255 = vunpack.c.l.b16 %v5191
      %v5256 = vunpack.c.l.b16 %v5192
      %v5257 = vunpack.c.l.b16 %v5193
      %v5258 = vunpack.c.l.b16 %v5194
      %v5259 = vunpack.c.l.b16 %v5195
      %v5260 = vunpack.c.l.b16 %v5196
      %v5261 = vunpack.c.l.b16 %v5197
      %v5262 = vunpack.c.l.b16 %v5198
      %v5263 = vunpack.c.l.b16 %v5199
      %v5264 = vunpack.c.l.b16 %v5200
      %v5265 = vunpack.c.l.b16 %v5201
      %v5266 = vunpack.c.l.b16 %v5202
      %v5267 = vunpack.c.l.b16 %v5203
      %v5268 = vunpack.c.l.b16 %v5204
      %v5269 = vunpack.c.l.b16 %v5205
      %v5270 = vunpack.c.l.b16 %v5206
      %v5271 = vunpack.c.l.b16 %v5207
      %v5272 = vunpack.c.l.b16 %v5208
      %v5273 = vunpack.c.l.b16 %v5209
      %v5274 = vunpack.c.l.b16 %v5210
      %v5275 = vunpack.c.l.b16 %v5211
      %vm5276 = vcmask 1041409
      %v5277 = vsel %vm5276, %v5213, %v5212
      %vm5278 = vcmask 1042434
      %v5279 = vsel %vm5278, %v5214, %v5277
      %vm5280 = vcmask 1043459
      %v5281 = vsel %vm5280, %v5215, %v5279
      %vm5282 = vcmask 1044484
      %v5283 = vsel %vm5282, %v5216, %v5281
      %vm5284 = vcmask 1045509
      %v5285 = vsel %vm5284, %v5217, %v5283
      %vm5286 = vcmask 1046534
      %v5287 = vsel %vm5286, %v5218, %v5285
      %vm5288 = vcmask 1047559
      %v5289 = vsel %vm5288, %v5219, %v5287
      %v5290 = vsel %vm5276, %v5221, %v5220
      %v5291 = vsel %vm5278, %v5222, %v5290
      %v5292 = vsel %vm5280, %v5223, %v5291
      %v5293 = vsel %vm5282, %v5224, %v5292
      %v5294 = vsel %vm5284, %v5225, %v5293
      %v5295 = vsel %vm5286, %v5226, %v5294
      %v5296 = vsel %vm5288, %v5227, %v5295
      %v5297 = vsel %vm5276, %v5229, %v5228
      %v5298 = vsel %vm5278, %v5230, %v5297
      %v5299 = vsel %vm5280, %v5231, %v5298
      %v5300 = vsel %vm5282, %v5232, %v5299
      %v5301 = vsel %vm5284, %v5233, %v5300
      %v5302 = vsel %vm5286, %v5234, %v5301
      %v5303 = vsel %vm5288, %v5235, %v5302
      %v5304 = vsel %vm5276, %v5237, %v5236
      %v5305 = vsel %vm5278, %v5238, %v5304
      %v5306 = vsel %vm5280, %v5239, %v5305
      %v5307 = vsel %vm5282, %v5240, %v5306
      %v5308 = vsel %vm5284, %v5241, %v5307
      %v5309 = vsel %vm5286, %v5242, %v5308
      %v5310 = vsel %vm5288, %v5243, %v5309
      %v5311 = vsel %vm5276, %v5245, %v5244
      %v5312 = vsel %vm5278, %v5246, %v5311
      %v5313 = vsel %vm5280, %v5247, %v5312
      %v5314 = vsel %vm5282, %v5248, %v5313
      %v5315 = vsel %vm5284, %v5249, %v5314
      %v5316 = vsel %vm5286, %v5250, %v5315
      %v5317 = vsel %vm5288, %v5251, %v5316
      %v5318 = vsel %vm5276, %v5253, %v5252
      %v5319 = vsel %vm5278, %v5254, %v5318
      %v5320 = vsel %vm5280, %v5255, %v5319
      %v5321 = vsel %vm5282, %v5256, %v5320
      %v5322 = vsel %vm5284, %v5257, %v5321
      %v5323 = vsel %vm5286, %v5258, %v5322
      %v5324 = vsel %vm5288, %v5259, %v5323
      %v5325 = vsel %vm5276, %v5261, %v5260
      %v5326 = vsel %vm5278, %v5262, %v5325
      %v5327 = vsel %vm5280, %v5263, %v5326
      %v5328 = vsel %vm5282, %v5264, %v5327
      %v5329 = vsel %vm5284, %v5265, %v5328
      %v5330 = vsel %vm5286, %v5266, %v5329
      %v5331 = vsel %vm5288, %v5267, %v5330
      %v5332 = vsel %vm5276, %v5269, %v5268
      %v5333 = vsel %vm5278, %v5270, %v5332
      %v5334 = vsel %vm5280, %v5271, %v5333
      %v5335 = vsel %vm5282, %v5272, %v5334
      %v5336 = vsel %vm5284, %v5273, %v5335
      %v5337 = vsel %vm5286, %v5274, %v5336
      %v5338 = vsel %vm5288, %v5275, %v5337
      %v5339 = vpack.c.b16 %v5289, %v5289
      %v5340 = vpack.c.b16 %v5296, %v5296
      %v5341 = vpack.c.b16 %v5303, %v5303
      %v5342 = vpack.c.b16 %v5310, %v5310
      %v5343 = vpack.c.b16 %v5317, %v5317
      %v5344 = vpack.c.b16 %v5324, %v5324
      %v5345 = vpack.c.b16 %v5331, %v5331
      %v5346 = vpack.c.b16 %v5338, %v5338
      %vm5355 = vcmask 257024
      %5356 = vst.msk [vmem:[%s197] sm:$0xf] %vm5355, %v5339
      %5357 = vst.msk [vmem:[%s197 + $0x4] sm:$0xf] %vm5355, %v5340
      %5358 = vst.msk [vmem:[%s197 + $0x8] sm:$0xf] %vm5355, %v5341
      %5359 = vst.msk [vmem:[%s197 + $0xc] sm:$0xf] %vm5355, %v5342
      %5360 = vst.msk [vmem:[%s197 + $0x10] sm:$0xf] %vm5355, %v5343
      %5361 = vst.msk [vmem:[%s197 + $0x14] sm:$0xf] %vm5355, %v5344
      %5362 = vst.msk [vmem:[%s197 + $0x18] sm:$0xf] %vm5355, %v5345
      %5363 = vst.msk [vmem:[%s197 + $0x1c] sm:$0xf] %vm5355, %v5346
      %p5364 = scmp.lt.s32.totalorder %s15, 1
      %s5365 = scalar_select %p5364, %s15, 1
      %s5366 = smul.addr %s5365, 8
      %s5367 = smul.addr %s5366, 4
      %s5368 = scalar_lea.vmem %s4, %s5367
      // Predicated region
      $region37: #{sam2_classifier_forward.5} parent=35 // pred_check
        %p5369 = pneg %p122
      $region38: #{sam2_classifier_forward.5} parent=35 // pred_check_branch
        %5371 = sbr.rel (%p5369) target = $region40
      $region39: #{sam2_classifier_forward.5} parent=35 // pred_region
        _
      $region40: #{sam2_classifier_forward.5} parent=35 // pred_fallthru
        _
    $region36: #{sam2_classifier_forward.5} parent=5 // pred_fallthru
      _
    %p5372 = scmp.le.s32.totalorder 2, %s10
    // Predicated region
    $region41: #{sam2_classifier_forward.5} parent=5 // pred_check
      %p5373 = pneg %p5372
    $region42: #{sam2_classifier_forward.5} parent=5 // pred_check_branch
      %5375 = sbr.rel (%p5373) target = $region44
    $region43: #{sam2_classifier_forward.5} parent=5 // pred_region
      %s5376 = ssub.s32 %s10, 2
      // Predicated region
      $region45: #{sam2_classifier_forward.5} parent=43 // pred_check
        %p5377 = pneg %p128
      $region46: #{sam2_classifier_forward.5} parent=43 // pred_check_branch
        %5379 = sbr.rel (%p5377) target = $region48
      $region47: #{sam2_classifier_forward.5} parent=43 // pred_region
        %p5380 = scmp.lt.s32.totalorder %s16, 1
        %s5381 = scalar_select %p5380, %s16, 1
        %s5382 = smul.addr %s5381, 8
        %s5383 = smul.addr %s5382, 4
        %s5384 = scalar_lea.vmem %s4, %s5383
      $region48: #{sam2_classifier_forward.5} parent=43 // pred_fallthru
        _
    $region44: #{sam2_classifier_forward.5} parent=5 // pred_fallthru
      _
  $region6: #{sam2_classifier_forward.5} parent=0 // loop_footer
    %s14 = sadd.s32 1, %s10
  $region7: #{sam2_classifier_forward.5} parent=0 // loop_footer_branch
    %9 = sbr.rel target = $region3
  $region8: #{sam2_classifier_forward.5} parent=0 // loop_exit
    _

</llo_original>
